<compile_context>
chip_gen: v6e
topology: v6e:2x2x1
jax: 0.10.0
libtpu: 0.0.40
codegen_flags: <defaults>
</compile_context>

<pallas_src>
import functools

import jax
import jax.numpy as jnp
from jax import lax
from jax.experimental import pallas as pl
from jax.experimental.pallas import tpu as pltpu


# --------------------------------------------------------------------------
# feature probe: single-buffered BlockSpecs (pipeline_mode=pl.Buffered(1))
# --------------------------------------------------------------------------
def _probe_single_buffer():
    if not hasattr(pl, "Buffered"):
        return False
    try:
        def copy_kernel(x_ref, o_ref):
            o_ref[...] = x_ref[...]
        spec = pl.BlockSpec((8, 128), lambda i: (i, 0),
                            pipeline_mode=pl.Buffered(1))
        fn = pl.pallas_call(
            copy_kernel,
            out_shape=jax.ShapeDtypeStruct((8, 128), jnp.float32),
            grid=(1,),
            in_specs=[spec],
            out_specs=pl.BlockSpec((8, 128), lambda i: (i, 0)))
        jax.block_until_ready(fn(jnp.zeros((8, 128), jnp.float32)))
        return True
    except Exception:
        return False


_SINGLE_BUFFER_OK = _probe_single_buffer()


def _spec(shape, index_map, *, single_buffer=False):
    """BlockSpec; single-buffer revisited/constant blocks when supported."""
    if single_buffer and _SINGLE_BUFFER_OK:
        return pl.BlockSpec(shape, index_map, pipeline_mode=pl.Buffered(1))
    return pl.BlockSpec(shape, index_map)


# --------------------------------------------------------------------------
# tiling helpers
# --------------------------------------------------------------------------
def _row_tile(rows, target):
    """Largest tile that divides `rows` exactly (multiple of 8, or full dim)."""
    if rows <= target:
        return rows
    cand = (min(target, rows) // 8) * 8
    while cand >= 8:
        if rows % cand == 0:
            return cand
        cand -= 8
    return rows  # fall back to a single full-size tile


def _kv_row_tile(rows, c_in, c_out, budget=20 << 20):
    """Row tile for the kv kernel, sized against an explicit VMEM budget."""
    # resident weights (single-buffered bf16) + bias / LayerNorm vectors
    fixed = (c_in * c_out + 2 * c_out * c_out) * 2 + 4 * c_out * 4
    # per row: bf16 input tile (double buffered) + two bf16 output tiles
    # (double buffered) + f32 LayerNorm temporaries
    per_row = 4 * c_in + 8 * c_out + 12 * c_out
    target = max(8, (budget - fixed) // per_row)
    if rows >= 16:                       # prefer >=2 grid steps (megacore)
        target = min(target, max(8, rows // 2))
    return _row_tile(rows, min(1024, target))


def _attn_row_tile(n, c, m, heads, budget=20 << 20):
    """Query-row tile for the attention kernel (VMEM-budget aware)."""
    m_pad = max(128, ((m + 127) // 128) * 128)
    fixed = (2 * m * c * 2                 # k, v blocks (bf16)
             + 2 * c * c * 2               # q_w (head-major) + proj_w (bf16)
             + 2 * heads * c * m_pad * 2   # W_qk / VW scratches (bf16)
             + 4 * c * 4)                  # bias etc.
    # per row: bf16 x / out tiles (double buffered) + f32 acc scratch
    # + f32 score/prob temporaries (lane-padded to >=128)
    per_row = 4 * c + 4 * c + 4 * c + 8 * m_pad
    target = max(8, (budget - fixed) // per_row)
    return _row_tile(n, min(1024, target))


def patchify(x_nchw, ps):
    """Strided conv (kernel==stride) lowering: NCHW -> (B*Hp*Wp, C*ps*ps).

    Column order is (c, ki, kj), i.e. the flattened torch Conv2d weight layout.
    """
    B, C, H, W = x_nchw.shape
    Hp, Wp = H // ps, W // ps
    x = x_nchw.reshape(B, C, Hp, ps, Wp, ps)
    x = x.transpose(0, 2, 4, 1, 3, 5)                 # (B, Hp, Wp, C, ps, ps)
    return x.reshape(B * Hp * Wp, C * ps * ps), Hp, Wp


# --------------------------------------------------------------------------
# kernel 1: kv side  (optional sr-conv + LayerNorm) + k/v projections
# --------------------------------------------------------------------------
def _kv_plain_kernel(x_ref, kw_ref, vw_ref, k_ref, v_ref):
    xb = x_ref[...]                                    # (tm, C) bf16
    k_ref[...] = jnp.dot(xb, kw_ref[...],
                         preferred_element_type=jnp.float32).astype(k_ref.dtype)
    v_ref[...] = jnp.dot(xb, vw_ref[...],
                         preferred_element_type=jnp.float32).astype(v_ref.dtype)


def _kv_sr_kernel(xr_ref, srw_ref, srb_ref, g_ref, b_ref, kw_ref, vw_ref,
                  k_ref, v_ref):
    # spatial-reduction conv (as patch matmul) + bias; statistics in f32
    xs = jnp.dot(xr_ref[...], srw_ref[...],
                 preferred_element_type=jnp.float32) + srb_ref[...]
    mu = jnp.mean(xs, axis=-1, keepdims=True)
    var = jnp.mean(jnp.square(xs - mu), axis=-1, keepdims=True)
    xn = (xs - mu) * lax.rsqrt(var + 1e-5) * g_ref[...] + b_ref[...]
    xb = xn.astype(jnp.bfloat16)
    k_ref[...] = jnp.dot(xb, kw_ref[...],
                         preferred_element_type=jnp.float32).astype(k_ref.dtype)
    v_ref[...] = jnp.dot(xb, vw_ref[...],
                         preferred_element_type=jnp.float32).astype(v_ref.dtype)


def _kv_plain(x_flat, k_w, v_w):
    R, C = x_flat.shape
    tm = _kv_row_tile(R, C, C)
    return pl.pallas_call(
        _kv_plain_kernel,
        out_shape=(jax.ShapeDtypeStruct((R, C), jnp.bfloat16),
                   jax.ShapeDtypeStruct((R, C), jnp.bfloat16)),
        grid_spec=pltpu.PrefetchScalarGridSpec(
            num_scalar_prefetch=0,
            grid=(R // tm,),
            in_specs=[pl.BlockSpec((tm, C), lambda i: (i, 0)),
                      _spec((C, C), lambda i: (0, 0), single_buffer=True),
                      _spec((C, C), lambda i: (0, 0), single_buffer=True)],
            out_specs=(pl.BlockSpec((tm, C), lambda i: (i, 0)),
                       pl.BlockSpec((tm, C), lambda i: (i, 0))),
        ),
        compiler_params=pltpu.CompilerParams(
            dimension_semantics=("parallel",),
            vmem_limit_bytes=32 << 20),
    )(x_flat, k_w, v_w)


def _kv_sr(patches, sr_w, sr_b, ln_g, ln_b, k_w, v_w):
    R, Cr = patches.shape
    C = sr_w.shape[1]
    tm = _kv_row_tile(R, Cr, C)
    return pl.pallas_call(
        _kv_sr_kernel,
        out_shape=(jax.ShapeDtypeStruct((R, C), jnp.bfloat16),
                   jax.ShapeDtypeStruct((R, C), jnp.bfloat16)),
        grid_spec=pltpu.PrefetchScalarGridSpec(
            num_scalar_prefetch=0,
            grid=(R // tm,),
            in_specs=[pl.BlockSpec((tm, Cr), lambda i: (i, 0)),
                      _spec((Cr, C), lambda i: (0, 0), single_buffer=True),
                      _spec((1, C), lambda i: (0, 0), single_buffer=True),
                      _spec((1, C), lambda i: (0, 0), single_buffer=True),
                      _spec((1, C), lambda i: (0, 0), single_buffer=True),
                      _spec((C, C), lambda i: (0, 0), single_buffer=True),
                      _spec((C, C), lambda i: (0, 0), single_buffer=True)],
            out_specs=(pl.BlockSpec((tm, C), lambda i: (i, 0)),
                       pl.BlockSpec((tm, C), lambda i: (i, 0))),
        ),
        compiler_params=pltpu.CompilerParams(
            dimension_semantics=("parallel",),
            vmem_limit_bytes=32 << 20),
    )(patches, sr_w,
      sr_b.reshape(1, C).astype(jnp.float32),
      ln_g.reshape(1, C).astype(jnp.float32),
      ln_b.reshape(1, C).astype(jnp.float32),
      k_w, v_w)


# --------------------------------------------------------------------------
# kernel 2: fused multi-head attention (+ q projection + output projection,
#           both folded into per-batch weight products in a prologue)
# --------------------------------------------------------------------------
def _attn_kernel(x_ref, k_ref, v_ref, qwhm_ref, pw_ref, pb_ref, o_ref,
                 wqk_scr, vw_scr, acc_scr, *, scale):
    heads, C, d = qwhm_ref.shape

    # --- per-(batch, parallel-chunk) prologue: fold K^T and V.proj_w -------
    @pl.when(pl.program_id(2) == 0)
    def _():
        kb = k_ref[0]                                  # (M, C) bf16
        vb = v_ref[0]                                  # (M, C) bf16
        pw = pw_ref[...]                               # (C, C) bf16
        kT = kb.T                                      # (C, M): one transpose / batch
        for h in range(heads):
            sl = slice(h * d, (h + 1) * d)
            # W_qk[h] = scale * q_w[:, h-block] @ K_h^T        -> (C, M)
            wqk = jnp.dot(qwhm_ref[h], kT[sl, :],
                          preferred_element_type=jnp.float32) * scale
            wqk_scr[h] = wqk.astype(wqk_scr.dtype)
            # VW[h]   = V_h @ proj_w[h-block, :]               -> (M, C)
            vw = jnp.dot(vb[:, sl], pw[sl, :],
                         preferred_element_type=jnp.float32)
            vw_scr[h] = vw.astype(vw_scr.dtype)

    # --- main: all heads for one query tile (no slices, lane-dense output) --
    x_t = x_ref[0]                                     # (tn, C) bf16
    for h in range(heads):
        s = jnp.dot(x_t, wqk_scr[h],
                    preferred_element_type=jnp.float32)        # (tn, M) f32
        s = s - jnp.max(s, axis=-1, keepdims=True)
        p = jnp.exp(s)
        p = p * pl.reciprocal(jnp.sum(p, axis=-1, keepdims=True), approx=True)
        upd = jnp.dot(p.astype(jnp.bfloat16), vw_scr[h],
                      preferred_element_type=jnp.float32)       # (tn, C) f32
        if h == 0:
            acc_scr[...] = upd + pb_ref[...]
        else:
            acc_scr[...] += upd
    o_ref[0] = acc_scr[...].astype(o_ref.dtype)


# --------------------------------------------------------------------------
# module forward
# --------------------------------------------------------------------------
def pvt_attention(x, params, *, H, W, num_heads, sr_ratio):
    """PVT Attention forward.  x: (B, N, C) f32, N == H*W.  Returns (B, N, C) bf16."""
    B, N, C = x.shape
    assert N == H * W and C % num_heads == 0
    d = C // num_heads
    scale = d ** -0.5

    xb = x.astype(jnp.bfloat16)                         # single cast, reused
    k_w = params["kv_w"][:, :C].astype(jnp.bfloat16)    # torch kv layout: [k | v]
    v_w = params["kv_w"][:, C:].astype(jnp.bfloat16)

    # ---- kv side (one fused kernel) ----
    if sr_ratio > 1:
        x_nchw = xb.transpose(0, 2, 1).reshape(B, C, H, W)
        patches, Hs, Ws = patchify(x_nchw, sr_ratio)    # bf16 patch extraction
        M = Hs * Ws
        k_flat, v_flat = _kv_sr(patches, params["sr_w"].astype(jnp.bfloat16),
                                params["sr_b"], params["ln_g"], params["ln_b"],
                                k_w, v_w)
    else:
        M = N
        k_flat, v_flat = _kv_plain(xb.reshape(B * N, C), k_w, v_w)
    k = k_flat.reshape(B, M, C)
    v = v_flat.reshape(B, M, C)

    # head-major q weight: (heads, C, d)
    qw_hm = params["q_w"].reshape(C, num_heads, d).transpose(1, 0, 2)
    qw_hm = qw_hm.astype(jnp.bfloat16)
    pw = params["proj_w"].astype(jnp.bfloat16)
    pb = params["proj_b"].reshape(1, C).astype(jnp.float32)

    tn = _attn_row_tile(N, C, M, num_heads)
    n_steps = N // tn
    # on 2-TC chips, give the grid >=2 parallel steps when B == 1
    if B == 1 and n_steps >= 2 and n_steps % 2 == 0:
        n_par, n_inner = 2, n_steps // 2
    else:
        n_par, n_inner = 1, n_steps

    def xmap(b, p, i):
        return (b, p * n_inner + i, 0)

    def bmap(b, p, i):
        return (b, 0, 0)

    def cmap2(b, p, i):
        return (0, 0)

    def cmap3(b, p, i):
        return (0, 0, 0)

    out = pl.pallas_call(
        functools.partial(_attn_kernel, scale=scale),
        out_shape=jax.ShapeDtypeStruct((B, N, C), jnp.bfloat16),
        grid_spec=pltpu.PrefetchScalarGridSpec(
            num_scalar_prefetch=0,
            grid=(B, n_par, n_inner),
            in_specs=[pl.BlockSpec((1, tn, C), xmap),
                      _spec((1, M, C), bmap, single_buffer=True),
                      _spec((1, M, C), bmap, single_buffer=True),
                      _spec((num_heads, C, d), cmap3, single_buffer=True),
                      _spec((C, C), cmap2, single_buffer=True),
                      _spec((1, C), cmap2, single_buffer=True)],
            out_specs=pl.BlockSpec((1, tn, C), xmap),
            scratch_shapes=[pltpu.VMEM((num_heads, C, M), jnp.bfloat16),
                            pltpu.VMEM((num_heads, M, C), jnp.bfloat16),
                            pltpu.VMEM((tn, C), jnp.float32)]),
        compiler_params=pltpu.CompilerParams(
            dimension_semantics=("parallel", "parallel", "arbitrary"),
            vmem_limit_bytes=32 << 20),
    )(xb, k, v, qw_hm, pw, pb)
    return out


# --------------------------------------------------------------------------
# pure-JAX reference (f32) for correctness checking
# --------------------------------------------------------------------------
def attention_ref(x, H, W, p, heads, sr):
    B, N, C = x.shape
    d = C // heads
    scale = d ** -0.5
    q = x @ p["q_w"]
    q = q.reshape(B, N, heads, d).transpose(0, 2, 1, 3)
    if sr > 1:
        x_nchw = x.transpose(0, 2, 1).reshape(B, C, H, W)
        patches, Hs, Ws = patchify(x_nchw, sr)
        xr = patches @ p["sr_w"] + p["sr_b"]
        mu = xr.mean(-1, keepdims=True)
        var = ((xr - mu) ** 2).mean(-1, keepdims=True)
        xr = (xr - mu) / jnp.sqrt(var + 1e-5) * p["ln_g"] + p["ln_b"]
        M = Hs * Ws
        xr = xr.reshape(B, M, C)
    else:
        xr, M = x, N
    kv = xr @ p["kv_w"]
    kv = kv.reshape(B, M, 2, heads, d).transpose(2, 0, 3, 1, 4)
    k, v = kv[0], kv[1]
    s = jnp.einsum("bhqd,bhkd->bhqk", q, k) * scale
    s = jax.nn.softmax(s, axis=-1)
    o = jnp.einsum("bhqk,bhkd->bhqd", s, v)
    o = o.transpose(0, 2, 1, 3).reshape(B, N, C)
    return o @ p["proj_w"] + p["proj_b"]


# --------------------------------------------------------------------------
# parameter init (matches the torch module's parameter set; qkv_bias=False)
# --------------------------------------------------------------------------
def init_attention_params(key, dim, sr_ratio, std=0.05):
    ks = jax.random.split(key, 8)
    p = dict(
        q_w=std * jax.random.normal(ks[0], (dim, dim), jnp.float32),
        kv_w=std * jax.random.normal(ks[1], (dim, 2 * dim), jnp.float32),
        proj_w=std * jax.random.normal(ks[2], (dim, dim), jnp.float32),
        proj_b=std * jax.random.normal(ks[3], (dim,), jnp.float32),
    )
    if sr_ratio > 1:
        cr = dim * sr_ratio * sr_ratio
        p.update(
            sr_w=std * jax.random.normal(ks[4], (cr, dim), jnp.float32),
            sr_b=std * jax.random.normal(ks[5], (dim,), jnp.float32),
            ln_g=1.0 + 0.1 * jax.random.normal(ks[6], (dim,), jnp.float32),
            ln_b=0.1 * jax.random.normal(ks[7], (dim,), jnp.float32),
        )
    return p


if __name__ == "__main__":
    key = jax.random.PRNGKey(0)
    configs = [
        dict(B=2, dim=128, heads=4, sr=2, H=16, W=16),   # sr-conv + LayerNorm path
        dict(B=2, dim=128, heads=8, sr=1, H=8, W=8),     # plain kv path
    ]
    fwd = jax.jit(pvt_attention,
                  static_argnames=("H", "W", "num_heads", "sr_ratio"))
    for ci, cfg in enumerate(configs):
        kp, kx = jax.random.split(jax.random.fold_in(key, ci))
        B, C, H, W = cfg["B"], cfg["dim"], cfg["H"], cfg["W"]
        N = H * W
        params = init_attention_params(kp, C, cfg["sr"])
        x = jax.random.normal(kx, (B, N, C), jnp.float32)

        out = jax.block_until_ready(
            fwd(x, params, H=H, W=W, num_heads=cfg["heads"],
                sr_ratio=cfg["sr"]))
        assert out.shape == (B, N, C), out.shape
        out32 = out.astype(jnp.float32)
        assert bool(jnp.all(jnp.isfinite(out32)))

        ref = attention_ref(x, H, W, params, cfg["heads"], cfg["sr"])
        err = float(jnp.max(jnp.abs(out32 - ref)))
        mag = float(jnp.max(jnp.abs(ref)))
        # bf16 MXU operands + bf16 output + approx reciprocal -> loose tolerance
        assert err <= 0.05 * mag + 1e-4, (err, mag)
    print("KERNEL_OK")
</pallas_src>

<mosaic_0001>
module attributes {stable_mosaic.version = 11 : i64} {
  func.func @copy_kernel(%arg0: i32, %arg1: memref<8x128xf32, #tpu.memory_space<vmem>>, %arg2: memref<8x128xf32, #tpu.memory_space<vmem>>) attributes {dimension_semantics = [#tpu.dimension_semantics<arbitrary>], iteration_bounds = array<i64: 1>, scalar_prefetch = 0 : i64, scratch_operands = 0 : i64, tpu.core_type = #tpu.core_type<tc>, window_params = [{pipeline_mode = #tpu.pipeline_mode<synchronous>, transform_indices = @transform_0, window_bounds = array<i64: 8, 128>}, {transform_indices = @transform_1, window_bounds = array<i64: 8, 128>}]} {
    %c0 = arith.constant 0 : index
    %c0_0 = arith.constant 0 : index
    %0 = vector.load %arg1[%c0, %c0_0] : memref<8x128xf32, #tpu.memory_space<vmem>>, vector<8x128xf32>
    %c0_1 = arith.constant 0 : index
    %c0_2 = arith.constant 0 : index
    %1 = vector.load %arg2[%c0_1, %c0_2] : memref<8x128xf32, #tpu.memory_space<vmem>>, vector<8x128xf32>
    tpu.vector_store %arg2[%c0_1, %c0_2], %0 {strides = array<i32>} : memref<8x128xf32, #tpu.memory_space<vmem>>, vector<8x128xf32>,
    return
  }
  func.func @transform_0(%arg0: i32) -> (i32, i32) {
    %c0_i32 = arith.constant 0 : i32
    %c0_i32_0 = arith.constant 0 : i32
    return %arg0, %c0_i32 : i32, i32
  }
  func.func @transform_1(%arg0: i32) -> (i32, i32) {
    %c0_i32 = arith.constant 0 : i32
    %c0_i32_0 = arith.constant 0 : i32
    return %arg0, %c0_i32 : i32, i32
  }
}

module attributes {stable_mosaic.version = 11 : i64} {
  func.func @_attn_kernel(%arg0: i32, %arg1: i32, %arg2: i32, %arg3: memref<1x256x128xbf16, #tpu.memory_space<vmem>>, %arg4: memref<1x64x128xbf16, #tpu.memory_space<vmem>>, %arg5: memref<1x64x128xbf16, #tpu.memory_space<vmem>>, %arg6: memref<4x128x32xbf16, #tpu.memory_space<vmem>>, %arg7: memref<128x128xbf16, #tpu.memory_space<vmem>>, %arg8: memref<1x128xf32, #tpu.memory_space<vmem>>, %arg9: memref<1x256x128xbf16, #tpu.memory_space<vmem>>, %arg10: memref<4x128x64xbf16, #tpu.memory_space<vmem>>, %arg11: memref<4x64x128xbf16, #tpu.memory_space<vmem>>, %arg12: memref<256x128xf32, #tpu.memory_space<vmem>>) attributes {dimension_semantics = [#tpu.dimension_semantics<parallel>, #tpu.dimension_semantics<parallel>, #tpu.dimension_semantics<arbitrary>], iteration_bounds = array<i64: 2, 1, 1>, scalar_prefetch = 0 : i64, scratch_operands = 3 : i64, tpu.core_type = #tpu.core_type<tc>, window_params = [{transform_indices = @transform_0, window_bounds = array<i64: 1, 256, 128>}, {transform_indices = @transform_1, window_bounds = array<i64: 1, 64, 128>}, {transform_indices = @transform_2, window_bounds = array<i64: 1, 64, 128>}, {pipeline_mode = #tpu.pipeline_mode<synchronous>, transform_indices = @transform_3, window_bounds = array<i64: 4, 128, 32>}, {pipeline_mode = #tpu.pipeline_mode<synchronous>, transform_indices = @transform_4, window_bounds = array<i64: 128, 128>}, {pipeline_mode = #tpu.pipeline_mode<synchronous>, transform_indices = @transform_5, window_bounds = array<i64: 1, 128>}, {transform_indices = @transform_6, window_bounds = array<i64: 1, 256, 128>}]} {
    %c0_i32 = arith.constant 0 : i32
    %0 = arith.cmpi eq, %arg2, %c0_i32 : i32
    %1 = arith.extui %0 : i1 to i32
    %c0_i32_0 = arith.constant 0 : i32
    %2 = arith.cmpi ne, %1, %c0_i32_0 : i32
    scf.if %2 {
      %c0_60 = arith.constant 0 : index
      %c0_61 = arith.constant 0 : index
      %c0_62 = arith.constant 0 : index
      %91 = vector.load %arg4[%c0_60, %c0_61, %c0_62] : memref<1x64x128xbf16, #tpu.memory_space<vmem>>, vector<1x64x128xbf16>
      %92 = vector.shape_cast %91 : vector<1x64x128xbf16> to vector<64x128xbf16>
      %c0_63 = arith.constant 0 : index
      %c0_64 = arith.constant 0 : index
      %c0_65 = arith.constant 0 : index
      %93 = vector.load %arg5[%c0_63, %c0_64, %c0_65] : memref<1x64x128xbf16, #tpu.memory_space<vmem>>, vector<1x64x128xbf16>
      %94 = vector.shape_cast %93 : vector<1x64x128xbf16> to vector<64x128xbf16>
      %c0_66 = arith.constant 0 : index
      %c0_67 = arith.constant 0 : index
      %95 = vector.load %arg7[%c0_66, %c0_67] : memref<128x128xbf16, #tpu.memory_space<vmem>>, vector<128x128xbf16>
      %96 = tpu.transpose %92, [1, 0] : vector<64x128xbf16> -> vector<128x64xbf16>
      %c0_68 = arith.constant 0 : index
      %c0_69 = arith.constant 0 : index
      %c0_70 = arith.constant 0 : index
      %97 = vector.load %arg6[%c0_68, %c0_69, %c0_70] : memref<4x128x32xbf16, #tpu.memory_space<vmem>>, vector<1x128x32xbf16>
      %98 = vector.shape_cast %97 : vector<1x128x32xbf16> to vector<128x32xbf16>
      %99 = vector.extract_strided_slice %96 {offsets = [0, 0], sizes = [32, 64], strides = [1, 1]} : vector<128x64xbf16> to vector<32x64xbf16>
      %cst_71 = arith.constant dense<0.000000e+00> : vector<128x64xf32>
      %100 = tpu.matmul %98, %99, %cst_71 {dimension_numbers = #tpu.dot_dimension_numbers<[1], [0], [0], [1], [0, 0, 1, 1], [], []>} : vector<128x32xbf16>, vector<32x64xbf16>, vector<128x64xf32> -> vector<128x64xf32>
      %cst_72 = arith.constant 0.176776692 : f32
      %101 = vector.broadcast %cst_72 : f32 to vector<128x64xf32>
      %102 = arith.mulf %100, %101 : vector<128x64xf32>
      %103 = arith.truncf %102 : vector<128x64xf32> to vector<128x64xbf16>
      %c0_73 = arith.constant 0 : index
      %c0_74 = arith.constant 0 : index
      %c0_75 = arith.constant 0 : index
      %104 = vector.load %arg10[%c0_73, %c0_74, %c0_75] : memref<4x128x64xbf16, #tpu.memory_space<vmem>>, vector<1x128x64xbf16>
      %105 = vector.shape_cast %104 : vector<1x128x64xbf16> to vector<128x64xbf16>
      %106 = vector.shape_cast %103 : vector<128x64xbf16> to vector<1x128x64xbf16>
      tpu.vector_store %arg10[%c0_73, %c0_74, %c0_75], %106 {strides = array<i32>} : memref<4x128x64xbf16, #tpu.memory_space<vmem>>, vector<1x128x64xbf16>,
      %107 = vector.extract_strided_slice %94 {offsets = [0, 0], sizes = [64, 32], strides = [1, 1]} : vector<64x128xbf16> to vector<64x32xbf16>
      %108 = vector.extract_strided_slice %95 {offsets = [0, 0], sizes = [32, 128], strides = [1, 1]} : vector<128x128xbf16> to vector<32x128xbf16>
      %cst_76 = arith.constant dense<0.000000e+00> : vector<64x128xf32>
      %109 = tpu.matmul %107, %108, %cst_76 {dimension_numbers = #tpu.dot_dimension_numbers<[1], [0], [0], [1], [0, 0, 1, 1], [], []>} : vector<64x32xbf16>, vector<32x128xbf16>, vector<64x128xf32> -> vector<64x128xf32>
      %110 = arith.truncf %109 : vector<64x128xf32> to vector<64x128xbf16>
      %c0_77 = arith.constant 0 : index
      %c0_78 = arith.constant 0 : index
      %c0_79 = arith.constant 0 : index
      %111 = vector.load %arg11[%c0_77, %c0_78, %c0_79] : memref<4x64x128xbf16, #tpu.memory_space<vmem>>, vector<1x64x128xbf16>
      %112 = vector.shape_cast %111 : vector<1x64x128xbf16> to vector<64x128xbf16>
      %113 = vector.shape_cast %110 : vector<64x128xbf16> to vector<1x64x128xbf16>
      tpu.vector_store %arg11[%c0_77, %c0_78, %c0_79], %113 {strides = array<i32>} : memref<4x64x128xbf16, #tpu.memory_space<vmem>>, vector<1x64x128xbf16>,
      %c1_80 = arith.constant 1 : index
      %c0_81 = arith.constant 0 : index
      %c0_82 = arith.constant 0 : index
      %114 = vector.load %arg6[%c1_80, %c0_81, %c0_82] : memref<4x128x32xbf16, #tpu.memory_space<vmem>>, vector<1x128x32xbf16>
      %115 = vector.shape_cast %114 : vector<1x128x32xbf16> to vector<128x32xbf16>
      %116 = vector.extract_strided_slice %96 {offsets = [32, 0], sizes = [32, 64], strides = [1, 1]} : vector<128x64xbf16> to vector<32x64xbf16>
      %cst_83 = arith.constant dense<0.000000e+00> : vector<128x64xf32>
      %117 = tpu.matmul %115, %116, %cst_83 {dimension_numbers = #tpu.dot_dimension_numbers<[1], [0], [0], [1], [0, 0, 1, 1], [], []>} : vector<128x32xbf16>, vector<32x64xbf16>, vector<128x64xf32> -> vector<128x64xf32>
      %cst_84 = arith.constant 0.176776692 : f32
      %118 = vector.broadcast %cst_84 : f32 to vector<128x64xf32>
      %119 = arith.mulf %117, %118 : vector<128x64xf32>
      %120 = arith.truncf %119 : vector<128x64xf32> to vector<128x64xbf16>
      %c1_85 = arith.constant 1 : index
      %c0_86 = arith.constant 0 : index
      %c0_87 = arith.constant 0 : index
      %121 = vector.load %arg10[%c1_85, %c0_86, %c0_87] : memref<4x128x64xbf16, #tpu.memory_space<vmem>>, vector<1x128x64xbf16>
      %122 = vector.shape_cast %121 : vector<1x128x64xbf16> to vector<128x64xbf16>
      %123 = vector.shape_cast %120 : vector<128x64xbf16> to vector<1x128x64xbf16>
      tpu.vector_store %arg10[%c1_85, %c0_86, %c0_87], %123 {strides = array<i32>} : memref<4x128x64xbf16, #tpu.memory_space<vmem>>, vector<1x128x64xbf16>,
      %124 = vector.extract_strided_slice %94 {offsets = [0, 32], sizes = [64, 32], strides = [1, 1]} : vector<64x128xbf16> to vector<64x32xbf16>
      %125 = vector.extract_strided_slice %95 {offsets = [32, 0], sizes = [32, 128], strides = [1, 1]} : vector<128x128xbf16> to vector<32x128xbf16>
      %cst_88 = arith.constant dense<0.000000e+00> : vector<64x128xf32>
      %126 = tpu.matmul %124, %125, %cst_88 {dimension_numbers = #tpu.dot_dimension_numbers<[1], [0], [0], [1], [0, 0, 1, 1], [], []>} : vector<64x32xbf16>, vector<32x128xbf16>, vector<64x128xf32> -> vector<64x128xf32>
      %127 = arith.truncf %126 : vector<64x128xf32> to vector<64x128xbf16>
      %c1_89 = arith.constant 1 : index
      %c0_90 = arith.constant 0 : index
      %c0_91 = arith.constant 0 : index
      %128 = vector.load %arg11[%c1_89, %c0_90, %c0_91] : memref<4x64x128xbf16, #tpu.memory_space<vmem>>, vector<1x64x128xbf16>
      %129 = vector.shape_cast %128 : vector<1x64x128xbf16> to vector<64x128xbf16>
      %130 = vector.shape_cast %127 : vector<64x128xbf16> to vector<1x64x128xbf16>
      tpu.vector_store %arg11[%c1_89, %c0_90, %c0_91], %130 {strides = array<i32>} : memref<4x64x128xbf16, #tpu.memory_space<vmem>>, vector<1x64x128xbf16>,
      %c2_92 = arith.constant 2 : index
      %c0_93 = arith.constant 0 : index
      %c0_94 = arith.constant 0 : index
      %131 = vector.load %arg6[%c2_92, %c0_93, %c0_94] : memref<4x128x32xbf16, #tpu.memory_space<vmem>>, vector<1x128x32xbf16>
      %132 = vector.shape_cast %131 : vector<1x128x32xbf16> to vector<128x32xbf16>
      %133 = vector.extract_strided_slice %96 {offsets = [64, 0], sizes = [32, 64], strides = [1, 1]} : vector<128x64xbf16> to vector<32x64xbf16>
      %cst_95 = arith.constant dense<0.000000e+00> : vector<128x64xf32>
      %134 = tpu.matmul %132, %133, %cst_95 {dimension_numbers = #tpu.dot_dimension_numbers<[1], [0], [0], [1], [0, 0, 1, 1], [], []>} : vector<128x32xbf16>, vector<32x64xbf16>, vector<128x64xf32> -> vector<128x64xf32>
      %cst_96 = arith.constant 0.176776692 : f32
      %135 = vector.broadcast %cst_96 : f32 to vector<128x64xf32>
      %136 = arith.mulf %134, %135 : vector<128x64xf32>
      %137 = arith.truncf %136 : vector<128x64xf32> to vector<128x64xbf16>
      %c2_97 = arith.constant 2 : index
      %c0_98 = arith.constant 0 : index
      %c0_99 = arith.constant 0 : index
      %138 = vector.load %arg10[%c2_97, %c0_98, %c0_99] : memref<4x128x64xbf16, #tpu.memory_space<vmem>>, vector<1x128x64xbf16>
      %139 = vector.shape_cast %138 : vector<1x128x64xbf16> to vector<128x64xbf16>
      %140 = vector.shape_cast %137 : vector<128x64xbf16> to vector<1x128x64xbf16>
      tpu.vector_store %arg10[%c2_97, %c0_98, %c0_99], %140 {strides = array<i32>} : memref<4x128x64xbf16, #tpu.memory_space<vmem>>, vector<1x128x64xbf16>,
      %141 = vector.extract_strided_slice %94 {offsets = [0, 64], sizes = [64, 32], strides = [1, 1]} : vector<64x128xbf16> to vector<64x32xbf16>
      %142 = vector.extract_strided_slice %95 {offsets = [64, 0], sizes = [32, 128], strides = [1, 1]} : vector<128x128xbf16> to vector<32x128xbf16>
      %cst_100 = arith.constant dense<0.000000e+00> : vector<64x128xf32>
      %143 = tpu.matmul %141, %142, %cst_100 {dimension_numbers = #tpu.dot_dimension_numbers<[1], [0], [0], [1], [0, 0, 1, 1], [], []>} : vector<64x32xbf16>, vector<32x128xbf16>, vector<64x128xf32> -> vector<64x128xf32>
      %144 = arith.truncf %143 : vector<64x128xf32> to vector<64x128xbf16>
      %c2_101 = arith.constant 2 : index
      %c0_102 = arith.constant 0 : index
      %c0_103 = arith.constant 0 : index
      %145 = vector.load %arg11[%c2_101, %c0_102, %c0_103] : memref<4x64x128xbf16, #tpu.memory_space<vmem>>, vector<1x64x128xbf16>
      %146 = vector.shape_cast %145 : vector<1x64x128xbf16> to vector<64x128xbf16>
      %147 = vector.shape_cast %144 : vector<64x128xbf16> to vector<1x64x128xbf16>
      tpu.vector_store %arg11[%c2_101, %c0_102, %c0_103], %147 {strides = array<i32>} : memref<4x64x128xbf16, #tpu.memory_space<vmem>>, vector<1x64x128xbf16>,
      %c3_104 = arith.constant 3 : index
      %c0_105 = arith.constant 0 : index
      %c0_106 = arith.constant 0 : index
      %148 = vector.load %arg6[%c3_104, %c0_105, %c0_106] : memref<4x128x32xbf16, #tpu.memory_space<vmem>>, vector<1x128x32xbf16>
      %149 = vector.shape_cast %148 : vector<1x128x32xbf16> to vector<128x32xbf16>
      %150 = vector.extract_strided_slice %96 {offsets = [96, 0], sizes = [32, 64], strides = [1, 1]} : vector<128x64xbf16> to vector<32x64xbf16>
      %cst_107 = arith.constant dense<0.000000e+00> : vector<128x64xf32>
      %151 = tpu.matmul %149, %150, %cst_107 {dimension_numbers = #tpu.dot_dimension_numbers<[1], [0], [0], [1], [0, 0, 1, 1], [], []>} : vector<128x32xbf16>, vector<32x64xbf16>, vector<128x64xf32> -> vector<128x64xf32>
      %cst_108 = arith.constant 0.176776692 : f32
      %152 = vector.broadcast %cst_108 : f32 to vector<128x64xf32>
      %153 = arith.mulf %151, %152 : vector<128x64xf32>
      %154 = arith.truncf %153 : vector<128x64xf32> to vector<128x64xbf16>
      %c3_109 = arith.constant 3 : index
      %c0_110 = arith.constant 0 : index
      %c0_111 = arith.constant 0 : index
      %155 = vector.load %arg10[%c3_109, %c0_110, %c0_111] : memref<4x128x64xbf16, #tpu.memory_space<vmem>>, vector<1x128x64xbf16>
      %156 = vector.shape_cast %155 : vector<1x128x64xbf16> to vector<128x64xbf16>
      %157 = vector.shape_cast %154 : vector<128x64xbf16> to vector<1x128x64xbf16>
      tpu.vector_store %arg10[%c3_109, %c0_110, %c0_111], %157 {strides = array<i32>} : memref<4x128x64xbf16, #tpu.memory_space<vmem>>, vector<1x128x64xbf16>,
      %158 = vector.extract_strided_slice %94 {offsets = [0, 96], sizes = [64, 32], strides = [1, 1]} : vector<64x128xbf16> to vector<64x32xbf16>
      %159 = vector.extract_strided_slice %95 {offsets = [96, 0], sizes = [32, 128], strides = [1, 1]} : vector<128x128xbf16> to vector<32x128xbf16>
      %cst_112 = arith.constant dense<0.000000e+00> : vector<64x128xf32>
      %160 = tpu.matmul %158, %159, %cst_112 {dimension_numbers = #tpu.dot_dimension_numbers<[1], [0], [0], [1], [0, 0, 1, 1], [], []>} : vector<64x32xbf16>, vector<32x128xbf16>, vector<64x128xf32> -> vector<64x128xf32>
      %161 = arith.truncf %160 : vector<64x128xf32> to vector<64x128xbf16>
      %c3_113 = arith.constant 3 : index
      %c0_114 = arith.constant 0 : index
      %c0_115 = arith.constant 0 : index
      %162 = vector.load %arg11[%c3_113, %c0_114, %c0_115] : memref<4x64x128xbf16, #tpu.memory_space<vmem>>, vector<1x64x128xbf16>
      %163 = vector.shape_cast %162 : vector<1x64x128xbf16> to vector<64x128xbf16>
      %164 = vector.shape_cast %161 : vector<64x128xbf16> to vector<1x64x128xbf16>
      tpu.vector_store %arg11[%c3_113, %c0_114, %c0_115], %164 {strides = array<i32>} : memref<4x64x128xbf16, #tpu.memory_space<vmem>>, vector<1x64x128xbf16>,
    } else {
    }
    %c0 = arith.constant 0 : index
    %c0_1 = arith.constant 0 : index
    %c0_2 = arith.constant 0 : index
    %3 = vector.load %arg3[%c0, %c0_1, %c0_2] : memref<1x256x128xbf16, #tpu.memory_space<vmem>>, vector<1x256x128xbf16>
    %4 = vector.shape_cast %3 : vector<1x256x128xbf16> to vector<256x128xbf16>
    %c0_3 = arith.constant 0 : index
    %c0_4 = arith.constant 0 : index
    %c0_5 = arith.constant 0 : index
    %5 = vector.load %arg10[%c0_3, %c0_4, %c0_5] : memref<4x128x64xbf16, #tpu.memory_space<vmem>>, vector<1x128x64xbf16>
    %6 = vector.shape_cast %5 : vector<1x128x64xbf16> to vector<128x64xbf16>
    %cst = arith.constant dense<0.000000e+00> : vector<256x64xf32>
    %7 = tpu.matmul %4, %6, %cst {dimension_numbers = #tpu.dot_dimension_numbers<[1], [0], [0], [1], [0, 0, 1, 1], [], []>} : vector<256x128xbf16>, vector<128x64xbf16>, vector<256x64xf32> -> vector<256x64xf32>
    %cst_6 = arith.constant dense<0xFF800000> : vector<256xf32>
    %8 = vector.multi_reduction <maximumf>, %7, %cst_6 [1] : vector<256x64xf32> to vector<256xf32>
    %9 = vector.shape_cast %8 : vector<256xf32> to vector<256x1xf32>
    %10 = vector.broadcast %9 : vector<256x1xf32> to vector<256x64xf32>
    %11 = arith.subf %7, %10 : vector<256x64xf32>
    %12 = math.exp %11 : vector<256x64xf32>
    %cst_7 = arith.constant dense<0.000000e+00> : vector<256xf32>
    %13 = vector.multi_reduction <add>, %12, %cst_7 [1] : vector<256x64xf32> to vector<256xf32>
    %14 = vector.shape_cast %13 : vector<256xf32> to vector<256x1xf32>
    %15 = tpu.reciprocal %14 {approx = true} : vector<256x1xf32> -> vector<256x1xf32>
    %16 = vector.broadcast %15 : vector<256x1xf32> to vector<256x64xf32>
    %17 = arith.mulf %12, %16 : vector<256x64xf32>
    %18 = arith.truncf %17 : vector<256x64xf32> to vector<256x64xbf16>
    %c0_8 = arith.constant 0 : index
    %c0_9 = arith.constant 0 : index
    %c0_10 = arith.constant 0 : index
    %19 = vector.load %arg11[%c0_8, %c0_9, %c0_10] : memref<4x64x128xbf16, #tpu.memory_space<vmem>>, vector<1x64x128xbf16>
    %20 = vector.shape_cast %19 : vector<1x64x128xbf16> to vector<64x128xbf16>
    %cst_11 = arith.constant dense<0.000000e+00> : vector<256x128xf32>
    %21 = tpu.matmul %18, %20, %cst_11 {dimension_numbers = #tpu.dot_dimension_numbers<[1], [0], [0], [1], [0, 0, 1, 1], [], []>} : vector<256x64xbf16>, vector<64x128xbf16>, vector<256x128xf32> -> vector<256x128xf32>
    %c0_12 = arith.constant 0 : index
    %c0_13 = arith.constant 0 : index
    %22 = vector.load %arg8[%c0_12, %c0_13] : memref<1x128xf32, #tpu.memory_space<vmem>>, vector<1x128xf32>
    %23 = vector.broadcast %22 : vector<1x128xf32> to vector<256x128xf32>
    %24 = arith.addf %21, %23 : vector<256x128xf32>
    %c0_14 = arith.constant 0 : index
    %c0_15 = arith.constant 0 : index
    %25 = vector.load %arg12[%c0_14, %c0_15] : memref<256x128xf32, #tpu.memory_space<vmem>>, vector<256x128xf32>
    tpu.vector_store %arg12[%c0_14, %c0_15], %24 {strides = array<i32>} : memref<256x128xf32, #tpu.memory_space<vmem>>, vector<256x128xf32>,
    %c1 = arith.constant 1 : index
    %c0_16 = arith.constant 0 : index
    %c0_17 = arith.constant 0 : index
    %26 = vector.load %arg10[%c1, %c0_16, %c0_17] : memref<4x128x64xbf16, #tpu.memory_space<vmem>>, vector<1x128x64xbf16>
    %27 = vector.shape_cast %26 : vector<1x128x64xbf16> to vector<128x64xbf16>
    %cst_18 = arith.constant dense<0.000000e+00> : vector<256x64xf32>
    %28 = tpu.matmul %4, %27, %cst_18 {dimension_numbers = #tpu.dot_dimension_numbers<[1], [0], [0], [1], [0, 0, 1, 1], [], []>} : vector<256x128xbf16>, vector<128x64xbf16>, vector<256x64xf32> -> vector<256x64xf32>
    %cst_19 = arith.constant dense<0xFF800000> : vector<256xf32>
    %29 = vector.multi_reduction <maximumf>, %28, %cst_19 [1] : vector<256x64xf32> to vector<256xf32>
    %30 = vector.shape_cast %29 : vector<256xf32> to vector<256x1xf32>
    %31 = vector.broadcast %30 : vector<256x1xf32> to vector<256x64xf32>
    %32 = arith.subf %28, %31 : vector<256x64xf32>
    %33 = math.exp %32 : vector<256x64xf32>
    %cst_20 = arith.constant dense<0.000000e+00> : vector<256xf32>
    %34 = vector.multi_reduction <add>, %33, %cst_20 [1] : vector<256x64xf32> to vector<256xf32>
    %35 = vector.shape_cast %34 : vector<256xf32> to vector<256x1xf32>
    %36 = tpu.reciprocal %35 {approx = true} : vector<256x1xf32> -> vector<256x1xf32>
    %37 = vector.broadcast %36 : vector<256x1xf32> to vector<256x64xf32>
    %38 = arith.mulf %33, %37 : vector<256x64xf32>
    %39 = arith.truncf %38 : vector<256x64xf32> to vector<256x64xbf16>
    %c1_21 = arith.constant 1 : index
    %c0_22 = arith.constant 0 : index
    %c0_23 = arith.constant 0 : index
    %40 = vector.load %arg11[%c1_21, %c0_22, %c0_23] : memref<4x64x128xbf16, #tpu.memory_space<vmem>>, vector<1x64x128xbf16>
    %41 = vector.shape_cast %40 : vector<1x64x128xbf16> to vector<64x128xbf16>
    %cst_24 = arith.constant dense<0.000000e+00> : vector<256x128xf32>
    %42 = tpu.matmul %39, %41, %cst_24 {dimension_numbers = #tpu.dot_dimension_numbers<[1], [0], [0], [1], [0, 0, 1, 1], [], []>} : vector<256x64xbf16>, vector<64x128xbf16>, vector<256x128xf32> -> vector<256x128xf32>
    %c0_25 = arith.constant 0 : index
    %c0_26 = arith.constant 0 : index
    %43 = vector.load %arg12[%c0_25, %c0_26] : memref<256x128xf32, #tpu.memory_space<vmem>>, vector<256x128xf32>
    %44 = arith.addf %43, %42 : vector<256x128xf32>
    %c0_27 = arith.constant 0 : index
    %c0_28 = arith.constant 0 : index
    %45 = vector.load %arg12[%c0_27, %c0_28] : memref<256x128xf32, #tpu.memory_space<vmem>>, vector<256x128xf32>
    tpu.vector_store %arg12[%c0_27, %c0_28], %44 {strides = array<i32>} : memref<256x128xf32, #tpu.memory_space<vmem>>, vector<256x128xf32>,
    %c2 = arith.constant 2 : index
    %c0_29 = arith.constant 0 : index
    %c0_30 = arith.constant 0 : index
    %46 = vector.load %arg10[%c2, %c0_29, %c0_30] : memref<4x128x64xbf16, #tpu.memory_space<vmem>>, vector<1x128x64xbf16>
    %47 = vector.shape_cast %46 : vector<1x128x64xbf16> to vector<128x64xbf16>
    %cst_31 = arith.constant dense<0.000000e+00> : vector<256x64xf32>
    %48 = tpu.matmul %4, %47, %cst_31 {dimension_numbers = #tpu.dot_dimension_numbers<[1], [0], [0], [1], [0, 0, 1, 1], [], []>} : vector<256x128xbf16>, vector<128x64xbf16>, vector<256x64xf32> -> vector<256x64xf32>
    %cst_32 = arith.constant dense<0xFF800000> : vector<256xf32>
    %49 = vector.multi_reduction <maximumf>, %48, %cst_32 [1] : vector<256x64xf32> to vector<256xf32>
    %50 = vector.shape_cast %49 : vector<256xf32> to vector<256x1xf32>
    %51 = vector.broadcast %50 : vector<256x1xf32> to vector<256x64xf32>
    %52 = arith.subf %48, %51 : vector<256x64xf32>
    %53 = math.exp %52 : vector<256x64xf32>
    %cst_33 = arith.constant dense<0.000000e+00> : vector<256xf32>
    %54 = vector.multi_reduction <add>, %53, %cst_33 [1] : vector<256x64xf32> to vector<256xf32>
    %55 = vector.shape_cast %54 : vector<256xf32> to vector<256x1xf32>
    %56 = tpu.reciprocal %55 {approx = true} : vector<256x1xf32> -> vector<256x1xf32>
    %57 = vector.broadcast %56 : vector<256x1xf32> to vector<256x64xf32>
    %58 = arith.mulf %53, %57 : vector<256x64xf32>
    %59 = arith.truncf %58 : vector<256x64xf32> to vector<256x64xbf16>
    %c2_34 = arith.constant 2 : index
    %c0_35 = arith.constant 0 : index
    %c0_36 = arith.constant 0 : index
    %60 = vector.load %arg11[%c2_34, %c0_35, %c0_36] : memref<4x64x128xbf16, #tpu.memory_space<vmem>>, vector<1x64x128xbf16>
    %61 = vector.shape_cast %60 : vector<1x64x128xbf16> to vector<64x128xbf16>
    %cst_37 = arith.constant dense<0.000000e+00> : vector<256x128xf32>
    %62 = tpu.matmul %59, %61, %cst_37 {dimension_numbers = #tpu.dot_dimension_numbers<[1], [0], [0], [1], [0, 0, 1, 1], [], []>} : vector<256x64xbf16>, vector<64x128xbf16>, vector<256x128xf32> -> vector<256x128xf32>
    %c0_38 = arith.constant 0 : index
    %c0_39 = arith.constant 0 : index
    %63 = vector.load %arg12[%c0_38, %c0_39] : memref<256x128xf32, #tpu.memory_space<vmem>>, vector<256x128xf32>
    %64 = arith.addf %63, %62 : vector<256x128xf32>
    %c0_40 = arith.constant 0 : index
    %c0_41 = arith.constant 0 : index
    %65 = vector.load %arg12[%c0_40, %c0_41] : memref<256x128xf32, #tpu.memory_space<vmem>>, vector<256x128xf32>
    tpu.vector_store %arg12[%c0_40, %c0_41], %64 {strides = array<i32>} : memref<256x128xf32, #tpu.memory_space<vmem>>, vector<256x128xf32>,
    %c3 = arith.constant 3 : index
    %c0_42 = arith.constant 0 : index
    %c0_43 = arith.constant 0 : index
    %66 = vector.load %arg10[%c3, %c0_42, %c0_43] : memref<4x128x64xbf16, #tpu.memory_space<vmem>>, vector<1x128x64xbf16>
    %67 = vector.shape_cast %66 : vector<1x128x64xbf16> to vector<128x64xbf16>
    %cst_44 = arith.constant dense<0.000000e+00> : vector<256x64xf32>
    %68 = tpu.matmul %4, %67, %cst_44 {dimension_numbers = #tpu.dot_dimension_numbers<[1], [0], [0], [1], [0, 0, 1, 1], [], []>} : vector<256x128xbf16>, vector<128x64xbf16>, vector<256x64xf32> -> vector<256x64xf32>
    %cst_45 = arith.constant dense<0xFF800000> : vector<256xf32>
    %69 = vector.multi_reduction <maximumf>, %68, %cst_45 [1] : vector<256x64xf32> to vector<256xf32>
    %70 = vector.shape_cast %69 : vector<256xf32> to vector<256x1xf32>
    %71 = vector.broadcast %70 : vector<256x1xf32> to vector<256x64xf32>
    %72 = arith.subf %68, %71 : vector<256x64xf32>
    %73 = math.exp %72 : vector<256x64xf32>
    %cst_46 = arith.constant dense<0.000000e+00> : vector<256xf32>
    %74 = vector.multi_reduction <add>, %73, %cst_46 [1] : vector<256x64xf32> to vector<256xf32>
    %75 = vector.shape_cast %74 : vector<256xf32> to vector<256x1xf32>
    %76 = tpu.reciprocal %75 {approx = true} : vector<256x1xf32> -> vector<256x1xf32>
    %77 = vector.broadcast %76 : vector<256x1xf32> to vector<256x64xf32>
    %78 = arith.mulf %73, %77 : vector<256x64xf32>
    %79 = arith.truncf %78 : vector<256x64xf32> to vector<256x64xbf16>
    %c3_47 = arith.constant 3 : index
    %c0_48 = arith.constant 0 : index
    %c0_49 = arith.constant 0 : index
    %80 = vector.load %arg11[%c3_47, %c0_48, %c0_49] : memref<4x64x128xbf16, #tpu.memory_space<vmem>>, vector<1x64x128xbf16>
    %81 = vector.shape_cast %80 : vector<1x64x128xbf16> to vector<64x128xbf16>
    %cst_50 = arith.constant dense<0.000000e+00> : vector<256x128xf32>
    %82 = tpu.matmul %79, %81, %cst_50 {dimension_numbers = #tpu.dot_dimension_numbers<[1], [0], [0], [1], [0, 0, 1, 1], [], []>} : vector<256x64xbf16>, vector<64x128xbf16>, vector<256x128xf32> -> vector<256x128xf32>
    %c0_51 = arith.constant 0 : index
    %c0_52 = arith.constant 0 : index
    %83 = vector.load %arg12[%c0_51, %c0_52] : memref<256x128xf32, #tpu.memory_space<vmem>>, vector<256x128xf32>
    %84 = arith.addf %83, %82 : vector<256x128xf32>
    %c0_53 = arith.constant 0 : index
    %c0_54 = arith.constant 0 : index
    %85 = vector.load %arg12[%c0_53, %c0_54] : memref<256x128xf32, #tpu.memory_space<vmem>>, vector<256x128xf32>
    tpu.vector_store %arg12[%c0_53, %c0_54], %84 {strides = array<i32>} : memref<256x128xf32, #tpu.memory_space<vmem>>, vector<256x128xf32>,
    %c0_55 = arith.constant 0 : index
    %c0_56 = arith.constant 0 : index
    %86 = vector.load %arg12[%c0_55, %c0_56] : memref<256x128xf32, #tpu.memory_space<vmem>>, vector<256x128xf32>
    %87 = arith.truncf %86 : vector<256x128xf32> to vector<256x128xbf16>
    %c0_57 = arith.constant 0 : index
    %c0_58 = arith.constant 0 : index
    %c0_59 = arith.constant 0 : index
    %88 = vector.load %arg9[%c0_57, %c0_58, %c0_59] : memref<1x256x128xbf16, #tpu.memory_space<vmem>>, vector<1x256x128xbf16>
    %89 = vector.shape_cast %88 : vector<1x256x128xbf16> to vector<256x128xbf16>
    %90 = vector.shape_cast %87 : vector<256x128xbf16> to vector<1x256x128xbf16>
    tpu.vector_store %arg9[%c0_57, %c0_58, %c0_59], %90 {strides = array<i32>} : memref<1x256x128xbf16, #tpu.memory_space<vmem>>, vector<1x256x128xbf16>,
    return
  }
  func.func @transform_0(%arg0: i32, %arg1: i32, %arg2: i32) -> (i32, i32, i32) {
    %c1_i32 = arith.constant 1 : i32
    %0 = arith.muli %arg1, %c1_i32 : i32
    %1 = arith.addi %0, %arg2 : i32
    %c0_i32 = arith.constant 0 : i32
    %c0_i32_0 = arith.constant 0 : i32
    return %arg0, %1, %c0_i32 : i32, i32, i32
  }
  func.func @transform_1(%arg0: i32, %arg1: i32, %arg2: i32) -> (i32, i32, i32) {
    %c0_i32 = arith.constant 0 : i32
    %c0_i32_0 = arith.constant 0 : i32
    %c0_i32_1 = arith.constant 0 : i32
    return %arg0, %c0_i32, %c0_i32_0 : i32, i32, i32
  }
  func.func @transform_2(%arg0: i32, %arg1: i32, %arg2: i32) -> (i32, i32, i32) {
    %c0_i32 = arith.constant 0 : i32
    %c0_i32_0 = arith.constant 0 : i32
    %c0_i32_1 = arith.constant 0 : i32
    return %arg0, %c0_i32, %c0_i32_0 : i32, i32, i32
  }
  func.func @transform_3(%arg0: i32, %arg1: i32, %arg2: i32) -> (i32, i32, i32) {
    %c0_i32 = arith.constant 0 : i32
    %c0_i32_0 = arith.constant 0 : i32
    %c0_i32_1 = arith.constant 0 : i32
    %c0_i32_2 = arith.constant 0 : i32
    return %c0_i32, %c0_i32_0, %c0_i32_1 : i32, i32, i32
  }
  func.func @transform_4(%arg0: i32, %arg1: i32, %arg2: i32) -> (i32, i32) {
    %c0_i32 = arith.constant 0 : i32
    %c0_i32_0 = arith.constant 0 : i32
    %c0_i32_1 = arith.constant 0 : i32
    return %c0_i32, %c0_i32_0 : i32, i32
  }
  func.func @transform_5(%arg0: i32, %arg1: i32, %arg2: i32) -> (i32, i32) {
    %c0_i32 = arith.constant 0 : i32
    %c0_i32_0 = arith.constant 0 : i32
    %c0_i32_1 = arith.constant 0 : i32
    return %c0_i32, %c0_i32_0 : i32, i32
  }
  func.func @transform_6(%arg0: i32, %arg1: i32, %arg2: i32) -> (i32, i32, i32) {
    %c1_i32 = arith.constant 1 : i32
    %0 = arith.muli %arg1, %c1_i32 : i32
    %1 = arith.addi %0, %arg2 : i32
    %c0_i32 = arith.constant 0 : i32
    %c0_i32_0 = arith.constant 0 : i32
    return %arg0, %1, %c0_i32 : i32, i32, i32
  }
}

module attributes {stable_mosaic.version = 11 : i64} {
  func.func @_kv_sr_kernel(%arg0: i32, %arg1: memref<64x512xbf16, #tpu.memory_space<vmem>>, %arg2: memref<512x128xbf16, #tpu.memory_space<vmem>>, %arg3: memref<1x128xf32, #tpu.memory_space<vmem>>, %arg4: memref<1x128xf32, #tpu.memory_space<vmem>>, %arg5: memref<1x128xf32, #tpu.memory_space<vmem>>, %arg6: memref<128x128xbf16, #tpu.memory_space<vmem>>, %arg7: memref<128x128xbf16, #tpu.memory_space<vmem>>, %arg8: memref<64x128xbf16, #tpu.memory_space<vmem>>, %arg9: memref<64x128xbf16, #tpu.memory_space<vmem>>) attributes {dimension_semantics = [#tpu.dimension_semantics<parallel>], iteration_bounds = array<i64: 2>, scalar_prefetch = 0 : i64, scratch_operands = 0 : i64, tpu.core_type = #tpu.core_type<tc>, window_params = [{transform_indices = @transform_0, window_bounds = array<i64: 64, 512>}, {pipeline_mode = #tpu.pipeline_mode<synchronous>, transform_indices = @transform_1, window_bounds = array<i64: 512, 128>}, {pipeline_mode = #tpu.pipeline_mode<synchronous>, transform_indices = @transform_2, window_bounds = array<i64: 1, 128>}, {pipeline_mode = #tpu.pipeline_mode<synchronous>, transform_indices = @transform_3, window_bounds = array<i64: 1, 128>}, {pipeline_mode = #tpu.pipeline_mode<synchronous>, transform_indices = @transform_4, window_bounds = array<i64: 1, 128>}, {pipeline_mode = #tpu.pipeline_mode<synchronous>, transform_indices = @transform_5, window_bounds = array<i64: 128, 128>}, {pipeline_mode = #tpu.pipeline_mode<synchronous>, transform_indices = @transform_6, window_bounds = array<i64: 128, 128>}, {transform_indices = @transform_7, window_bounds = array<i64: 64, 128>}, {transform_indices = @transform_8, window_bounds = array<i64: 64, 128>}]} {
    %c0 = arith.constant 0 : index
    %c0_0 = arith.constant 0 : index
    %0 = vector.load %arg1[%c0, %c0_0] : memref<64x512xbf16, #tpu.memory_space<vmem>>, vector<64x512xbf16>
    %c0_1 = arith.constant 0 : index
    %c0_2 = arith.constant 0 : index
    %1 = vector.load %arg2[%c0_1, %c0_2] : memref<512x128xbf16, #tpu.memory_space<vmem>>, vector<512x128xbf16>
    %cst = arith.constant dense<0.000000e+00> : vector<64x128xf32>
    %2 = tpu.matmul %0, %1, %cst {dimension_numbers = #tpu.dot_dimension_numbers<[1], [0], [0], [1], [0, 0, 1, 1], [], []>} : vector<64x512xbf16>, vector<512x128xbf16>, vector<64x128xf32> -> vector<64x128xf32>
    %c0_3 = arith.constant 0 : index
    %c0_4 = arith.constant 0 : index
    %3 = vector.load %arg3[%c0_3, %c0_4] : memref<1x128xf32, #tpu.memory_space<vmem>>, vector<1x128xf32>
    %4 = vector.broadcast %3 : vector<1x128xf32> to vector<64x128xf32>
    %5 = arith.addf %2, %4 : vector<64x128xf32>
    %cst_5 = arith.constant dense<0.000000e+00> : vector<64xf32>
    %6 = vector.multi_reduction <add>, %5, %cst_5 [1] : vector<64x128xf32> to vector<64xf32>
    %7 = vector.shape_cast %6 : vector<64xf32> to vector<64x1xf32>
    %cst_6 = arith.constant 1.280000e+02 : f32
    %8 = vector.broadcast %cst_6 : f32 to vector<64x1xf32>
    %9 = arith.divf %7, %8 : vector<64x1xf32>
    %10 = vector.broadcast %9 : vector<64x1xf32> to vector<64x128xf32>
    %11 = arith.subf %5, %10 : vector<64x128xf32>
    %12 = arith.mulf %11, %11 : vector<64x128xf32>
    %cst_7 = arith.constant dense<0.000000e+00> : vector<64xf32>
    %13 = vector.multi_reduction <add>, %12, %cst_7 [1] : vector<64x128xf32> to vector<64xf32>
    %14 = vector.shape_cast %13 : vector<64xf32> to vector<64x1xf32>
    %cst_8 = arith.constant 1.280000e+02 : f32
    %15 = vector.broadcast %cst_8 : f32 to vector<64x1xf32>
    %16 = arith.divf %14, %15 : vector<64x1xf32>
    %17 = vector.broadcast %9 : vector<64x1xf32> to vector<64x128xf32>
    %18 = arith.subf %5, %17 : vector<64x128xf32>
    %cst_9 = arith.constant 9.99999974E-6 : f32
    %19 = vector.broadcast %cst_9 : f32 to vector<64x1xf32>
    %20 = arith.addf %16, %19 : vector<64x1xf32>
    %21 = math.rsqrt %20 : vector<64x1xf32>
    %22 = vector.broadcast %21 : vector<64x1xf32> to vector<64x128xf32>
    %23 = arith.mulf %18, %22 : vector<64x128xf32>
    %c0_10 = arith.constant 0 : index
    %c0_11 = arith.constant 0 : index
    %24 = vector.load %arg4[%c0_10, %c0_11] : memref<1x128xf32, #tpu.memory_space<vmem>>, vector<1x128xf32>
    %25 = vector.broadcast %24 : vector<1x128xf32> to vector<64x128xf32>
    %26 = arith.mulf %23, %25 : vector<64x128xf32>
    %c0_12 = arith.constant 0 : index
    %c0_13 = arith.constant 0 : index
    %27 = vector.load %arg5[%c0_12, %c0_13] : memref<1x128xf32, #tpu.memory_space<vmem>>, vector<1x128xf32>
    %28 = vector.broadcast %27 : vector<1x128xf32> to vector<64x128xf32>
    %29 = arith.addf %26, %28 : vector<64x128xf32>
    %30 = arith.truncf %29 : vector<64x128xf32> to vector<64x128xbf16>
    %c0_14 = arith.constant 0 : index
    %c0_15 = arith.constant 0 : index
    %31 = vector.load %arg6[%c0_14, %c0_15] : memref<128x128xbf16, #tpu.memory_space<vmem>>, vector<128x128xbf16>
    %cst_16 = arith.constant dense<0.000000e+00> : vector<64x128xf32>
    %32 = tpu.matmul %30, %31, %cst_16 {dimension_numbers = #tpu.dot_dimension_numbers<[1], [0], [0], [1], [0, 0, 1, 1], [], []>} : vector<64x128xbf16>, vector<128x128xbf16>, vector<64x128xf32> -> vector<64x128xf32>
    %33 = arith.truncf %32 : vector<64x128xf32> to vector<64x128xbf16>
    %c0_17 = arith.constant 0 : index
    %c0_18 = arith.constant 0 : index
    %34 = vector.load %arg8[%c0_17, %c0_18] : memref<64x128xbf16, #tpu.memory_space<vmem>>, vector<64x128xbf16>
    tpu.vector_store %arg8[%c0_17, %c0_18], %33 {strides = array<i32>} : memref<64x128xbf16, #tpu.memory_space<vmem>>, vector<64x128xbf16>,
    %c0_19 = arith.constant 0 : index
    %c0_20 = arith.constant 0 : index
    %35 = vector.load %arg7[%c0_19, %c0_20] : memref<128x128xbf16, #tpu.memory_space<vmem>>, vector<128x128xbf16>
    %cst_21 = arith.constant dense<0.000000e+00> : vector<64x128xf32>
    %36 = tpu.matmul %30, %35, %cst_21 {dimension_numbers = #tpu.dot_dimension_numbers<[1], [0], [0], [1], [0, 0, 1, 1], [], []>} : vector<64x128xbf16>, vector<128x128xbf16>, vector<64x128xf32> -> vector<64x128xf32>
    %37 = arith.truncf %36 : vector<64x128xf32> to vector<64x128xbf16>
    %c0_22 = arith.constant 0 : index
    %c0_23 = arith.constant 0 : index
    %38 = vector.load %arg9[%c0_22, %c0_23] : memref<64x128xbf16, #tpu.memory_space<vmem>>, vector<64x128xbf16>
    tpu.vector_store %arg9[%c0_22, %c0_23], %37 {strides = array<i32>} : memref<64x128xbf16, #tpu.memory_space<vmem>>, vector<64x128xbf16>,
    return
  }
  func.func @transform_0(%arg0: i32) -> (i32, i32) {
    %c0_i32 = arith.constant 0 : i32
    %c0_i32_0 = arith.constant 0 : i32
    return %arg0, %c0_i32 : i32, i32
  }
  func.func @transform_1(%arg0: i32) -> (i32, i32) {
    %c0_i32 = arith.constant 0 : i32
    %c0_i32_0 = arith.constant 0 : i32
    %c0_i32_1 = arith.constant 0 : i32
    return %c0_i32, %c0_i32_0 : i32, i32
  }
  func.func @transform_2(%arg0: i32) -> (i32, i32) {
    %c0_i32 = arith.constant 0 : i32
    %c0_i32_0 = arith.constant 0 : i32
    %c0_i32_1 = arith.constant 0 : i32
    return %c0_i32, %c0_i32_0 : i32, i32
  }
  func.func @transform_3(%arg0: i32) -> (i32, i32) {
    %c0_i32 = arith.constant 0 : i32
    %c0_i32_0 = arith.constant 0 : i32
    %c0_i32_1 = arith.constant 0 : i32
    return %c0_i32, %c0_i32_0 : i32, i32
  }
  func.func @transform_4(%arg0: i32) -> (i32, i32) {
    %c0_i32 = arith.constant 0 : i32
    %c0_i32_0 = arith.constant 0 : i32
    %c0_i32_1 = arith.constant 0 : i32
    return %c0_i32, %c0_i32_0 : i32, i32
  }
  func.func @transform_5(%arg0: i32) -> (i32, i32) {
    %c0_i32 = arith.constant 0 : i32
    %c0_i32_0 = arith.constant 0 : i32
    %c0_i32_1 = arith.constant 0 : i32
    return %c0_i32, %c0_i32_0 : i32, i32
  }
  func.func @transform_6(%arg0: i32) -> (i32, i32) {
    %c0_i32 = arith.constant 0 : i32
    %c0_i32_0 = arith.constant 0 : i32
    %c0_i32_1 = arith.constant 0 : i32
    return %c0_i32, %c0_i32_0 : i32, i32
  }
  func.func @transform_7(%arg0: i32) -> (i32, i32) {
    %c0_i32 = arith.constant 0 : i32
    %c0_i32_0 = arith.constant 0 : i32
    return %arg0, %c0_i32 : i32, i32
  }
  func.func @transform_8(%arg0: i32) -> (i32, i32) {
    %c0_i32 = arith.constant 0 : i32
    %c0_i32_0 = arith.constant 0 : i32
    return %arg0, %c0_i32 : i32, i32
  }
}

</mosaic_0001>

<llo_original>
// kernel: tpu_custom_call.1
$region0: #{tpu_custom_call.1}
  #allocation0 [shape = 'u32[]', space=smem, size = 0x4, offset = 0x4, fixed_abs, tag = 'smem constant byte address 0x4 - core index']
  #allocation1 [shape = 'u32[144,128]{1,0:T(1,128)}', space=vmem, size = 0x12000, scoped, tag = 'internal scratch']
  %s0 = inlined_call_operand.hbm [shape: f32[8,128], index: 0, kind: input, shape index: {}]
  %s1 = inlined_call_operand.hbm [shape: f32[8,128], index: 1, kind: output, shape index: {}]
  %s2 = sld [smem:[#allocation0]]
  $region18: #{tpu_custom_call.1} parent=0
    _
  %s4 = ssub.s32 1, %s2
  %s5 = scalar_select 0, %s4, %s2
  $region1: #{tpu_custom_call.1} parent=0
    #allocation2 [shape = 'u8[4096]{0}', space=vmem, size = 0x1000, scoped, tag = 'input window, operand 0, single buffered']
    #allocation3 [shape = 's32[1]{0}', space=sflag, size = 0x4, scoped, tag = 'scoped memory for tpu_custom_call.1']
    #allocation4 [shape = 's32[1]{0}', space=sflag, size = 0x4, scoped, tag = 'scoped memory for tpu_custom_call.1']
    #allocation5 [shape = 'u8[4096]{0}', space=vmem, size = 0x1000, scoped, tag = 'output window, operand 0, single buffered']
    %6 = vsyncpa [#allocation3], 0
    %7 = vsyncpa [#allocation4], 0
    // Predicated region
    $region2: #{tpu_custom_call.1} parent=1 // pred_check
      _
    $region3: #{tpu_custom_call.1} parent=1 // pred_check_branch
      %9 = sbr.rel (0) target = $region5
    $region4: #{tpu_custom_call.1} parent=1 // pred_region
      %s11 = ssub.s32 128, 128
      %12 = vsyncadd [#allocation3], %s11
      %s14 = sshll.u32 [#allocation2], 4
      %s15 = int_to_ptr.vmem [resolvable:$true] %s14
      %17 = dma.hbm_to_vmem [thread:$0]  %s0, 128, %s15, [#allocation3]
    $region5: #{tpu_custom_call.1} parent=1 // pred_fallthru
      _
    // Predicated region
    $region6: #{tpu_custom_call.1} parent=1 // pred_check
      _
    $region7: #{tpu_custom_call.1} parent=1 // pred_check_branch
      %19 = sbr.rel (0) target = $region9
    $region8: #{tpu_custom_call.1} parent=1 // pred_region
      %20 = dma.done [#allocation3], 128
    $region9: #{tpu_custom_call.1} parent=1 // pred_fallthru
      _
    %v21 = vld [vmem:[#allocation2] sm:$0xff]
    %22 = vst [vmem:[#allocation5] sm:$0xff] %v21
    // Predicated region
    $region10: #{tpu_custom_call.1} parent=1 // pred_check
      _
    $region11: #{tpu_custom_call.1} parent=1 // pred_check_branch
      %24 = sbr.rel (0) target = $region13
    $region12: #{tpu_custom_call.1} parent=1 // pred_region
      %s26 = ssub.s32 128, 128
      %27 = vsyncadd [#allocation4], %s26
      %s29 = sshll.u32 [#allocation5], 4
      %s30 = int_to_ptr.vmem [resolvable:$true] %s29
      %32 = dma.vmem_to_hbm [thread:$0]  %s30, 128, %s1, [#allocation4]
    $region13: #{tpu_custom_call.1} parent=1 // pred_fallthru
      _
    // Predicated region
    $region14: #{tpu_custom_call.1} parent=1 // pred_check
      _
    $region15: #{tpu_custom_call.1} parent=1 // pred_check_branch
      %34 = sbr.rel (0) target = $region17
    $region16: #{tpu_custom_call.1} parent=1 // pred_region
      %35 = dma.done [#allocation4], 128
    $region17: #{tpu_custom_call.1} parent=1 // pred_fallthru
      _
    %36 = vsyncpa [#allocation3], 1
    %37 = vsyncpa [#allocation4], 1

// kernel: pvt_attention.2
$region0: #{pvt_attention.2}
  #allocation0 [shape = 'u32[]', space=smem, size = 0x4, offset = 0x4, fixed_abs, tag = 'smem constant byte address 0x4 - core index']
  #allocation1 [shape = 'u32[144,128]{1,0:T(1,128)}', space=vmem, size = 0x12000, scoped, tag = 'internal scratch']
  %s0 = inlined_call_operand.vmem [shape: bf16[128,512], index: 0, kind: input, shape index: {}]
  %s1 = inlined_call_operand.vmem [shape: bf16[512,128], index: 1, kind: input, shape index: {}]
  %s2 = inlined_call_operand.vmem [shape: f32[1,128], index: 2, kind: input, shape index: {}]
  %s3 = inlined_call_operand.vmem [shape: f32[1,128], index: 3, kind: input, shape index: {}]
  %s4 = inlined_call_operand.vmem [shape: f32[1,128], index: 4, kind: input, shape index: {}]
  %s5 = inlined_call_operand.vmem [shape: bf16[128,128], index: 5, kind: input, shape index: {}]
  %s6 = inlined_call_operand.vmem [shape: bf16[128,128], index: 6, kind: input, shape index: {}]
  %s7 = inlined_call_operand.vmem [shape: bf16[128,128], index: 7, kind: output, shape index: {0}]
  %s8 = inlined_call_operand.vmem [shape: bf16[128,128], index: 8, kind: output, shape index: {1}]
  %9 = xla_tuple %s7, %s8
  %s10 = sld [smem:[#allocation0]]
  $region69: #{pvt_attention.2} parent=0
    _
  %s12 = ssub.s32 1, %s10
  %s13 = scalar_select 0, %s12, %s10
  loop: start=0, step=1, limit=4
  $region2: #{pvt_attention.2} parent=0 // loop_pre_header
    _
  $region3: #{pvt_attention.2} parent=0 // loop_header
    %s15 = sphi 0, %s19
    %p16 = scmp.ge.s32.totalorder %s15, 4
    %s25 = sphi 0, %s27
    %s28 = sphi 0, %s25
    %s29 = sphi 0, %s28
    %s45 = sphi 0, %s29
    %s49 = sphi 0, %s49
    %s51 = sphi 0, %s49
    %s52 = sphi 0, %s51
    %s66 = sphi 0, %s52
    %s70 = sphi 0, %s70
    %s72 = sphi 0, %s70
    %s73 = sphi 0, %s72
    %s87 = sphi 0, %s73
    %s91 = sphi 0, %s91
    %s93 = sphi 0, %s91
    %s94 = sphi 0, %s93
    %s108 = sphi 0, %s94
    %s112 = sphi 0, %s112
    %s114 = sphi 0, %s112
    %s115 = sphi 0, %s114
    %s129 = sphi 0, %s115
    %s133 = sphi 0, %s133
    %s135 = sphi 0, %s133
    %s136 = sphi 0, %s135
    %s150 = sphi 0, %s136
    %s154 = sphi 0, %s154
    %s156 = sphi 0, %s154
    %s157 = sphi 0, %s156
    %s171 = sphi 0, %s157
    %s177 = sphi 0, %s179
    %s180 = sphi 0, %s177
    %s181 = sphi 0, %s180
    %s197 = sphi 0, %s181
    %s203 = sphi 0, %s205
    %s206 = sphi 0, %s203
    %s207 = sphi 0, %s206
    %s223 = sphi 0, %s207
  $region4: #{pvt_attention.2} parent=0 // loop_header_branch
    %18 = sbr.rel (%p16) target = $region8
  $region5: #{pvt_attention.2} parent=0 // loop_body
    %s20 = ssub.s32 %s15, 1
    %s21 = ssub.s32 %s15, 2
    %s22 = sadd.s32 %s15, 1
    %s23 = ssub.s32 %s15, %s22
    %p24 = scmp.eq.s32.totalorder %s23, 0
    %s26 = sadd.s32 %s25, 1
    %s27 = scalar_select %p24, %s25, %s26
    %p30 = pneg %p24
    %p31 = scmp.eq.s32.totalorder %s15, 1
    %p32 = por %p30, %p31
    %p33 = scmp.ne.s32.totalorder %s25, %s28
    %p34 = scmp.eq.s32.totalorder %s15, 0
    %p35 = por %p33, %p34
    %p36 = scmp.ne.s32.totalorder %s25, %s28
    %p37 = scmp.eq.s32.totalorder %s20, 1
    %p38 = por %p36, %p37
    %p39 = scmp.ne.s32.totalorder %s28, %s29
    %p40 = scmp.eq.s32.totalorder %s20, 0
    %p41 = por %p39, %p40
    %p42 = scmp.ne.s32.totalorder %s28, %s29
    %p43 = scmp.eq.s32.totalorder %s21, 1
    %p44 = por %p42, %p43
    %p46 = scmp.ne.s32.totalorder %s29, %s45
    %p47 = scmp.eq.s32.totalorder %s21, 0
    %p48 = por %p46, %p47
    %s50 = sadd.s32 %s49, 1
    %p53 = scmp.eq.s32.totalorder %s15, 1
    %p54 = scmp.ne.s32.totalorder %s49, %s51
    %p55 = scmp.eq.s32.totalorder %s15, 0
    %p56 = por %p54, %p55
    %p57 = scmp.ne.s32.totalorder %s49, %s51
    %p58 = scmp.eq.s32.totalorder %s20, 1
    %p59 = por %p57, %p58
    %p60 = scmp.ne.s32.totalorder %s51, %s52
    %p61 = scmp.eq.s32.totalorder %s20, 0
    %p62 = por %p60, %p61
    %p63 = scmp.ne.s32.totalorder %s51, %s52
    %p64 = scmp.eq.s32.totalorder %s21, 1
    %p65 = por %p63, %p64
    %p67 = scmp.ne.s32.totalorder %s52, %s66
    %p68 = scmp.eq.s32.totalorder %s21, 0
    %p69 = por %p67, %p68
    %s71 = sadd.s32 %s70, 1
    %p74 = scmp.eq.s32.totalorder %s15, 1
    %p75 = scmp.ne.s32.totalorder %s70, %s72
    %p76 = scmp.eq.s32.totalorder %s15, 0
    %p77 = por %p75, %p76
    %p78 = scmp.ne.s32.totalorder %s70, %s72
    %p79 = scmp.eq.s32.totalorder %s20, 1
    %p80 = por %p78, %p79
    %p81 = scmp.ne.s32.totalorder %s72, %s73
    %p82 = scmp.eq.s32.totalorder %s20, 0
    %p83 = por %p81, %p82
    %p84 = scmp.ne.s32.totalorder %s72, %s73
    %p85 = scmp.eq.s32.totalorder %s21, 1
    %p86 = por %p84, %p85
    %p88 = scmp.ne.s32.totalorder %s73, %s87
    %p89 = scmp.eq.s32.totalorder %s21, 0
    %p90 = por %p88, %p89
    %s92 = sadd.s32 %s91, 1
    %p95 = scmp.eq.s32.totalorder %s15, 1
    %p96 = scmp.ne.s32.totalorder %s91, %s93
    %p97 = scmp.eq.s32.totalorder %s15, 0
    %p98 = por %p96, %p97
    %p99 = scmp.ne.s32.totalorder %s91, %s93
    %p100 = scmp.eq.s32.totalorder %s20, 1
    %p101 = por %p99, %p100
    %p102 = scmp.ne.s32.totalorder %s93, %s94
    %p103 = scmp.eq.s32.totalorder %s20, 0
    %p104 = por %p102, %p103
    %p105 = scmp.ne.s32.totalorder %s93, %s94
    %p106 = scmp.eq.s32.totalorder %s21, 1
    %p107 = por %p105, %p106
    %p109 = scmp.ne.s32.totalorder %s94, %s108
    %p110 = scmp.eq.s32.totalorder %s21, 0
    %p111 = por %p109, %p110
    %s113 = sadd.s32 %s112, 1
    %p116 = scmp.eq.s32.totalorder %s15, 1
    %p117 = scmp.ne.s32.totalorder %s112, %s114
    %p118 = scmp.eq.s32.totalorder %s15, 0
    %p119 = por %p117, %p118
    %p120 = scmp.ne.s32.totalorder %s112, %s114
    %p121 = scmp.eq.s32.totalorder %s20, 1
    %p122 = por %p120, %p121
    %p123 = scmp.ne.s32.totalorder %s114, %s115
    %p124 = scmp.eq.s32.totalorder %s20, 0
    %p125 = por %p123, %p124
    %p126 = scmp.ne.s32.totalorder %s114, %s115
    %p127 = scmp.eq.s32.totalorder %s21, 1
    %p128 = por %p126, %p127
    %p130 = scmp.ne.s32.totalorder %s115, %s129
    %p131 = scmp.eq.s32.totalorder %s21, 0
    %p132 = por %p130, %p131
    %s134 = sadd.s32 %s133, 1
    %p137 = scmp.eq.s32.totalorder %s15, 1
    %p138 = scmp.ne.s32.totalorder %s133, %s135
    %p139 = scmp.eq.s32.totalorder %s15, 0
    %p140 = por %p138, %p139
    %p141 = scmp.ne.s32.totalorder %s133, %s135
    %p142 = scmp.eq.s32.totalorder %s20, 1
    %p143 = por %p141, %p142
    %p144 = scmp.ne.s32.totalorder %s135, %s136
    %p145 = scmp.eq.s32.totalorder %s20, 0
    %p146 = por %p144, %p145
    %p147 = scmp.ne.s32.totalorder %s135, %s136
    %p148 = scmp.eq.s32.totalorder %s21, 1
    %p149 = por %p147, %p148
    %p151 = scmp.ne.s32.totalorder %s136, %s150
    %p152 = scmp.eq.s32.totalorder %s21, 0
    %p153 = por %p151, %p152
    %s155 = sadd.s32 %s154, 1
    %p158 = scmp.eq.s32.totalorder %s15, 1
    %p159 = scmp.ne.s32.totalorder %s154, %s156
    %p160 = scmp.eq.s32.totalorder %s15, 0
    %p161 = por %p159, %p160
    %p162 = scmp.ne.s32.totalorder %s154, %s156
    %p163 = scmp.eq.s32.totalorder %s20, 1
    %p164 = por %p162, %p163
    %p165 = scmp.ne.s32.totalorder %s156, %s157
    %p166 = scmp.eq.s32.totalorder %s20, 0
    %p167 = por %p165, %p166
    %p168 = scmp.ne.s32.totalorder %s156, %s157
    %p169 = scmp.eq.s32.totalorder %s21, 1
    %p170 = por %p168, %p169
    %p172 = scmp.ne.s32.totalorder %s157, %s171
    %p173 = scmp.eq.s32.totalorder %s21, 0
    %p174 = por %p172, %p173
    %s175 = ssub.s32 %s15, %s22
    %p176 = scmp.eq.s32.totalorder %s175, 0
    %s178 = sadd.s32 %s177, 1
    %s179 = scalar_select %p176, %s177, %s178
    %p182 = pneg %p176
    %p183 = scmp.eq.s32.totalorder %s15, 1
    %p184 = por %p182, %p183
    %p185 = scmp.ne.s32.totalorder %s177, %s180
    %p186 = scmp.eq.s32.totalorder %s15, 0
    %p187 = por %p185, %p186
    %p188 = scmp.ne.s32.totalorder %s177, %s180
    %p189 = scmp.eq.s32.totalorder %s20, 1
    %p190 = por %p188, %p189
    %p191 = scmp.ne.s32.totalorder %s180, %s181
    %p192 = scmp.eq.s32.totalorder %s20, 0
    %p193 = por %p191, %p192
    %p194 = scmp.ne.s32.totalorder %s180, %s181
    %p195 = scmp.eq.s32.totalorder %s21, 1
    %p196 = por %p194, %p195
    %p198 = scmp.ne.s32.totalorder %s181, %s197
    %p199 = scmp.eq.s32.totalorder %s21, 0
    %p200 = por %p198, %p199
    %s201 = ssub.s32 %s15, %s22
    %p202 = scmp.eq.s32.totalorder %s201, 0
    %s204 = sadd.s32 %s203, 1
    %s205 = scalar_select %p202, %s203, %s204
    %p208 = pneg %p202
    %p209 = scmp.eq.s32.totalorder %s15, 1
    %p210 = por %p208, %p209
    %p211 = scmp.ne.s32.totalorder %s203, %s206
    %p212 = scmp.eq.s32.totalorder %s15, 0
    %p213 = por %p211, %p212
    %p214 = scmp.ne.s32.totalorder %s203, %s206
    %p215 = scmp.eq.s32.totalorder %s20, 1
    %p216 = por %p214, %p215
    %p217 = scmp.ne.s32.totalorder %s206, %s207
    %p218 = scmp.eq.s32.totalorder %s20, 0
    %p219 = por %p217, %p218
    %p220 = scmp.ne.s32.totalorder %s206, %s207
    %p221 = scmp.eq.s32.totalorder %s21, 1
    %p222 = por %p220, %p221
    %p224 = scmp.ne.s32.totalorder %s207, %s223
    %p225 = scmp.eq.s32.totalorder %s21, 0
    %p226 = por %p224, %p225
    %p227 = scmp.le.s32.totalorder 1, %s15
    %p228 = scmp.lt.s32.totalorder %s15, 3
    %p229 = pnand %p227, %p228
    %p230 = pneg %p229
    // Predicated region
    $region9: #{pvt_attention.2} parent=5 // pred_check
      _
    $region10: #{pvt_attention.2} parent=5 // pred_check_branch
      %232 = sbr.rel (%p229) target = $region12
    $region11: #{pvt_attention.2} parent=5 // pred_region
      %s233 = ssub.s32 %s15, 1
      // Predicated region
      $region13: #{pvt_attention.2} parent=11 // pred_check
        %p234 = pneg %p62
      $region14: #{pvt_attention.2} parent=11 // pred_check_branch
        %236 = sbr.rel (%p234) target = $region16
      $region15: #{pvt_attention.2} parent=11 // pred_region
        _
      $region16: #{pvt_attention.2} parent=11 // pred_fallthru
        _
      // Predicated region
      $region17: #{pvt_attention.2} parent=11 // pred_check
        %p237 = pneg %p83
      $region18: #{pvt_attention.2} parent=11 // pred_check_branch
        %239 = sbr.rel (%p237) target = $region20
      $region19: #{pvt_attention.2} parent=11 // pred_region
        _
      $region20: #{pvt_attention.2} parent=11 // pred_fallthru
        _
      // Predicated region
      $region21: #{pvt_attention.2} parent=11 // pred_check
        %p240 = pneg %p104
      $region22: #{pvt_attention.2} parent=11 // pred_check_branch
        %242 = sbr.rel (%p240) target = $region24
      $region23: #{pvt_attention.2} parent=11 // pred_region
        _
      $region24: #{pvt_attention.2} parent=11 // pred_fallthru
        _
      // Predicated region
      $region25: #{pvt_attention.2} parent=11 // pred_check
        %p243 = pneg %p125
      $region26: #{pvt_attention.2} parent=11 // pred_check_branch
        %245 = sbr.rel (%p243) target = $region28
      $region27: #{pvt_attention.2} parent=11 // pred_region
        _
      $region28: #{pvt_attention.2} parent=11 // pred_fallthru
        _
      // Predicated region
      $region29: #{pvt_attention.2} parent=11 // pred_check
        %p246 = pneg %p146
      $region30: #{pvt_attention.2} parent=11 // pred_check_branch
        %248 = sbr.rel (%p246) target = $region32
      $region31: #{pvt_attention.2} parent=11 // pred_region
        _
      $region32: #{pvt_attention.2} parent=11 // pred_fallthru
        _
      // Predicated region
      $region33: #{pvt_attention.2} parent=11 // pred_check
        %p249 = pneg %p167
      $region34: #{pvt_attention.2} parent=11 // pred_check_branch
        %251 = sbr.rel (%p249) target = $region36
      $region35: #{pvt_attention.2} parent=11 // pred_region
        _
      $region36: #{pvt_attention.2} parent=11 // pred_fallthru
        _
    $region12: #{pvt_attention.2} parent=5 // pred_fallthru
      _
    %p252 = scmp.lt.s32.totalorder %s15, 2
    // Predicated region
    $region37: #{pvt_attention.2} parent=5 // pred_check
      %p253 = pneg %p252
    $region38: #{pvt_attention.2} parent=5 // pred_check_branch
      %255 = sbr.rel (%p253) target = $region40
    $region39: #{pvt_attention.2} parent=5 // pred_region
      // Predicated region
      $region41: #{pvt_attention.2} parent=39 // pred_check
        %p256 = pneg %p35
      $region42: #{pvt_attention.2} parent=39 // pred_check_branch
        %258 = sbr.rel (%p256) target = $region44
      $region43: #{pvt_attention.2} parent=39 // pred_region
        %s259 = smul.u32 8, %s15
        %p260 = scmp.lt.s32.totalorder %s259, 15
        %s261 = scalar_select %p260, %s259, 15
        %s262 = smul.addr %s261, 4
        %s263 = smul.addr %s262, 4
        %s264 = scalar_lea.vmem %s0, %s263
        %s265 = smul.u32 8, %s15
      $region44: #{pvt_attention.2} parent=39 // pred_fallthru
        _
    $region40: #{pvt_attention.2} parent=5 // pred_fallthru
      _
    %p266 = scmp.le.s32.totalorder 1, %s15
    %p267 = scmp.lt.s32.totalorder %s15, 3
    %p268 = pnand %p266, %p267
    %p269 = pneg %p268
    // Predicated region
    $region45: #{pvt_attention.2} parent=5 // pred_check
      _
    $region46: #{pvt_attention.2} parent=5 // pred_check_branch
      %271 = sbr.rel (%p268) target = $region48
    $region47: #{pvt_attention.2} parent=5 // pred_region
      %s272 = ssub.s32 %s15, 1
      %s273 = smul.u32 8, %s20
      %p274 = scmp.lt.s32.totalorder %s273, 15
      %s275 = scalar_select %p274, %s273, 15
      %s276 = smul.addr %s275, 4
      %s277 = smul.addr %s276, 4
      %s278 = scalar_lea.vmem %s0, %s277
      %p279 = pneg %p41
      %p280 = pneg %p38
      %p281 = pneg %p62
      %p282 = pneg %p59
      %p283 = pneg %p83
      %p284 = pneg %p80
      %p285 = pneg %p104
      %p286 = pneg %p101
      %p287 = pneg %p125
      %p288 = pneg %p122
      %p289 = pneg %p146
      %p290 = pneg %p143
      %p291 = pneg %p167
      %p292 = pneg %p164
      %p293 = pneg %p193
      %p294 = pneg %p190
      %s295 = smul.u32 8, %s20
      %p296 = scmp.lt.s32.totalorder %s295, 15
      %s297 = scalar_select %p296, %s295, 15
      %s298 = smul.addr %s297, 4
      %s299 = scalar_lea.vmem %s7, %s298
      %p300 = pneg %p219
      %p301 = pneg %p216
      %s302 = smul.u32 8, %s20
      %p303 = scmp.lt.s32.totalorder %s302, 15
      %s304 = scalar_select %p303, %s302, 15
      %s305 = smul.addr %s304, 4
      %s306 = scalar_lea.vmem %s8, %s305
      %s307 = smul.u32 8, %s20
      %p308 = scmp.lt.s32.totalorder %s307, 15
      %s309 = scalar_select %p308, %s307, 15
      %s310 = smul.addr %s309, 4
      %s311 = smul.addr %s310, 4
      %s312 = scalar_lea.vmem %s0, %s311
      %s313 = smul.u32 8, %s20
      %s314 = smul.u32 8, %s20
      %p315 = scmp.lt.s32.totalorder %s314, 15
      %s316 = scalar_select %p315, %s314, 15
      %s317 = smul.addr %s316, 4
      %s318 = scalar_lea.vmem %s7, %s317
      %s319 = smul.u32 8, %s20
      %s320 = smul.u32 8, %s20
      %p321 = scmp.lt.s32.totalorder %s320, 15
      %s322 = scalar_select %p321, %s320, 15
      %s323 = smul.addr %s322, 4
      %s324 = scalar_lea.vmem %s8, %s323
      %s325 = smul.u32 8, %s20
      %v327 = vld [vmem:[%s312] sm:$0xff]
      %v328 = vld [vmem:[%s312 + $0x8] sm:$0xff]
      %v329 = vld [vmem:[%s312 + $0x10] sm:$0xff]
      %v330 = vld [vmem:[%s312 + $0x18] sm:$0xff]
      %v331 = vld [vmem:[%s312 + $0x20] sm:$0xff]
      %v332 = vld [vmem:[%s312 + $0x28] sm:$0xff]
      %v333 = vld [vmem:[%s312 + $0x30] sm:$0xff]
      %v334 = vld [vmem:[%s312 + $0x38] sm:$0xff]
      %v335 = vld [vmem:[%s312 + $0x40] sm:$0xff]
      %v336 = vld [vmem:[%s312 + $0x48] sm:$0xff]
      %v337 = vld [vmem:[%s312 + $0x50] sm:$0xff]
      %v338 = vld [vmem:[%s312 + $0x58] sm:$0xff]
      %v339 = vld [vmem:[%s312 + $0x60] sm:$0xff]
      %v340 = vld [vmem:[%s312 + $0x68] sm:$0xff]
      %v341 = vld [vmem:[%s312 + $0x70] sm:$0xff]
      %v342 = vld [vmem:[%s312 + $0x78] sm:$0xff]
      %v343 = vld [vmem:[%s1] sm:$0xf]
      %v344 = vld [vmem:[%s1 + $0x4] sm:$0xf]
      %v345 = vld [vmem:[%s1 + $0x8] sm:$0xf]
      %v346 = vld [vmem:[%s1 + $0xc] sm:$0xf]
      %v347 = vld [vmem:[%s1 + $0x10] sm:$0xf]
      %v348 = vld [vmem:[%s1 + $0x14] sm:$0xf]
      %v349 = vld [vmem:[%s1 + $0x18] sm:$0xf]
      %v350 = vld [vmem:[%s1 + $0x1c] sm:$0xf]
      %v351 = vld [vmem:[%s1 + $0x20] sm:$0xf]
      %v352 = vld [vmem:[%s1 + $0x24] sm:$0xf]
      %v353 = vld [vmem:[%s1 + $0x28] sm:$0xf]
      %v354 = vld [vmem:[%s1 + $0x2c] sm:$0xf]
      %v355 = vld [vmem:[%s1 + $0x30] sm:$0xf]
      %v356 = vld [vmem:[%s1 + $0x34] sm:$0xf]
      %v357 = vld [vmem:[%s1 + $0x38] sm:$0xf]
      %v358 = vld [vmem:[%s1 + $0x3c] sm:$0xf]
      %v359 = vld [vmem:[%s1 + $0x40] sm:$0xf]
      %v360 = vld [vmem:[%s1 + $0x44] sm:$0xf]
      %v361 = vld [vmem:[%s1 + $0x48] sm:$0xf]
      %v362 = vld [vmem:[%s1 + $0x4c] sm:$0xf]
      %v363 = vld [vmem:[%s1 + $0x50] sm:$0xf]
      %v364 = vld [vmem:[%s1 + $0x54] sm:$0xf]
      %v365 = vld [vmem:[%s1 + $0x58] sm:$0xf]
      %v366 = vld [vmem:[%s1 + $0x5c] sm:$0xf]
      %v367 = vld [vmem:[%s1 + $0x60] sm:$0xf]
      %v368 = vld [vmem:[%s1 + $0x64] sm:$0xf]
      %v369 = vld [vmem:[%s1 + $0x68] sm:$0xf]
      %v370 = vld [vmem:[%s1 + $0x6c] sm:$0xf]
      %v371 = vld [vmem:[%s1 + $0x70] sm:$0xf]
      %v372 = vld [vmem:[%s1 + $0x74] sm:$0xf]
      %v373 = vld [vmem:[%s1 + $0x78] sm:$0xf]
      %v374 = vld [vmem:[%s1 + $0x7c] sm:$0xf]
      %v375 = vld [vmem:[%s1 + $0x80] sm:$0xf]
      %v376 = vld [vmem:[%s1 + $0x84] sm:$0xf]
      %v377 = vld [vmem:[%s1 + $0x88] sm:$0xf]
      %v378 = vld [vmem:[%s1 + $0x8c] sm:$0xf]
      %v379 = vld [vmem:[%s1 + $0x90] sm:$0xf]
      %v380 = vld [vmem:[%s1 + $0x94] sm:$0xf]
      %v381 = vld [vmem:[%s1 + $0x98] sm:$0xf]
      %v382 = vld [vmem:[%s1 + $0x9c] sm:$0xf]
      %v383 = vld [vmem:[%s1 + $0xa0] sm:$0xf]
      %v384 = vld [vmem:[%s1 + $0xa4] sm:$0xf]
      %v385 = vld [vmem:[%s1 + $0xa8] sm:$0xf]
      %v386 = vld [vmem:[%s1 + $0xac] sm:$0xf]
      %v387 = vld [vmem:[%s1 + $0xb0] sm:$0xf]
      %v388 = vld [vmem:[%s1 + $0xb4] sm:$0xf]
      %v389 = vld [vmem:[%s1 + $0xb8] sm:$0xf]
      %v390 = vld [vmem:[%s1 + $0xbc] sm:$0xf]
      %v391 = vld [vmem:[%s1 + $0xc0] sm:$0xf]
      %v392 = vld [vmem:[%s1 + $0xc4] sm:$0xf]
      %v393 = vld [vmem:[%s1 + $0xc8] sm:$0xf]
      %v394 = vld [vmem:[%s1 + $0xcc] sm:$0xf]
      %v395 = vld [vmem:[%s1 + $0xd0] sm:$0xf]
      %v396 = vld [vmem:[%s1 + $0xd4] sm:$0xf]
      %v397 = vld [vmem:[%s1 + $0xd8] sm:$0xf]
      %v398 = vld [vmem:[%s1 + $0xdc] sm:$0xf]
      %v399 = vld [vmem:[%s1 + $0xe0] sm:$0xf]
      %v400 = vld [vmem:[%s1 + $0xe4] sm:$0xf]
      %v401 = vld [vmem:[%s1 + $0xe8] sm:$0xf]
      %v402 = vld [vmem:[%s1 + $0xec] sm:$0xf]
      %v403 = vld [vmem:[%s1 + $0xf0] sm:$0xf]
      %v404 = vld [vmem:[%s1 + $0xf4] sm:$0xf]
      %v405 = vld [vmem:[%s1 + $0xf8] sm:$0xf]
      %v406 = vld [vmem:[%s1 + $0xfc] sm:$0xf]
      %v407 = vld [vmem:[%s2] sm:$0x1]
      %v409 = vlaneseq
      %v410 = vshrl.u32 %v409, 7
      %v411 = vsub.s32 0, %v410
      %v412 = vrot.slane %v407, %v411
      %v430 = vunpack.c.l.b16 %v327
      %v431 = vunpack.c.h.b16 %v327
      %v432 = vunpack.c.l.b16 %v328
      %v433 = vunpack.c.h.b16 %v328
      %v434 = vunpack.c.l.b16 %v329
      %v435 = vunpack.c.h.b16 %v329
      %v436 = vunpack.c.l.b16 %v330
      %v437 = vunpack.c.h.b16 %v330
      %v438 = vunpack.c.l.b16 %v331
      %v439 = vunpack.c.h.b16 %v331
      %v440 = vunpack.c.l.b16 %v332
      %v441 = vunpack.c.h.b16 %v332
      %v442 = vunpack.c.l.b16 %v333
      %v443 = vunpack.c.h.b16 %v333
      %v444 = vunpack.c.l.b16 %v334
      %v445 = vunpack.c.h.b16 %v334
      %v446 = vunpack.c.l.b16 %v335
      %v447 = vunpack.c.h.b16 %v335
      %v448 = vunpack.c.l.b16 %v336
      %v449 = vunpack.c.h.b16 %v336
      %v450 = vunpack.c.l.b16 %v337
      %v451 = vunpack.c.h.b16 %v337
      %v452 = vunpack.c.l.b16 %v338
      %v453 = vunpack.c.h.b16 %v338
      %v454 = vunpack.c.l.b16 %v339
      %v455 = vunpack.c.h.b16 %v339
      %v456 = vunpack.c.l.b16 %v340
      %v457 = vunpack.c.h.b16 %v340
      %v458 = vunpack.c.l.b16 %v341
      %v459 = vunpack.c.h.b16 %v341
      %v460 = vunpack.c.l.b16 %v342
      %v461 = vunpack.c.h.b16 %v342
      %v462 = vpack.c.b16 %v434, %v430
      %v463 = vpack.c.b16 %v435, %v431
      %v464 = vpack.c.b16 %v436, %v432
      %v465 = vpack.c.b16 %v437, %v433
      %v466 = vpack.c.b16 %v442, %v438
      %v467 = vpack.c.b16 %v443, %v439
      %v468 = vpack.c.b16 %v444, %v440
      %v469 = vpack.c.b16 %v445, %v441
      %v470 = vpack.c.b16 %v450, %v446
      %v471 = vpack.c.b16 %v451, %v447
      %v472 = vpack.c.b16 %v452, %v448
      %v473 = vpack.c.b16 %v453, %v449
      %v474 = vpack.c.b16 %v458, %v454
      %v475 = vpack.c.b16 %v459, %v455
      %v476 = vpack.c.b16 %v460, %v456
      %v477 = vpack.c.b16 %v461, %v457
      %v558 = vunpack.c.l.b16 %v343
      %v559 = vunpack.c.l.b16 %v344
      %v560 = vunpack.c.l.b16 %v345
      %v561 = vunpack.c.l.b16 %v346
      %v562 = vunpack.c.l.b16 %v347
      %v563 = vunpack.c.l.b16 %v348
      %v564 = vunpack.c.l.b16 %v349
      %v565 = vunpack.c.l.b16 %v350
      %v566 = vunpack.c.l.b16 %v351
      %v567 = vunpack.c.l.b16 %v352
      %v568 = vunpack.c.l.b16 %v353
      %v569 = vunpack.c.l.b16 %v354
      %v570 = vunpack.c.l.b16 %v355
      %v571 = vunpack.c.l.b16 %v356
      %v572 = vunpack.c.l.b16 %v357
      %v573 = vunpack.c.l.b16 %v358
      %v574 = vunpack.c.l.b16 %v359
      %v575 = vunpack.c.l.b16 %v360
      %v576 = vunpack.c.l.b16 %v361
      %v577 = vunpack.c.l.b16 %v362
      %v578 = vunpack.c.l.b16 %v363
      %v579 = vunpack.c.l.b16 %v364
      %v580 = vunpack.c.l.b16 %v365
      %v581 = vunpack.c.l.b16 %v366
      %v582 = vunpack.c.l.b16 %v367
      %v583 = vunpack.c.l.b16 %v368
      %v584 = vunpack.c.l.b16 %v369
      %v585 = vunpack.c.l.b16 %v370
      %v586 = vunpack.c.l.b16 %v371
      %v587 = vunpack.c.l.b16 %v372
      %v588 = vunpack.c.l.b16 %v373
      %v589 = vunpack.c.l.b16 %v374
      %v590 = vunpack.c.l.b16 %v375
      %v591 = vunpack.c.l.b16 %v376
      %v592 = vunpack.c.l.b16 %v377
      %v593 = vunpack.c.l.b16 %v378
      %v594 = vunpack.c.l.b16 %v379
      %v595 = vunpack.c.l.b16 %v380
      %v596 = vunpack.c.l.b16 %v381
      %v597 = vunpack.c.l.b16 %v382
      %v598 = vunpack.c.l.b16 %v383
      %v599 = vunpack.c.l.b16 %v384
      %v600 = vunpack.c.l.b16 %v385
      %v601 = vunpack.c.l.b16 %v386
      %v602 = vunpack.c.l.b16 %v387
      %v603 = vunpack.c.l.b16 %v388
      %v604 = vunpack.c.l.b16 %v389
      %v605 = vunpack.c.l.b16 %v390
      %v606 = vunpack.c.l.b16 %v391
      %v607 = vunpack.c.l.b16 %v392
      %v608 = vunpack.c.l.b16 %v393
      %v609 = vunpack.c.l.b16 %v394
      %v610 = vunpack.c.l.b16 %v395
      %v611 = vunpack.c.l.b16 %v396
      %v612 = vunpack.c.l.b16 %v397
      %v613 = vunpack.c.l.b16 %v398
      %v614 = vunpack.c.l.b16 %v399
      %v615 = vunpack.c.l.b16 %v400
      %v616 = vunpack.c.l.b16 %v401
      %v617 = vunpack.c.l.b16 %v402
      %v618 = vunpack.c.l.b16 %v403
      %v619 = vunpack.c.l.b16 %v404
      %v620 = vunpack.c.l.b16 %v405
      %v621 = vunpack.c.l.b16 %v406
      %v622 = vpack.c.b16 %v559, %v558
      %v623 = vpack.c.b16 %v561, %v560
      %v624 = vpack.c.b16 %v563, %v562
      %v625 = vpack.c.b16 %v565, %v564
      %v626 = vpack.c.b16 %v567, %v566
      %v627 = vpack.c.b16 %v569, %v568
      %v628 = vpack.c.b16 %v571, %v570
      %v629 = vpack.c.b16 %v573, %v572
      %v630 = vpack.c.b16 %v575, %v574
      %v631 = vpack.c.b16 %v577, %v576
      %v632 = vpack.c.b16 %v579, %v578
      %v633 = vpack.c.b16 %v581, %v580
      %v634 = vpack.c.b16 %v583, %v582
      %v635 = vpack.c.b16 %v585, %v584
      %v636 = vpack.c.b16 %v587, %v586
      %v637 = vpack.c.b16 %v589, %v588
      %v638 = vpack.c.b16 %v591, %v590
      %v639 = vpack.c.b16 %v593, %v592
      %v640 = vpack.c.b16 %v595, %v594
      %v641 = vpack.c.b16 %v597, %v596
      %v642 = vpack.c.b16 %v599, %v598
      %v643 = vpack.c.b16 %v601, %v600
      %v644 = vpack.c.b16 %v603, %v602
      %v645 = vpack.c.b16 %v605, %v604
      %v646 = vpack.c.b16 %v607, %v606
      %v647 = vpack.c.b16 %v609, %v608
      %v648 = vpack.c.b16 %v611, %v610
      %v649 = vpack.c.b16 %v613, %v612
      %v650 = vpack.c.b16 %v615, %v614
      %v651 = vpack.c.b16 %v617, %v616
      %v652 = vpack.c.b16 %v619, %v618
      %v653 = vpack.c.b16 %v621, %v620
      %686 = vmatprep.subr.bf16.mxu0 0
      %687 = vmatpush1.bf16.msra.mxu0 %v629
      %688 = vmatprep.subr.bf16.mxu0 0
      %689 = vmatpush1.bf16.msra.mxu0 %v628
      %690 = vmatprep.subr.bf16.mxu0 0
      %691 = vmatpush1.bf16.msra.mxu0 %v627
      %692 = vmatprep.subr.bf16.mxu0 0
      %693 = vmatpush1.bf16.msra.mxu0 %v626
      %694 = vmatprep.subr.bf16.mxu0 0
      %695 = vmatpush1.bf16.msra.mxu0 %v625
      %696 = vmatprep.subr.bf16.mxu0 0
      %697 = vmatpush1.bf16.msra.mxu0 %v624
      %698 = vmatprep.subr.bf16.mxu0 0
      %699 = vmatpush1.bf16.msra.mxu0 %v623
      %700 = vmatprep.subr.bf16.mxu0 0
      %701 = vmatpush1.bf16.msra.mxu0 %v622
      %702 = vmatprep.subr.bf16.mxu0 0
      %703 = vmatpush2.bf16.msra.mxu0 %v637
      %704 = vmatprep.subr.bf16.mxu0 0
      %705 = vmatpush2.bf16.msra.mxu0 %v636
      %706 = vmatprep.subr.bf16.mxu0 0
      %707 = vmatpush2.bf16.msra.mxu0 %v635
      %708 = vmatprep.subr.bf16.mxu0 0
      %709 = vmatpush2.bf16.msra.mxu0 %v634
      %710 = vmatprep.subr.bf16.mxu0 0
      %711 = vmatpush2.bf16.msra.mxu0 %v633
      %712 = vmatprep.subr.bf16.mxu0 0
      %713 = vmatpush2.bf16.msra.mxu0 %v632
      %714 = vmatprep.subr.bf16.mxu0 0
      %715 = vmatpush2.bf16.msra.mxu0 %v631
      %716 = vmatprep.subr.bf16.mxu0 0
      %717 = vmatpush2.bf16.msra.mxu0 %v630
      %718 = vmatprep.mubr.bf16.mxu0 %v463
      %719 = vmatmul.mubr.bf16.gmra.mxu0 %v462
      %v720 = vpop.f32.mrf.mxu0
      %v721 = vadd.f32 %v412, %v720
      %v722 = vpop.f32.mrf.mxu0
      %v723 = vpop.f32.mrf.mxu0
      %v724 = vadd.f32 %v412, %v723
      %v725 = vpop.f32.mrf.mxu0
      %726 = vmatprep.mubr.bf16.mxu0 %v467
      %727 = vmatmul.mubr.bf16.gmra.mxu0 %v466
      %v728 = vpop.f32.mrf.mxu0
      %v729 = vadd.f32 %v412, %v728
      %v730 = vpop.f32.mrf.mxu0
      %v731 = vpop.f32.mrf.mxu0
      %v732 = vadd.f32 %v412, %v731
      %v733 = vpop.f32.mrf.mxu0
      %734 = vmatprep.mubr.bf16.mxu0 %v471
      %735 = vmatmul.mubr.bf16.gmra.mxu0 %v470
      %v736 = vpop.f32.mrf.mxu0
      %v737 = vadd.f32 %v412, %v736
      %v738 = vpop.f32.mrf.mxu0
      %v739 = vpop.f32.mrf.mxu0
      %v740 = vadd.f32 %v412, %v739
      %v741 = vpop.f32.mrf.mxu0
      %742 = vmatprep.mubr.bf16.mxu0 %v475
      %743 = vmatmul.mubr.bf16.gmra.mxu0 %v474
      %v744 = vpop.f32.mrf.mxu0
      %v745 = vadd.f32 %v412, %v744
      %v746 = vpop.f32.mrf.mxu0
      %v747 = vpop.f32.mrf.mxu0
      %v748 = vadd.f32 %v412, %v747
      %v749 = vpop.f32.mrf.mxu0
      %750 = vdwg.mxu0
      %751 = vmatprep.subr.bf16.mxu0 0
      %752 = vmatpush1.bf16.msra.mxu0 %v645
      %753 = vmatprep.subr.bf16.mxu0 0
      %754 = vmatpush1.bf16.msra.mxu0 %v644
      %755 = vmatprep.subr.bf16.mxu0 0
      %756 = vmatpush1.bf16.msra.mxu0 %v643
      %757 = vmatprep.subr.bf16.mxu0 0
      %758 = vmatpush1.bf16.msra.mxu0 %v642
      %759 = vmatprep.subr.bf16.mxu0 0
      %760 = vmatpush1.bf16.msra.mxu0 %v641
      %761 = vmatprep.subr.bf16.mxu0 0
      %762 = vmatpush1.bf16.msra.mxu0 %v640
      %763 = vmatprep.subr.bf16.mxu0 0
      %764 = vmatpush1.bf16.msra.mxu0 %v639
      %765 = vmatprep.subr.bf16.mxu0 0
      %766 = vmatpush1.bf16.msra.mxu0 %v638
      %767 = vmatprep.subr.bf16.mxu0 0
      %768 = vmatpush2.bf16.msra.mxu0 %v653
      %769 = vmatprep.subr.bf16.mxu0 0
      %770 = vmatpush2.bf16.msra.mxu0 %v652
      %771 = vmatprep.subr.bf16.mxu0 0
      %772 = vmatpush2.bf16.msra.mxu0 %v651
      %773 = vmatprep.subr.bf16.mxu0 0
      %774 = vmatpush2.bf16.msra.mxu0 %v650
      %775 = vmatprep.subr.bf16.mxu0 0
      %776 = vmatpush2.bf16.msra.mxu0 %v649
      %777 = vmatprep.subr.bf16.mxu0 0
      %778 = vmatpush2.bf16.msra.mxu0 %v648
      %779 = vmatprep.subr.bf16.mxu0 0
      %780 = vmatpush2.bf16.msra.mxu0 %v647
      %781 = vmatprep.subr.bf16.mxu0 0
      %782 = vmatpush2.bf16.msra.mxu0 %v646
      %783 = vmatprep.mubr.bf16.mxu0 %v465
      %784 = vmatmul.mubr.bf16.gmra.mxu0 %v464
      %v785 = vpop.f32.mrf.mxu0
      %v786 = vadd.f32 %v721, %v785
      %v787 = vpop.f32.mrf.mxu0
      %v788 = vpop.f32.mrf.mxu0
      %v789 = vadd.f32 %v724, %v788
      %v790 = vpop.f32.mrf.mxu0
      %791 = vmatprep.mubr.bf16.mxu0 %v469
      %792 = vmatmul.mubr.bf16.gmra.mxu0 %v468
      %v793 = vpop.f32.mrf.mxu0
      %v794 = vadd.f32 %v729, %v793
      %v795 = vpop.f32.mrf.mxu0
      %v796 = vpop.f32.mrf.mxu0
      %v797 = vadd.f32 %v732, %v796
      %v798 = vpop.f32.mrf.mxu0
      %799 = vmatprep.mubr.bf16.mxu0 %v473
      %800 = vmatmul.mubr.bf16.gmra.mxu0 %v472
      %v801 = vpop.f32.mrf.mxu0
      %v802 = vadd.f32 %v737, %v801
      %v803 = vpop.f32.mrf.mxu0
      %v804 = vpop.f32.mrf.mxu0
      %v805 = vadd.f32 %v740, %v804
      %v806 = vpop.f32.mrf.mxu0
      %807 = vmatprep.mubr.bf16.mxu0 %v477
      %808 = vmatmul.mubr.bf16.gmra.mxu0 %v476
      %v809 = vpop.f32.mrf.mxu0
      %v810 = vadd.f32 %v745, %v809
      %v811 = vpop.f32.mrf.mxu0
      %v812 = vpop.f32.mrf.mxu0
      %v813 = vadd.f32 %v748, %v812
      %v814 = vpop.f32.mrf.mxu0
      %815 = vdwg.mxu0
      %816 = vadd.xlane.f32.xlu0 %v786
      %v817 = vpop.xlane.xlu0 %816
      %818 = vadd.xlane.f32.xlu0 %v789
      %v819 = vpop.xlane.xlu0 %818
      %820 = vadd.xlane.f32.xlu0 %v794
      %v821 = vpop.xlane.xlu0 %820
      %822 = vadd.xlane.f32.xlu0 %v797
      %v823 = vpop.xlane.xlu0 %822
      %824 = vadd.xlane.f32.xlu0 %v802
      %v825 = vpop.xlane.xlu0 %824
      %826 = vadd.xlane.f32.xlu0 %v805
      %v827 = vpop.xlane.xlu0 %826
      %828 = vadd.xlane.f32.xlu0 %v810
      %v829 = vpop.xlane.xlu0 %828
      %830 = vadd.xlane.f32.xlu0 %v813
      %v831 = vpop.xlane.xlu0 %830
      %v832 = vrcp.pop 128.0
      %v833 = vmul.f32 %v817, %v832
      %v834 = vmul.f32 %v819, %v832
      %v835 = vmul.f32 %v821, %v832
      %v836 = vmul.f32 %v823, %v832
      %v837 = vmul.f32 %v825, %v832
      %v838 = vmul.f32 %v827, %v832
      %v839 = vmul.f32 %v829, %v832
      %v840 = vmul.f32 %v831, %v832
      %v841 = vsub.f32 %v786, %v833
      %v842 = vsub.f32 %v789, %v834
      %v843 = vsub.f32 %v794, %v835
      %v844 = vsub.f32 %v797, %v836
      %v845 = vsub.f32 %v802, %v837
      %v846 = vsub.f32 %v805, %v838
      %v847 = vsub.f32 %v810, %v839
      %v848 = vsub.f32 %v813, %v840
      %v849 = vmul.f32 %v841, %v841
      %v850 = vmul.f32 %v842, %v842
      %v851 = vmul.f32 %v843, %v843
      %v852 = vmul.f32 %v844, %v844
      %v853 = vmul.f32 %v845, %v845
      %v854 = vmul.f32 %v846, %v846
      %v855 = vmul.f32 %v847, %v847
      %v856 = vmul.f32 %v848, %v848
      %857 = vadd.xlane.f32.xlu0 %v849
      %v858 = vpop.xlane.xlu0 %857
      %859 = vadd.xlane.f32.xlu0 %v850
      %v860 = vpop.xlane.xlu0 %859
      %861 = vadd.xlane.f32.xlu0 %v851
      %v862 = vpop.xlane.xlu0 %861
      %863 = vadd.xlane.f32.xlu0 %v852
      %v864 = vpop.xlane.xlu0 %863
      %865 = vadd.xlane.f32.xlu0 %v853
      %v866 = vpop.xlane.xlu0 %865
      %867 = vadd.xlane.f32.xlu0 %v854
      %v868 = vpop.xlane.xlu0 %867
      %869 = vadd.xlane.f32.xlu0 %v855
      %v870 = vpop.xlane.xlu0 %869
      %871 = vadd.xlane.f32.xlu0 %v856
      %v872 = vpop.xlane.xlu0 %871
      %v873 = vmul.f32 %v858, %v832
      %v874 = vmul.f32 %v860, %v832
      %v875 = vmul.f32 %v862, %v832
      %v876 = vmul.f32 %v864, %v832
      %v877 = vmul.f32 %v866, %v832
      %v878 = vmul.f32 %v868, %v832
      %v879 = vmul.f32 %v870, %v832
      %v880 = vmul.f32 %v872, %v832
      %v881 = vadd.f32 %v873, 1e-05
      %v882 = vadd.f32 %v874, 1e-05
      %v883 = vadd.f32 %v875, 1e-05
      %v884 = vadd.f32 %v876, 1e-05
      %v885 = vadd.f32 %v877, 1e-05
      %v886 = vadd.f32 %v878, 1e-05
      %v887 = vadd.f32 %v879, 1e-05
      %v888 = vadd.f32 %v880, 1e-05
      %v889 = vrsqrt.pop %v881
      %v890 = vrsqrt.pop %v882
      %v891 = vrsqrt.pop %v883
      %v892 = vrsqrt.pop %v884
      %v893 = vrsqrt.pop %v885
      %v894 = vrsqrt.pop %v886
      %v895 = vrsqrt.pop %v887
      %v896 = vrsqrt.pop %v888
      %v897 = vmul.f32 %v841, %v889
      %v898 = vmul.f32 %v842, %v890
      %v899 = vmul.f32 %v843, %v891
      %v900 = vmul.f32 %v844, %v892
      %v901 = vmul.f32 %v845, %v893
      %v902 = vmul.f32 %v846, %v894
      %v903 = vmul.f32 %v847, %v895
      %v904 = vmul.f32 %v848, %v896
      %v905 = vld [vmem:[%s3] sm:$0x1]
      %v907 = vlaneseq
      %v908 = vshrl.u32 %v907, 7
      %v909 = vsub.s32 0, %v908
      %v910 = vrot.slane %v905, %v909
      %v912 = vmul.f32 %v897, %v910
      %v913 = vmul.f32 %v898, %v910
      %v914 = vmul.f32 %v899, %v910
      %v915 = vmul.f32 %v900, %v910
      %v916 = vmul.f32 %v901, %v910
      %v917 = vmul.f32 %v902, %v910
      %v918 = vmul.f32 %v903, %v910
      %v919 = vmul.f32 %v904, %v910
      %v920 = vld [vmem:[%s4] sm:$0x1]
      %v922 = vlaneseq
      %v923 = vshrl.u32 %v922, 7
      %v924 = vsub.s32 0, %v923
      %v925 = vrot.slane %v920, %v924
      %v927 = vadd.f32 %v912, %v925
      %v928 = vadd.f32 %v913, %v925
      %v929 = vadd.f32 %v914, %v925
      %v930 = vadd.f32 %v915, %v925
      %v931 = vadd.f32 %v916, %v925
      %v932 = vadd.f32 %v917, %v925
      %v933 = vadd.f32 %v918, %v925
      %v934 = vadd.f32 %v919, %v925
      %v935 = vpack.c.bf16 %v928, %v927
      %v936 = vpack.c.bf16 %v930, %v929
      %v937 = vpack.c.bf16 %v932, %v931
      %v938 = vpack.c.bf16 %v934, %v933
      %v939 = vld [vmem:[%s5] sm:$0xf]
      %v940 = vld [vmem:[%s5 + $0x4] sm:$0xf]
      %v941 = vld [vmem:[%s5 + $0x8] sm:$0xf]
      %v942 = vld [vmem:[%s5 + $0xc] sm:$0xf]
      %v943 = vld [vmem:[%s5 + $0x10] sm:$0xf]
      %v944 = vld [vmem:[%s5 + $0x14] sm:$0xf]
      %v945 = vld [vmem:[%s5 + $0x18] sm:$0xf]
      %v946 = vld [vmem:[%s5 + $0x1c] sm:$0xf]
      %v947 = vld [vmem:[%s5 + $0x20] sm:$0xf]
      %v948 = vld [vmem:[%s5 + $0x24] sm:$0xf]
      %v949 = vld [vmem:[%s5 + $0x28] sm:$0xf]
      %v950 = vld [vmem:[%s5 + $0x2c] sm:$0xf]
      %v951 = vld [vmem:[%s5 + $0x30] sm:$0xf]
      %v952 = vld [vmem:[%s5 + $0x34] sm:$0xf]
      %v953 = vld [vmem:[%s5 + $0x38] sm:$0xf]
      %v954 = vld [vmem:[%s5 + $0x3c] sm:$0xf]
      %v971 = vunpack.c.l.b16 %v939
      %v972 = vunpack.c.l.b16 %v940
      %v973 = vunpack.c.l.b16 %v941
      %v974 = vunpack.c.l.b16 %v942
      %v975 = vunpack.c.l.b16 %v943
      %v976 = vunpack.c.l.b16 %v944
      %v977 = vunpack.c.l.b16 %v945
      %v978 = vunpack.c.l.b16 %v946
      %v979 = vunpack.c.l.b16 %v947
      %v980 = vunpack.c.l.b16 %v948
      %v981 = vunpack.c.l.b16 %v949
      %v982 = vunpack.c.l.b16 %v950
      %v983 = vunpack.c.l.b16 %v951
      %v984 = vunpack.c.l.b16 %v952
      %v985 = vunpack.c.l.b16 %v953
      %v986 = vunpack.c.l.b16 %v954
      %v987 = vpack.c.b16 %v972, %v971
      %v988 = vpack.c.b16 %v974, %v973
      %v989 = vpack.c.b16 %v976, %v975
      %v990 = vpack.c.b16 %v978, %v977
      %v991 = vpack.c.b16 %v980, %v979
      %v992 = vpack.c.b16 %v982, %v981
      %v993 = vpack.c.b16 %v984, %v983
      %v994 = vpack.c.b16 %v986, %v985
      %1003 = vmatprep.subr.bf16.mxu0 0
      %1004 = vmatpush1.bf16.msra.mxu0 %v994
      %1005 = vmatprep.subr.bf16.mxu0 0
      %1006 = vmatpush1.bf16.msra.mxu0 %v993
      %1007 = vmatprep.subr.bf16.mxu0 0
      %1008 = vmatpush1.bf16.msra.mxu0 %v992
      %1009 = vmatprep.subr.bf16.mxu0 0
      %1010 = vmatpush1.bf16.msra.mxu0 %v991
      %1011 = vmatprep.subr.bf16.mxu0 0
      %1012 = vmatpush1.bf16.msra.mxu0 %v990
      %1013 = vmatprep.subr.bf16.mxu0 0
      %1014 = vmatpush1.bf16.msra.mxu0 %v989
      %1015 = vmatprep.subr.bf16.mxu0 0
      %1016 = vmatpush1.bf16.msra.mxu0 %v988
      %1017 = vmatprep.subr.bf16.mxu0 0
      %1018 = vmatpush1.bf16.msra.mxu0 %v987
      %1019 = vmatprep.subr.bf16.mxu0 0
      %1020 = vmatpush2.bf16.msra.mxu0 0
      %1021 = vmatprep.subr.bf16.mxu0 0
      %1022 = vmatpush2.bf16.msra.mxu0 0
      %1023 = vmatprep.subr.bf16.mxu0 0
      %1024 = vmatpush2.bf16.msra.mxu0 0
      %1025 = vmatprep.subr.bf16.mxu0 0
      %1026 = vmatpush2.bf16.msra.mxu0 0
      %1027 = vmatprep.subr.bf16.mxu0 0
      %1028 = vmatpush2.bf16.msra.mxu0 0
      %1029 = vmatprep.subr.bf16.mxu0 0
      %1030 = vmatpush2.bf16.msra.mxu0 0
      %1031 = vmatprep.subr.bf16.mxu0 0
      %1032 = vmatpush2.bf16.msra.mxu0 0
      %1033 = vmatprep.subr.bf16.mxu0 0
      %1034 = vmatpush2.bf16.msra.mxu0 0
      %1035 = vmatprep.mubr.bf16.mxu0 0
      %1036 = vmatmul.mubr.bf16.gmra.mxu0 %v935
      %v1037 = vpop.f32.mrf.mxu0
      %v1038 = vadd.f32 0.0, %v1037
      %v1039 = vpop.f32.mrf.mxu0
      %v1040 = vpop.f32.mrf.mxu0
      %v1041 = vadd.f32 0.0, %v1040
      %v1042 = vpop.f32.mrf.mxu0
      %1043 = vmatprep.mubr.bf16.mxu0 0
      %1044 = vmatmul.mubr.bf16.gmra.mxu0 %v936
      %v1045 = vpop.f32.mrf.mxu0
      %v1046 = vadd.f32 0.0, %v1045
      %v1047 = vpop.f32.mrf.mxu0
      %v1048 = vpop.f32.mrf.mxu0
      %v1049 = vadd.f32 0.0, %v1048
      %v1050 = vpop.f32.mrf.mxu0
      %1051 = vmatprep.mubr.bf16.mxu0 0
      %1052 = vmatmul.mubr.bf16.gmra.mxu0 %v937
      %v1053 = vpop.f32.mrf.mxu0
      %v1054 = vadd.f32 0.0, %v1053
      %v1055 = vpop.f32.mrf.mxu0
      %v1056 = vpop.f32.mrf.mxu0
      %v1057 = vadd.f32 0.0, %v1056
      %v1058 = vpop.f32.mrf.mxu0
      %1059 = vmatprep.mubr.bf16.mxu0 0
      %1060 = vmatmul.mubr.bf16.gmra.mxu0 %v938
      %v1061 = vpop.f32.mrf.mxu0
      %v1062 = vadd.f32 0.0, %v1061
      %v1063 = vpop.f32.mrf.mxu0
      %v1064 = vpop.f32.mrf.mxu0
      %v1065 = vadd.f32 0.0, %v1064
      %v1066 = vpop.f32.mrf.mxu0
      %1067 = vdwg.mxu0
      %v1068 = vpack.c.bf16 %v1041, %v1038
      %v1069 = vpack.c.bf16 %v1049, %v1046
      %v1070 = vpack.c.bf16 %v1057, %v1054
      %v1071 = vpack.c.bf16 %v1065, %v1062
      %v1076 = vunpack.c.l.b16 %v1068
      %v1077 = vunpack.c.h.b16 %v1068
      %v1078 = vunpack.c.l.b16 %v1069
      %v1079 = vunpack.c.h.b16 %v1069
      %v1080 = vunpack.c.l.b16 %v1070
      %v1081 = vunpack.c.h.b16 %v1070
      %v1082 = vunpack.c.l.b16 %v1071
      %v1083 = vunpack.c.h.b16 %v1071
      %v1084 = vpack.c.b16 %v1076, %v1076
      %v1085 = vpack.c.b16 %v1077, %v1077
      %v1086 = vpack.c.b16 %v1078, %v1078
      %v1087 = vpack.c.b16 %v1079, %v1079
      %v1088 = vpack.c.b16 %v1080, %v1080
      %v1089 = vpack.c.b16 %v1081, %v1081
      %v1090 = vpack.c.b16 %v1082, %v1082
      %v1091 = vpack.c.b16 %v1083, %v1083
      %1100 = vst [vmem:[%s318] sm:$0xf] %v1084
      %1101 = vst [vmem:[%s318 + $0x4] sm:$0xf] %v1085
      %1102 = vst [vmem:[%s318 + $0x8] sm:$0xf] %v1086
      %1103 = vst [vmem:[%s318 + $0xc] sm:$0xf] %v1087
      %1104 = vst [vmem:[%s318 + $0x10] sm:$0xf] %v1088
      %1105 = vst [vmem:[%s318 + $0x14] sm:$0xf] %v1089
      %1106 = vst [vmem:[%s318 + $0x18] sm:$0xf] %v1090
      %1107 = vst [vmem:[%s318 + $0x1c] sm:$0xf] %v1091
      %v1108 = vld [vmem:[%s6] sm:$0xf]
      %v1109 = vld [vmem:[%s6 + $0x4] sm:$0xf]
      %v1110 = vld [vmem:[%s6 + $0x8] sm:$0xf]
      %v1111 = vld [vmem:[%s6 + $0xc] sm:$0xf]
      %v1112 = vld [vmem:[%s6 + $0x10] sm:$0xf]
      %v1113 = vld [vmem:[%s6 + $0x14] sm:$0xf]
      %v1114 = vld [vmem:[%s6 + $0x18] sm:$0xf]
      %v1115 = vld [vmem:[%s6 + $0x1c] sm:$0xf]
      %v1116 = vld [vmem:[%s6 + $0x20] sm:$0xf]
      %v1117 = vld [vmem:[%s6 + $0x24] sm:$0xf]
      %v1118 = vld [vmem:[%s6 + $0x28] sm:$0xf]
      %v1119 = vld [vmem:[%s6 + $0x2c] sm:$0xf]
      %v1120 = vld [vmem:[%s6 + $0x30] sm:$0xf]
      %v1121 = vld [vmem:[%s6 + $0x34] sm:$0xf]
      %v1122 = vld [vmem:[%s6 + $0x38] sm:$0xf]
      %v1123 = vld [vmem:[%s6 + $0x3c] sm:$0xf]
      %v1140 = vunpack.c.l.b16 %v1108
      %v1141 = vunpack.c.l.b16 %v1109
      %v1142 = vunpack.c.l.b16 %v1110
      %v1143 = vunpack.c.l.b16 %v1111
      %v1144 = vunpack.c.l.b16 %v1112
      %v1145 = vunpack.c.l.b16 %v1113
      %v1146 = vunpack.c.l.b16 %v1114
      %v1147 = vunpack.c.l.b16 %v1115
      %v1148 = vunpack.c.l.b16 %v1116
      %v1149 = vunpack.c.l.b16 %v1117
      %v1150 = vunpack.c.l.b16 %v1118
      %v1151 = vunpack.c.l.b16 %v1119
      %v1152 = vunpack.c.l.b16 %v1120
      %v1153 = vunpack.c.l.b16 %v1121
      %v1154 = vunpack.c.l.b16 %v1122
      %v1155 = vunpack.c.l.b16 %v1123
      %v1156 = vpack.c.b16 %v1141, %v1140
      %v1157 = vpack.c.b16 %v1143, %v1142
      %v1158 = vpack.c.b16 %v1145, %v1144
      %v1159 = vpack.c.b16 %v1147, %v1146
      %v1160 = vpack.c.b16 %v1149, %v1148
      %v1161 = vpack.c.b16 %v1151, %v1150
      %v1162 = vpack.c.b16 %v1153, %v1152
      %v1163 = vpack.c.b16 %v1155, %v1154
      %1172 = vmatprep.subr.bf16.mxu0 0
      %1173 = vmatpush1.bf16.msra.mxu0 %v1163
      %1174 = vmatprep.subr.bf16.mxu0 0
      %1175 = vmatpush1.bf16.msra.mxu0 %v1162
      %1176 = vmatprep.subr.bf16.mxu0 0
      %1177 = vmatpush1.bf16.msra.mxu0 %v1161
      %1178 = vmatprep.subr.bf16.mxu0 0
      %1179 = vmatpush1.bf16.msra.mxu0 %v1160
      %1180 = vmatprep.subr.bf16.mxu0 0
      %1181 = vmatpush1.bf16.msra.mxu0 %v1159
      %1182 = vmatprep.subr.bf16.mxu0 0
      %1183 = vmatpush1.bf16.msra.mxu0 %v1158
      %1184 = vmatprep.subr.bf16.mxu0 0
      %1185 = vmatpush1.bf16.msra.mxu0 %v1157
      %1186 = vmatprep.subr.bf16.mxu0 0
      %1187 = vmatpush1.bf16.msra.mxu0 %v1156
      %1188 = vmatprep.subr.bf16.mxu0 0
      %1189 = vmatpush2.bf16.msra.mxu0 0
      %1190 = vmatprep.subr.bf16.mxu0 0
      %1191 = vmatpush2.bf16.msra.mxu0 0
      %1192 = vmatprep.subr.bf16.mxu0 0
      %1193 = vmatpush2.bf16.msra.mxu0 0
      %1194 = vmatprep.subr.bf16.mxu0 0
      %1195 = vmatpush2.bf16.msra.mxu0 0
      %1196 = vmatprep.subr.bf16.mxu0 0
      %1197 = vmatpush2.bf16.msra.mxu0 0
      %1198 = vmatprep.subr.bf16.mxu0 0
      %1199 = vmatpush2.bf16.msra.mxu0 0
      %1200 = vmatprep.subr.bf16.mxu0 0
      %1201 = vmatpush2.bf16.msra.mxu0 0
      %1202 = vmatprep.subr.bf16.mxu0 0
      %1203 = vmatpush2.bf16.msra.mxu0 0
      %1204 = vmatprep.mubr.bf16.mxu0 0
      %1205 = vmatmul.mubr.bf16.gmra.mxu0 %v935
      %v1206 = vpop.f32.mrf.mxu0
      %v1207 = vadd.f32 0.0, %v1206
      %v1208 = vpop.f32.mrf.mxu0
      %v1209 = vpop.f32.mrf.mxu0
      %v1210 = vadd.f32 0.0, %v1209
      %v1211 = vpop.f32.mrf.mxu0
      %1212 = vmatprep.mubr.bf16.mxu0 0
      %1213 = vmatmul.mubr.bf16.gmra.mxu0 %v936
      %v1214 = vpop.f32.mrf.mxu0
      %v1215 = vadd.f32 0.0, %v1214
      %v1216 = vpop.f32.mrf.mxu0
      %v1217 = vpop.f32.mrf.mxu0
      %v1218 = vadd.f32 0.0, %v1217
      %v1219 = vpop.f32.mrf.mxu0
      %1220 = vmatprep.mubr.bf16.mxu0 0
      %1221 = vmatmul.mubr.bf16.gmra.mxu0 %v937
      %v1222 = vpop.f32.mrf.mxu0
      %v1223 = vadd.f32 0.0, %v1222
      %v1224 = vpop.f32.mrf.mxu0
      %v1225 = vpop.f32.mrf.mxu0
      %v1226 = vadd.f32 0.0, %v1225
      %v1227 = vpop.f32.mrf.mxu0
      %1228 = vmatprep.mubr.bf16.mxu0 0
      %1229 = vmatmul.mubr.bf16.gmra.mxu0 %v938
      %v1230 = vpop.f32.mrf.mxu0
      %v1231 = vadd.f32 0.0, %v1230
      %v1232 = vpop.f32.mrf.mxu0
      %v1233 = vpop.f32.mrf.mxu0
      %v1234 = vadd.f32 0.0, %v1233
      %v1235 = vpop.f32.mrf.mxu0
      %1236 = vdwg.mxu0
      %v1237 = vpack.c.bf16 %v1210, %v1207
      %v1238 = vpack.c.bf16 %v1218, %v1215
      %v1239 = vpack.c.bf16 %v1226, %v1223
      %v1240 = vpack.c.bf16 %v1234, %v1231
      %v1245 = vunpack.c.l.b16 %v1237
      %v1246 = vunpack.c.h.b16 %v1237
      %v1247 = vunpack.c.l.b16 %v1238
      %v1248 = vunpack.c.h.b16 %v1238
      %v1249 = vunpack.c.l.b16 %v1239
      %v1250 = vunpack.c.h.b16 %v1239
      %v1251 = vunpack.c.l.b16 %v1240
      %v1252 = vunpack.c.h.b16 %v1240
      %v1253 = vpack.c.b16 %v1245, %v1245
      %v1254 = vpack.c.b16 %v1246, %v1246
      %v1255 = vpack.c.b16 %v1247, %v1247
      %v1256 = vpack.c.b16 %v1248, %v1248
      %v1257 = vpack.c.b16 %v1249, %v1249
      %v1258 = vpack.c.b16 %v1250, %v1250
      %v1259 = vpack.c.b16 %v1251, %v1251
      %v1260 = vpack.c.b16 %v1252, %v1252
      %1269 = vst [vmem:[%s324] sm:$0xf] %v1253
      %1270 = vst [vmem:[%s324 + $0x4] sm:$0xf] %v1254
      %1271 = vst [vmem:[%s324 + $0x8] sm:$0xf] %v1255
      %1272 = vst [vmem:[%s324 + $0xc] sm:$0xf] %v1256
      %1273 = vst [vmem:[%s324 + $0x10] sm:$0xf] %v1257
      %1274 = vst [vmem:[%s324 + $0x14] sm:$0xf] %v1258
      %1275 = vst [vmem:[%s324 + $0x18] sm:$0xf] %v1259
      %1276 = vst [vmem:[%s324 + $0x1c] sm:$0xf] %v1260
      %s1277 = smul.u32 8, %s20
      %p1278 = scmp.lt.s32.totalorder %s1277, 15
      %s1279 = scalar_select %p1278, %s1277, 15
      %s1280 = smul.addr %s1279, 4
      %s1281 = scalar_lea.vmem %s7, %s1280
      %s1282 = smul.u32 8, %s20
      %p1283 = scmp.lt.s32.totalorder %s1282, 15
      %s1284 = scalar_select %p1283, %s1282, 15
      %s1285 = smul.addr %s1284, 4
      %s1286 = scalar_lea.vmem %s8, %s1285
      // Predicated region
      $region49: #{pvt_attention.2} parent=47 // pred_check
        %p1287 = pneg %p190
      $region50: #{pvt_attention.2} parent=47 // pred_check_branch
        %1289 = sbr.rel (%p1287) target = $region52
      $region51: #{pvt_attention.2} parent=47 // pred_region
        %s1290 = smul.u32 8, %s20
      $region52: #{pvt_attention.2} parent=47 // pred_fallthru
        _
      // Predicated region
      $region53: #{pvt_attention.2} parent=47 // pred_check
        %p1291 = pneg %p216
      $region54: #{pvt_attention.2} parent=47 // pred_check_branch
        %1293 = sbr.rel (%p1291) target = $region56
      $region55: #{pvt_attention.2} parent=47 // pred_region
        %s1294 = smul.u32 8, %s20
      $region56: #{pvt_attention.2} parent=47 // pred_fallthru
        _
    $region48: #{pvt_attention.2} parent=5 // pred_fallthru
      _
    %p1295 = scmp.le.s32.totalorder 2, %s15
    // Predicated region
    $region57: #{pvt_attention.2} parent=5 // pred_check
      %p1296 = pneg %p1295
    $region58: #{pvt_attention.2} parent=5 // pred_check_branch
      %1298 = sbr.rel (%p1296) target = $region60
    $region59: #{pvt_attention.2} parent=5 // pred_region
      %s1299 = ssub.s32 %s15, 2
      // Predicated region
      $region61: #{pvt_attention.2} parent=59 // pred_check
        %p1300 = pneg %p196
      $region62: #{pvt_attention.2} parent=59 // pred_check_branch
        %1302 = sbr.rel (%p1300) target = $region64
      $region63: #{pvt_attention.2} parent=59 // pred_region
        %s1303 = smul.u32 8, %s21
        %p1304 = scmp.lt.s32.totalorder %s1303, 15
        %s1305 = scalar_select %p1304, %s1303, 15
        %s1306 = smul.addr %s1305, 4
        %s1307 = scalar_lea.vmem %s7, %s1306
      $region64: #{pvt_attention.2} parent=59 // pred_fallthru
        _
      // Predicated region
      $region65: #{pvt_attention.2} parent=59 // pred_check
        %p1308 = pneg %p222
      $region66: #{pvt_attention.2} parent=59 // pred_check_branch
        %1310 = sbr.rel (%p1308) target = $region68
      $region67: #{pvt_attention.2} parent=59 // pred_region
        %s1311 = smul.u32 8, %s21
        %p1312 = scmp.lt.s32.totalorder %s1311, 15
        %s1313 = scalar_select %p1312, %s1311, 15
        %s1314 = smul.addr %s1313, 4
        %s1315 = scalar_lea.vmem %s8, %s1314
      $region68: #{pvt_attention.2} parent=59 // pred_fallthru
        _
    $region60: #{pvt_attention.2} parent=5 // pred_fallthru
      _
  $region6: #{pvt_attention.2} parent=0 // loop_footer
    %s19 = sadd.s32 1, %s15
  $region7: #{pvt_attention.2} parent=0 // loop_footer_branch
    %14 = sbr.rel target = $region3
  $region8: #{pvt_attention.2} parent=0 // loop_exit
    _

// kernel: pvt_attention.3
$region0: #{pvt_attention.3}
  #allocation0 [shape = 'u32[]', space=smem, size = 0x4, offset = 0x4, fixed_abs, tag = 'smem constant byte address 0x4 - core index']
  #allocation1 [shape = 'u32[144,128]{1,0:T(1,128)}', space=vmem, size = 0x12000, scoped, tag = 'internal scratch']
  #allocation2 [shape = 'bf16[4,128,64]{2,1,0:T(8,128)(2,1)}', space=vmem, size = 0x20000, scoped, tag = 'scratch operand']
  #allocation3 [shape = 'bf16[4,64,128]{2,1,0:T(8,128)(2,1)}', space=vmem, size = 0x10000, scoped, tag = 'scratch operand']
  #allocation4 [shape = 'f32[256,128]{1,0:T(8,128)}', space=vmem, size = 0x20000, scoped, tag = 'scratch operand']
  %s0 = inlined_call_operand.vmem [shape: bf16[2,256,128], index: 0, kind: input, shape index: {}]
  %s1 = inlined_call_operand.vmem [shape: bf16[2,64,128], index: 1, kind: input, shape index: {}]
  %s2 = inlined_call_operand.vmem [shape: bf16[2,64,128], index: 2, kind: input, shape index: {}]
  %s3 = inlined_call_operand.vmem [shape: bf16[4,128,32], index: 3, kind: input, shape index: {}]
  %s4 = inlined_call_operand.vmem [shape: bf16[128,128], index: 4, kind: input, shape index: {}]
  %s5 = inlined_call_operand.vmem [shape: f32[1,128], index: 5, kind: input, shape index: {}]
  %s6 = inlined_call_operand.hbm [shape: bf16[2,256,128], index: 6, kind: output, shape index: {}]
  %s7 = sld [smem:[#allocation0]]
  $region61: #{pvt_attention.3} parent=0
    _
  %s9 = ssub.s32 1, %s7
  %s10 = scalar_select 0, %s9, %s7
  $region1: #{pvt_attention.3} parent=0
    #allocation5 [shape = 'u8[131072]{0}', space=vmem, size = 0x20000, scoped, tag = 'output window, operand 0']
    #allocation6 [shape = 's32[2]{0}', space=sflag, size = 0x8, scoped, tag = 'scoped memory for pvt_attention.3']
    %11 = vsyncpa [#allocation6], 0
    %s12 = scalar_lea.sflag [#allocation6], 1
    %13 = vsyncpa %s12, 0
    loop: start=0, step=1, limit=4
    $region2: #{pvt_attention.3} parent=1 // loop_pre_header
      _
    $region3: #{pvt_attention.3} parent=1 // loop_header
      %s15 = sphi 0, %s19
      %p16 = scmp.ge.s32.totalorder %s15, 4
      %s22 = sphi 0, %s41
      %s23 = sphi 0, %s37
      %s24 = sphi 0, %s33
      %s25 = sphi 0, %s22
      %s26 = sphi 0, %s23
      %s27 = sphi 0, %s24
      %s28 = sphi 0, %s25
      %s29 = sphi 0, %s26
      %s30 = sphi 0, %s27
      %s48 = sphi 0, %s50
      %s51 = sphi 0, %s48
      %s52 = sphi 0, %s51
      %s68 = sphi 0, %s52
      %s74 = sphi 0, %s76
      %s77 = sphi 0, %s74
      %s78 = sphi 0, %s77
      %s94 = sphi 0, %s78
      %s100 = sphi 0, %s102
      %s103 = sphi 0, %s100
      %s104 = sphi 0, %s103
      %s120 = sphi 0, %s104
      %s124 = sphi 0, %s124
      %s126 = sphi 0, %s124
      %s127 = sphi 0, %s126
      %s141 = sphi 0, %s127
      %s145 = sphi 0, %s145
      %s147 = sphi 0, %s145
      %s148 = sphi 0, %s147
      %s162 = sphi 0, %s148
      %s166 = sphi 0, %s166
      %s168 = sphi 0, %s166
      %s169 = sphi 0, %s168
      %s183 = sphi 0, %s169
      %s193 = sphi 0, %s195
      %s196 = sphi 0, %s193
      %s197 = sphi 0, %s196
      %s213 = sphi 0, %s197
    $region4: #{pvt_attention.3} parent=1 // loop_header_branch
      %18 = sbr.rel (%p16) target = $region8
    $region5: #{pvt_attention.3} parent=1 // loop_body
      %s20 = ssub.s32 %s15, 1
      %s21 = ssub.s32 %s15, 2
      %s31 = sadd.s32 1, %s24
      %p32 = scmp.ge.s32.totalorder %s31, 1
      %s33 = scalar_select %p32, 0, %s31
      %s34 = sadd.s32 1, %s23
      %s35 = scalar_select %p32, %s34, %s23
      %p36 = scmp.ge.s32.totalorder %s35, 1
      %s37 = scalar_select %p36, 0, %s35
      %s38 = sadd.s32 1, %s22
      %s39 = scalar_select %p36, %s38, %s22
      %p40 = scmp.ge.s32.totalorder %s39, 2
      %s41 = scalar_select %p40, 0, %s39
      %s42 = sadd.s32 %s23, %s24
      %s43 = sadd.s32 %s37, %s33
      %s44 = ssub.s32 %s22, %s41
      %s45 = ssub.s32 %s42, %s43
      %s46 = sor.u32 %s44, %s45
      %p47 = scmp.eq.s32.totalorder %s46, 0
      %s49 = sadd.s32 %s48, 1
      %s50 = scalar_select %p47, %s48, %s49
      %p53 = pneg %p47
      %p54 = scmp.eq.s32.totalorder %s15, 1
      %p55 = por %p53, %p54
      %p56 = scmp.ne.s32.totalorder %s48, %s51
      %p57 = scmp.eq.s32.totalorder %s15, 0
      %p58 = por %p56, %p57
      %p59 = scmp.ne.s32.totalorder %s48, %s51
      %p60 = scmp.eq.s32.totalorder %s20, 1
      %p61 = por %p59, %p60
      %p62 = scmp.ne.s32.totalorder %s51, %s52
      %p63 = scmp.eq.s32.totalorder %s20, 0
      %p64 = por %p62, %p63
      %p65 = scmp.ne.s32.totalorder %s51, %s52
      %p66 = scmp.eq.s32.totalorder %s21, 1
      %p67 = por %p65, %p66
      %p69 = scmp.ne.s32.totalorder %s52, %s68
      %p70 = scmp.eq.s32.totalorder %s21, 0
      %p71 = por %p69, %p70
      %s72 = ssub.s32 %s22, %s41
      %p73 = scmp.eq.s32.totalorder %s72, 0
      %s75 = sadd.s32 %s74, 1
      %s76 = scalar_select %p73, %s74, %s75
      %p79 = pneg %p73
      %p80 = scmp.eq.s32.totalorder %s15, 1
      %p81 = por %p79, %p80
      %p82 = scmp.ne.s32.totalorder %s74, %s77
      %p83 = scmp.eq.s32.totalorder %s15, 0
      %p84 = por %p82, %p83
      %p85 = scmp.ne.s32.totalorder %s74, %s77
      %p86 = scmp.eq.s32.totalorder %s20, 1
      %p87 = por %p85, %p86
      %p88 = scmp.ne.s32.totalorder %s77, %s78
      %p89 = scmp.eq.s32.totalorder %s20, 0
      %p90 = por %p88, %p89
      %p91 = scmp.ne.s32.totalorder %s77, %s78
      %p92 = scmp.eq.s32.totalorder %s21, 1
      %p93 = por %p91, %p92
      %p95 = scmp.ne.s32.totalorder %s78, %s94
      %p96 = scmp.eq.s32.totalorder %s21, 0
      %p97 = por %p95, %p96
      %s98 = ssub.s32 %s22, %s41
      %p99 = scmp.eq.s32.totalorder %s98, 0
      %s101 = sadd.s32 %s100, 1
      %s102 = scalar_select %p99, %s100, %s101
      %p105 = pneg %p99
      %p106 = scmp.eq.s32.totalorder %s15, 1
      %p107 = por %p105, %p106
      %p108 = scmp.ne.s32.totalorder %s100, %s103
      %p109 = scmp.eq.s32.totalorder %s15, 0
      %p110 = por %p108, %p109
      %p111 = scmp.ne.s32.totalorder %s100, %s103
      %p112 = scmp.eq.s32.totalorder %s20, 1
      %p113 = por %p111, %p112
      %p114 = scmp.ne.s32.totalorder %s103, %s104
      %p115 = scmp.eq.s32.totalorder %s20, 0
      %p116 = por %p114, %p115
      %p117 = scmp.ne.s32.totalorder %s103, %s104
      %p118 = scmp.eq.s32.totalorder %s21, 1
      %p119 = por %p117, %p118
      %p121 = scmp.ne.s32.totalorder %s104, %s120
      %p122 = scmp.eq.s32.totalorder %s21, 0
      %p123 = por %p121, %p122
      %s125 = sadd.s32 %s124, 1
      %p128 = scmp.eq.s32.totalorder %s15, 1
      %p129 = scmp.ne.s32.totalorder %s124, %s126
      %p130 = scmp.eq.s32.totalorder %s15, 0
      %p131 = por %p129, %p130
      %p132 = scmp.ne.s32.totalorder %s124, %s126
      %p133 = scmp.eq.s32.totalorder %s20, 1
      %p134 = por %p132, %p133
      %p135 = scmp.ne.s32.totalorder %s126, %s127
      %p136 = scmp.eq.s32.totalorder %s20, 0
      %p137 = por %p135, %p136
      %p138 = scmp.ne.s32.totalorder %s126, %s127
      %p139 = scmp.eq.s32.totalorder %s21, 1
      %p140 = por %p138, %p139
      %p142 = scmp.ne.s32.totalorder %s127, %s141
      %p143 = scmp.eq.s32.totalorder %s21, 0
      %p144 = por %p142, %p143
      %s146 = sadd.s32 %s145, 1
      %p149 = scmp.eq.s32.totalorder %s15, 1
      %p150 = scmp.ne.s32.totalorder %s145, %s147
      %p151 = scmp.eq.s32.totalorder %s15, 0
      %p152 = por %p150, %p151
      %p153 = scmp.ne.s32.totalorder %s145, %s147
      %p154 = scmp.eq.s32.totalorder %s20, 1
      %p155 = por %p153, %p154
      %p156 = scmp.ne.s32.totalorder %s147, %s148
      %p157 = scmp.eq.s32.totalorder %s20, 0
      %p158 = por %p156, %p157
      %p159 = scmp.ne.s32.totalorder %s147, %s148
      %p160 = scmp.eq.s32.totalorder %s21, 1
      %p161 = por %p159, %p160
      %p163 = scmp.ne.s32.totalorder %s148, %s162
      %p164 = scmp.eq.s32.totalorder %s21, 0
      %p165 = por %p163, %p164
      %s167 = sadd.s32 %s166, 1
      %p170 = scmp.eq.s32.totalorder %s15, 1
      %p171 = scmp.ne.s32.totalorder %s166, %s168
      %p172 = scmp.eq.s32.totalorder %s15, 0
      %p173 = por %p171, %p172
      %p174 = scmp.ne.s32.totalorder %s166, %s168
      %p175 = scmp.eq.s32.totalorder %s20, 1
      %p176 = por %p174, %p175
      %p177 = scmp.ne.s32.totalorder %s168, %s169
      %p178 = scmp.eq.s32.totalorder %s20, 0
      %p179 = por %p177, %p178
      %p180 = scmp.ne.s32.totalorder %s168, %s169
      %p181 = scmp.eq.s32.totalorder %s21, 1
      %p182 = por %p180, %p181
      %p184 = scmp.ne.s32.totalorder %s169, %s183
      %p185 = scmp.eq.s32.totalorder %s21, 0
      %p186 = por %p184, %p185
      %s187 = sadd.s32 %s23, %s24
      %s188 = sadd.s32 %s37, %s33
      %s189 = ssub.s32 %s22, %s41
      %s190 = ssub.s32 %s187, %s188
      %s191 = sor.u32 %s189, %s190
      %p192 = scmp.eq.s32.totalorder %s191, 0
      %s194 = sadd.s32 %s193, 1
      %s195 = scalar_select %p192, %s193, %s194
      %p198 = pneg %p192
      %p199 = scmp.eq.s32.totalorder %s15, 1
      %p200 = por %p198, %p199
      %p201 = scmp.ne.s32.totalorder %s193, %s196
      %p202 = scmp.eq.s32.totalorder %s15, 0
      %p203 = por %p201, %p202
      %p204 = scmp.ne.s32.totalorder %s193, %s196
      %p205 = scmp.eq.s32.totalorder %s20, 1
      %p206 = por %p204, %p205
      %p207 = scmp.ne.s32.totalorder %s196, %s197
      %p208 = scmp.eq.s32.totalorder %s20, 0
      %p209 = por %p207, %p208
      %p210 = scmp.ne.s32.totalorder %s196, %s197
      %p211 = scmp.eq.s32.totalorder %s21, 1
      %p212 = por %p210, %p211
      %p214 = scmp.ne.s32.totalorder %s197, %s213
      %p215 = scmp.eq.s32.totalorder %s21, 0
      %p216 = por %p214, %p215
      %p217 = scmp.le.s32.totalorder 1, %s15
      %p218 = scmp.lt.s32.totalorder %s15, 3
      %p219 = pnand %p217, %p218
      %p220 = pneg %p219
      // Predicated region
      $region9: #{pvt_attention.3} parent=5 // pred_check
        _
      $region10: #{pvt_attention.3} parent=5 // pred_check_branch
        %222 = sbr.rel (%p219) target = $region12
      $region11: #{pvt_attention.3} parent=5 // pred_region
        %s223 = ssub.s32 %s15, 1
        // Predicated region
        $region13: #{pvt_attention.3} parent=11 // pred_check
          %p224 = pneg %p137
        $region14: #{pvt_attention.3} parent=11 // pred_check_branch
          %226 = sbr.rel (%p224) target = $region16
        $region15: #{pvt_attention.3} parent=11 // pred_region
          _
        $region16: #{pvt_attention.3} parent=11 // pred_fallthru
          _
        // Predicated region
        $region17: #{pvt_attention.3} parent=11 // pred_check
          %p227 = pneg %p158
        $region18: #{pvt_attention.3} parent=11 // pred_check_branch
          %229 = sbr.rel (%p227) target = $region20
        $region19: #{pvt_attention.3} parent=11 // pred_region
          _
        $region20: #{pvt_attention.3} parent=11 // pred_fallthru
          _
        // Predicated region
        $region21: #{pvt_attention.3} parent=11 // pred_check
          %p230 = pneg %p179
        $region22: #{pvt_attention.3} parent=11 // pred_check_branch
          %232 = sbr.rel (%p230) target = $region24
        $region23: #{pvt_attention.3} parent=11 // pred_region
          _
        $region24: #{pvt_attention.3} parent=11 // pred_fallthru
          _
      $region12: #{pvt_attention.3} parent=5 // pred_fallthru
        _
      %p233 = scmp.lt.s32.totalorder %s15, 2
      // Predicated region
      $region25: #{pvt_attention.3} parent=5 // pred_check
        %p234 = pneg %p233
      $region26: #{pvt_attention.3} parent=5 // pred_check_branch
        %236 = sbr.rel (%p234) target = $region28
      $region27: #{pvt_attention.3} parent=5 // pred_region
        // Predicated region
        $region29: #{pvt_attention.3} parent=27 // pred_check
          %p237 = pneg %p58
        $region30: #{pvt_attention.3} parent=27 // pred_check_branch
          %239 = sbr.rel (%p237) target = $region32
        $region31: #{pvt_attention.3} parent=27 // pred_region
          %s240 = sadd.s32 %s23, %s24
          %s241 = smul.u32 32, %s240
          %p242 = scmp.lt.s32.totalorder %s22, 1
          %s243 = scalar_select %p242, %s22, 1
          %p244 = scmp.lt.s32.totalorder %s241, 31
          %s245 = scalar_select %p244, %s241, 31
          %s246 = smul.addr %s243, 32
          %s247 = sadd.s32 %s245, %s246
          %s248 = smul.addr %s247, 4
          %s249 = scalar_lea.vmem %s0, %s248
          %s250 = sadd.s32 %s23, %s24
          %s251 = smul.u32 32, %s250
        $region32: #{pvt_attention.3} parent=27 // pred_fallthru
          _
        // Predicated region
        $region33: #{pvt_attention.3} parent=27 // pred_check
          %p252 = pneg %p84
        $region34: #{pvt_attention.3} parent=27 // pred_check_branch
          %254 = sbr.rel (%p252) target = $region36
        $region35: #{pvt_attention.3} parent=27 // pred_region
          %p255 = scmp.lt.s32.totalorder %s22, 1
          %s256 = scalar_select %p255, %s22, 1
          %s257 = smul.addr %s256, 8
          %s258 = smul.addr %s257, 4
          %s259 = scalar_lea.vmem %s1, %s258
        $region36: #{pvt_attention.3} parent=27 // pred_fallthru
          _
        // Predicated region
        $region37: #{pvt_attention.3} parent=27 // pred_check
          %p260 = pneg %p110
        $region38: #{pvt_attention.3} parent=27 // pred_check_branch
          %262 = sbr.rel (%p260) target = $region40
        $region39: #{pvt_attention.3} parent=27 // pred_region
          %p263 = scmp.lt.s32.totalorder %s22, 1
          %s264 = scalar_select %p263, %s22, 1
          %s265 = smul.addr %s264, 8
          %s266 = smul.addr %s265, 4
          %s267 = scalar_lea.vmem %s2, %s266
        $region40: #{pvt_attention.3} parent=27 // pred_fallthru
          _
      $region28: #{pvt_attention.3} parent=5 // pred_fallthru
        _
      %p268 = scmp.le.s32.totalorder 1, %s15
      %p269 = scmp.lt.s32.totalorder %s15, 3
      %p270 = pnand %p268, %p269
      %p271 = pneg %p270
      // Predicated region
      $region41: #{pvt_attention.3} parent=5 // pred_check
        _
      $region42: #{pvt_attention.3} parent=5 // pred_check_branch
        %273 = sbr.rel (%p270) target = $region44
      $region43: #{pvt_attention.3} parent=5 // pred_region
        %s274 = ssub.s32 %s15, 1
        %s275 = sadd.s32 %s26, %s27
        %s276 = smul.u32 32, %s275
        %p277 = scmp.lt.s32.totalorder %s25, 1
        %s278 = scalar_select %p277, %s25, 1
        %p279 = scmp.lt.s32.totalorder %s276, 31
        %s280 = scalar_select %p279, %s276, 31
        %s281 = smul.addr %s278, 32
        %s282 = sadd.s32 %s280, %s281
        %s283 = smul.addr %s282, 4
        %s284 = scalar_lea.vmem %s0, %s283
        %p285 = pneg %p64
        %p286 = pneg %p61
        %p287 = scmp.lt.s32.totalorder %s25, 1
        %s288 = scalar_select %p287, %s25, 1
        %s289 = smul.addr %s288, 8
        %s290 = smul.addr %s289, 4
        %s291 = scalar_lea.vmem %s1, %s290
        %p292 = pneg %p90
        %p293 = pneg %p87
        %p294 = scmp.lt.s32.totalorder %s25, 1
        %s295 = scalar_select %p294, %s25, 1
        %s296 = smul.addr %s295, 8
        %s297 = smul.addr %s296, 4
        %s298 = scalar_lea.vmem %s2, %s297
        %p299 = pneg %p116
        %p300 = pneg %p113
        %p301 = pneg %p137
        %p302 = pneg %p134
        %p303 = pneg %p158
        %p304 = pneg %p155
        %p305 = pneg %p179
        %p306 = pneg %p176
        %p307 = pneg %p209
        %p308 = pneg %p206
        %s309 = sand.u32 %s196, 1
        %s310 = scalar_lea.sflag [#allocation6], %s309
        %s311 = sand.u32 %s196, 1
        %s312 = smul.addr %s311, 128
        %s313 = scalar_lea.vmem [#allocation5], %s312
        %s314 = sadd.s32 %s26, %s27
        %s315 = smul.u32 32, %s314
        %p316 = scmp.lt.s32.totalorder %s25, 1
        %s317 = scalar_select %p316, %s25, 1
        %p318 = scmp.lt.s32.totalorder %s315, 31
        %s319 = scalar_select %p318, %s315, 31
        %s320 = smul.addr %s317, 32
        %s321 = sadd.s32 %s319, %s320
        %s322 = smul.addr %s321, 4
        %s323 = scalar_lea.vmem %s0, %s322
        %s324 = sadd.s32 %s26, %s27
        %s325 = smul.u32 32, %s324
        %p326 = scmp.lt.s32.totalorder %s25, 1
        %s327 = scalar_select %p326, %s25, 1
        %s328 = smul.addr %s327, 8
        %s329 = smul.addr %s328, 4
        %s330 = scalar_lea.vmem %s1, %s329
        %p331 = scmp.lt.s32.totalorder %s25, 1
        %s332 = scalar_select %p331, %s25, 1
        %s333 = smul.addr %s332, 8
        %s334 = smul.addr %s333, 4
        %s335 = scalar_lea.vmem %s2, %s334
        %s336 = sadd.s32 %s26, %s27
        %s337 = smul.u32 32, %s336
        %p339 = scmp.eq.s32.totalorder %s27, 0
        // Predicated region
        $region45: #{pvt_attention.3} parent=43 // pred_check
          %p340 = pneg %p339
        $region46: #{pvt_attention.3} parent=43 // pred_check_branch
          %342 = sbr.rel (%p340) target = $region48
        $region47: #{pvt_attention.3} parent=43 // pred_region
          %v343 = vld [vmem:[%s330] sm:$0xf]
          %v344 = vld [vmem:[%s330 + $0x4] sm:$0xf]
          %v345 = vld [vmem:[%s330 + $0x8] sm:$0xf]
          %v346 = vld [vmem:[%s330 + $0xc] sm:$0xf]
          %v347 = vld [vmem:[%s330 + $0x10] sm:$0xf]
          %v348 = vld [vmem:[%s330 + $0x14] sm:$0xf]
          %v349 = vld [vmem:[%s330 + $0x18] sm:$0xf]
          %v350 = vld [vmem:[%s330 + $0x1c] sm:$0xf]
          %v351 = vld [vmem:[%s335] sm:$0xf]
          %v352 = vld [vmem:[%s335 + $0x4] sm:$0xf]
          %v353 = vld [vmem:[%s335 + $0x8] sm:$0xf]
          %v354 = vld [vmem:[%s335 + $0xc] sm:$0xf]
          %v355 = vld [vmem:[%s335 + $0x10] sm:$0xf]
          %v356 = vld [vmem:[%s335 + $0x14] sm:$0xf]
          %v357 = vld [vmem:[%s335 + $0x18] sm:$0xf]
          %v358 = vld [vmem:[%s335 + $0x1c] sm:$0xf]
          %v359 = vld [vmem:[%s4] sm:$0xf]
          %v360 = vld [vmem:[%s4 + $0x4] sm:$0xf]
          %v361 = vld [vmem:[%s4 + $0x8] sm:$0xf]
          %v362 = vld [vmem:[%s4 + $0xc] sm:$0xf]
          %v363 = vld [vmem:[%s4 + $0x10] sm:$0xf]
          %v364 = vld [vmem:[%s4 + $0x14] sm:$0xf]
          %v365 = vld [vmem:[%s4 + $0x18] sm:$0xf]
          %v366 = vld [vmem:[%s4 + $0x1c] sm:$0xf]
          %v367 = vld [vmem:[%s4 + $0x20] sm:$0xf]
          %v368 = vld [vmem:[%s4 + $0x24] sm:$0xf]
          %v369 = vld [vmem:[%s4 + $0x28] sm:$0xf]
          %v370 = vld [vmem:[%s4 + $0x2c] sm:$0xf]
          %v371 = vld [vmem:[%s4 + $0x30] sm:$0xf]
          %v372 = vld [vmem:[%s4 + $0x34] sm:$0xf]
          %v373 = vld [vmem:[%s4 + $0x38] sm:$0xf]
          %v374 = vld [vmem:[%s4 + $0x3c] sm:$0xf]
          %v375 = vld [vmem:[%s3] sm:$0xf]
          %v376 = vld [vmem:[%s3 + $0x4] sm:$0xf]
          %v377 = vld [vmem:[%s3 + $0x8] sm:$0xf]
          %v378 = vld [vmem:[%s3 + $0xc] sm:$0xf]
          %v379 = vld [vmem:[%s3 + $0x10] sm:$0xf]
          %v380 = vld [vmem:[%s3 + $0x14] sm:$0xf]
          %v381 = vld [vmem:[%s3 + $0x18] sm:$0xf]
          %v382 = vld [vmem:[%s3 + $0x1c] sm:$0xf]
          %v383 = vld [vmem:[%s3 + $0x20] sm:$0xf]
          %v384 = vld [vmem:[%s3 + $0x24] sm:$0xf]
          %v385 = vld [vmem:[%s3 + $0x28] sm:$0xf]
          %v386 = vld [vmem:[%s3 + $0x2c] sm:$0xf]
          %v387 = vld [vmem:[%s3 + $0x30] sm:$0xf]
          %v388 = vld [vmem:[%s3 + $0x34] sm:$0xf]
          %v389 = vld [vmem:[%s3 + $0x38] sm:$0xf]
          %v390 = vld [vmem:[%s3 + $0x3c] sm:$0xf]
          %v407 = vunpack.c.l.b16 %v375
          %v408 = vunpack.c.l.b16 %v376
          %v409 = vunpack.c.l.b16 %v377
          %v410 = vunpack.c.l.b16 %v378
          %v411 = vunpack.c.l.b16 %v379
          %v412 = vunpack.c.l.b16 %v380
          %v413 = vunpack.c.l.b16 %v381
          %v414 = vunpack.c.l.b16 %v382
          %v415 = vunpack.c.l.b16 %v383
          %v416 = vunpack.c.l.b16 %v384
          %v417 = vunpack.c.l.b16 %v385
          %v418 = vunpack.c.l.b16 %v386
          %v419 = vunpack.c.l.b16 %v387
          %v420 = vunpack.c.l.b16 %v388
          %v421 = vunpack.c.l.b16 %v389
          %v422 = vunpack.c.l.b16 %v390
          %v423 = vpack.c.b16 %v408, %v407
          %v424 = vpack.c.b16 %v410, %v409
          %v425 = vpack.c.b16 %v412, %v411
          %v426 = vpack.c.b16 %v414, %v413
          %v427 = vpack.c.b16 %v416, %v415
          %v428 = vpack.c.b16 %v418, %v417
          %v429 = vpack.c.b16 %v420, %v419
          %v430 = vpack.c.b16 %v422, %v421
          %v439 = vunpack.c.l.b16 %v343
          %v440 = vunpack.c.l.b16 %v344
          %v441 = vunpack.c.l.b16 %v345
          %v442 = vunpack.c.l.b16 %v346
          %v443 = vunpack.c.l.b16 %v347
          %v444 = vunpack.c.l.b16 %v348
          %v445 = vunpack.c.l.b16 %v349
          %v446 = vunpack.c.l.b16 %v350
          %v447 = vpack.c.b16 %v440, %v439
          %v448 = vpack.c.b16 %v442, %v441
          %v449 = vpack.c.b16 %v444, %v443
          %v450 = vpack.c.b16 %v446, %v445
          %vm451 = vcmask 261120
          %v453 = vsel %vm451, %v423, 0
          %v456 = vsel %vm451, %v424, 0
          %v459 = vsel %vm451, %v425, 0
          %v462 = vsel %vm451, %v426, 0
          %v465 = vsel %vm451, %v427, 0
          %v468 = vsel %vm451, %v428, 0
          %v471 = vsel %vm451, %v429, 0
          %v474 = vsel %vm451, %v430, 0
          %v477 = vsel %vm451, %v447, 0
          %v480 = vsel %vm451, %v448, 0
          %v483 = vsel %vm451, %v449, 0
          %v486 = vsel %vm451, %v450, 0
          %488 = vmatprep.subr.bf16.mxu0 0
          %489 = vmatpush1.bf16.xpose.msra.mxu0 0
          %490 = vmatprep.subr.bf16.mxu0 0
          %491 = vmatpush1.bf16.xpose.msra.mxu0 0
          %492 = vmatprep.subr.bf16.mxu0 0
          %493 = vmatpush1.bf16.xpose.msra.mxu0 0
          %494 = vmatprep.subr.bf16.mxu0 0
          %495 = vmatpush1.bf16.xpose.msra.mxu0 0
          %496 = vmatprep.subr.bf16.mxu0 0
          %497 = vmatpush1.bf16.xpose.msra.mxu0 %v486
          %498 = vmatprep.subr.bf16.mxu0 0
          %499 = vmatpush1.bf16.xpose.msra.mxu0 %v483
          %500 = vmatprep.subr.bf16.mxu0 0
          %501 = vmatpush1.bf16.xpose.msra.mxu0 %v480
          %502 = vmatprep.subr.bf16.mxu0 0
          %503 = vmatpush1.bf16.xpose.msra.mxu0 %v477
          %504 = vmatprep.subr.bf16.mxu0 0
          %505 = vmatpush2.bf16.xpose.msra.mxu0 0
          %506 = vmatprep.subr.bf16.mxu0 0
          %507 = vmatpush2.bf16.xpose.msra.mxu0 0
          %508 = vmatprep.subr.bf16.mxu0 0
          %509 = vmatpush2.bf16.xpose.msra.mxu0 0
          %510 = vmatprep.subr.bf16.mxu0 0
          %511 = vmatpush2.bf16.xpose.msra.mxu0 0
          %512 = vmatprep.subr.bf16.mxu0 0
          %513 = vmatpush2.bf16.xpose.msra.mxu0 0
          %514 = vmatprep.subr.bf16.mxu0 0
          %515 = vmatpush2.bf16.xpose.msra.mxu0 0
          %516 = vmatprep.subr.bf16.mxu0 0
          %517 = vmatpush2.bf16.xpose.msra.mxu0 0
          %518 = vmatprep.subr.bf16.mxu0 0
          %519 = vmatpush2.bf16.xpose.msra.mxu0 0
          %520 = vmatprep.mubr.bf16.mxu0 0
          %521 = vmatmul.mubr.bf16.gmra.mxu0 %v453
          %v522 = vpop.f32.mrf.mxu0
          %v523 = vadd.f32 0.0, %v522
          %v524 = vpop.f32.mrf.mxu0
          %v525 = vpop.f32.mrf.mxu0
          %v526 = vadd.f32 0.0, %v525
          %v527 = vpop.f32.mrf.mxu0
          %528 = vmatprep.mubr.bf16.mxu0 0
          %529 = vmatmul.mubr.bf16.gmra.mxu0 %v456
          %v530 = vpop.f32.mrf.mxu0
          %v531 = vadd.f32 0.0, %v530
          %v532 = vpop.f32.mrf.mxu0
          %v533 = vpop.f32.mrf.mxu0
          %v534 = vadd.f32 0.0, %v533
          %v535 = vpop.f32.mrf.mxu0
          %536 = vmatprep.mubr.bf16.mxu0 0
          %537 = vmatmul.mubr.bf16.gmra.mxu0 %v459
          %v538 = vpop.f32.mrf.mxu0
          %v539 = vadd.f32 0.0, %v538
          %v540 = vpop.f32.mrf.mxu0
          %v541 = vpop.f32.mrf.mxu0
          %v542 = vadd.f32 0.0, %v541
          %v543 = vpop.f32.mrf.mxu0
          %544 = vmatprep.mubr.bf16.mxu0 0
          %545 = vmatmul.mubr.bf16.gmra.mxu0 %v462
          %v546 = vpop.f32.mrf.mxu0
          %v547 = vadd.f32 0.0, %v546
          %v548 = vpop.f32.mrf.mxu0
          %v549 = vpop.f32.mrf.mxu0
          %v550 = vadd.f32 0.0, %v549
          %v551 = vpop.f32.mrf.mxu0
          %552 = vmatprep.mubr.bf16.mxu0 0
          %553 = vmatmul.mubr.bf16.gmra.mxu0 %v465
          %v554 = vpop.f32.mrf.mxu0
          %v555 = vadd.f32 0.0, %v554
          %v556 = vpop.f32.mrf.mxu0
          %v557 = vpop.f32.mrf.mxu0
          %v558 = vadd.f32 0.0, %v557
          %v559 = vpop.f32.mrf.mxu0
          %560 = vmatprep.mubr.bf16.mxu0 0
          %561 = vmatmul.mubr.bf16.gmra.mxu0 %v468
          %v562 = vpop.f32.mrf.mxu0
          %v563 = vadd.f32 0.0, %v562
          %v564 = vpop.f32.mrf.mxu0
          %v565 = vpop.f32.mrf.mxu0
          %v566 = vadd.f32 0.0, %v565
          %v567 = vpop.f32.mrf.mxu0
          %568 = vmatprep.mubr.bf16.mxu0 0
          %569 = vmatmul.mubr.bf16.gmra.mxu0 %v471
          %v570 = vpop.f32.mrf.mxu0
          %v571 = vadd.f32 0.0, %v570
          %v572 = vpop.f32.mrf.mxu0
          %v573 = vpop.f32.mrf.mxu0
          %v574 = vadd.f32 0.0, %v573
          %v575 = vpop.f32.mrf.mxu0
          %576 = vmatprep.mubr.bf16.mxu0 0
          %577 = vmatmul.mubr.bf16.gmra.mxu0 %v474
          %v578 = vpop.f32.mrf.mxu0
          %v579 = vadd.f32 0.0, %v578
          %v580 = vpop.f32.mrf.mxu0
          %v581 = vpop.f32.mrf.mxu0
          %v582 = vadd.f32 0.0, %v581
          %v583 = vpop.f32.mrf.mxu0
          %584 = vdwg.mxu0
          %v585 = vmul.f32 %v523, 0.17677669
          %v586 = vmul.f32 %v526, 0.17677669
          %v587 = vmul.f32 %v531, 0.17677669
          %v588 = vmul.f32 %v534, 0.17677669
          %v589 = vmul.f32 %v539, 0.17677669
          %v590 = vmul.f32 %v542, 0.17677669
          %v591 = vmul.f32 %v547, 0.17677669
          %v592 = vmul.f32 %v550, 0.17677669
          %v593 = vmul.f32 %v555, 0.17677669
          %v594 = vmul.f32 %v558, 0.17677669
          %v595 = vmul.f32 %v563, 0.17677669
          %v596 = vmul.f32 %v566, 0.17677669
          %v597 = vmul.f32 %v571, 0.17677669
          %v598 = vmul.f32 %v574, 0.17677669
          %v599 = vmul.f32 %v579, 0.17677669
          %v600 = vmul.f32 %v582, 0.17677669
          %v601 = vpack.c.bf16 %v586, %v585
          %v602 = vpack.c.bf16 %v588, %v587
          %v603 = vpack.c.bf16 %v590, %v589
          %v604 = vpack.c.bf16 %v592, %v591
          %v605 = vpack.c.bf16 %v594, %v593
          %v606 = vpack.c.bf16 %v596, %v595
          %v607 = vpack.c.bf16 %v598, %v597
          %v608 = vpack.c.bf16 %v600, %v599
          %v617 = vunpack.c.l.b16 %v601
          %v618 = vunpack.c.h.b16 %v601
          %v619 = vunpack.c.l.b16 %v602
          %v620 = vunpack.c.h.b16 %v602
          %v621 = vunpack.c.l.b16 %v603
          %v622 = vunpack.c.h.b16 %v603
          %v623 = vunpack.c.l.b16 %v604
          %v624 = vunpack.c.h.b16 %v604
          %v625 = vunpack.c.l.b16 %v605
          %v626 = vunpack.c.h.b16 %v605
          %v627 = vunpack.c.l.b16 %v606
          %v628 = vunpack.c.h.b16 %v606
          %v629 = vunpack.c.l.b16 %v607
          %v630 = vunpack.c.h.b16 %v607
          %v631 = vunpack.c.l.b16 %v608
          %v632 = vunpack.c.h.b16 %v608
          %v633 = vpack.c.b16 %v617, %v617
          %v634 = vpack.c.b16 %v618, %v618
          %v635 = vpack.c.b16 %v619, %v619
          %v636 = vpack.c.b16 %v620, %v620
          %v637 = vpack.c.b16 %v621, %v621
          %v638 = vpack.c.b16 %v622, %v622
          %v639 = vpack.c.b16 %v623, %v623
          %v640 = vpack.c.b16 %v624, %v624
          %v641 = vpack.c.b16 %v625, %v625
          %v642 = vpack.c.b16 %v626, %v626
          %v643 = vpack.c.b16 %v627, %v627
          %v644 = vpack.c.b16 %v628, %v628
          %v645 = vpack.c.b16 %v629, %v629
          %v646 = vpack.c.b16 %v630, %v630
          %v647 = vpack.c.b16 %v631, %v631
          %v648 = vpack.c.b16 %v632, %v632
          %vm665 = vcmask 519168
          %666 = vst.msk [vmem:[#allocation2] sm:$0xf] %vm665, %v633
          %667 = vst.msk [vmem:[#allocation2 + $0x4] sm:$0xf] %vm665, %v634
          %668 = vst.msk [vmem:[#allocation2 + $0x8] sm:$0xf] %vm665, %v635
          %669 = vst.msk [vmem:[#allocation2 + $0xc] sm:$0xf] %vm665, %v636
          %670 = vst.msk [vmem:[#allocation2 + $0x10] sm:$0xf] %vm665, %v637
          %671 = vst.msk [vmem:[#allocation2 + $0x14] sm:$0xf] %vm665, %v638
          %672 = vst.msk [vmem:[#allocation2 + $0x18] sm:$0xf] %vm665, %v639
          %673 = vst.msk [vmem:[#allocation2 + $0x1c] sm:$0xf] %vm665, %v640
          %674 = vst.msk [vmem:[#allocation2 + $0x20] sm:$0xf] %vm665, %v641
          %675 = vst.msk [vmem:[#allocation2 + $0x24] sm:$0xf] %vm665, %v642
          %676 = vst.msk [vmem:[#allocation2 + $0x28] sm:$0xf] %vm665, %v643
          %677 = vst.msk [vmem:[#allocation2 + $0x2c] sm:$0xf] %vm665, %v644
          %678 = vst.msk [vmem:[#allocation2 + $0x30] sm:$0xf] %vm665, %v645
          %679 = vst.msk [vmem:[#allocation2 + $0x34] sm:$0xf] %vm665, %v646
          %680 = vst.msk [vmem:[#allocation2 + $0x38] sm:$0xf] %vm665, %v647
          %681 = vst.msk [vmem:[#allocation2 + $0x3c] sm:$0xf] %vm665, %v648
          %v690 = vunpack.c.l.b16 %v351
          %v691 = vunpack.c.l.b16 %v352
          %v692 = vunpack.c.l.b16 %v353
          %v693 = vunpack.c.l.b16 %v354
          %v694 = vunpack.c.l.b16 %v355
          %v695 = vunpack.c.l.b16 %v356
          %v696 = vunpack.c.l.b16 %v357
          %v697 = vunpack.c.l.b16 %v358
          %v698 = vpack.c.b16 %v691, %v690
          %v699 = vpack.c.b16 %v693, %v692
          %v700 = vpack.c.b16 %v695, %v694
          %v701 = vpack.c.b16 %v697, %v696
          %v706 = vunpack.c.l.b16 %v359
          %v707 = vunpack.c.l.b16 %v360
          %v708 = vunpack.c.l.b16 %v361
          %v709 = vunpack.c.l.b16 %v362
          %v710 = vpack.c.b16 %v707, %v706
          %v711 = vpack.c.b16 %v709, %v708
          %v715 = vsel %vm451, %v698, 0
          %v718 = vsel %vm451, %v699, 0
          %v721 = vsel %vm451, %v700, 0
          %v724 = vsel %vm451, %v701, 0
          %726 = vmatprep.subr.bf16.mxu0 0
          %727 = vmatpush1.bf16.msra.mxu0 0
          %728 = vmatprep.subr.bf16.mxu0 0
          %729 = vmatpush1.bf16.msra.mxu0 0
          %730 = vmatprep.subr.bf16.mxu0 0
          %731 = vmatpush1.bf16.msra.mxu0 0
          %732 = vmatprep.subr.bf16.mxu0 0
          %733 = vmatpush1.bf16.msra.mxu0 0
          %734 = vmatprep.subr.bf16.mxu0 0
          %735 = vmatpush1.bf16.msra.mxu0 0
          %736 = vmatprep.subr.bf16.mxu0 0
          %737 = vmatpush1.bf16.msra.mxu0 0
          %738 = vmatprep.subr.bf16.mxu0 0
          %739 = vmatpush1.bf16.msra.mxu0 %v711
          %740 = vmatprep.subr.bf16.mxu0 0
          %741 = vmatpush1.bf16.msra.mxu0 %v710
          %742 = vmatprep.subr.bf16.mxu0 0
          %743 = vmatpush2.bf16.msra.mxu0 0
          %744 = vmatprep.subr.bf16.mxu0 0
          %745 = vmatpush2.bf16.msra.mxu0 0
          %746 = vmatprep.subr.bf16.mxu0 0
          %747 = vmatpush2.bf16.msra.mxu0 0
          %748 = vmatprep.subr.bf16.mxu0 0
          %749 = vmatpush2.bf16.msra.mxu0 0
          %750 = vmatprep.subr.bf16.mxu0 0
          %751 = vmatpush2.bf16.msra.mxu0 0
          %752 = vmatprep.subr.bf16.mxu0 0
          %753 = vmatpush2.bf16.msra.mxu0 0
          %754 = vmatprep.subr.bf16.mxu0 0
          %755 = vmatpush2.bf16.msra.mxu0 0
          %756 = vmatprep.subr.bf16.mxu0 0
          %757 = vmatpush2.bf16.msra.mxu0 0
          %758 = vmatprep.mubr.bf16.mxu0 0
          %759 = vmatmul.mubr.bf16.gmra.mxu0 %v715
          %v760 = vpop.f32.mrf.mxu0
          %v761 = vadd.f32 0.0, %v760
          %v762 = vpop.f32.mrf.mxu0
          %v763 = vpop.f32.mrf.mxu0
          %v764 = vadd.f32 0.0, %v763
          %v765 = vpop.f32.mrf.mxu0
          %766 = vmatprep.mubr.bf16.mxu0 0
          %767 = vmatmul.mubr.bf16.gmra.mxu0 %v718
          %v768 = vpop.f32.mrf.mxu0
          %v769 = vadd.f32 0.0, %v768
          %v770 = vpop.f32.mrf.mxu0
          %v771 = vpop.f32.mrf.mxu0
          %v772 = vadd.f32 0.0, %v771
          %v773 = vpop.f32.mrf.mxu0
          %774 = vmatprep.mubr.bf16.mxu0 0
          %775 = vmatmul.mubr.bf16.gmra.mxu0 %v721
          %v776 = vpop.f32.mrf.mxu0
          %v777 = vadd.f32 0.0, %v776
          %v778 = vpop.f32.mrf.mxu0
          %v779 = vpop.f32.mrf.mxu0
          %v780 = vadd.f32 0.0, %v779
          %v781 = vpop.f32.mrf.mxu0
          %782 = vmatprep.mubr.bf16.mxu0 0
          %783 = vmatmul.mubr.bf16.gmra.mxu0 %v724
          %v784 = vpop.f32.mrf.mxu0
          %v785 = vadd.f32 0.0, %v784
          %v786 = vpop.f32.mrf.mxu0
          %v787 = vpop.f32.mrf.mxu0
          %v788 = vadd.f32 0.0, %v787
          %v789 = vpop.f32.mrf.mxu0
          %790 = vdwg.mxu0
          %v791 = vpack.c.bf16 %v764, %v761
          %v792 = vpack.c.bf16 %v772, %v769
          %v793 = vpack.c.bf16 %v780, %v777
          %v794 = vpack.c.bf16 %v788, %v785
          %v799 = vunpack.c.l.b16 %v791
          %v800 = vunpack.c.h.b16 %v791
          %v801 = vunpack.c.l.b16 %v792
          %v802 = vunpack.c.h.b16 %v792
          %v803 = vunpack.c.l.b16 %v793
          %v804 = vunpack.c.h.b16 %v793
          %v805 = vunpack.c.l.b16 %v794
          %v806 = vunpack.c.h.b16 %v794
          %v807 = vpack.c.b16 %v799, %v799
          %v808 = vpack.c.b16 %v800, %v800
          %v809 = vpack.c.b16 %v801, %v801
          %v810 = vpack.c.b16 %v802, %v802
          %v811 = vpack.c.b16 %v803, %v803
          %v812 = vpack.c.b16 %v804, %v804
          %v813 = vpack.c.b16 %v805, %v805
          %v814 = vpack.c.b16 %v806, %v806
          %823 = vst [vmem:[#allocation3] sm:$0xf] %v807
          %824 = vst [vmem:[#allocation3 + $0x4] sm:$0xf] %v808
          %825 = vst [vmem:[#allocation3 + $0x8] sm:$0xf] %v809
          %826 = vst [vmem:[#allocation3 + $0xc] sm:$0xf] %v810
          %827 = vst [vmem:[#allocation3 + $0x10] sm:$0xf] %v811
          %828 = vst [vmem:[#allocation3 + $0x14] sm:$0xf] %v812
          %829 = vst [vmem:[#allocation3 + $0x18] sm:$0xf] %v813
          %830 = vst [vmem:[#allocation3 + $0x1c] sm:$0xf] %v814
          %s831 = scalar_lea.vmem %s3, 64
          %v832 = vld [vmem:[%s831] sm:$0xf]
          %v833 = vld [vmem:[%s831 + $0x4] sm:$0xf]
          %v834 = vld [vmem:[%s831 + $0x8] sm:$0xf]
          %v835 = vld [vmem:[%s831 + $0xc] sm:$0xf]
          %v836 = vld [vmem:[%s831 + $0x10] sm:$0xf]
          %v837 = vld [vmem:[%s831 + $0x14] sm:$0xf]
          %v838 = vld [vmem:[%s831 + $0x18] sm:$0xf]
          %v839 = vld [vmem:[%s831 + $0x1c] sm:$0xf]
          %v840 = vld [vmem:[%s831 + $0x20] sm:$0xf]
          %v841 = vld [vmem:[%s831 + $0x24] sm:$0xf]
          %v842 = vld [vmem:[%s831 + $0x28] sm:$0xf]
          %v843 = vld [vmem:[%s831 + $0x2c] sm:$0xf]
          %v844 = vld [vmem:[%s831 + $0x30] sm:$0xf]
          %v845 = vld [vmem:[%s831 + $0x34] sm:$0xf]
          %v846 = vld [vmem:[%s831 + $0x38] sm:$0xf]
          %v847 = vld [vmem:[%s831 + $0x3c] sm:$0xf]
          %v864 = vunpack.c.l.b16 %v832
          %v865 = vunpack.c.l.b16 %v833
          %v866 = vunpack.c.l.b16 %v834
          %v867 = vunpack.c.l.b16 %v835
          %v868 = vunpack.c.l.b16 %v836
          %v869 = vunpack.c.l.b16 %v837
          %v870 = vunpack.c.l.b16 %v838
          %v871 = vunpack.c.l.b16 %v839
          %v872 = vunpack.c.l.b16 %v840
          %v873 = vunpack.c.l.b16 %v841
          %v874 = vunpack.c.l.b16 %v842
          %v875 = vunpack.c.l.b16 %v843
          %v876 = vunpack.c.l.b16 %v844
          %v877 = vunpack.c.l.b16 %v845
          %v878 = vunpack.c.l.b16 %v846
          %v879 = vunpack.c.l.b16 %v847
          %v880 = vpack.c.b16 %v865, %v864
          %v881 = vpack.c.b16 %v867, %v866
          %v882 = vpack.c.b16 %v869, %v868
          %v883 = vpack.c.b16 %v871, %v870
          %v884 = vpack.c.b16 %v873, %v872
          %v885 = vpack.c.b16 %v875, %v874
          %v886 = vpack.c.b16 %v877, %v876
          %v887 = vpack.c.b16 %v879, %v878
          %888 = vrot.lane.b32.xlu0 %v447, 96
          %v889 = vpop.permute.xlu0 %888
          %890 = vrot.lane.b32.xlu0 %v448, 96
          %v891 = vpop.permute.xlu0 %890
          %892 = vrot.lane.b32.xlu0 %v449, 96
          %v893 = vpop.permute.xlu0 %892
          %894 = vrot.lane.b32.xlu0 %v450, 96
          %v895 = vpop.permute.xlu0 %894
          %v897 = vsel %vm451, %v880, 0
          %v900 = vsel %vm451, %v881, 0
          %v903 = vsel %vm451, %v882, 0
          %v906 = vsel %vm451, %v883, 0
          %v909 = vsel %vm451, %v884, 0
          %v912 = vsel %vm451, %v885, 0
          %v915 = vsel %vm451, %v886, 0
          %v918 = vsel %vm451, %v887, 0
          %v921 = vsel %vm451, %v889, 0
          %v924 = vsel %vm451, %v891, 0
          %v927 = vsel %vm451, %v893, 0
          %v930 = vsel %vm451, %v895, 0
          %932 = vmatprep.subr.bf16.mxu0 0
          %933 = vmatpush1.bf16.xpose.msra.mxu0 0
          %934 = vmatprep.subr.bf16.mxu0 0
          %935 = vmatpush1.bf16.xpose.msra.mxu0 0
          %936 = vmatprep.subr.bf16.mxu0 0
          %937 = vmatpush1.bf16.xpose.msra.mxu0 0
          %938 = vmatprep.subr.bf16.mxu0 0
          %939 = vmatpush1.bf16.xpose.msra.mxu0 0
          %940 = vmatprep.subr.bf16.mxu0 0
          %941 = vmatpush1.bf16.xpose.msra.mxu0 %v930
          %942 = vmatprep.subr.bf16.mxu0 0
          %943 = vmatpush1.bf16.xpose.msra.mxu0 %v927
          %944 = vmatprep.subr.bf16.mxu0 0
          %945 = vmatpush1.bf16.xpose.msra.mxu0 %v924
          %946 = vmatprep.subr.bf16.mxu0 0
          %947 = vmatpush1.bf16.xpose.msra.mxu0 %v921
          %948 = vmatprep.subr.bf16.mxu0 0
          %949 = vmatpush2.bf16.xpose.msra.mxu0 0
          %950 = vmatprep.subr.bf16.mxu0 0
          %951 = vmatpush2.bf16.xpose.msra.mxu0 0
          %952 = vmatprep.subr.bf16.mxu0 0
          %953 = vmatpush2.bf16.xpose.msra.mxu0 0
          %954 = vmatprep.subr.bf16.mxu0 0
          %955 = vmatpush2.bf16.xpose.msra.mxu0 0
          %956 = vmatprep.subr.bf16.mxu0 0
          %957 = vmatpush2.bf16.xpose.msra.mxu0 0
          %958 = vmatprep.subr.bf16.mxu0 0
          %959 = vmatpush2.bf16.xpose.msra.mxu0 0
          %960 = vmatprep.subr.bf16.mxu0 0
          %961 = vmatpush2.bf16.xpose.msra.mxu0 0
          %962 = vmatprep.subr.bf16.mxu0 0
          %963 = vmatpush2.bf16.xpose.msra.mxu0 0
          %964 = vmatprep.mubr.bf16.mxu0 0
          %965 = vmatmul.mubr.bf16.gmra.mxu0 %v897
          %v966 = vpop.f32.mrf.mxu0
          %v967 = vadd.f32 0.0, %v966
          %v968 = vpop.f32.mrf.mxu0
          %v969 = vpop.f32.mrf.mxu0
          %v970 = vadd.f32 0.0, %v969
          %v971 = vpop.f32.mrf.mxu0
          %972 = vmatprep.mubr.bf16.mxu0 0
          %973 = vmatmul.mubr.bf16.gmra.mxu0 %v900
          %v974 = vpop.f32.mrf.mxu0
          %v975 = vadd.f32 0.0, %v974
          %v976 = vpop.f32.mrf.mxu0
          %v977 = vpop.f32.mrf.mxu0
          %v978 = vadd.f32 0.0, %v977
          %v979 = vpop.f32.mrf.mxu0
          %980 = vmatprep.mubr.bf16.mxu0 0
          %981 = vmatmul.mubr.bf16.gmra.mxu0 %v903
          %v982 = vpop.f32.mrf.mxu0
          %v983 = vadd.f32 0.0, %v982
          %v984 = vpop.f32.mrf.mxu0
          %v985 = vpop.f32.mrf.mxu0
          %v986 = vadd.f32 0.0, %v985
          %v987 = vpop.f32.mrf.mxu0
          %988 = vmatprep.mubr.bf16.mxu0 0
          %989 = vmatmul.mubr.bf16.gmra.mxu0 %v906
          %v990 = vpop.f32.mrf.mxu0
          %v991 = vadd.f32 0.0, %v990
          %v992 = vpop.f32.mrf.mxu0
          %v993 = vpop.f32.mrf.mxu0
          %v994 = vadd.f32 0.0, %v993
          %v995 = vpop.f32.mrf.mxu0
          %996 = vmatprep.mubr.bf16.mxu0 0
          %997 = vmatmul.mubr.bf16.gmra.mxu0 %v909
          %v998 = vpop.f32.mrf.mxu0
          %v999 = vadd.f32 0.0, %v998
          %v1000 = vpop.f32.mrf.mxu0
          %v1001 = vpop.f32.mrf.mxu0
          %v1002 = vadd.f32 0.0, %v1001
          %v1003 = vpop.f32.mrf.mxu0
          %1004 = vmatprep.mubr.bf16.mxu0 0
          %1005 = vmatmul.mubr.bf16.gmra.mxu0 %v912
          %v1006 = vpop.f32.mrf.mxu0
          %v1007 = vadd.f32 0.0, %v1006
          %v1008 = vpop.f32.mrf.mxu0
          %v1009 = vpop.f32.mrf.mxu0
          %v1010 = vadd.f32 0.0, %v1009
          %v1011 = vpop.f32.mrf.mxu0
          %1012 = vmatprep.mubr.bf16.mxu0 0
          %1013 = vmatmul.mubr.bf16.gmra.mxu0 %v915
          %v1014 = vpop.f32.mrf.mxu0
          %v1015 = vadd.f32 0.0, %v1014
          %v1016 = vpop.f32.mrf.mxu0
          %v1017 = vpop.f32.mrf.mxu0
          %v1018 = vadd.f32 0.0, %v1017
          %v1019 = vpop.f32.mrf.mxu0
          %1020 = vmatprep.mubr.bf16.mxu0 0
          %1021 = vmatmul.mubr.bf16.gmra.mxu0 %v918
          %v1022 = vpop.f32.mrf.mxu0
          %v1023 = vadd.f32 0.0, %v1022
          %v1024 = vpop.f32.mrf.mxu0
          %v1025 = vpop.f32.mrf.mxu0
          %v1026 = vadd.f32 0.0, %v1025
          %v1027 = vpop.f32.mrf.mxu0
          %1028 = vdwg.mxu0
          %v1029 = vmul.f32 %v967, 0.17677669
          %v1030 = vmul.f32 %v970, 0.17677669
          %v1031 = vmul.f32 %v975, 0.17677669
          %v1032 = vmul.f32 %v978, 0.17677669
          %v1033 = vmul.f32 %v983, 0.17677669
          %v1034 = vmul.f32 %v986, 0.17677669
          %v1035 = vmul.f32 %v991, 0.17677669
          %v1036 = vmul.f32 %v994, 0.17677669
          %v1037 = vmul.f32 %v999, 0.17677669
          %v1038 = vmul.f32 %v1002, 0.17677669
          %v1039 = vmul.f32 %v1007, 0.17677669
          %v1040 = vmul.f32 %v1010, 0.17677669
          %v1041 = vmul.f32 %v1015, 0.17677669
          %v1042 = vmul.f32 %v1018, 0.17677669
          %v1043 = vmul.f32 %v1023, 0.17677669
          %v1044 = vmul.f32 %v1026, 0.17677669
          %v1045 = vpack.c.bf16 %v1030, %v1029
          %v1046 = vpack.c.bf16 %v1032, %v1031
          %v1047 = vpack.c.bf16 %v1034, %v1033
          %v1048 = vpack.c.bf16 %v1036, %v1035
          %v1049 = vpack.c.bf16 %v1038, %v1037
          %v1050 = vpack.c.bf16 %v1040, %v1039
          %v1051 = vpack.c.bf16 %v1042, %v1041
          %v1052 = vpack.c.bf16 %v1044, %v1043
          %v1061 = vunpack.c.l.b16 %v1045
          %v1062 = vunpack.c.h.b16 %v1045
          %v1063 = vunpack.c.l.b16 %v1046
          %v1064 = vunpack.c.h.b16 %v1046
          %v1065 = vunpack.c.l.b16 %v1047
          %v1066 = vunpack.c.h.b16 %v1047
          %v1067 = vunpack.c.l.b16 %v1048
          %v1068 = vunpack.c.h.b16 %v1048
          %v1069 = vunpack.c.l.b16 %v1049
          %v1070 = vunpack.c.h.b16 %v1049
          %v1071 = vunpack.c.l.b16 %v1050
          %v1072 = vunpack.c.h.b16 %v1050
          %v1073 = vunpack.c.l.b16 %v1051
          %v1074 = vunpack.c.h.b16 %v1051
          %v1075 = vunpack.c.l.b16 %v1052
          %v1076 = vunpack.c.h.b16 %v1052
          %v1077 = vpack.c.b16 %v1061, %v1061
          %v1078 = vpack.c.b16 %v1062, %v1062
          %v1079 = vpack.c.b16 %v1063, %v1063
          %v1080 = vpack.c.b16 %v1064, %v1064
          %v1081 = vpack.c.b16 %v1065, %v1065
          %v1082 = vpack.c.b16 %v1066, %v1066
          %v1083 = vpack.c.b16 %v1067, %v1067
          %v1084 = vpack.c.b16 %v1068, %v1068
          %v1085 = vpack.c.b16 %v1069, %v1069
          %v1086 = vpack.c.b16 %v1070, %v1070
          %v1087 = vpack.c.b16 %v1071, %v1071
          %v1088 = vpack.c.b16 %v1072, %v1072
          %v1089 = vpack.c.b16 %v1073, %v1073
          %v1090 = vpack.c.b16 %v1074, %v1074
          %v1091 = vpack.c.b16 %v1075, %v1075
          %v1092 = vpack.c.b16 %v1076, %v1076
          %s1109 = scalar_lea.vmem [#allocation2], 64
          %1110 = vst.msk [vmem:[%s1109] sm:$0xf] %vm665, %v1077
          %1111 = vst.msk [vmem:[%s1109 + $0x4] sm:$0xf] %vm665, %v1078
          %1112 = vst.msk [vmem:[%s1109 + $0x8] sm:$0xf] %vm665, %v1079
          %1113 = vst.msk [vmem:[%s1109 + $0xc] sm:$0xf] %vm665, %v1080
          %1114 = vst.msk [vmem:[%s1109 + $0x10] sm:$0xf] %vm665, %v1081
          %1115 = vst.msk [vmem:[%s1109 + $0x14] sm:$0xf] %vm665, %v1082
          %1116 = vst.msk [vmem:[%s1109 + $0x18] sm:$0xf] %vm665, %v1083
          %1117 = vst.msk [vmem:[%s1109 + $0x1c] sm:$0xf] %vm665, %v1084
          %1118 = vst.msk [vmem:[%s1109 + $0x20] sm:$0xf] %vm665, %v1085
          %1119 = vst.msk [vmem:[%s1109 + $0x24] sm:$0xf] %vm665, %v1086
          %1120 = vst.msk [vmem:[%s1109 + $0x28] sm:$0xf] %vm665, %v1087
          %1121 = vst.msk [vmem:[%s1109 + $0x2c] sm:$0xf] %vm665, %v1088
          %1122 = vst.msk [vmem:[%s1109 + $0x30] sm:$0xf] %vm665, %v1089
          %1123 = vst.msk [vmem:[%s1109 + $0x34] sm:$0xf] %vm665, %v1090
          %1124 = vst.msk [vmem:[%s1109 + $0x38] sm:$0xf] %vm665, %v1091
          %1125 = vst.msk [vmem:[%s1109 + $0x3c] sm:$0xf] %vm665, %v1092
          %1126 = vrot.lane.b32.xlu0 %v698, 96
          %v1127 = vpop.permute.xlu0 %1126
          %1128 = vrot.lane.b32.xlu0 %v699, 96
          %v1129 = vpop.permute.xlu0 %1128
          %1130 = vrot.lane.b32.xlu0 %v700, 96
          %v1131 = vpop.permute.xlu0 %1130
          %1132 = vrot.lane.b32.xlu0 %v701, 96
          %v1133 = vpop.permute.xlu0 %1132
          %v1138 = vunpack.c.l.b16 %v363
          %v1139 = vunpack.c.l.b16 %v364
          %v1140 = vunpack.c.l.b16 %v365
          %v1141 = vunpack.c.l.b16 %v366
          %v1142 = vpack.c.b16 %v1139, %v1138
          %v1143 = vpack.c.b16 %v1141, %v1140
          %v1147 = vsel %vm451, %v1127, 0
          %v1150 = vsel %vm451, %v1129, 0
          %v1153 = vsel %vm451, %v1131, 0
          %v1156 = vsel %vm451, %v1133, 0
          %1158 = vmatprep.subr.bf16.mxu0 0
          %1159 = vmatpush1.bf16.msra.mxu0 0
          %1160 = vmatprep.subr.bf16.mxu0 0
          %1161 = vmatpush1.bf16.msra.mxu0 0
          %1162 = vmatprep.subr.bf16.mxu0 0
          %1163 = vmatpush1.bf16.msra.mxu0 0
          %1164 = vmatprep.subr.bf16.mxu0 0
          %1165 = vmatpush1.bf16.msra.mxu0 0
          %1166 = vmatprep.subr.bf16.mxu0 0
          %1167 = vmatpush1.bf16.msra.mxu0 0
          %1168 = vmatprep.subr.bf16.mxu0 0
          %1169 = vmatpush1.bf16.msra.mxu0 0
          %1170 = vmatprep.subr.bf16.mxu0 0
          %1171 = vmatpush1.bf16.msra.mxu0 %v1143
          %1172 = vmatprep.subr.bf16.mxu0 0
          %1173 = vmatpush1.bf16.msra.mxu0 %v1142
          %1174 = vmatprep.subr.bf16.mxu0 0
          %1175 = vmatpush2.bf16.msra.mxu0 0
          %1176 = vmatprep.subr.bf16.mxu0 0
          %1177 = vmatpush2.bf16.msra.mxu0 0
          %1178 = vmatprep.subr.bf16.mxu0 0
          %1179 = vmatpush2.bf16.msra.mxu0 0
          %1180 = vmatprep.subr.bf16.mxu0 0
          %1181 = vmatpush2.bf16.msra.mxu0 0
          %1182 = vmatprep.subr.bf16.mxu0 0
          %1183 = vmatpush2.bf16.msra.mxu0 0
          %1184 = vmatprep.subr.bf16.mxu0 0
          %1185 = vmatpush2.bf16.msra.mxu0 0
          %1186 = vmatprep.subr.bf16.mxu0 0
          %1187 = vmatpush2.bf16.msra.mxu0 0
          %1188 = vmatprep.subr.bf16.mxu0 0
          %1189 = vmatpush2.bf16.msra.mxu0 0
          %1190 = vmatprep.mubr.bf16.mxu0 0
          %1191 = vmatmul.mubr.bf16.gmra.mxu0 %v1147
          %v1192 = vpop.f32.mrf.mxu0
          %v1193 = vadd.f32 0.0, %v1192
          %v1194 = vpop.f32.mrf.mxu0
          %v1195 = vpop.f32.mrf.mxu0
          %v1196 = vadd.f32 0.0, %v1195
          %v1197 = vpop.f32.mrf.mxu0
          %1198 = vmatprep.mubr.bf16.mxu0 0
          %1199 = vmatmul.mubr.bf16.gmra.mxu0 %v1150
          %v1200 = vpop.f32.mrf.mxu0
          %v1201 = vadd.f32 0.0, %v1200
          %v1202 = vpop.f32.mrf.mxu0
          %v1203 = vpop.f32.mrf.mxu0
          %v1204 = vadd.f32 0.0, %v1203
          %v1205 = vpop.f32.mrf.mxu0
          %1206 = vmatprep.mubr.bf16.mxu0 0
          %1207 = vmatmul.mubr.bf16.gmra.mxu0 %v1153
          %v1208 = vpop.f32.mrf.mxu0
          %v1209 = vadd.f32 0.0, %v1208
          %v1210 = vpop.f32.mrf.mxu0
          %v1211 = vpop.f32.mrf.mxu0
          %v1212 = vadd.f32 0.0, %v1211
          %v1213 = vpop.f32.mrf.mxu0
          %1214 = vmatprep.mubr.bf16.mxu0 0
          %1215 = vmatmul.mubr.bf16.gmra.mxu0 %v1156
          %v1216 = vpop.f32.mrf.mxu0
          %v1217 = vadd.f32 0.0, %v1216
          %v1218 = vpop.f32.mrf.mxu0
          %v1219 = vpop.f32.mrf.mxu0
          %v1220 = vadd.f32 0.0, %v1219
          %v1221 = vpop.f32.mrf.mxu0
          %1222 = vdwg.mxu0
          %v1223 = vpack.c.bf16 %v1196, %v1193
          %v1224 = vpack.c.bf16 %v1204, %v1201
          %v1225 = vpack.c.bf16 %v1212, %v1209
          %v1226 = vpack.c.bf16 %v1220, %v1217
          %v1231 = vunpack.c.l.b16 %v1223
          %v1232 = vunpack.c.h.b16 %v1223
          %v1233 = vunpack.c.l.b16 %v1224
          %v1234 = vunpack.c.h.b16 %v1224
          %v1235 = vunpack.c.l.b16 %v1225
          %v1236 = vunpack.c.h.b16 %v1225
          %v1237 = vunpack.c.l.b16 %v1226
          %v1238 = vunpack.c.h.b16 %v1226
          %v1239 = vpack.c.b16 %v1231, %v1231
          %v1240 = vpack.c.b16 %v1232, %v1232
          %v1241 = vpack.c.b16 %v1233, %v1233
          %v1242 = vpack.c.b16 %v1234, %v1234
          %v1243 = vpack.c.b16 %v1235, %v1235
          %v1244 = vpack.c.b16 %v1236, %v1236
          %v1245 = vpack.c.b16 %v1237, %v1237
          %v1246 = vpack.c.b16 %v1238, %v1238
          %s1255 = scalar_lea.vmem [#allocation3], 32
          %1256 = vst [vmem:[%s1255] sm:$0xf] %v1239
          %1257 = vst [vmem:[%s1255 + $0x4] sm:$0xf] %v1240
          %1258 = vst [vmem:[%s1255 + $0x8] sm:$0xf] %v1241
          %1259 = vst [vmem:[%s1255 + $0xc] sm:$0xf] %v1242
          %1260 = vst [vmem:[%s1255 + $0x10] sm:$0xf] %v1243
          %1261 = vst [vmem:[%s1255 + $0x14] sm:$0xf] %v1244
          %1262 = vst [vmem:[%s1255 + $0x18] sm:$0xf] %v1245
          %1263 = vst [vmem:[%s1255 + $0x1c] sm:$0xf] %v1246
          %s1264 = scalar_lea.vmem %s3, 128
          %v1265 = vld [vmem:[%s1264] sm:$0xf]
          %v1266 = vld [vmem:[%s1264 + $0x4] sm:$0xf]
          %v1267 = vld [vmem:[%s1264 + $0x8] sm:$0xf]
          %v1268 = vld [vmem:[%s1264 + $0xc] sm:$0xf]
          %v1269 = vld [vmem:[%s1264 + $0x10] sm:$0xf]
          %v1270 = vld [vmem:[%s1264 + $0x14] sm:$0xf]
          %v1271 = vld [vmem:[%s1264 + $0x18] sm:$0xf]
          %v1272 = vld [vmem:[%s1264 + $0x1c] sm:$0xf]
          %v1273 = vld [vmem:[%s1264 + $0x20] sm:$0xf]
          %v1274 = vld [vmem:[%s1264 + $0x24] sm:$0xf]
          %v1275 = vld [vmem:[%s1264 + $0x28] sm:$0xf]
          %v1276 = vld [vmem:[%s1264 + $0x2c] sm:$0xf]
          %v1277 = vld [vmem:[%s1264 + $0x30] sm:$0xf]
          %v1278 = vld [vmem:[%s1264 + $0x34] sm:$0xf]
          %v1279 = vld [vmem:[%s1264 + $0x38] sm:$0xf]
          %v1280 = vld [vmem:[%s1264 + $0x3c] sm:$0xf]
          %v1297 = vunpack.c.l.b16 %v1265
          %v1298 = vunpack.c.l.b16 %v1266
          %v1299 = vunpack.c.l.b16 %v1267
          %v1300 = vunpack.c.l.b16 %v1268
          %v1301 = vunpack.c.l.b16 %v1269
          %v1302 = vunpack.c.l.b16 %v1270
          %v1303 = vunpack.c.l.b16 %v1271
          %v1304 = vunpack.c.l.b16 %v1272
          %v1305 = vunpack.c.l.b16 %v1273
          %v1306 = vunpack.c.l.b16 %v1274
          %v1307 = vunpack.c.l.b16 %v1275
          %v1308 = vunpack.c.l.b16 %v1276
          %v1309 = vunpack.c.l.b16 %v1277
          %v1310 = vunpack.c.l.b16 %v1278
          %v1311 = vunpack.c.l.b16 %v1279
          %v1312 = vunpack.c.l.b16 %v1280
          %v1313 = vpack.c.b16 %v1298, %v1297
          %v1314 = vpack.c.b16 %v1300, %v1299
          %v1315 = vpack.c.b16 %v1302, %v1301
          %v1316 = vpack.c.b16 %v1304, %v1303
          %v1317 = vpack.c.b16 %v1306, %v1305
          %v1318 = vpack.c.b16 %v1308, %v1307
          %v1319 = vpack.c.b16 %v1310, %v1309
          %v1320 = vpack.c.b16 %v1312, %v1311
          %1321 = vrot.lane.b32.xlu0 %v447, 64
          %v1322 = vpop.permute.xlu0 %1321
          %1323 = vrot.lane.b32.xlu0 %v448, 64
          %v1324 = vpop.permute.xlu0 %1323
          %1325 = vrot.lane.b32.xlu0 %v449, 64
          %v1326 = vpop.permute.xlu0 %1325
          %1327 = vrot.lane.b32.xlu0 %v450, 64
          %v1328 = vpop.permute.xlu0 %1327
          %v1330 = vsel %vm451, %v1313, 0
          %v1333 = vsel %vm451, %v1314, 0
          %v1336 = vsel %vm451, %v1315, 0
          %v1339 = vsel %vm451, %v1316, 0
          %v1342 = vsel %vm451, %v1317, 0
          %v1345 = vsel %vm451, %v1318, 0
          %v1348 = vsel %vm451, %v1319, 0
          %v1351 = vsel %vm451, %v1320, 0
          %v1354 = vsel %vm451, %v1322, 0
          %v1357 = vsel %vm451, %v1324, 0
          %v1360 = vsel %vm451, %v1326, 0
          %v1363 = vsel %vm451, %v1328, 0
          %1365 = vmatprep.subr.bf16.mxu0 0
          %1366 = vmatpush1.bf16.xpose.msra.mxu0 0
          %1367 = vmatprep.subr.bf16.mxu0 0
          %1368 = vmatpush1.bf16.xpose.msra.mxu0 0
          %1369 = vmatprep.subr.bf16.mxu0 0
          %1370 = vmatpush1.bf16.xpose.msra.mxu0 0
          %1371 = vmatprep.subr.bf16.mxu0 0
          %1372 = vmatpush1.bf16.xpose.msra.mxu0 0
          %1373 = vmatprep.subr.bf16.mxu0 0
          %1374 = vmatpush1.bf16.xpose.msra.mxu0 %v1363
          %1375 = vmatprep.subr.bf16.mxu0 0
          %1376 = vmatpush1.bf16.xpose.msra.mxu0 %v1360
          %1377 = vmatprep.subr.bf16.mxu0 0
          %1378 = vmatpush1.bf16.xpose.msra.mxu0 %v1357
          %1379 = vmatprep.subr.bf16.mxu0 0
          %1380 = vmatpush1.bf16.xpose.msra.mxu0 %v1354
          %1381 = vmatprep.subr.bf16.mxu0 0
          %1382 = vmatpush2.bf16.xpose.msra.mxu0 0
          %1383 = vmatprep.subr.bf16.mxu0 0
          %1384 = vmatpush2.bf16.xpose.msra.mxu0 0
          %1385 = vmatprep.subr.bf16.mxu0 0
          %1386 = vmatpush2.bf16.xpose.msra.mxu0 0
          %1387 = vmatprep.subr.bf16.mxu0 0
          %1388 = vmatpush2.bf16.xpose.msra.mxu0 0
          %1389 = vmatprep.subr.bf16.mxu0 0
          %1390 = vmatpush2.bf16.xpose.msra.mxu0 0
          %1391 = vmatprep.subr.bf16.mxu0 0
          %1392 = vmatpush2.bf16.xpose.msra.mxu0 0
          %1393 = vmatprep.subr.bf16.mxu0 0
          %1394 = vmatpush2.bf16.xpose.msra.mxu0 0
          %1395 = vmatprep.subr.bf16.mxu0 0
          %1396 = vmatpush2.bf16.xpose.msra.mxu0 0
          %1397 = vmatprep.mubr.bf16.mxu0 0
          %1398 = vmatmul.mubr.bf16.gmra.mxu0 %v1330
          %v1399 = vpop.f32.mrf.mxu0
          %v1400 = vadd.f32 0.0, %v1399
          %v1401 = vpop.f32.mrf.mxu0
          %v1402 = vpop.f32.mrf.mxu0
          %v1403 = vadd.f32 0.0, %v1402
          %v1404 = vpop.f32.mrf.mxu0
          %1405 = vmatprep.mubr.bf16.mxu0 0
          %1406 = vmatmul.mubr.bf16.gmra.mxu0 %v1333
          %v1407 = vpop.f32.mrf.mxu0
          %v1408 = vadd.f32 0.0, %v1407
          %v1409 = vpop.f32.mrf.mxu0
          %v1410 = vpop.f32.mrf.mxu0
          %v1411 = vadd.f32 0.0, %v1410
          %v1412 = vpop.f32.mrf.mxu0
          %1413 = vmatprep.mubr.bf16.mxu0 0
          %1414 = vmatmul.mubr.bf16.gmra.mxu0 %v1336
          %v1415 = vpop.f32.mrf.mxu0
          %v1416 = vadd.f32 0.0, %v1415
          %v1417 = vpop.f32.mrf.mxu0
          %v1418 = vpop.f32.mrf.mxu0
          %v1419 = vadd.f32 0.0, %v1418
          %v1420 = vpop.f32.mrf.mxu0
          %1421 = vmatprep.mubr.bf16.mxu0 0
          %1422 = vmatmul.mubr.bf16.gmra.mxu0 %v1339
          %v1423 = vpop.f32.mrf.mxu0
          %v1424 = vadd.f32 0.0, %v1423
          %v1425 = vpop.f32.mrf.mxu0
          %v1426 = vpop.f32.mrf.mxu0
          %v1427 = vadd.f32 0.0, %v1426
          %v1428 = vpop.f32.mrf.mxu0
          %1429 = vmatprep.mubr.bf16.mxu0 0
          %1430 = vmatmul.mubr.bf16.gmra.mxu0 %v1342
          %v1431 = vpop.f32.mrf.mxu0
          %v1432 = vadd.f32 0.0, %v1431
          %v1433 = vpop.f32.mrf.mxu0
          %v1434 = vpop.f32.mrf.mxu0
          %v1435 = vadd.f32 0.0, %v1434
          %v1436 = vpop.f32.mrf.mxu0
          %1437 = vmatprep.mubr.bf16.mxu0 0
          %1438 = vmatmul.mubr.bf16.gmra.mxu0 %v1345
          %v1439 = vpop.f32.mrf.mxu0
          %v1440 = vadd.f32 0.0, %v1439
          %v1441 = vpop.f32.mrf.mxu0
          %v1442 = vpop.f32.mrf.mxu0
          %v1443 = vadd.f32 0.0, %v1442
          %v1444 = vpop.f32.mrf.mxu0
          %1445 = vmatprep.mubr.bf16.mxu0 0
          %1446 = vmatmul.mubr.bf16.gmra.mxu0 %v1348
          %v1447 = vpop.f32.mrf.mxu0
          %v1448 = vadd.f32 0.0, %v1447
          %v1449 = vpop.f32.mrf.mxu0
          %v1450 = vpop.f32.mrf.mxu0
          %v1451 = vadd.f32 0.0, %v1450
          %v1452 = vpop.f32.mrf.mxu0
          %1453 = vmatprep.mubr.bf16.mxu0 0
          %1454 = vmatmul.mubr.bf16.gmra.mxu0 %v1351
          %v1455 = vpop.f32.mrf.mxu0
          %v1456 = vadd.f32 0.0, %v1455
          %v1457 = vpop.f32.mrf.mxu0
          %v1458 = vpop.f32.mrf.mxu0
          %v1459 = vadd.f32 0.0, %v1458
          %v1460 = vpop.f32.mrf.mxu0
          %1461 = vdwg.mxu0
          %v1462 = vmul.f32 %v1400, 0.17677669
          %v1463 = vmul.f32 %v1403, 0.17677669
          %v1464 = vmul.f32 %v1408, 0.17677669
          %v1465 = vmul.f32 %v1411, 0.17677669
          %v1466 = vmul.f32 %v1416, 0.17677669
          %v1467 = vmul.f32 %v1419, 0.17677669
          %v1468 = vmul.f32 %v1424, 0.17677669
          %v1469 = vmul.f32 %v1427, 0.17677669
          %v1470 = vmul.f32 %v1432, 0.17677669
          %v1471 = vmul.f32 %v1435, 0.17677669
          %v1472 = vmul.f32 %v1440, 0.17677669
          %v1473 = vmul.f32 %v1443, 0.17677669
          %v1474 = vmul.f32 %v1448, 0.17677669
          %v1475 = vmul.f32 %v1451, 0.17677669
          %v1476 = vmul.f32 %v1456, 0.17677669
          %v1477 = vmul.f32 %v1459, 0.17677669
          %v1478 = vpack.c.bf16 %v1463, %v1462
          %v1479 = vpack.c.bf16 %v1465, %v1464
          %v1480 = vpack.c.bf16 %v1467, %v1466
          %v1481 = vpack.c.bf16 %v1469, %v1468
          %v1482 = vpack.c.bf16 %v1471, %v1470
          %v1483 = vpack.c.bf16 %v1473, %v1472
          %v1484 = vpack.c.bf16 %v1475, %v1474
          %v1485 = vpack.c.bf16 %v1477, %v1476
          %v1494 = vunpack.c.l.b16 %v1478
          %v1495 = vunpack.c.h.b16 %v1478
          %v1496 = vunpack.c.l.b16 %v1479
          %v1497 = vunpack.c.h.b16 %v1479
          %v1498 = vunpack.c.l.b16 %v1480
          %v1499 = vunpack.c.h.b16 %v1480
          %v1500 = vunpack.c.l.b16 %v1481
          %v1501 = vunpack.c.h.b16 %v1481
          %v1502 = vunpack.c.l.b16 %v1482
          %v1503 = vunpack.c.h.b16 %v1482
          %v1504 = vunpack.c.l.b16 %v1483
          %v1505 = vunpack.c.h.b16 %v1483
          %v1506 = vunpack.c.l.b16 %v1484
          %v1507 = vunpack.c.h.b16 %v1484
          %v1508 = vunpack.c.l.b16 %v1485
          %v1509 = vunpack.c.h.b16 %v1485
          %v1510 = vpack.c.b16 %v1494, %v1494
          %v1511 = vpack.c.b16 %v1495, %v1495
          %v1512 = vpack.c.b16 %v1496, %v1496
          %v1513 = vpack.c.b16 %v1497, %v1497
          %v1514 = vpack.c.b16 %v1498, %v1498
          %v1515 = vpack.c.b16 %v1499, %v1499
          %v1516 = vpack.c.b16 %v1500, %v1500
          %v1517 = vpack.c.b16 %v1501, %v1501
          %v1518 = vpack.c.b16 %v1502, %v1502
          %v1519 = vpack.c.b16 %v1503, %v1503
          %v1520 = vpack.c.b16 %v1504, %v1504
          %v1521 = vpack.c.b16 %v1505, %v1505
          %v1522 = vpack.c.b16 %v1506, %v1506
          %v1523 = vpack.c.b16 %v1507, %v1507
          %v1524 = vpack.c.b16 %v1508, %v1508
          %v1525 = vpack.c.b16 %v1509, %v1509
          %s1542 = scalar_lea.vmem [#allocation2], 128
          %1543 = vst.msk [vmem:[%s1542] sm:$0xf] %vm665, %v1510
          %1544 = vst.msk [vmem:[%s1542 + $0x4] sm:$0xf] %vm665, %v1511
          %1545 = vst.msk [vmem:[%s1542 + $0x8] sm:$0xf] %vm665, %v1512
          %1546 = vst.msk [vmem:[%s1542 + $0xc] sm:$0xf] %vm665, %v1513
          %1547 = vst.msk [vmem:[%s1542 + $0x10] sm:$0xf] %vm665, %v1514
          %1548 = vst.msk [vmem:[%s1542 + $0x14] sm:$0xf] %vm665, %v1515
          %1549 = vst.msk [vmem:[%s1542 + $0x18] sm:$0xf] %vm665, %v1516
          %1550 = vst.msk [vmem:[%s1542 + $0x1c] sm:$0xf] %vm665, %v1517
          %1551 = vst.msk [vmem:[%s1542 + $0x20] sm:$0xf] %vm665, %v1518
          %1552 = vst.msk [vmem:[%s1542 + $0x24] sm:$0xf] %vm665, %v1519
          %1553 = vst.msk [vmem:[%s1542 + $0x28] sm:$0xf] %vm665, %v1520
          %1554 = vst.msk [vmem:[%s1542 + $0x2c] sm:$0xf] %vm665, %v1521
          %1555 = vst.msk [vmem:[%s1542 + $0x30] sm:$0xf] %vm665, %v1522
          %1556 = vst.msk [vmem:[%s1542 + $0x34] sm:$0xf] %vm665, %v1523
          %1557 = vst.msk [vmem:[%s1542 + $0x38] sm:$0xf] %vm665, %v1524
          %1558 = vst.msk [vmem:[%s1542 + $0x3c] sm:$0xf] %vm665, %v1525
          %1559 = vrot.lane.b32.xlu0 %v698, 64
          %v1560 = vpop.permute.xlu0 %1559
          %1561 = vrot.lane.b32.xlu0 %v699, 64
          %v1562 = vpop.permute.xlu0 %1561
          %1563 = vrot.lane.b32.xlu0 %v700, 64
          %v1564 = vpop.permute.xlu0 %1563
          %1565 = vrot.lane.b32.xlu0 %v701, 64
          %v1566 = vpop.permute.xlu0 %1565
          %v1571 = vunpack.c.l.b16 %v367
          %v1572 = vunpack.c.l.b16 %v368
          %v1573 = vunpack.c.l.b16 %v369
          %v1574 = vunpack.c.l.b16 %v370
          %v1575 = vpack.c.b16 %v1572, %v1571
          %v1576 = vpack.c.b16 %v1574, %v1573
          %v1580 = vsel %vm451, %v1560, 0
          %v1583 = vsel %vm451, %v1562, 0
          %v1586 = vsel %vm451, %v1564, 0
          %v1589 = vsel %vm451, %v1566, 0
          %1591 = vmatprep.subr.bf16.mxu0 0
          %1592 = vmatpush1.bf16.msra.mxu0 0
          %1593 = vmatprep.subr.bf16.mxu0 0
          %1594 = vmatpush1.bf16.msra.mxu0 0
          %1595 = vmatprep.subr.bf16.mxu0 0
          %1596 = vmatpush1.bf16.msra.mxu0 0
          %1597 = vmatprep.subr.bf16.mxu0 0
          %1598 = vmatpush1.bf16.msra.mxu0 0
          %1599 = vmatprep.subr.bf16.mxu0 0
          %1600 = vmatpush1.bf16.msra.mxu0 0
          %1601 = vmatprep.subr.bf16.mxu0 0
          %1602 = vmatpush1.bf16.msra.mxu0 0
          %1603 = vmatprep.subr.bf16.mxu0 0
          %1604 = vmatpush1.bf16.msra.mxu0 %v1576
          %1605 = vmatprep.subr.bf16.mxu0 0
          %1606 = vmatpush1.bf16.msra.mxu0 %v1575
          %1607 = vmatprep.subr.bf16.mxu0 0
          %1608 = vmatpush2.bf16.msra.mxu0 0
          %1609 = vmatprep.subr.bf16.mxu0 0
          %1610 = vmatpush2.bf16.msra.mxu0 0
          %1611 = vmatprep.subr.bf16.mxu0 0
          %1612 = vmatpush2.bf16.msra.mxu0 0
          %1613 = vmatprep.subr.bf16.mxu0 0
          %1614 = vmatpush2.bf16.msra.mxu0 0
          %1615 = vmatprep.subr.bf16.mxu0 0
          %1616 = vmatpush2.bf16.msra.mxu0 0
          %1617 = vmatprep.subr.bf16.mxu0 0
          %1618 = vmatpush2.bf16.msra.mxu0 0
          %1619 = vmatprep.subr.bf16.mxu0 0
          %1620 = vmatpush2.bf16.msra.mxu0 0
          %1621 = vmatprep.subr.bf16.mxu0 0
          %1622 = vmatpush2.bf16.msra.mxu0 0
          %1623 = vmatprep.mubr.bf16.mxu0 0
          %1624 = vmatmul.mubr.bf16.gmra.mxu0 %v1580
          %v1625 = vpop.f32.mrf.mxu0
          %v1626 = vadd.f32 0.0, %v1625
          %v1627 = vpop.f32.mrf.mxu0
          %v1628 = vpop.f32.mrf.mxu0
          %v1629 = vadd.f32 0.0, %v1628
          %v1630 = vpop.f32.mrf.mxu0
          %1631 = vmatprep.mubr.bf16.mxu0 0
          %1632 = vmatmul.mubr.bf16.gmra.mxu0 %v1583
          %v1633 = vpop.f32.mrf.mxu0
          %v1634 = vadd.f32 0.0, %v1633
          %v1635 = vpop.f32.mrf.mxu0
          %v1636 = vpop.f32.mrf.mxu0
          %v1637 = vadd.f32 0.0, %v1636
          %v1638 = vpop.f32.mrf.mxu0
          %1639 = vmatprep.mubr.bf16.mxu0 0
          %1640 = vmatmul.mubr.bf16.gmra.mxu0 %v1586
          %v1641 = vpop.f32.mrf.mxu0
          %v1642 = vadd.f32 0.0, %v1641
          %v1643 = vpop.f32.mrf.mxu0
          %v1644 = vpop.f32.mrf.mxu0
          %v1645 = vadd.f32 0.0, %v1644
          %v1646 = vpop.f32.mrf.mxu0
          %1647 = vmatprep.mubr.bf16.mxu0 0
          %1648 = vmatmul.mubr.bf16.gmra.mxu0 %v1589
          %v1649 = vpop.f32.mrf.mxu0
          %v1650 = vadd.f32 0.0, %v1649
          %v1651 = vpop.f32.mrf.mxu0
          %v1652 = vpop.f32.mrf.mxu0
          %v1653 = vadd.f32 0.0, %v1652
          %v1654 = vpop.f32.mrf.mxu0
          %1655 = vdwg.mxu0
          %v1656 = vpack.c.bf16 %v1629, %v1626
          %v1657 = vpack.c.bf16 %v1637, %v1634
          %v1658 = vpack.c.bf16 %v1645, %v1642
          %v1659 = vpack.c.bf16 %v1653, %v1650
          %v1664 = vunpack.c.l.b16 %v1656
          %v1665 = vunpack.c.h.b16 %v1656
          %v1666 = vunpack.c.l.b16 %v1657
          %v1667 = vunpack.c.h.b16 %v1657
          %v1668 = vunpack.c.l.b16 %v1658
          %v1669 = vunpack.c.h.b16 %v1658
          %v1670 = vunpack.c.l.b16 %v1659
          %v1671 = vunpack.c.h.b16 %v1659
          %v1672 = vpack.c.b16 %v1664, %v1664
          %v1673 = vpack.c.b16 %v1665, %v1665
          %v1674 = vpack.c.b16 %v1666, %v1666
          %v1675 = vpack.c.b16 %v1667, %v1667
          %v1676 = vpack.c.b16 %v1668, %v1668
          %v1677 = vpack.c.b16 %v1669, %v1669
          %v1678 = vpack.c.b16 %v1670, %v1670
          %v1679 = vpack.c.b16 %v1671, %v1671
          %s1688 = scalar_lea.vmem [#allocation3], 64
          %1689 = vst [vmem:[%s1688] sm:$0xf] %v1672
          %1690 = vst [vmem:[%s1688 + $0x4] sm:$0xf] %v1673
          %1691 = vst [vmem:[%s1688 + $0x8] sm:$0xf] %v1674
          %1692 = vst [vmem:[%s1688 + $0xc] sm:$0xf] %v1675
          %1693 = vst [vmem:[%s1688 + $0x10] sm:$0xf] %v1676
          %1694 = vst [vmem:[%s1688 + $0x14] sm:$0xf] %v1677
          %1695 = vst [vmem:[%s1688 + $0x18] sm:$0xf] %v1678
          %1696 = vst [vmem:[%s1688 + $0x1c] sm:$0xf] %v1679
          %s1697 = scalar_lea.vmem %s3, 192
          %v1698 = vld [vmem:[%s1697] sm:$0xf]
          %v1699 = vld [vmem:[%s1697 + $0x4] sm:$0xf]
          %v1700 = vld [vmem:[%s1697 + $0x8] sm:$0xf]
          %v1701 = vld [vmem:[%s1697 + $0xc] sm:$0xf]
          %v1702 = vld [vmem:[%s1697 + $0x10] sm:$0xf]
          %v1703 = vld [vmem:[%s1697 + $0x14] sm:$0xf]
          %v1704 = vld [vmem:[%s1697 + $0x18] sm:$0xf]
          %v1705 = vld [vmem:[%s1697 + $0x1c] sm:$0xf]
          %v1706 = vld [vmem:[%s1697 + $0x20] sm:$0xf]
          %v1707 = vld [vmem:[%s1697 + $0x24] sm:$0xf]
          %v1708 = vld [vmem:[%s1697 + $0x28] sm:$0xf]
          %v1709 = vld [vmem:[%s1697 + $0x2c] sm:$0xf]
          %v1710 = vld [vmem:[%s1697 + $0x30] sm:$0xf]
          %v1711 = vld [vmem:[%s1697 + $0x34] sm:$0xf]
          %v1712 = vld [vmem:[%s1697 + $0x38] sm:$0xf]
          %v1713 = vld [vmem:[%s1697 + $0x3c] sm:$0xf]
          %v1730 = vunpack.c.l.b16 %v1698
          %v1731 = vunpack.c.l.b16 %v1699
          %v1732 = vunpack.c.l.b16 %v1700
          %v1733 = vunpack.c.l.b16 %v1701
          %v1734 = vunpack.c.l.b16 %v1702
          %v1735 = vunpack.c.l.b16 %v1703
          %v1736 = vunpack.c.l.b16 %v1704
          %v1737 = vunpack.c.l.b16 %v1705
          %v1738 = vunpack.c.l.b16 %v1706
          %v1739 = vunpack.c.l.b16 %v1707
          %v1740 = vunpack.c.l.b16 %v1708
          %v1741 = vunpack.c.l.b16 %v1709
          %v1742 = vunpack.c.l.b16 %v1710
          %v1743 = vunpack.c.l.b16 %v1711
          %v1744 = vunpack.c.l.b16 %v1712
          %v1745 = vunpack.c.l.b16 %v1713
          %v1746 = vpack.c.b16 %v1731, %v1730
          %v1747 = vpack.c.b16 %v1733, %v1732
          %v1748 = vpack.c.b16 %v1735, %v1734
          %v1749 = vpack.c.b16 %v1737, %v1736
          %v1750 = vpack.c.b16 %v1739, %v1738
          %v1751 = vpack.c.b16 %v1741, %v1740
          %v1752 = vpack.c.b16 %v1743, %v1742
          %v1753 = vpack.c.b16 %v1745, %v1744
          %1754 = vrot.lane.b32.xlu0 %v447, 32
          %v1755 = vpop.permute.xlu0 %1754
          %1756 = vrot.lane.b32.xlu0 %v448, 32
          %v1757 = vpop.permute.xlu0 %1756
          %1758 = vrot.lane.b32.xlu0 %v449, 32
          %v1759 = vpop.permute.xlu0 %1758
          %1760 = vrot.lane.b32.xlu0 %v450, 32
          %v1761 = vpop.permute.xlu0 %1760
          %v1763 = vsel %vm451, %v1746, 0
          %v1766 = vsel %vm451, %v1747, 0
          %v1769 = vsel %vm451, %v1748, 0
          %v1772 = vsel %vm451, %v1749, 0
          %v1775 = vsel %vm451, %v1750, 0
          %v1778 = vsel %vm451, %v1751, 0
          %v1781 = vsel %vm451, %v1752, 0
          %v1784 = vsel %vm451, %v1753, 0
          %v1787 = vsel %vm451, %v1755, 0
          %v1790 = vsel %vm451, %v1757, 0
          %v1793 = vsel %vm451, %v1759, 0
          %v1796 = vsel %vm451, %v1761, 0
          %1798 = vmatprep.subr.bf16.mxu0 0
          %1799 = vmatpush1.bf16.xpose.msra.mxu0 0
          %1800 = vmatprep.subr.bf16.mxu0 0
          %1801 = vmatpush1.bf16.xpose.msra.mxu0 0
          %1802 = vmatprep.subr.bf16.mxu0 0
          %1803 = vmatpush1.bf16.xpose.msra.mxu0 0
          %1804 = vmatprep.subr.bf16.mxu0 0
          %1805 = vmatpush1.bf16.xpose.msra.mxu0 0
          %1806 = vmatprep.subr.bf16.mxu0 0
          %1807 = vmatpush1.bf16.xpose.msra.mxu0 %v1796
          %1808 = vmatprep.subr.bf16.mxu0 0
          %1809 = vmatpush1.bf16.xpose.msra.mxu0 %v1793
          %1810 = vmatprep.subr.bf16.mxu0 0
          %1811 = vmatpush1.bf16.xpose.msra.mxu0 %v1790
          %1812 = vmatprep.subr.bf16.mxu0 0
          %1813 = vmatpush1.bf16.xpose.msra.mxu0 %v1787
          %1814 = vmatprep.subr.bf16.mxu0 0
          %1815 = vmatpush2.bf16.xpose.msra.mxu0 0
          %1816 = vmatprep.subr.bf16.mxu0 0
          %1817 = vmatpush2.bf16.xpose.msra.mxu0 0
          %1818 = vmatprep.subr.bf16.mxu0 0
          %1819 = vmatpush2.bf16.xpose.msra.mxu0 0
          %1820 = vmatprep.subr.bf16.mxu0 0
          %1821 = vmatpush2.bf16.xpose.msra.mxu0 0
          %1822 = vmatprep.subr.bf16.mxu0 0
          %1823 = vmatpush2.bf16.xpose.msra.mxu0 0
          %1824 = vmatprep.subr.bf16.mxu0 0
          %1825 = vmatpush2.bf16.xpose.msra.mxu0 0
          %1826 = vmatprep.subr.bf16.mxu0 0
          %1827 = vmatpush2.bf16.xpose.msra.mxu0 0
          %1828 = vmatprep.subr.bf16.mxu0 0
          %1829 = vmatpush2.bf16.xpose.msra.mxu0 0
          %1830 = vmatprep.mubr.bf16.mxu0 0
          %1831 = vmatmul.mubr.bf16.gmra.mxu0 %v1763
          %v1832 = vpop.f32.mrf.mxu0
          %v1833 = vadd.f32 0.0, %v1832
          %v1834 = vpop.f32.mrf.mxu0
          %v1835 = vpop.f32.mrf.mxu0
          %v1836 = vadd.f32 0.0, %v1835
          %v1837 = vpop.f32.mrf.mxu0
          %1838 = vmatprep.mubr.bf16.mxu0 0
          %1839 = vmatmul.mubr.bf16.gmra.mxu0 %v1766
          %v1840 = vpop.f32.mrf.mxu0
          %v1841 = vadd.f32 0.0, %v1840
          %v1842 = vpop.f32.mrf.mxu0
          %v1843 = vpop.f32.mrf.mxu0
          %v1844 = vadd.f32 0.0, %v1843
          %v1845 = vpop.f32.mrf.mxu0
          %1846 = vmatprep.mubr.bf16.mxu0 0
          %1847 = vmatmul.mubr.bf16.gmra.mxu0 %v1769
          %v1848 = vpop.f32.mrf.mxu0
          %v1849 = vadd.f32 0.0, %v1848
          %v1850 = vpop.f32.mrf.mxu0
          %v1851 = vpop.f32.mrf.mxu0
          %v1852 = vadd.f32 0.0, %v1851
          %v1853 = vpop.f32.mrf.mxu0
          %1854 = vmatprep.mubr.bf16.mxu0 0
          %1855 = vmatmul.mubr.bf16.gmra.mxu0 %v1772
          %v1856 = vpop.f32.mrf.mxu0
          %v1857 = vadd.f32 0.0, %v1856
          %v1858 = vpop.f32.mrf.mxu0
          %v1859 = vpop.f32.mrf.mxu0
          %v1860 = vadd.f32 0.0, %v1859
          %v1861 = vpop.f32.mrf.mxu0
          %1862 = vmatprep.mubr.bf16.mxu0 0
          %1863 = vmatmul.mubr.bf16.gmra.mxu0 %v1775
          %v1864 = vpop.f32.mrf.mxu0
          %v1865 = vadd.f32 0.0, %v1864
          %v1866 = vpop.f32.mrf.mxu0
          %v1867 = vpop.f32.mrf.mxu0
          %v1868 = vadd.f32 0.0, %v1867
          %v1869 = vpop.f32.mrf.mxu0
          %1870 = vmatprep.mubr.bf16.mxu0 0
          %1871 = vmatmul.mubr.bf16.gmra.mxu0 %v1778
          %v1872 = vpop.f32.mrf.mxu0
          %v1873 = vadd.f32 0.0, %v1872
          %v1874 = vpop.f32.mrf.mxu0
          %v1875 = vpop.f32.mrf.mxu0
          %v1876 = vadd.f32 0.0, %v1875
          %v1877 = vpop.f32.mrf.mxu0
          %1878 = vmatprep.mubr.bf16.mxu0 0
          %1879 = vmatmul.mubr.bf16.gmra.mxu0 %v1781
          %v1880 = vpop.f32.mrf.mxu0
          %v1881 = vadd.f32 0.0, %v1880
          %v1882 = vpop.f32.mrf.mxu0
          %v1883 = vpop.f32.mrf.mxu0
          %v1884 = vadd.f32 0.0, %v1883
          %v1885 = vpop.f32.mrf.mxu0
          %1886 = vmatprep.mubr.bf16.mxu0 0
          %1887 = vmatmul.mubr.bf16.gmra.mxu0 %v1784
          %v1888 = vpop.f32.mrf.mxu0
          %v1889 = vadd.f32 0.0, %v1888
          %v1890 = vpop.f32.mrf.mxu0
          %v1891 = vpop.f32.mrf.mxu0
          %v1892 = vadd.f32 0.0, %v1891
          %v1893 = vpop.f32.mrf.mxu0
          %1894 = vdwg.mxu0
          %v1895 = vmul.f32 %v1833, 0.17677669
          %v1896 = vmul.f32 %v1836, 0.17677669
          %v1897 = vmul.f32 %v1841, 0.17677669
          %v1898 = vmul.f32 %v1844, 0.17677669
          %v1899 = vmul.f32 %v1849, 0.17677669
          %v1900 = vmul.f32 %v1852, 0.17677669
          %v1901 = vmul.f32 %v1857, 0.17677669
          %v1902 = vmul.f32 %v1860, 0.17677669
          %v1903 = vmul.f32 %v1865, 0.17677669
          %v1904 = vmul.f32 %v1868, 0.17677669
          %v1905 = vmul.f32 %v1873, 0.17677669
          %v1906 = vmul.f32 %v1876, 0.17677669
          %v1907 = vmul.f32 %v1881, 0.17677669
          %v1908 = vmul.f32 %v1884, 0.17677669
          %v1909 = vmul.f32 %v1889, 0.17677669
          %v1910 = vmul.f32 %v1892, 0.17677669
          %v1911 = vpack.c.bf16 %v1896, %v1895
          %v1912 = vpack.c.bf16 %v1898, %v1897
          %v1913 = vpack.c.bf16 %v1900, %v1899
          %v1914 = vpack.c.bf16 %v1902, %v1901
          %v1915 = vpack.c.bf16 %v1904, %v1903
          %v1916 = vpack.c.bf16 %v1906, %v1905
          %v1917 = vpack.c.bf16 %v1908, %v1907
          %v1918 = vpack.c.bf16 %v1910, %v1909
          %v1927 = vunpack.c.l.b16 %v1911
          %v1928 = vunpack.c.h.b16 %v1911
          %v1929 = vunpack.c.l.b16 %v1912
          %v1930 = vunpack.c.h.b16 %v1912
          %v1931 = vunpack.c.l.b16 %v1913
          %v1932 = vunpack.c.h.b16 %v1913
          %v1933 = vunpack.c.l.b16 %v1914
          %v1934 = vunpack.c.h.b16 %v1914
          %v1935 = vunpack.c.l.b16 %v1915
          %v1936 = vunpack.c.h.b16 %v1915
          %v1937 = vunpack.c.l.b16 %v1916
          %v1938 = vunpack.c.h.b16 %v1916
          %v1939 = vunpack.c.l.b16 %v1917
          %v1940 = vunpack.c.h.b16 %v1917
          %v1941 = vunpack.c.l.b16 %v1918
          %v1942 = vunpack.c.h.b16 %v1918
          %v1943 = vpack.c.b16 %v1927, %v1927
          %v1944 = vpack.c.b16 %v1928, %v1928
          %v1945 = vpack.c.b16 %v1929, %v1929
          %v1946 = vpack.c.b16 %v1930, %v1930
          %v1947 = vpack.c.b16 %v1931, %v1931
          %v1948 = vpack.c.b16 %v1932, %v1932
          %v1949 = vpack.c.b16 %v1933, %v1933
          %v1950 = vpack.c.b16 %v1934, %v1934
          %v1951 = vpack.c.b16 %v1935, %v1935
          %v1952 = vpack.c.b16 %v1936, %v1936
          %v1953 = vpack.c.b16 %v1937, %v1937
          %v1954 = vpack.c.b16 %v1938, %v1938
          %v1955 = vpack.c.b16 %v1939, %v1939
          %v1956 = vpack.c.b16 %v1940, %v1940
          %v1957 = vpack.c.b16 %v1941, %v1941
          %v1958 = vpack.c.b16 %v1942, %v1942
          %s1975 = scalar_lea.vmem [#allocation2], 192
          %1976 = vst.msk [vmem:[%s1975] sm:$0xf] %vm665, %v1943
          %1977 = vst.msk [vmem:[%s1975 + $0x4] sm:$0xf] %vm665, %v1944
          %1978 = vst.msk [vmem:[%s1975 + $0x8] sm:$0xf] %vm665, %v1945
          %1979 = vst.msk [vmem:[%s1975 + $0xc] sm:$0xf] %vm665, %v1946
          %1980 = vst.msk [vmem:[%s1975 + $0x10] sm:$0xf] %vm665, %v1947
          %1981 = vst.msk [vmem:[%s1975 + $0x14] sm:$0xf] %vm665, %v1948
          %1982 = vst.msk [vmem:[%s1975 + $0x18] sm:$0xf] %vm665, %v1949
          %1983 = vst.msk [vmem:[%s1975 + $0x1c] sm:$0xf] %vm665, %v1950
          %1984 = vst.msk [vmem:[%s1975 + $0x20] sm:$0xf] %vm665, %v1951
          %1985 = vst.msk [vmem:[%s1975 + $0x24] sm:$0xf] %vm665, %v1952
          %1986 = vst.msk [vmem:[%s1975 + $0x28] sm:$0xf] %vm665, %v1953
          %1987 = vst.msk [vmem:[%s1975 + $0x2c] sm:$0xf] %vm665, %v1954
          %1988 = vst.msk [vmem:[%s1975 + $0x30] sm:$0xf] %vm665, %v1955
          %1989 = vst.msk [vmem:[%s1975 + $0x34] sm:$0xf] %vm665, %v1956
          %1990 = vst.msk [vmem:[%s1975 + $0x38] sm:$0xf] %vm665, %v1957
          %1991 = vst.msk [vmem:[%s1975 + $0x3c] sm:$0xf] %vm665, %v1958
          %1992 = vrot.lane.b32.xlu0 %v698, 32
          %v1993 = vpop.permute.xlu0 %1992
          %1994 = vrot.lane.b32.xlu0 %v699, 32
          %v1995 = vpop.permute.xlu0 %1994
          %1996 = vrot.lane.b32.xlu0 %v700, 32
          %v1997 = vpop.permute.xlu0 %1996
          %1998 = vrot.lane.b32.xlu0 %v701, 32
          %v1999 = vpop.permute.xlu0 %1998
          %v2004 = vunpack.c.l.b16 %v371
          %v2005 = vunpack.c.l.b16 %v372
          %v2006 = vunpack.c.l.b16 %v373
          %v2007 = vunpack.c.l.b16 %v374
          %v2008 = vpack.c.b16 %v2005, %v2004
          %v2009 = vpack.c.b16 %v2007, %v2006
          %v2013 = vsel %vm451, %v1993, 0
          %v2016 = vsel %vm451, %v1995, 0
          %v2019 = vsel %vm451, %v1997, 0
          %v2022 = vsel %vm451, %v1999, 0
          %2024 = vmatprep.subr.bf16.mxu0 0
          %2025 = vmatpush1.bf16.msra.mxu0 0
          %2026 = vmatprep.subr.bf16.mxu0 0
          %2027 = vmatpush1.bf16.msra.mxu0 0
          %2028 = vmatprep.subr.bf16.mxu0 0
          %2029 = vmatpush1.bf16.msra.mxu0 0
          %2030 = vmatprep.subr.bf16.mxu0 0
          %2031 = vmatpush1.bf16.msra.mxu0 0
          %2032 = vmatprep.subr.bf16.mxu0 0
          %2033 = vmatpush1.bf16.msra.mxu0 0
          %2034 = vmatprep.subr.bf16.mxu0 0
          %2035 = vmatpush1.bf16.msra.mxu0 0
          %2036 = vmatprep.subr.bf16.mxu0 0
          %2037 = vmatpush1.bf16.msra.mxu0 %v2009
          %2038 = vmatprep.subr.bf16.mxu0 0
          %2039 = vmatpush1.bf16.msra.mxu0 %v2008
          %2040 = vmatprep.subr.bf16.mxu0 0
          %2041 = vmatpush2.bf16.msra.mxu0 0
          %2042 = vmatprep.subr.bf16.mxu0 0
          %2043 = vmatpush2.bf16.msra.mxu0 0
          %2044 = vmatprep.subr.bf16.mxu0 0
          %2045 = vmatpush2.bf16.msra.mxu0 0
          %2046 = vmatprep.subr.bf16.mxu0 0
          %2047 = vmatpush2.bf16.msra.mxu0 0
          %2048 = vmatprep.subr.bf16.mxu0 0
          %2049 = vmatpush2.bf16.msra.mxu0 0
          %2050 = vmatprep.subr.bf16.mxu0 0
          %2051 = vmatpush2.bf16.msra.mxu0 0
          %2052 = vmatprep.subr.bf16.mxu0 0
          %2053 = vmatpush2.bf16.msra.mxu0 0
          %2054 = vmatprep.subr.bf16.mxu0 0
          %2055 = vmatpush2.bf16.msra.mxu0 0
          %2056 = vmatprep.mubr.bf16.mxu0 0
          %2057 = vmatmul.mubr.bf16.gmra.mxu0 %v2013
          %v2058 = vpop.f32.mrf.mxu0
          %v2059 = vadd.f32 0.0, %v2058
          %v2060 = vpop.f32.mrf.mxu0
          %v2061 = vpop.f32.mrf.mxu0
          %v2062 = vadd.f32 0.0, %v2061
          %v2063 = vpop.f32.mrf.mxu0
          %2064 = vmatprep.mubr.bf16.mxu0 0
          %2065 = vmatmul.mubr.bf16.gmra.mxu0 %v2016
          %v2066 = vpop.f32.mrf.mxu0
          %v2067 = vadd.f32 0.0, %v2066
          %v2068 = vpop.f32.mrf.mxu0
          %v2069 = vpop.f32.mrf.mxu0
          %v2070 = vadd.f32 0.0, %v2069
          %v2071 = vpop.f32.mrf.mxu0
          %2072 = vmatprep.mubr.bf16.mxu0 0
          %2073 = vmatmul.mubr.bf16.gmra.mxu0 %v2019
          %v2074 = vpop.f32.mrf.mxu0
          %v2075 = vadd.f32 0.0, %v2074
          %v2076 = vpop.f32.mrf.mxu0
          %v2077 = vpop.f32.mrf.mxu0
          %v2078 = vadd.f32 0.0, %v2077
          %v2079 = vpop.f32.mrf.mxu0
          %2080 = vmatprep.mubr.bf16.mxu0 0
          %2081 = vmatmul.mubr.bf16.gmra.mxu0 %v2022
          %v2082 = vpop.f32.mrf.mxu0
          %v2083 = vadd.f32 0.0, %v2082
          %v2084 = vpop.f32.mrf.mxu0
          %v2085 = vpop.f32.mrf.mxu0
          %v2086 = vadd.f32 0.0, %v2085
          %v2087 = vpop.f32.mrf.mxu0
          %2088 = vdwg.mxu0
          %v2089 = vpack.c.bf16 %v2062, %v2059
          %v2090 = vpack.c.bf16 %v2070, %v2067
          %v2091 = vpack.c.bf16 %v2078, %v2075
          %v2092 = vpack.c.bf16 %v2086, %v2083
          %v2097 = vunpack.c.l.b16 %v2089
          %v2098 = vunpack.c.h.b16 %v2089
          %v2099 = vunpack.c.l.b16 %v2090
          %v2100 = vunpack.c.h.b16 %v2090
          %v2101 = vunpack.c.l.b16 %v2091
          %v2102 = vunpack.c.h.b16 %v2091
          %v2103 = vunpack.c.l.b16 %v2092
          %v2104 = vunpack.c.h.b16 %v2092
          %v2105 = vpack.c.b16 %v2097, %v2097
          %v2106 = vpack.c.b16 %v2098, %v2098
          %v2107 = vpack.c.b16 %v2099, %v2099
          %v2108 = vpack.c.b16 %v2100, %v2100
          %v2109 = vpack.c.b16 %v2101, %v2101
          %v2110 = vpack.c.b16 %v2102, %v2102
          %v2111 = vpack.c.b16 %v2103, %v2103
          %v2112 = vpack.c.b16 %v2104, %v2104
          %s2121 = scalar_lea.vmem [#allocation3], 96
          %2122 = vst [vmem:[%s2121] sm:$0xf] %v2105
          %2123 = vst [vmem:[%s2121 + $0x4] sm:$0xf] %v2106
          %2124 = vst [vmem:[%s2121 + $0x8] sm:$0xf] %v2107
          %2125 = vst [vmem:[%s2121 + $0xc] sm:$0xf] %v2108
          %2126 = vst [vmem:[%s2121 + $0x10] sm:$0xf] %v2109
          %2127 = vst [vmem:[%s2121 + $0x14] sm:$0xf] %v2110
          %2128 = vst [vmem:[%s2121 + $0x18] sm:$0xf] %v2111
          %2129 = vst [vmem:[%s2121 + $0x1c] sm:$0xf] %v2112
        $region48: #{pvt_attention.3} parent=43 // pred_fallthru
          _
        %v2130 = vld [vmem:[%s323] sm:$0xf]
        %v2131 = vld [vmem:[%s323 + $0x4] sm:$0xf]
        %v2132 = vld [vmem:[%s323 + $0x8] sm:$0xf]
        %v2133 = vld [vmem:[%s323 + $0xc] sm:$0xf]
        %v2134 = vld [vmem:[%s323 + $0x10] sm:$0xf]
        %v2135 = vld [vmem:[%s323 + $0x14] sm:$0xf]
        %v2136 = vld [vmem:[%s323 + $0x18] sm:$0xf]
        %v2137 = vld [vmem:[%s323 + $0x1c] sm:$0xf]
        %v2138 = vld [vmem:[%s323 + $0x20] sm:$0xf]
        %v2139 = vld [vmem:[%s323 + $0x24] sm:$0xf]
        %v2140 = vld [vmem:[%s323 + $0x28] sm:$0xf]
        %v2141 = vld [vmem:[%s323 + $0x2c] sm:$0xf]
        %v2142 = vld [vmem:[%s323 + $0x30] sm:$0xf]
        %v2143 = vld [vmem:[%s323 + $0x34] sm:$0xf]
        %v2144 = vld [vmem:[%s323 + $0x38] sm:$0xf]
        %v2145 = vld [vmem:[%s323 + $0x3c] sm:$0xf]
        %v2146 = vld [vmem:[%s323 + $0x40] sm:$0xf]
        %v2147 = vld [vmem:[%s323 + $0x44] sm:$0xf]
        %v2148 = vld [vmem:[%s323 + $0x48] sm:$0xf]
        %v2149 = vld [vmem:[%s323 + $0x4c] sm:$0xf]
        %v2150 = vld [vmem:[%s323 + $0x50] sm:$0xf]
        %v2151 = vld [vmem:[%s323 + $0x54] sm:$0xf]
        %v2152 = vld [vmem:[%s323 + $0x58] sm:$0xf]
        %v2153 = vld [vmem:[%s323 + $0x5c] sm:$0xf]
        %v2154 = vld [vmem:[%s323 + $0x60] sm:$0xf]
        %v2155 = vld [vmem:[%s323 + $0x64] sm:$0xf]
        %v2156 = vld [vmem:[%s323 + $0x68] sm:$0xf]
        %v2157 = vld [vmem:[%s323 + $0x6c] sm:$0xf]
        %v2158 = vld [vmem:[%s323 + $0x70] sm:$0xf]
        %v2159 = vld [vmem:[%s323 + $0x74] sm:$0xf]
        %v2160 = vld [vmem:[%s323 + $0x78] sm:$0xf]
        %v2161 = vld [vmem:[%s323 + $0x7c] sm:$0xf]
        %v2162 = vld [vmem:[#allocation2] sm:$0xf]
        %v2163 = vld [vmem:[#allocation2 + $0x4] sm:$0xf]
        %v2164 = vld [vmem:[#allocation2 + $0x8] sm:$0xf]
        %v2165 = vld [vmem:[#allocation2 + $0xc] sm:$0xf]
        %v2166 = vld [vmem:[#allocation2 + $0x10] sm:$0xf]
        %v2167 = vld [vmem:[#allocation2 + $0x14] sm:$0xf]
        %v2168 = vld [vmem:[#allocation2 + $0x18] sm:$0xf]
        %v2169 = vld [vmem:[#allocation2 + $0x1c] sm:$0xf]
        %v2170 = vld [vmem:[#allocation2 + $0x20] sm:$0xf]
        %v2171 = vld [vmem:[#allocation2 + $0x24] sm:$0xf]
        %v2172 = vld [vmem:[#allocation2 + $0x28] sm:$0xf]
        %v2173 = vld [vmem:[#allocation2 + $0x2c] sm:$0xf]
        %v2174 = vld [vmem:[#allocation2 + $0x30] sm:$0xf]
        %v2175 = vld [vmem:[#allocation2 + $0x34] sm:$0xf]
        %v2176 = vld [vmem:[#allocation2 + $0x38] sm:$0xf]
        %v2177 = vld [vmem:[#allocation2 + $0x3c] sm:$0xf]
        %v2210 = vunpack.c.l.b16 %v2130
        %v2211 = vunpack.c.l.b16 %v2131
        %v2212 = vunpack.c.l.b16 %v2132
        %v2213 = vunpack.c.l.b16 %v2133
        %v2214 = vunpack.c.l.b16 %v2134
        %v2215 = vunpack.c.l.b16 %v2135
        %v2216 = vunpack.c.l.b16 %v2136
        %v2217 = vunpack.c.l.b16 %v2137
        %v2218 = vunpack.c.l.b16 %v2138
        %v2219 = vunpack.c.l.b16 %v2139
        %v2220 = vunpack.c.l.b16 %v2140
        %v2221 = vunpack.c.l.b16 %v2141
        %v2222 = vunpack.c.l.b16 %v2142
        %v2223 = vunpack.c.l.b16 %v2143
        %v2224 = vunpack.c.l.b16 %v2144
        %v2225 = vunpack.c.l.b16 %v2145
        %v2226 = vunpack.c.l.b16 %v2146
        %v2227 = vunpack.c.l.b16 %v2147
        %v2228 = vunpack.c.l.b16 %v2148
        %v2229 = vunpack.c.l.b16 %v2149
        %v2230 = vunpack.c.l.b16 %v2150
        %v2231 = vunpack.c.l.b16 %v2151
        %v2232 = vunpack.c.l.b16 %v2152
        %v2233 = vunpack.c.l.b16 %v2153
        %v2234 = vunpack.c.l.b16 %v2154
        %v2235 = vunpack.c.l.b16 %v2155
        %v2236 = vunpack.c.l.b16 %v2156
        %v2237 = vunpack.c.l.b16 %v2157
        %v2238 = vunpack.c.l.b16 %v2158
        %v2239 = vunpack.c.l.b16 %v2159
        %v2240 = vunpack.c.l.b16 %v2160
        %v2241 = vunpack.c.l.b16 %v2161
        %v2242 = vpack.c.b16 %v2211, %v2210
        %v2243 = vpack.c.b16 %v2213, %v2212
        %v2244 = vpack.c.b16 %v2215, %v2214
        %v2245 = vpack.c.b16 %v2217, %v2216
        %v2246 = vpack.c.b16 %v2219, %v2218
        %v2247 = vpack.c.b16 %v2221, %v2220
        %v2248 = vpack.c.b16 %v2223, %v2222
        %v2249 = vpack.c.b16 %v2225, %v2224
        %v2250 = vpack.c.b16 %v2227, %v2226
        %v2251 = vpack.c.b16 %v2229, %v2228
        %v2252 = vpack.c.b16 %v2231, %v2230
        %v2253 = vpack.c.b16 %v2233, %v2232
        %v2254 = vpack.c.b16 %v2235, %v2234
        %v2255 = vpack.c.b16 %v2237, %v2236
        %v2256 = vpack.c.b16 %v2239, %v2238
        %v2257 = vpack.c.b16 %v2241, %v2240
        %v2290 = vunpack.c.l.b16 %v2162
        %v2291 = vunpack.c.l.b16 %v2163
        %v2292 = vunpack.c.l.b16 %v2164
        %v2293 = vunpack.c.l.b16 %v2165
        %v2294 = vunpack.c.l.b16 %v2166
        %v2295 = vunpack.c.l.b16 %v2167
        %v2296 = vunpack.c.l.b16 %v2168
        %v2297 = vunpack.c.l.b16 %v2169
        %v2298 = vunpack.c.l.b16 %v2170
        %v2299 = vunpack.c.l.b16 %v2171
        %v2300 = vunpack.c.l.b16 %v2172
        %v2301 = vunpack.c.l.b16 %v2173
        %v2302 = vunpack.c.l.b16 %v2174
        %v2303 = vunpack.c.l.b16 %v2175
        %v2304 = vunpack.c.l.b16 %v2176
        %v2305 = vunpack.c.l.b16 %v2177
        %v2306 = vpack.c.b16 %v2291, %v2290
        %v2307 = vpack.c.b16 %v2293, %v2292
        %v2308 = vpack.c.b16 %v2295, %v2294
        %v2309 = vpack.c.b16 %v2297, %v2296
        %v2310 = vpack.c.b16 %v2299, %v2298
        %v2311 = vpack.c.b16 %v2301, %v2300
        %v2312 = vpack.c.b16 %v2303, %v2302
        %v2313 = vpack.c.b16 %v2305, %v2304
        %2322 = vmatprep.subr.bf16.mxu0 0
        %2323 = vmatpush1.bf16.msra.mxu0 %v2313
        %2324 = vmatprep.subr.bf16.mxu0 0
        %2325 = vmatpush1.bf16.msra.mxu0 %v2312
        %2326 = vmatprep.subr.bf16.mxu0 0
        %2327 = vmatpush1.bf16.msra.mxu0 %v2311
        %2328 = vmatprep.subr.bf16.mxu0 0
        %2329 = vmatpush1.bf16.msra.mxu0 %v2310
        %2330 = vmatprep.subr.bf16.mxu0 0
        %2331 = vmatpush1.bf16.msra.mxu0 %v2309
        %2332 = vmatprep.subr.bf16.mxu0 0
        %2333 = vmatpush1.bf16.msra.mxu0 %v2308
        %2334 = vmatprep.subr.bf16.mxu0 0
        %2335 = vmatpush1.bf16.msra.mxu0 %v2307
        %2336 = vmatprep.subr.bf16.mxu0 0
        %2337 = vmatpush1.bf16.msra.mxu0 %v2306
        %2338 = vmatprep.subr.bf16.mxu0 0
        %2339 = vmatpush2.bf16.msra.mxu0 0
        %2340 = vmatprep.subr.bf16.mxu0 0
        %2341 = vmatpush2.bf16.msra.mxu0 0
        %2342 = vmatprep.subr.bf16.mxu0 0
        %2343 = vmatpush2.bf16.msra.mxu0 0
        %2344 = vmatprep.subr.bf16.mxu0 0
        %2345 = vmatpush2.bf16.msra.mxu0 0
        %2346 = vmatprep.subr.bf16.mxu0 0
        %2347 = vmatpush2.bf16.msra.mxu0 0
        %2348 = vmatprep.subr.bf16.mxu0 0
        %2349 = vmatpush2.bf16.msra.mxu0 0
        %2350 = vmatprep.subr.bf16.mxu0 0
        %2351 = vmatpush2.bf16.msra.mxu0 0
        %2352 = vmatprep.subr.bf16.mxu0 0
        %2353 = vmatpush2.bf16.msra.mxu0 0
        %2354 = vmatprep.mubr.bf16.mxu0 0
        %2355 = vmatmul.mubr.bf16.gmra.mxu0 %v2242
        %v2356 = vpop.f32.mrf.mxu0
        %v2357 = vadd.f32 0.0, %v2356
        %v2358 = vpop.f32.mrf.mxu0
        %v2359 = vpop.f32.mrf.mxu0
        %v2360 = vadd.f32 0.0, %v2359
        %v2361 = vpop.f32.mrf.mxu0
        %2362 = vmatprep.mubr.bf16.mxu0 0
        %2363 = vmatmul.mubr.bf16.gmra.mxu0 %v2243
        %v2364 = vpop.f32.mrf.mxu0
        %v2365 = vadd.f32 0.0, %v2364
        %v2366 = vpop.f32.mrf.mxu0
        %v2367 = vpop.f32.mrf.mxu0
        %v2368 = vadd.f32 0.0, %v2367
        %v2369 = vpop.f32.mrf.mxu0
        %2370 = vmatprep.mubr.bf16.mxu0 0
        %2371 = vmatmul.mubr.bf16.gmra.mxu0 %v2244
        %v2372 = vpop.f32.mrf.mxu0
        %v2373 = vadd.f32 0.0, %v2372
        %v2374 = vpop.f32.mrf.mxu0
        %v2375 = vpop.f32.mrf.mxu0
        %v2376 = vadd.f32 0.0, %v2375
        %v2377 = vpop.f32.mrf.mxu0
        %2378 = vmatprep.mubr.bf16.mxu0 0
        %2379 = vmatmul.mubr.bf16.gmra.mxu0 %v2245
        %v2380 = vpop.f32.mrf.mxu0
        %v2381 = vadd.f32 0.0, %v2380
        %v2382 = vpop.f32.mrf.mxu0
        %v2383 = vpop.f32.mrf.mxu0
        %v2384 = vadd.f32 0.0, %v2383
        %v2385 = vpop.f32.mrf.mxu0
        %2386 = vmatprep.mubr.bf16.mxu0 0
        %2387 = vmatmul.mubr.bf16.gmra.mxu0 %v2246
        %v2388 = vpop.f32.mrf.mxu0
        %v2389 = vadd.f32 0.0, %v2388
        %v2390 = vpop.f32.mrf.mxu0
        %v2391 = vpop.f32.mrf.mxu0
        %v2392 = vadd.f32 0.0, %v2391
        %v2393 = vpop.f32.mrf.mxu0
        %2394 = vmatprep.mubr.bf16.mxu0 0
        %2395 = vmatmul.mubr.bf16.gmra.mxu0 %v2247
        %v2396 = vpop.f32.mrf.mxu0
        %v2397 = vadd.f32 0.0, %v2396
        %v2398 = vpop.f32.mrf.mxu0
        %v2399 = vpop.f32.mrf.mxu0
        %v2400 = vadd.f32 0.0, %v2399
        %v2401 = vpop.f32.mrf.mxu0
        %2402 = vmatprep.mubr.bf16.mxu0 0
        %2403 = vmatmul.mubr.bf16.gmra.mxu0 %v2248
        %v2404 = vpop.f32.mrf.mxu0
        %v2405 = vadd.f32 0.0, %v2404
        %v2406 = vpop.f32.mrf.mxu0
        %v2407 = vpop.f32.mrf.mxu0
        %v2408 = vadd.f32 0.0, %v2407
        %v2409 = vpop.f32.mrf.mxu0
        %2410 = vmatprep.mubr.bf16.mxu0 0
        %2411 = vmatmul.mubr.bf16.gmra.mxu0 %v2249
        %v2412 = vpop.f32.mrf.mxu0
        %v2413 = vadd.f32 0.0, %v2412
        %v2414 = vpop.f32.mrf.mxu0
        %v2415 = vpop.f32.mrf.mxu0
        %v2416 = vadd.f32 0.0, %v2415
        %v2417 = vpop.f32.mrf.mxu0
        %2418 = vmatprep.mubr.bf16.mxu0 0
        %2419 = vmatmul.mubr.bf16.gmra.mxu0 %v2250
        %v2420 = vpop.f32.mrf.mxu0
        %v2421 = vadd.f32 0.0, %v2420
        %v2422 = vpop.f32.mrf.mxu0
        %v2423 = vpop.f32.mrf.mxu0
        %v2424 = vadd.f32 0.0, %v2423
        %v2425 = vpop.f32.mrf.mxu0
        %2426 = vmatprep.mubr.bf16.mxu0 0
        %2427 = vmatmul.mubr.bf16.gmra.mxu0 %v2251
        %v2428 = vpop.f32.mrf.mxu0
        %v2429 = vadd.f32 0.0, %v2428
        %v2430 = vpop.f32.mrf.mxu0
        %v2431 = vpop.f32.mrf.mxu0
        %v2432 = vadd.f32 0.0, %v2431
        %v2433 = vpop.f32.mrf.mxu0
        %2434 = vmatprep.mubr.bf16.mxu0 0
        %2435 = vmatmul.mubr.bf16.gmra.mxu0 %v2252
        %v2436 = vpop.f32.mrf.mxu0
        %v2437 = vadd.f32 0.0, %v2436
        %v2438 = vpop.f32.mrf.mxu0
        %v2439 = vpop.f32.mrf.mxu0
        %v2440 = vadd.f32 0.0, %v2439
        %v2441 = vpop.f32.mrf.mxu0
        %2442 = vmatprep.mubr.bf16.mxu0 0
        %2443 = vmatmul.mubr.bf16.gmra.mxu0 %v2253
        %v2444 = vpop.f32.mrf.mxu0
        %v2445 = vadd.f32 0.0, %v2444
        %v2446 = vpop.f32.mrf.mxu0
        %v2447 = vpop.f32.mrf.mxu0
        %v2448 = vadd.f32 0.0, %v2447
        %v2449 = vpop.f32.mrf.mxu0
        %2450 = vmatprep.mubr.bf16.mxu0 0
        %2451 = vmatmul.mubr.bf16.gmra.mxu0 %v2254
        %v2452 = vpop.f32.mrf.mxu0
        %v2453 = vadd.f32 0.0, %v2452
        %v2454 = vpop.f32.mrf.mxu0
        %v2455 = vpop.f32.mrf.mxu0
        %v2456 = vadd.f32 0.0, %v2455
        %v2457 = vpop.f32.mrf.mxu0
        %2458 = vmatprep.mubr.bf16.mxu0 0
        %2459 = vmatmul.mubr.bf16.gmra.mxu0 %v2255
        %v2460 = vpop.f32.mrf.mxu0
        %v2461 = vadd.f32 0.0, %v2460
        %v2462 = vpop.f32.mrf.mxu0
        %v2463 = vpop.f32.mrf.mxu0
        %v2464 = vadd.f32 0.0, %v2463
        %v2465 = vpop.f32.mrf.mxu0
        %2466 = vmatprep.mubr.bf16.mxu0 0
        %2467 = vmatmul.mubr.bf16.gmra.mxu0 %v2256
        %v2468 = vpop.f32.mrf.mxu0
        %v2469 = vadd.f32 0.0, %v2468
        %v2470 = vpop.f32.mrf.mxu0
        %v2471 = vpop.f32.mrf.mxu0
        %v2472 = vadd.f32 0.0, %v2471
        %v2473 = vpop.f32.mrf.mxu0
        %2474 = vmatprep.mubr.bf16.mxu0 0
        %2475 = vmatmul.mubr.bf16.gmra.mxu0 %v2257
        %v2476 = vpop.f32.mrf.mxu0
        %v2477 = vadd.f32 0.0, %v2476
        %v2478 = vpop.f32.mrf.mxu0
        %v2479 = vpop.f32.mrf.mxu0
        %v2480 = vadd.f32 0.0, %v2479
        %v2481 = vpop.f32.mrf.mxu0
        %2482 = vdwg.mxu0
        %vm2483 = vcmask 523264
        %v2484 = vsel %vm2483, %v2357, -inf
        %2485 = vmax.xlane.f32.xlu0 %v2484
        %v2486 = vpop.xlane.xlu0 %2485
        %v2487 = vsel %vm2483, %v2360, -inf
        %2488 = vmax.xlane.f32.xlu0 %v2487
        %v2489 = vpop.xlane.xlu0 %2488
        %v2490 = vsel %vm2483, %v2365, -inf
        %2491 = vmax.xlane.f32.xlu0 %v2490
        %v2492 = vpop.xlane.xlu0 %2491
        %v2493 = vsel %vm2483, %v2368, -inf
        %2494 = vmax.xlane.f32.xlu0 %v2493
        %v2495 = vpop.xlane.xlu0 %2494
        %v2496 = vsel %vm2483, %v2373, -inf
        %2497 = vmax.xlane.f32.xlu0 %v2496
        %v2498 = vpop.xlane.xlu0 %2497
        %v2499 = vsel %vm2483, %v2376, -inf
        %2500 = vmax.xlane.f32.xlu0 %v2499
        %v2501 = vpop.xlane.xlu0 %2500
        %v2502 = vsel %vm2483, %v2381, -inf
        %2503 = vmax.xlane.f32.xlu0 %v2502
        %v2504 = vpop.xlane.xlu0 %2503
        %v2505 = vsel %vm2483, %v2384, -inf
        %2506 = vmax.xlane.f32.xlu0 %v2505
        %v2507 = vpop.xlane.xlu0 %2506
        %v2508 = vsel %vm2483, %v2389, -inf
        %2509 = vmax.xlane.f32.xlu0 %v2508
        %v2510 = vpop.xlane.xlu0 %2509
        %v2511 = vsel %vm2483, %v2392, -inf
        %2512 = vmax.xlane.f32.xlu0 %v2511
        %v2513 = vpop.xlane.xlu0 %2512
        %v2514 = vsel %vm2483, %v2397, -inf
        %2515 = vmax.xlane.f32.xlu0 %v2514
        %v2516 = vpop.xlane.xlu0 %2515
        %v2517 = vsel %vm2483, %v2400, -inf
        %2518 = vmax.xlane.f32.xlu0 %v2517
        %v2519 = vpop.xlane.xlu0 %2518
        %v2520 = vsel %vm2483, %v2405, -inf
        %2521 = vmax.xlane.f32.xlu0 %v2520
        %v2522 = vpop.xlane.xlu0 %2521
        %v2523 = vsel %vm2483, %v2408, -inf
        %2524 = vmax.xlane.f32.xlu0 %v2523
        %v2525 = vpop.xlane.xlu0 %2524
        %v2526 = vsel %vm2483, %v2413, -inf
        %2527 = vmax.xlane.f32.xlu0 %v2526
        %v2528 = vpop.xlane.xlu0 %2527
        %v2529 = vsel %vm2483, %v2416, -inf
        %2530 = vmax.xlane.f32.xlu0 %v2529
        %v2531 = vpop.xlane.xlu0 %2530
        %v2532 = vsel %vm2483, %v2421, -inf
        %2533 = vmax.xlane.f32.xlu0 %v2532
        %v2534 = vpop.xlane.xlu0 %2533
        %v2535 = vsel %vm2483, %v2424, -inf
        %2536 = vmax.xlane.f32.xlu0 %v2535
        %v2537 = vpop.xlane.xlu0 %2536
        %v2538 = vsel %vm2483, %v2429, -inf
        %2539 = vmax.xlane.f32.xlu0 %v2538
        %v2540 = vpop.xlane.xlu0 %2539
        %v2541 = vsel %vm2483, %v2432, -inf
        %2542 = vmax.xlane.f32.xlu0 %v2541
        %v2543 = vpop.xlane.xlu0 %2542
        %v2544 = vsel %vm2483, %v2437, -inf
        %2545 = vmax.xlane.f32.xlu0 %v2544
        %v2546 = vpop.xlane.xlu0 %2545
        %v2547 = vsel %vm2483, %v2440, -inf
        %2548 = vmax.xlane.f32.xlu0 %v2547
        %v2549 = vpop.xlane.xlu0 %2548
        %v2550 = vsel %vm2483, %v2445, -inf
        %2551 = vmax.xlane.f32.xlu0 %v2550
        %v2552 = vpop.xlane.xlu0 %2551
        %v2553 = vsel %vm2483, %v2448, -inf
        %2554 = vmax.xlane.f32.xlu0 %v2553
        %v2555 = vpop.xlane.xlu0 %2554
        %v2556 = vsel %vm2483, %v2453, -inf
        %2557 = vmax.xlane.f32.xlu0 %v2556
        %v2558 = vpop.xlane.xlu0 %2557
        %v2559 = vsel %vm2483, %v2456, -inf
        %2560 = vmax.xlane.f32.xlu0 %v2559
        %v2561 = vpop.xlane.xlu0 %2560
        %v2562 = vsel %vm2483, %v2461, -inf
        %2563 = vmax.xlane.f32.xlu0 %v2562
        %v2564 = vpop.xlane.xlu0 %2563
        %v2565 = vsel %vm2483, %v2464, -inf
        %2566 = vmax.xlane.f32.xlu0 %v2565
        %v2567 = vpop.xlane.xlu0 %2566
        %v2568 = vsel %vm2483, %v2469, -inf
        %2569 = vmax.xlane.f32.xlu0 %v2568
        %v2570 = vpop.xlane.xlu0 %2569
        %v2571 = vsel %vm2483, %v2472, -inf
        %2572 = vmax.xlane.f32.xlu0 %v2571
        %v2573 = vpop.xlane.xlu0 %2572
        %v2574 = vsel %vm2483, %v2477, -inf
        %2575 = vmax.xlane.f32.xlu0 %v2574
        %v2576 = vpop.xlane.xlu0 %2575
        %v2577 = vsel %vm2483, %v2480, -inf
        %2578 = vmax.xlane.f32.xlu0 %v2577
        %v2579 = vpop.xlane.xlu0 %2578
        %v2580 = vsub.f32 %v2357, %v2486
        %v2581 = vsub.f32 %v2360, %v2489
        %v2582 = vsub.f32 %v2365, %v2492
        %v2583 = vsub.f32 %v2368, %v2495
        %v2584 = vsub.f32 %v2373, %v2498
        %v2585 = vsub.f32 %v2376, %v2501
        %v2586 = vsub.f32 %v2381, %v2504
        %v2587 = vsub.f32 %v2384, %v2507
        %v2588 = vsub.f32 %v2389, %v2510
        %v2589 = vsub.f32 %v2392, %v2513
        %v2590 = vsub.f32 %v2397, %v2516
        %v2591 = vsub.f32 %v2400, %v2519
        %v2592 = vsub.f32 %v2405, %v2522
        %v2593 = vsub.f32 %v2408, %v2525
        %v2594 = vsub.f32 %v2413, %v2528
        %v2595 = vsub.f32 %v2416, %v2531
        %v2596 = vsub.f32 %v2421, %v2534
        %v2597 = vsub.f32 %v2424, %v2537
        %v2598 = vsub.f32 %v2429, %v2540
        %v2599 = vsub.f32 %v2432, %v2543
        %v2600 = vsub.f32 %v2437, %v2546
        %v2601 = vsub.f32 %v2440, %v2549
        %v2602 = vsub.f32 %v2445, %v2552
        %v2603 = vsub.f32 %v2448, %v2555
        %v2604 = vsub.f32 %v2453, %v2558
        %v2605 = vsub.f32 %v2456, %v2561
        %v2606 = vsub.f32 %v2461, %v2564
        %v2607 = vsub.f32 %v2464, %v2567
        %v2608 = vsub.f32 %v2469, %v2570
        %v2609 = vsub.f32 %v2472, %v2573
        %v2610 = vsub.f32 %v2477, %v2576
        %v2611 = vsub.f32 %v2480, %v2579
        %v2612 = vmul.f32 %v2580, 1.442695
        %v2613 = vpow.pop %v2612
        %v2614 = vmul.f32 %v2581, 1.442695
        %v2615 = vpow.pop %v2614
        %v2616 = vmul.f32 %v2582, 1.442695
        %v2617 = vpow.pop %v2616
        %v2618 = vmul.f32 %v2583, 1.442695
        %v2619 = vpow.pop %v2618
        %v2620 = vmul.f32 %v2584, 1.442695
        %v2621 = vpow.pop %v2620
        %v2622 = vmul.f32 %v2585, 1.442695
        %v2623 = vpow.pop %v2622
        %v2624 = vmul.f32 %v2586, 1.442695
        %v2625 = vpow.pop %v2624
        %v2626 = vmul.f32 %v2587, 1.442695
        %v2627 = vpow.pop %v2626
        %v2628 = vmul.f32 %v2588, 1.442695
        %v2629 = vpow.pop %v2628
        %v2630 = vmul.f32 %v2589, 1.442695
        %v2631 = vpow.pop %v2630
        %v2632 = vmul.f32 %v2590, 1.442695
        %v2633 = vpow.pop %v2632
        %v2634 = vmul.f32 %v2591, 1.442695
        %v2635 = vpow.pop %v2634
        %v2636 = vmul.f32 %v2592, 1.442695
        %v2637 = vpow.pop %v2636
        %v2638 = vmul.f32 %v2593, 1.442695
        %v2639 = vpow.pop %v2638
        %v2640 = vmul.f32 %v2594, 1.442695
        %v2641 = vpow.pop %v2640
        %v2642 = vmul.f32 %v2595, 1.442695
        %v2643 = vpow.pop %v2642
        %v2644 = vmul.f32 %v2596, 1.442695
        %v2645 = vpow.pop %v2644
        %v2646 = vmul.f32 %v2597, 1.442695
        %v2647 = vpow.pop %v2646
        %v2648 = vmul.f32 %v2598, 1.442695
        %v2649 = vpow.pop %v2648
        %v2650 = vmul.f32 %v2599, 1.442695
        %v2651 = vpow.pop %v2650
        %v2652 = vmul.f32 %v2600, 1.442695
        %v2653 = vpow.pop %v2652
        %v2654 = vmul.f32 %v2601, 1.442695
        %v2655 = vpow.pop %v2654
        %v2656 = vmul.f32 %v2602, 1.442695
        %v2657 = vpow.pop %v2656
        %v2658 = vmul.f32 %v2603, 1.442695
        %v2659 = vpow.pop %v2658
        %v2660 = vmul.f32 %v2604, 1.442695
        %v2661 = vpow.pop %v2660
        %v2662 = vmul.f32 %v2605, 1.442695
        %v2663 = vpow.pop %v2662
        %v2664 = vmul.f32 %v2606, 1.442695
        %v2665 = vpow.pop %v2664
        %v2666 = vmul.f32 %v2607, 1.442695
        %v2667 = vpow.pop %v2666
        %v2668 = vmul.f32 %v2608, 1.442695
        %v2669 = vpow.pop %v2668
        %v2670 = vmul.f32 %v2609, 1.442695
        %v2671 = vpow.pop %v2670
        %v2672 = vmul.f32 %v2610, 1.442695
        %v2673 = vpow.pop %v2672
        %v2674 = vmul.f32 %v2611, 1.442695
        %v2675 = vpow.pop %v2674
        %v2676 = vsel %vm2483, %v2613, 0.0
        %2677 = vadd.xlane.f32.xlu0 %v2676
        %v2678 = vpop.xlane.xlu0 %2677
        %v2679 = vsel %vm2483, %v2615, 0.0
        %2680 = vadd.xlane.f32.xlu0 %v2679
        %v2681 = vpop.xlane.xlu0 %2680
        %v2682 = vsel %vm2483, %v2617, 0.0
        %2683 = vadd.xlane.f32.xlu0 %v2682
        %v2684 = vpop.xlane.xlu0 %2683
        %v2685 = vsel %vm2483, %v2619, 0.0
        %2686 = vadd.xlane.f32.xlu0 %v2685
        %v2687 = vpop.xlane.xlu0 %2686
        %v2688 = vsel %vm2483, %v2621, 0.0
        %2689 = vadd.xlane.f32.xlu0 %v2688
        %v2690 = vpop.xlane.xlu0 %2689
        %v2691 = vsel %vm2483, %v2623, 0.0
        %2692 = vadd.xlane.f32.xlu0 %v2691
        %v2693 = vpop.xlane.xlu0 %2692
        %v2694 = vsel %vm2483, %v2625, 0.0
        %2695 = vadd.xlane.f32.xlu0 %v2694
        %v2696 = vpop.xlane.xlu0 %2695
        %v2697 = vsel %vm2483, %v2627, 0.0
        %2698 = vadd.xlane.f32.xlu0 %v2697
        %v2699 = vpop.xlane.xlu0 %2698
        %v2700 = vsel %vm2483, %v2629, 0.0
        %2701 = vadd.xlane.f32.xlu0 %v2700
        %v2702 = vpop.xlane.xlu0 %2701
        %v2703 = vsel %vm2483, %v2631, 0.0
        %2704 = vadd.xlane.f32.xlu0 %v2703
        %v2705 = vpop.xlane.xlu0 %2704
        %v2706 = vsel %vm2483, %v2633, 0.0
        %2707 = vadd.xlane.f32.xlu0 %v2706
        %v2708 = vpop.xlane.xlu0 %2707
        %v2709 = vsel %vm2483, %v2635, 0.0
        %2710 = vadd.xlane.f32.xlu0 %v2709
        %v2711 = vpop.xlane.xlu0 %2710
        %v2712 = vsel %vm2483, %v2637, 0.0
        %2713 = vadd.xlane.f32.xlu0 %v2712
        %v2714 = vpop.xlane.xlu0 %2713
        %v2715 = vsel %vm2483, %v2639, 0.0
        %2716 = vadd.xlane.f32.xlu0 %v2715
        %v2717 = vpop.xlane.xlu0 %2716
        %v2718 = vsel %vm2483, %v2641, 0.0
        %2719 = vadd.xlane.f32.xlu0 %v2718
        %v2720 = vpop.xlane.xlu0 %2719
        %v2721 = vsel %vm2483, %v2643, 0.0
        %2722 = vadd.xlane.f32.xlu0 %v2721
        %v2723 = vpop.xlane.xlu0 %2722
        %v2724 = vsel %vm2483, %v2645, 0.0
        %2725 = vadd.xlane.f32.xlu0 %v2724
        %v2726 = vpop.xlane.xlu0 %2725
        %v2727 = vsel %vm2483, %v2647, 0.0
        %2728 = vadd.xlane.f32.xlu0 %v2727
        %v2729 = vpop.xlane.xlu0 %2728
        %v2730 = vsel %vm2483, %v2649, 0.0
        %2731 = vadd.xlane.f32.xlu0 %v2730
        %v2732 = vpop.xlane.xlu0 %2731
        %v2733 = vsel %vm2483, %v2651, 0.0
        %2734 = vadd.xlane.f32.xlu0 %v2733
        %v2735 = vpop.xlane.xlu0 %2734
        %v2736 = vsel %vm2483, %v2653, 0.0
        %2737 = vadd.xlane.f32.xlu0 %v2736
        %v2738 = vpop.xlane.xlu0 %2737
        %v2739 = vsel %vm2483, %v2655, 0.0
        %2740 = vadd.xlane.f32.xlu0 %v2739
        %v2741 = vpop.xlane.xlu0 %2740
        %v2742 = vsel %vm2483, %v2657, 0.0
        %2743 = vadd.xlane.f32.xlu0 %v2742
        %v2744 = vpop.xlane.xlu0 %2743
        %v2745 = vsel %vm2483, %v2659, 0.0
        %2746 = vadd.xlane.f32.xlu0 %v2745
        %v2747 = vpop.xlane.xlu0 %2746
        %v2748 = vsel %vm2483, %v2661, 0.0
        %2749 = vadd.xlane.f32.xlu0 %v2748
        %v2750 = vpop.xlane.xlu0 %2749
        %v2751 = vsel %vm2483, %v2663, 0.0
        %2752 = vadd.xlane.f32.xlu0 %v2751
        %v2753 = vpop.xlane.xlu0 %2752
        %v2754 = vsel %vm2483, %v2665, 0.0
        %2755 = vadd.xlane.f32.xlu0 %v2754
        %v2756 = vpop.xlane.xlu0 %2755
        %v2757 = vsel %vm2483, %v2667, 0.0
        %2758 = vadd.xlane.f32.xlu0 %v2757
        %v2759 = vpop.xlane.xlu0 %2758
        %v2760 = vsel %vm2483, %v2669, 0.0
        %2761 = vadd.xlane.f32.xlu0 %v2760
        %v2762 = vpop.xlane.xlu0 %2761
        %v2763 = vsel %vm2483, %v2671, 0.0
        %2764 = vadd.xlane.f32.xlu0 %v2763
        %v2765 = vpop.xlane.xlu0 %2764
        %v2766 = vsel %vm2483, %v2673, 0.0
        %2767 = vadd.xlane.f32.xlu0 %v2766
        %v2768 = vpop.xlane.xlu0 %2767
        %v2769 = vsel %vm2483, %v2675, 0.0
        %2770 = vadd.xlane.f32.xlu0 %v2769
        %v2771 = vpop.xlane.xlu0 %2770
        %v2772 = vrcp.pop %v2678
        %v2773 = vrcp.pop %v2681
        %v2774 = vrcp.pop %v2684
        %v2775 = vrcp.pop %v2687
        %v2776 = vrcp.pop %v2690
        %v2777 = vrcp.pop %v2693
        %v2778 = vrcp.pop %v2696
        %v2779 = vrcp.pop %v2699
        %v2780 = vrcp.pop %v2702
        %v2781 = vrcp.pop %v2705
        %v2782 = vrcp.pop %v2708
        %v2783 = vrcp.pop %v2711
        %v2784 = vrcp.pop %v2714
        %v2785 = vrcp.pop %v2717
        %v2786 = vrcp.pop %v2720
        %v2787 = vrcp.pop %v2723
        %v2788 = vrcp.pop %v2726
        %v2789 = vrcp.pop %v2729
        %v2790 = vrcp.pop %v2732
        %v2791 = vrcp.pop %v2735
        %v2792 = vrcp.pop %v2738
        %v2793 = vrcp.pop %v2741
        %v2794 = vrcp.pop %v2744
        %v2795 = vrcp.pop %v2747
        %v2796 = vrcp.pop %v2750
        %v2797 = vrcp.pop %v2753
        %v2798 = vrcp.pop %v2756
        %v2799 = vrcp.pop %v2759
        %v2800 = vrcp.pop %v2762
        %v2801 = vrcp.pop %v2765
        %v2802 = vrcp.pop %v2768
        %v2803 = vrcp.pop %v2771
        %v2804 = vmul.f32 %v2613, %v2772
        %v2805 = vmul.f32 %v2615, %v2773
        %v2806 = vmul.f32 %v2617, %v2774
        %v2807 = vmul.f32 %v2619, %v2775
        %v2808 = vmul.f32 %v2621, %v2776
        %v2809 = vmul.f32 %v2623, %v2777
        %v2810 = vmul.f32 %v2625, %v2778
        %v2811 = vmul.f32 %v2627, %v2779
        %v2812 = vmul.f32 %v2629, %v2780
        %v2813 = vmul.f32 %v2631, %v2781
        %v2814 = vmul.f32 %v2633, %v2782
        %v2815 = vmul.f32 %v2635, %v2783
        %v2816 = vmul.f32 %v2637, %v2784
        %v2817 = vmul.f32 %v2639, %v2785
        %v2818 = vmul.f32 %v2641, %v2786
        %v2819 = vmul.f32 %v2643, %v2787
        %v2820 = vmul.f32 %v2645, %v2788
        %v2821 = vmul.f32 %v2647, %v2789
        %v2822 = vmul.f32 %v2649, %v2790
        %v2823 = vmul.f32 %v2651, %v2791
        %v2824 = vmul.f32 %v2653, %v2792
        %v2825 = vmul.f32 %v2655, %v2793
        %v2826 = vmul.f32 %v2657, %v2794
        %v2827 = vmul.f32 %v2659, %v2795
        %v2828 = vmul.f32 %v2661, %v2796
        %v2829 = vmul.f32 %v2663, %v2797
        %v2830 = vmul.f32 %v2665, %v2798
        %v2831 = vmul.f32 %v2667, %v2799
        %v2832 = vmul.f32 %v2669, %v2800
        %v2833 = vmul.f32 %v2671, %v2801
        %v2834 = vmul.f32 %v2673, %v2802
        %v2835 = vmul.f32 %v2675, %v2803
        %v2836 = vpack.c.bf16 %v2805, %v2804
        %v2837 = vpack.c.bf16 %v2807, %v2806
        %v2838 = vpack.c.bf16 %v2809, %v2808
        %v2839 = vpack.c.bf16 %v2811, %v2810
        %v2840 = vpack.c.bf16 %v2813, %v2812
        %v2841 = vpack.c.bf16 %v2815, %v2814
        %v2842 = vpack.c.bf16 %v2817, %v2816
        %v2843 = vpack.c.bf16 %v2819, %v2818
        %v2844 = vpack.c.bf16 %v2821, %v2820
        %v2845 = vpack.c.bf16 %v2823, %v2822
        %v2846 = vpack.c.bf16 %v2825, %v2824
        %v2847 = vpack.c.bf16 %v2827, %v2826
        %v2848 = vpack.c.bf16 %v2829, %v2828
        %v2849 = vpack.c.bf16 %v2831, %v2830
        %v2850 = vpack.c.bf16 %v2833, %v2832
        %v2851 = vpack.c.bf16 %v2835, %v2834
        %v2852 = vld [vmem:[#allocation3] sm:$0xf]
        %v2853 = vld [vmem:[#allocation3 + $0x4] sm:$0xf]
        %v2854 = vld [vmem:[#allocation3 + $0x8] sm:$0xf]
        %v2855 = vld [vmem:[#allocation3 + $0xc] sm:$0xf]
        %v2856 = vld [vmem:[#allocation3 + $0x10] sm:$0xf]
        %v2857 = vld [vmem:[#allocation3 + $0x14] sm:$0xf]
        %v2858 = vld [vmem:[#allocation3 + $0x18] sm:$0xf]
        %v2859 = vld [vmem:[#allocation3 + $0x1c] sm:$0xf]
        %v2860 = vld [vmem:[%s5] sm:$0x1]
        %v2862 = vlaneseq
        %v2863 = vshrl.u32 %v2862, 7
        %v2864 = vsub.s32 0, %v2863
        %v2865 = vrot.slane %v2860, %v2864
        %v2875 = vunpack.c.l.b16 %v2852
        %v2876 = vunpack.c.l.b16 %v2853
        %v2877 = vunpack.c.l.b16 %v2854
        %v2878 = vunpack.c.l.b16 %v2855
        %v2879 = vunpack.c.l.b16 %v2856
        %v2880 = vunpack.c.l.b16 %v2857
        %v2881 = vunpack.c.l.b16 %v2858
        %v2882 = vunpack.c.l.b16 %v2859
        %v2883 = vpack.c.b16 %v2876, %v2875
        %v2884 = vpack.c.b16 %v2878, %v2877
        %v2885 = vpack.c.b16 %v2880, %v2879
        %v2886 = vpack.c.b16 %v2882, %v2881
        %v2892 = vsel %vm2483, %v2836, 0
        %v2895 = vsel %vm2483, %v2837, 0
        %v2898 = vsel %vm2483, %v2838, 0
        %v2901 = vsel %vm2483, %v2839, 0
        %v2904 = vsel %vm2483, %v2840, 0
        %v2907 = vsel %vm2483, %v2841, 0
        %v2910 = vsel %vm2483, %v2842, 0
        %v2913 = vsel %vm2483, %v2843, 0
        %v2916 = vsel %vm2483, %v2844, 0
        %v2919 = vsel %vm2483, %v2845, 0
        %v2922 = vsel %vm2483, %v2846, 0
        %v2925 = vsel %vm2483, %v2847, 0
        %v2928 = vsel %vm2483, %v2848, 0
        %v2931 = vsel %vm2483, %v2849, 0
        %v2934 = vsel %vm2483, %v2850, 0
        %v2937 = vsel %vm2483, %v2851, 0
        %2939 = vmatprep.subr.bf16.mxu0 0
        %2940 = vmatpush1.bf16.msra.mxu0 0
        %2941 = vmatprep.subr.bf16.mxu0 0
        %2942 = vmatpush1.bf16.msra.mxu0 0
        %2943 = vmatprep.subr.bf16.mxu0 0
        %2944 = vmatpush1.bf16.msra.mxu0 0
        %2945 = vmatprep.subr.bf16.mxu0 0
        %2946 = vmatpush1.bf16.msra.mxu0 0
        %2947 = vmatprep.subr.bf16.mxu0 0
        %2948 = vmatpush1.bf16.msra.mxu0 %v2886
        %2949 = vmatprep.subr.bf16.mxu0 0
        %2950 = vmatpush1.bf16.msra.mxu0 %v2885
        %2951 = vmatprep.subr.bf16.mxu0 0
        %2952 = vmatpush1.bf16.msra.mxu0 %v2884
        %2953 = vmatprep.subr.bf16.mxu0 0
        %2954 = vmatpush1.bf16.msra.mxu0 %v2883
        %2955 = vmatprep.subr.bf16.mxu0 0
        %2956 = vmatpush2.bf16.msra.mxu0 0
        %2957 = vmatprep.subr.bf16.mxu0 0
        %2958 = vmatpush2.bf16.msra.mxu0 0
        %2959 = vmatprep.subr.bf16.mxu0 0
        %2960 = vmatpush2.bf16.msra.mxu0 0
        %2961 = vmatprep.subr.bf16.mxu0 0
        %2962 = vmatpush2.bf16.msra.mxu0 0
        %2963 = vmatprep.subr.bf16.mxu0 0
        %2964 = vmatpush2.bf16.msra.mxu0 0
        %2965 = vmatprep.subr.bf16.mxu0 0
        %2966 = vmatpush2.bf16.msra.mxu0 0
        %2967 = vmatprep.subr.bf16.mxu0 0
        %2968 = vmatpush2.bf16.msra.mxu0 0
        %2969 = vmatprep.subr.bf16.mxu0 0
        %2970 = vmatpush2.bf16.msra.mxu0 0
        %2971 = vmatprep.mubr.bf16.mxu0 0
        %2972 = vmatmul.mubr.bf16.gmra.mxu0 %v2892
        %v2973 = vpop.f32.mrf.mxu0
        %v2974 = vadd.f32 %v2865, %v2973
        %v2975 = vpop.f32.mrf.mxu0
        %v2976 = vpop.f32.mrf.mxu0
        %v2977 = vadd.f32 %v2865, %v2976
        %v2978 = vpop.f32.mrf.mxu0
        %2979 = vmatprep.mubr.bf16.mxu0 0
        %2980 = vmatmul.mubr.bf16.gmra.mxu0 %v2895
        %v2981 = vpop.f32.mrf.mxu0
        %v2982 = vadd.f32 %v2865, %v2981
        %v2983 = vpop.f32.mrf.mxu0
        %v2984 = vpop.f32.mrf.mxu0
        %v2985 = vadd.f32 %v2865, %v2984
        %v2986 = vpop.f32.mrf.mxu0
        %2987 = vmatprep.mubr.bf16.mxu0 0
        %2988 = vmatmul.mubr.bf16.gmra.mxu0 %v2898
        %v2989 = vpop.f32.mrf.mxu0
        %v2990 = vadd.f32 %v2865, %v2989
        %v2991 = vpop.f32.mrf.mxu0
        %v2992 = vpop.f32.mrf.mxu0
        %v2993 = vadd.f32 %v2865, %v2992
        %v2994 = vpop.f32.mrf.mxu0
        %2995 = vmatprep.mubr.bf16.mxu0 0
        %2996 = vmatmul.mubr.bf16.gmra.mxu0 %v2901
        %v2997 = vpop.f32.mrf.mxu0
        %v2998 = vadd.f32 %v2865, %v2997
        %v2999 = vpop.f32.mrf.mxu0
        %v3000 = vpop.f32.mrf.mxu0
        %v3001 = vadd.f32 %v2865, %v3000
        %v3002 = vpop.f32.mrf.mxu0
        %3003 = vmatprep.mubr.bf16.mxu0 0
        %3004 = vmatmul.mubr.bf16.gmra.mxu0 %v2904
        %v3005 = vpop.f32.mrf.mxu0
        %v3006 = vadd.f32 %v2865, %v3005
        %v3007 = vpop.f32.mrf.mxu0
        %v3008 = vpop.f32.mrf.mxu0
        %v3009 = vadd.f32 %v2865, %v3008
        %v3010 = vpop.f32.mrf.mxu0
        %3011 = vmatprep.mubr.bf16.mxu0 0
        %3012 = vmatmul.mubr.bf16.gmra.mxu0 %v2907
        %v3013 = vpop.f32.mrf.mxu0
        %v3014 = vadd.f32 %v2865, %v3013
        %v3015 = vpop.f32.mrf.mxu0
        %v3016 = vpop.f32.mrf.mxu0
        %v3017 = vadd.f32 %v2865, %v3016
        %v3018 = vpop.f32.mrf.mxu0
        %3019 = vmatprep.mubr.bf16.mxu0 0
        %3020 = vmatmul.mubr.bf16.gmra.mxu0 %v2910
        %v3021 = vpop.f32.mrf.mxu0
        %v3022 = vadd.f32 %v2865, %v3021
        %v3023 = vpop.f32.mrf.mxu0
        %v3024 = vpop.f32.mrf.mxu0
        %v3025 = vadd.f32 %v2865, %v3024
        %v3026 = vpop.f32.mrf.mxu0
        %3027 = vmatprep.mubr.bf16.mxu0 0
        %3028 = vmatmul.mubr.bf16.gmra.mxu0 %v2913
        %v3029 = vpop.f32.mrf.mxu0
        %v3030 = vadd.f32 %v2865, %v3029
        %v3031 = vpop.f32.mrf.mxu0
        %v3032 = vpop.f32.mrf.mxu0
        %v3033 = vadd.f32 %v2865, %v3032
        %v3034 = vpop.f32.mrf.mxu0
        %3035 = vmatprep.mubr.bf16.mxu0 0
        %3036 = vmatmul.mubr.bf16.gmra.mxu0 %v2916
        %v3037 = vpop.f32.mrf.mxu0
        %v3038 = vadd.f32 %v2865, %v3037
        %v3039 = vpop.f32.mrf.mxu0
        %v3040 = vpop.f32.mrf.mxu0
        %v3041 = vadd.f32 %v2865, %v3040
        %v3042 = vpop.f32.mrf.mxu0
        %3043 = vmatprep.mubr.bf16.mxu0 0
        %3044 = vmatmul.mubr.bf16.gmra.mxu0 %v2919
        %v3045 = vpop.f32.mrf.mxu0
        %v3046 = vadd.f32 %v2865, %v3045
        %v3047 = vpop.f32.mrf.mxu0
        %v3048 = vpop.f32.mrf.mxu0
        %v3049 = vadd.f32 %v2865, %v3048
        %v3050 = vpop.f32.mrf.mxu0
        %3051 = vmatprep.mubr.bf16.mxu0 0
        %3052 = vmatmul.mubr.bf16.gmra.mxu0 %v2922
        %v3053 = vpop.f32.mrf.mxu0
        %v3054 = vadd.f32 %v2865, %v3053
        %v3055 = vpop.f32.mrf.mxu0
        %v3056 = vpop.f32.mrf.mxu0
        %v3057 = vadd.f32 %v2865, %v3056
        %v3058 = vpop.f32.mrf.mxu0
        %3059 = vmatprep.mubr.bf16.mxu0 0
        %3060 = vmatmul.mubr.bf16.gmra.mxu0 %v2925
        %v3061 = vpop.f32.mrf.mxu0
        %v3062 = vadd.f32 %v2865, %v3061
        %v3063 = vpop.f32.mrf.mxu0
        %v3064 = vpop.f32.mrf.mxu0
        %v3065 = vadd.f32 %v2865, %v3064
        %v3066 = vpop.f32.mrf.mxu0
        %3067 = vmatprep.mubr.bf16.mxu0 0
        %3068 = vmatmul.mubr.bf16.gmra.mxu0 %v2928
        %v3069 = vpop.f32.mrf.mxu0
        %v3070 = vadd.f32 %v2865, %v3069
        %v3071 = vpop.f32.mrf.mxu0
        %v3072 = vpop.f32.mrf.mxu0
        %v3073 = vadd.f32 %v2865, %v3072
        %v3074 = vpop.f32.mrf.mxu0
        %3075 = vmatprep.mubr.bf16.mxu0 0
        %3076 = vmatmul.mubr.bf16.gmra.mxu0 %v2931
        %v3077 = vpop.f32.mrf.mxu0
        %v3078 = vadd.f32 %v2865, %v3077
        %v3079 = vpop.f32.mrf.mxu0
        %v3080 = vpop.f32.mrf.mxu0
        %v3081 = vadd.f32 %v2865, %v3080
        %v3082 = vpop.f32.mrf.mxu0
        %3083 = vmatprep.mubr.bf16.mxu0 0
        %3084 = vmatmul.mubr.bf16.gmra.mxu0 %v2934
        %v3085 = vpop.f32.mrf.mxu0
        %v3086 = vadd.f32 %v2865, %v3085
        %v3087 = vpop.f32.mrf.mxu0
        %v3088 = vpop.f32.mrf.mxu0
        %v3089 = vadd.f32 %v2865, %v3088
        %v3090 = vpop.f32.mrf.mxu0
        %3091 = vmatprep.mubr.bf16.mxu0 0
        %3092 = vmatmul.mubr.bf16.gmra.mxu0 %v2937
        %v3093 = vpop.f32.mrf.mxu0
        %v3094 = vadd.f32 %v2865, %v3093
        %v3095 = vpop.f32.mrf.mxu0
        %v3096 = vpop.f32.mrf.mxu0
        %v3097 = vadd.f32 %v2865, %v3096
        %v3098 = vpop.f32.mrf.mxu0
        %3099 = vdwg.mxu0
        %3100 = vst [vmem:[#allocation4] sm:$0xff] %v2974
        %3101 = vst [vmem:[#allocation4 + $0x8] sm:$0xff] %v2977
        %3102 = vst [vmem:[#allocation4 + $0x10] sm:$0xff] %v2982
        %3103 = vst [vmem:[#allocation4 + $0x18] sm:$0xff] %v2985
        %3104 = vst [vmem:[#allocation4 + $0x20] sm:$0xff] %v2990
        %3105 = vst [vmem:[#allocation4 + $0x28] sm:$0xff] %v2993
        %3106 = vst [vmem:[#allocation4 + $0x30] sm:$0xff] %v2998
        %3107 = vst [vmem:[#allocation4 + $0x38] sm:$0xff] %v3001
        %3108 = vst [vmem:[#allocation4 + $0x40] sm:$0xff] %v3006
        %3109 = vst [vmem:[#allocation4 + $0x48] sm:$0xff] %v3009
        %3110 = vst [vmem:[#allocation4 + $0x50] sm:$0xff] %v3014
        %3111 = vst [vmem:[#allocation4 + $0x58] sm:$0xff] %v3017
        %3112 = vst [vmem:[#allocation4 + $0x60] sm:$0xff] %v3022
        %3113 = vst [vmem:[#allocation4 + $0x68] sm:$0xff] %v3025
        %3114 = vst [vmem:[#allocation4 + $0x70] sm:$0xff] %v3030
        %3115 = vst [vmem:[#allocation4 + $0x78] sm:$0xff] %v3033
        %3116 = vst [vmem:[#allocation4 + $0x80] sm:$0xff] %v3038
        %3117 = vst [vmem:[#allocation4 + $0x88] sm:$0xff] %v3041
        %3118 = vst [vmem:[#allocation4 + $0x90] sm:$0xff] %v3046
        %3119 = vst [vmem:[#allocation4 + $0x98] sm:$0xff] %v3049
        %3120 = vst [vmem:[#allocation4 + $0xa0] sm:$0xff] %v3054
        %3121 = vst [vmem:[#allocation4 + $0xa8] sm:$0xff] %v3057
        %3122 = vst [vmem:[#allocation4 + $0xb0] sm:$0xff] %v3062
        %3123 = vst [vmem:[#allocation4 + $0xb8] sm:$0xff] %v3065
        %3124 = vst [vmem:[#allocation4 + $0xc0] sm:$0xff] %v3070
        %3125 = vst [vmem:[#allocation4 + $0xc8] sm:$0xff] %v3073
        %3126 = vst [vmem:[#allocation4 + $0xd0] sm:$0xff] %v3078
        %3127 = vst [vmem:[#allocation4 + $0xd8] sm:$0xff] %v3081
        %3128 = vst [vmem:[#allocation4 + $0xe0] sm:$0xff] %v3086
        %3129 = vst [vmem:[#allocation4 + $0xe8] sm:$0xff] %v3089
        %3130 = vst [vmem:[#allocation4 + $0xf0] sm:$0xff] %v3094
        %3131 = vst [vmem:[#allocation4 + $0xf8] sm:$0xff] %v3097
        %s3132 = scalar_lea.vmem [#allocation2], 64
        %v3133 = vld [vmem:[%s3132] sm:$0xf]
        %v3134 = vld [vmem:[%s3132 + $0x4] sm:$0xf]
        %v3135 = vld [vmem:[%s3132 + $0x8] sm:$0xf]
        %v3136 = vld [vmem:[%s3132 + $0xc] sm:$0xf]
        %v3137 = vld [vmem:[%s3132 + $0x10] sm:$0xf]
        %v3138 = vld [vmem:[%s3132 + $0x14] sm:$0xf]
        %v3139 = vld [vmem:[%s3132 + $0x18] sm:$0xf]
        %v3140 = vld [vmem:[%s3132 + $0x1c] sm:$0xf]
        %v3141 = vld [vmem:[%s3132 + $0x20] sm:$0xf]
        %v3142 = vld [vmem:[%s3132 + $0x24] sm:$0xf]
        %v3143 = vld [vmem:[%s3132 + $0x28] sm:$0xf]
        %v3144 = vld [vmem:[%s3132 + $0x2c] sm:$0xf]
        %v3145 = vld [vmem:[%s3132 + $0x30] sm:$0xf]
        %v3146 = vld [vmem:[%s3132 + $0x34] sm:$0xf]
        %v3147 = vld [vmem:[%s3132 + $0x38] sm:$0xf]
        %v3148 = vld [vmem:[%s3132 + $0x3c] sm:$0xf]
        %v3165 = vunpack.c.l.b16 %v3133
        %v3166 = vunpack.c.l.b16 %v3134
        %v3167 = vunpack.c.l.b16 %v3135
        %v3168 = vunpack.c.l.b16 %v3136
        %v3169 = vunpack.c.l.b16 %v3137
        %v3170 = vunpack.c.l.b16 %v3138
        %v3171 = vunpack.c.l.b16 %v3139
        %v3172 = vunpack.c.l.b16 %v3140
        %v3173 = vunpack.c.l.b16 %v3141
        %v3174 = vunpack.c.l.b16 %v3142
        %v3175 = vunpack.c.l.b16 %v3143
        %v3176 = vunpack.c.l.b16 %v3144
        %v3177 = vunpack.c.l.b16 %v3145
        %v3178 = vunpack.c.l.b16 %v3146
        %v3179 = vunpack.c.l.b16 %v3147
        %v3180 = vunpack.c.l.b16 %v3148
        %v3181 = vpack.c.b16 %v3166, %v3165
        %v3182 = vpack.c.b16 %v3168, %v3167
        %v3183 = vpack.c.b16 %v3170, %v3169
        %v3184 = vpack.c.b16 %v3172, %v3171
        %v3185 = vpack.c.b16 %v3174, %v3173
        %v3186 = vpack.c.b16 %v3176, %v3175
        %v3187 = vpack.c.b16 %v3178, %v3177
        %v3188 = vpack.c.b16 %v3180, %v3179
        %3197 = vmatprep.subr.bf16.mxu0 0
        %3198 = vmatpush1.bf16.msra.mxu0 %v3188
        %3199 = vmatprep.subr.bf16.mxu0 0
        %3200 = vmatpush1.bf16.msra.mxu0 %v3187
        %3201 = vmatprep.subr.bf16.mxu0 0
        %3202 = vmatpush1.bf16.msra.mxu0 %v3186
        %3203 = vmatprep.subr.bf16.mxu0 0
        %3204 = vmatpush1.bf16.msra.mxu0 %v3185
        %3205 = vmatprep.subr.bf16.mxu0 0
        %3206 = vmatpush1.bf16.msra.mxu0 %v3184
        %3207 = vmatprep.subr.bf16.mxu0 0
        %3208 = vmatpush1.bf16.msra.mxu0 %v3183
        %3209 = vmatprep.subr.bf16.mxu0 0
        %3210 = vmatpush1.bf16.msra.mxu0 %v3182
        %3211 = vmatprep.subr.bf16.mxu0 0
        %3212 = vmatpush1.bf16.msra.mxu0 %v3181
        %3213 = vmatprep.subr.bf16.mxu0 0
        %3214 = vmatpush2.bf16.msra.mxu0 0
        %3215 = vmatprep.subr.bf16.mxu0 0
        %3216 = vmatpush2.bf16.msra.mxu0 0
        %3217 = vmatprep.subr.bf16.mxu0 0
        %3218 = vmatpush2.bf16.msra.mxu0 0
        %3219 = vmatprep.subr.bf16.mxu0 0
        %3220 = vmatpush2.bf16.msra.mxu0 0
        %3221 = vmatprep.subr.bf16.mxu0 0
        %3222 = vmatpush2.bf16.msra.mxu0 0
        %3223 = vmatprep.subr.bf16.mxu0 0
        %3224 = vmatpush2.bf16.msra.mxu0 0
        %3225 = vmatprep.subr.bf16.mxu0 0
        %3226 = vmatpush2.bf16.msra.mxu0 0
        %3227 = vmatprep.subr.bf16.mxu0 0
        %3228 = vmatpush2.bf16.msra.mxu0 0
        %3229 = vmatprep.mubr.bf16.mxu0 0
        %3230 = vmatmul.mubr.bf16.gmra.mxu0 %v2242
        %v3231 = vpop.f32.mrf.mxu0
        %v3232 = vadd.f32 0.0, %v3231
        %v3233 = vpop.f32.mrf.mxu0
        %v3234 = vpop.f32.mrf.mxu0
        %v3235 = vadd.f32 0.0, %v3234
        %v3236 = vpop.f32.mrf.mxu0
        %3237 = vmatprep.mubr.bf16.mxu0 0
        %3238 = vmatmul.mubr.bf16.gmra.mxu0 %v2243
        %v3239 = vpop.f32.mrf.mxu0
        %v3240 = vadd.f32 0.0, %v3239
        %v3241 = vpop.f32.mrf.mxu0
        %v3242 = vpop.f32.mrf.mxu0
        %v3243 = vadd.f32 0.0, %v3242
        %v3244 = vpop.f32.mrf.mxu0
        %3245 = vmatprep.mubr.bf16.mxu0 0
        %3246 = vmatmul.mubr.bf16.gmra.mxu0 %v2244
        %v3247 = vpop.f32.mrf.mxu0
        %v3248 = vadd.f32 0.0, %v3247
        %v3249 = vpop.f32.mrf.mxu0
        %v3250 = vpop.f32.mrf.mxu0
        %v3251 = vadd.f32 0.0, %v3250
        %v3252 = vpop.f32.mrf.mxu0
        %3253 = vmatprep.mubr.bf16.mxu0 0
        %3254 = vmatmul.mubr.bf16.gmra.mxu0 %v2245
        %v3255 = vpop.f32.mrf.mxu0
        %v3256 = vadd.f32 0.0, %v3255
        %v3257 = vpop.f32.mrf.mxu0
        %v3258 = vpop.f32.mrf.mxu0
        %v3259 = vadd.f32 0.0, %v3258
        %v3260 = vpop.f32.mrf.mxu0
        %3261 = vmatprep.mubr.bf16.mxu0 0
        %3262 = vmatmul.mubr.bf16.gmra.mxu0 %v2246
        %v3263 = vpop.f32.mrf.mxu0
        %v3264 = vadd.f32 0.0, %v3263
        %v3265 = vpop.f32.mrf.mxu0
        %v3266 = vpop.f32.mrf.mxu0
        %v3267 = vadd.f32 0.0, %v3266
        %v3268 = vpop.f32.mrf.mxu0
        %3269 = vmatprep.mubr.bf16.mxu0 0
        %3270 = vmatmul.mubr.bf16.gmra.mxu0 %v2247
        %v3271 = vpop.f32.mrf.mxu0
        %v3272 = vadd.f32 0.0, %v3271
        %v3273 = vpop.f32.mrf.mxu0
        %v3274 = vpop.f32.mrf.mxu0
        %v3275 = vadd.f32 0.0, %v3274
        %v3276 = vpop.f32.mrf.mxu0
        %3277 = vmatprep.mubr.bf16.mxu0 0
        %3278 = vmatmul.mubr.bf16.gmra.mxu0 %v2248
        %v3279 = vpop.f32.mrf.mxu0
        %v3280 = vadd.f32 0.0, %v3279
        %v3281 = vpop.f32.mrf.mxu0
        %v3282 = vpop.f32.mrf.mxu0
        %v3283 = vadd.f32 0.0, %v3282
        %v3284 = vpop.f32.mrf.mxu0
        %3285 = vmatprep.mubr.bf16.mxu0 0
        %3286 = vmatmul.mubr.bf16.gmra.mxu0 %v2249
        %v3287 = vpop.f32.mrf.mxu0
        %v3288 = vadd.f32 0.0, %v3287
        %v3289 = vpop.f32.mrf.mxu0
        %v3290 = vpop.f32.mrf.mxu0
        %v3291 = vadd.f32 0.0, %v3290
        %v3292 = vpop.f32.mrf.mxu0
        %3293 = vmatprep.mubr.bf16.mxu0 0
        %3294 = vmatmul.mubr.bf16.gmra.mxu0 %v2250
        %v3295 = vpop.f32.mrf.mxu0
        %v3296 = vadd.f32 0.0, %v3295
        %v3297 = vpop.f32.mrf.mxu0
        %v3298 = vpop.f32.mrf.mxu0
        %v3299 = vadd.f32 0.0, %v3298
        %v3300 = vpop.f32.mrf.mxu0
        %3301 = vmatprep.mubr.bf16.mxu0 0
        %3302 = vmatmul.mubr.bf16.gmra.mxu0 %v2251
        %v3303 = vpop.f32.mrf.mxu0
        %v3304 = vadd.f32 0.0, %v3303
        %v3305 = vpop.f32.mrf.mxu0
        %v3306 = vpop.f32.mrf.mxu0
        %v3307 = vadd.f32 0.0, %v3306
        %v3308 = vpop.f32.mrf.mxu0
        %3309 = vmatprep.mubr.bf16.mxu0 0
        %3310 = vmatmul.mubr.bf16.gmra.mxu0 %v2252
        %v3311 = vpop.f32.mrf.mxu0
        %v3312 = vadd.f32 0.0, %v3311
        %v3313 = vpop.f32.mrf.mxu0
        %v3314 = vpop.f32.mrf.mxu0
        %v3315 = vadd.f32 0.0, %v3314
        %v3316 = vpop.f32.mrf.mxu0
        %3317 = vmatprep.mubr.bf16.mxu0 0
        %3318 = vmatmul.mubr.bf16.gmra.mxu0 %v2253
        %v3319 = vpop.f32.mrf.mxu0
        %v3320 = vadd.f32 0.0, %v3319
        %v3321 = vpop.f32.mrf.mxu0
        %v3322 = vpop.f32.mrf.mxu0
        %v3323 = vadd.f32 0.0, %v3322
        %v3324 = vpop.f32.mrf.mxu0
        %3325 = vmatprep.mubr.bf16.mxu0 0
        %3326 = vmatmul.mubr.bf16.gmra.mxu0 %v2254
        %v3327 = vpop.f32.mrf.mxu0
        %v3328 = vadd.f32 0.0, %v3327
        %v3329 = vpop.f32.mrf.mxu0
        %v3330 = vpop.f32.mrf.mxu0
        %v3331 = vadd.f32 0.0, %v3330
        %v3332 = vpop.f32.mrf.mxu0
        %3333 = vmatprep.mubr.bf16.mxu0 0
        %3334 = vmatmul.mubr.bf16.gmra.mxu0 %v2255
        %v3335 = vpop.f32.mrf.mxu0
        %v3336 = vadd.f32 0.0, %v3335
        %v3337 = vpop.f32.mrf.mxu0
        %v3338 = vpop.f32.mrf.mxu0
        %v3339 = vadd.f32 0.0, %v3338
        %v3340 = vpop.f32.mrf.mxu0
        %3341 = vmatprep.mubr.bf16.mxu0 0
        %3342 = vmatmul.mubr.bf16.gmra.mxu0 %v2256
        %v3343 = vpop.f32.mrf.mxu0
        %v3344 = vadd.f32 0.0, %v3343
        %v3345 = vpop.f32.mrf.mxu0
        %v3346 = vpop.f32.mrf.mxu0
        %v3347 = vadd.f32 0.0, %v3346
        %v3348 = vpop.f32.mrf.mxu0
        %3349 = vmatprep.mubr.bf16.mxu0 0
        %3350 = vmatmul.mubr.bf16.gmra.mxu0 %v2257
        %v3351 = vpop.f32.mrf.mxu0
        %v3352 = vadd.f32 0.0, %v3351
        %v3353 = vpop.f32.mrf.mxu0
        %v3354 = vpop.f32.mrf.mxu0
        %v3355 = vadd.f32 0.0, %v3354
        %v3356 = vpop.f32.mrf.mxu0
        %3357 = vdwg.mxu0
        %v3358 = vsel %vm2483, %v3232, -inf
        %3359 = vmax.xlane.f32.xlu0 %v3358
        %v3360 = vpop.xlane.xlu0 %3359
        %v3361 = vsel %vm2483, %v3235, -inf
        %3362 = vmax.xlane.f32.xlu0 %v3361
        %v3363 = vpop.xlane.xlu0 %3362
        %v3364 = vsel %vm2483, %v3240, -inf
        %3365 = vmax.xlane.f32.xlu0 %v3364
        %v3366 = vpop.xlane.xlu0 %3365
        %v3367 = vsel %vm2483, %v3243, -inf
        %3368 = vmax.xlane.f32.xlu0 %v3367
        %v3369 = vpop.xlane.xlu0 %3368
        %v3370 = vsel %vm2483, %v3248, -inf
        %3371 = vmax.xlane.f32.xlu0 %v3370
        %v3372 = vpop.xlane.xlu0 %3371
        %v3373 = vsel %vm2483, %v3251, -inf
        %3374 = vmax.xlane.f32.xlu0 %v3373
        %v3375 = vpop.xlane.xlu0 %3374
        %v3376 = vsel %vm2483, %v3256, -inf
        %3377 = vmax.xlane.f32.xlu0 %v3376
        %v3378 = vpop.xlane.xlu0 %3377
        %v3379 = vsel %vm2483, %v3259, -inf
        %3380 = vmax.xlane.f32.xlu0 %v3379
        %v3381 = vpop.xlane.xlu0 %3380
        %v3382 = vsel %vm2483, %v3264, -inf
        %3383 = vmax.xlane.f32.xlu0 %v3382
        %v3384 = vpop.xlane.xlu0 %3383
        %v3385 = vsel %vm2483, %v3267, -inf
        %3386 = vmax.xlane.f32.xlu0 %v3385
        %v3387 = vpop.xlane.xlu0 %3386
        %v3388 = vsel %vm2483, %v3272, -inf
        %3389 = vmax.xlane.f32.xlu0 %v3388
        %v3390 = vpop.xlane.xlu0 %3389
        %v3391 = vsel %vm2483, %v3275, -inf
        %3392 = vmax.xlane.f32.xlu0 %v3391
        %v3393 = vpop.xlane.xlu0 %3392
        %v3394 = vsel %vm2483, %v3280, -inf
        %3395 = vmax.xlane.f32.xlu0 %v3394
        %v3396 = vpop.xlane.xlu0 %3395
        %v3397 = vsel %vm2483, %v3283, -inf
        %3398 = vmax.xlane.f32.xlu0 %v3397
        %v3399 = vpop.xlane.xlu0 %3398
        %v3400 = vsel %vm2483, %v3288, -inf
        %3401 = vmax.xlane.f32.xlu0 %v3400
        %v3402 = vpop.xlane.xlu0 %3401
        %v3403 = vsel %vm2483, %v3291, -inf
        %3404 = vmax.xlane.f32.xlu0 %v3403
        %v3405 = vpop.xlane.xlu0 %3404
        %v3406 = vsel %vm2483, %v3296, -inf
        %3407 = vmax.xlane.f32.xlu0 %v3406
        %v3408 = vpop.xlane.xlu0 %3407
        %v3409 = vsel %vm2483, %v3299, -inf
        %3410 = vmax.xlane.f32.xlu0 %v3409
        %v3411 = vpop.xlane.xlu0 %3410
        %v3412 = vsel %vm2483, %v3304, -inf
        %3413 = vmax.xlane.f32.xlu0 %v3412
        %v3414 = vpop.xlane.xlu0 %3413
        %v3415 = vsel %vm2483, %v3307, -inf
        %3416 = vmax.xlane.f32.xlu0 %v3415
        %v3417 = vpop.xlane.xlu0 %3416
        %v3418 = vsel %vm2483, %v3312, -inf
        %3419 = vmax.xlane.f32.xlu0 %v3418
        %v3420 = vpop.xlane.xlu0 %3419
        %v3421 = vsel %vm2483, %v3315, -inf
        %3422 = vmax.xlane.f32.xlu0 %v3421
        %v3423 = vpop.xlane.xlu0 %3422
        %v3424 = vsel %vm2483, %v3320, -inf
        %3425 = vmax.xlane.f32.xlu0 %v3424
        %v3426 = vpop.xlane.xlu0 %3425
        %v3427 = vsel %vm2483, %v3323, -inf
        %3428 = vmax.xlane.f32.xlu0 %v3427
        %v3429 = vpop.xlane.xlu0 %3428
        %v3430 = vsel %vm2483, %v3328, -inf
        %3431 = vmax.xlane.f32.xlu0 %v3430
        %v3432 = vpop.xlane.xlu0 %3431
        %v3433 = vsel %vm2483, %v3331, -inf
        %3434 = vmax.xlane.f32.xlu0 %v3433
        %v3435 = vpop.xlane.xlu0 %3434
        %v3436 = vsel %vm2483, %v3336, -inf
        %3437 = vmax.xlane.f32.xlu0 %v3436
        %v3438 = vpop.xlane.xlu0 %3437
        %v3439 = vsel %vm2483, %v3339, -inf
        %3440 = vmax.xlane.f32.xlu0 %v3439
        %v3441 = vpop.xlane.xlu0 %3440
        %v3442 = vsel %vm2483, %v3344, -inf
        %3443 = vmax.xlane.f32.xlu0 %v3442
        %v3444 = vpop.xlane.xlu0 %3443
        %v3445 = vsel %vm2483, %v3347, -inf
        %3446 = vmax.xlane.f32.xlu0 %v3445
        %v3447 = vpop.xlane.xlu0 %3446
        %v3448 = vsel %vm2483, %v3352, -inf
        %3449 = vmax.xlane.f32.xlu0 %v3448
        %v3450 = vpop.xlane.xlu0 %3449
        %v3451 = vsel %vm2483, %v3355, -inf
        %3452 = vmax.xlane.f32.xlu0 %v3451
        %v3453 = vpop.xlane.xlu0 %3452
        %v3454 = vsub.f32 %v3232, %v3360
        %v3455 = vsub.f32 %v3235, %v3363
        %v3456 = vsub.f32 %v3240, %v3366
        %v3457 = vsub.f32 %v3243, %v3369
        %v3458 = vsub.f32 %v3248, %v3372
        %v3459 = vsub.f32 %v3251, %v3375
        %v3460 = vsub.f32 %v3256, %v3378
        %v3461 = vsub.f32 %v3259, %v3381
        %v3462 = vsub.f32 %v3264, %v3384
        %v3463 = vsub.f32 %v3267, %v3387
        %v3464 = vsub.f32 %v3272, %v3390
        %v3465 = vsub.f32 %v3275, %v3393
        %v3466 = vsub.f32 %v3280, %v3396
        %v3467 = vsub.f32 %v3283, %v3399
        %v3468 = vsub.f32 %v3288, %v3402
        %v3469 = vsub.f32 %v3291, %v3405
        %v3470 = vsub.f32 %v3296, %v3408
        %v3471 = vsub.f32 %v3299, %v3411
        %v3472 = vsub.f32 %v3304, %v3414
        %v3473 = vsub.f32 %v3307, %v3417
        %v3474 = vsub.f32 %v3312, %v3420
        %v3475 = vsub.f32 %v3315, %v3423
        %v3476 = vsub.f32 %v3320, %v3426
        %v3477 = vsub.f32 %v3323, %v3429
        %v3478 = vsub.f32 %v3328, %v3432
        %v3479 = vsub.f32 %v3331, %v3435
        %v3480 = vsub.f32 %v3336, %v3438
        %v3481 = vsub.f32 %v3339, %v3441
        %v3482 = vsub.f32 %v3344, %v3444
        %v3483 = vsub.f32 %v3347, %v3447
        %v3484 = vsub.f32 %v3352, %v3450
        %v3485 = vsub.f32 %v3355, %v3453
        %v3486 = vmul.f32 %v3454, 1.442695
        %v3487 = vpow.pop %v3486
        %v3488 = vmul.f32 %v3455, 1.442695
        %v3489 = vpow.pop %v3488
        %v3490 = vmul.f32 %v3456, 1.442695
        %v3491 = vpow.pop %v3490
        %v3492 = vmul.f32 %v3457, 1.442695
        %v3493 = vpow.pop %v3492
        %v3494 = vmul.f32 %v3458, 1.442695
        %v3495 = vpow.pop %v3494
        %v3496 = vmul.f32 %v3459, 1.442695
        %v3497 = vpow.pop %v3496
        %v3498 = vmul.f32 %v3460, 1.442695
        %v3499 = vpow.pop %v3498
        %v3500 = vmul.f32 %v3461, 1.442695
        %v3501 = vpow.pop %v3500
        %v3502 = vmul.f32 %v3462, 1.442695
        %v3503 = vpow.pop %v3502
        %v3504 = vmul.f32 %v3463, 1.442695
        %v3505 = vpow.pop %v3504
        %v3506 = vmul.f32 %v3464, 1.442695
        %v3507 = vpow.pop %v3506
        %v3508 = vmul.f32 %v3465, 1.442695
        %v3509 = vpow.pop %v3508
        %v3510 = vmul.f32 %v3466, 1.442695
        %v3511 = vpow.pop %v3510
        %v3512 = vmul.f32 %v3467, 1.442695
        %v3513 = vpow.pop %v3512
        %v3514 = vmul.f32 %v3468, 1.442695
        %v3515 = vpow.pop %v3514
        %v3516 = vmul.f32 %v3469, 1.442695
        %v3517 = vpow.pop %v3516
        %v3518 = vmul.f32 %v3470, 1.442695
        %v3519 = vpow.pop %v3518
        %v3520 = vmul.f32 %v3471, 1.442695
        %v3521 = vpow.pop %v3520
        %v3522 = vmul.f32 %v3472, 1.442695
        %v3523 = vpow.pop %v3522
        %v3524 = vmul.f32 %v3473, 1.442695
        %v3525 = vpow.pop %v3524
        %v3526 = vmul.f32 %v3474, 1.442695
        %v3527 = vpow.pop %v3526
        %v3528 = vmul.f32 %v3475, 1.442695
        %v3529 = vpow.pop %v3528
        %v3530 = vmul.f32 %v3476, 1.442695
        %v3531 = vpow.pop %v3530
        %v3532 = vmul.f32 %v3477, 1.442695
        %v3533 = vpow.pop %v3532
        %v3534 = vmul.f32 %v3478, 1.442695
        %v3535 = vpow.pop %v3534
        %v3536 = vmul.f32 %v3479, 1.442695
        %v3537 = vpow.pop %v3536
        %v3538 = vmul.f32 %v3480, 1.442695
        %v3539 = vpow.pop %v3538
        %v3540 = vmul.f32 %v3481, 1.442695
        %v3541 = vpow.pop %v3540
        %v3542 = vmul.f32 %v3482, 1.442695
        %v3543 = vpow.pop %v3542
        %v3544 = vmul.f32 %v3483, 1.442695
        %v3545 = vpow.pop %v3544
        %v3546 = vmul.f32 %v3484, 1.442695
        %v3547 = vpow.pop %v3546
        %v3548 = vmul.f32 %v3485, 1.442695
        %v3549 = vpow.pop %v3548
        %v3550 = vsel %vm2483, %v3487, 0.0
        %3551 = vadd.xlane.f32.xlu0 %v3550
        %v3552 = vpop.xlane.xlu0 %3551
        %v3553 = vsel %vm2483, %v3489, 0.0
        %3554 = vadd.xlane.f32.xlu0 %v3553
        %v3555 = vpop.xlane.xlu0 %3554
        %v3556 = vsel %vm2483, %v3491, 0.0
        %3557 = vadd.xlane.f32.xlu0 %v3556
        %v3558 = vpop.xlane.xlu0 %3557
        %v3559 = vsel %vm2483, %v3493, 0.0
        %3560 = vadd.xlane.f32.xlu0 %v3559
        %v3561 = vpop.xlane.xlu0 %3560
        %v3562 = vsel %vm2483, %v3495, 0.0
        %3563 = vadd.xlane.f32.xlu0 %v3562
        %v3564 = vpop.xlane.xlu0 %3563
        %v3565 = vsel %vm2483, %v3497, 0.0
        %3566 = vadd.xlane.f32.xlu0 %v3565
        %v3567 = vpop.xlane.xlu0 %3566
        %v3568 = vsel %vm2483, %v3499, 0.0
        %3569 = vadd.xlane.f32.xlu0 %v3568
        %v3570 = vpop.xlane.xlu0 %3569
        %v3571 = vsel %vm2483, %v3501, 0.0
        %3572 = vadd.xlane.f32.xlu0 %v3571
        %v3573 = vpop.xlane.xlu0 %3572
        %v3574 = vsel %vm2483, %v3503, 0.0
        %3575 = vadd.xlane.f32.xlu0 %v3574
        %v3576 = vpop.xlane.xlu0 %3575
        %v3577 = vsel %vm2483, %v3505, 0.0
        %3578 = vadd.xlane.f32.xlu0 %v3577
        %v3579 = vpop.xlane.xlu0 %3578
        %v3580 = vsel %vm2483, %v3507, 0.0
        %3581 = vadd.xlane.f32.xlu0 %v3580
        %v3582 = vpop.xlane.xlu0 %3581
        %v3583 = vsel %vm2483, %v3509, 0.0
        %3584 = vadd.xlane.f32.xlu0 %v3583
        %v3585 = vpop.xlane.xlu0 %3584
        %v3586 = vsel %vm2483, %v3511, 0.0
        %3587 = vadd.xlane.f32.xlu0 %v3586
        %v3588 = vpop.xlane.xlu0 %3587
        %v3589 = vsel %vm2483, %v3513, 0.0
        %3590 = vadd.xlane.f32.xlu0 %v3589
        %v3591 = vpop.xlane.xlu0 %3590
        %v3592 = vsel %vm2483, %v3515, 0.0
        %3593 = vadd.xlane.f32.xlu0 %v3592
        %v3594 = vpop.xlane.xlu0 %3593
        %v3595 = vsel %vm2483, %v3517, 0.0
        %3596 = vadd.xlane.f32.xlu0 %v3595
        %v3597 = vpop.xlane.xlu0 %3596
        %v3598 = vsel %vm2483, %v3519, 0.0
        %3599 = vadd.xlane.f32.xlu0 %v3598
        %v3600 = vpop.xlane.xlu0 %3599
        %v3601 = vsel %vm2483, %v3521, 0.0
        %3602 = vadd.xlane.f32.xlu0 %v3601
        %v3603 = vpop.xlane.xlu0 %3602
        %v3604 = vsel %vm2483, %v3523, 0.0
        %3605 = vadd.xlane.f32.xlu0 %v3604
        %v3606 = vpop.xlane.xlu0 %3605
        %v3607 = vsel %vm2483, %v3525, 0.0
        %3608 = vadd.xlane.f32.xlu0 %v3607
        %v3609 = vpop.xlane.xlu0 %3608
        %v3610 = vsel %vm2483, %v3527, 0.0
        %3611 = vadd.xlane.f32.xlu0 %v3610
        %v3612 = vpop.xlane.xlu0 %3611
        %v3613 = vsel %vm2483, %v3529, 0.0
        %3614 = vadd.xlane.f32.xlu0 %v3613
        %v3615 = vpop.xlane.xlu0 %3614
        %v3616 = vsel %vm2483, %v3531, 0.0
        %3617 = vadd.xlane.f32.xlu0 %v3616
        %v3618 = vpop.xlane.xlu0 %3617
        %v3619 = vsel %vm2483, %v3533, 0.0
        %3620 = vadd.xlane.f32.xlu0 %v3619
        %v3621 = vpop.xlane.xlu0 %3620
        %v3622 = vsel %vm2483, %v3535, 0.0
        %3623 = vadd.xlane.f32.xlu0 %v3622
        %v3624 = vpop.xlane.xlu0 %3623
        %v3625 = vsel %vm2483, %v3537, 0.0
        %3626 = vadd.xlane.f32.xlu0 %v3625
        %v3627 = vpop.xlane.xlu0 %3626
        %v3628 = vsel %vm2483, %v3539, 0.0
        %3629 = vadd.xlane.f32.xlu0 %v3628
        %v3630 = vpop.xlane.xlu0 %3629
        %v3631 = vsel %vm2483, %v3541, 0.0
        %3632 = vadd.xlane.f32.xlu0 %v3631
        %v3633 = vpop.xlane.xlu0 %3632
        %v3634 = vsel %vm2483, %v3543, 0.0
        %3635 = vadd.xlane.f32.xlu0 %v3634
        %v3636 = vpop.xlane.xlu0 %3635
        %v3637 = vsel %vm2483, %v3545, 0.0
        %3638 = vadd.xlane.f32.xlu0 %v3637
        %v3639 = vpop.xlane.xlu0 %3638
        %v3640 = vsel %vm2483, %v3547, 0.0
        %3641 = vadd.xlane.f32.xlu0 %v3640
        %v3642 = vpop.xlane.xlu0 %3641
        %v3643 = vsel %vm2483, %v3549, 0.0
        %3644 = vadd.xlane.f32.xlu0 %v3643
        %v3645 = vpop.xlane.xlu0 %3644
        %v3646 = vrcp.pop %v3552
        %v3647 = vrcp.pop %v3555
        %v3648 = vrcp.pop %v3558
        %v3649 = vrcp.pop %v3561
        %v3650 = vrcp.pop %v3564
        %v3651 = vrcp.pop %v3567
        %v3652 = vrcp.pop %v3570
        %v3653 = vrcp.pop %v3573
        %v3654 = vrcp.pop %v3576
        %v3655 = vrcp.pop %v3579
        %v3656 = vrcp.pop %v3582
        %v3657 = vrcp.pop %v3585
        %v3658 = vrcp.pop %v3588
        %v3659 = vrcp.pop %v3591
        %v3660 = vrcp.pop %v3594
        %v3661 = vrcp.pop %v3597
        %v3662 = vrcp.pop %v3600
        %v3663 = vrcp.pop %v3603
        %v3664 = vrcp.pop %v3606
        %v3665 = vrcp.pop %v3609
        %v3666 = vrcp.pop %v3612
        %v3667 = vrcp.pop %v3615
        %v3668 = vrcp.pop %v3618
        %v3669 = vrcp.pop %v3621
        %v3670 = vrcp.pop %v3624
        %v3671 = vrcp.pop %v3627
        %v3672 = vrcp.pop %v3630
        %v3673 = vrcp.pop %v3633
        %v3674 = vrcp.pop %v3636
        %v3675 = vrcp.pop %v3639
        %v3676 = vrcp.pop %v3642
        %v3677 = vrcp.pop %v3645
        %v3678 = vmul.f32 %v3487, %v3646
        %v3679 = vmul.f32 %v3489, %v3647
        %v3680 = vmul.f32 %v3491, %v3648
        %v3681 = vmul.f32 %v3493, %v3649
        %v3682 = vmul.f32 %v3495, %v3650
        %v3683 = vmul.f32 %v3497, %v3651
        %v3684 = vmul.f32 %v3499, %v3652
        %v3685 = vmul.f32 %v3501, %v3653
        %v3686 = vmul.f32 %v3503, %v3654
        %v3687 = vmul.f32 %v3505, %v3655
        %v3688 = vmul.f32 %v3507, %v3656
        %v3689 = vmul.f32 %v3509, %v3657
        %v3690 = vmul.f32 %v3511, %v3658
        %v3691 = vmul.f32 %v3513, %v3659
        %v3692 = vmul.f32 %v3515, %v3660
        %v3693 = vmul.f32 %v3517, %v3661
        %v3694 = vmul.f32 %v3519, %v3662
        %v3695 = vmul.f32 %v3521, %v3663
        %v3696 = vmul.f32 %v3523, %v3664
        %v3697 = vmul.f32 %v3525, %v3665
        %v3698 = vmul.f32 %v3527, %v3666
        %v3699 = vmul.f32 %v3529, %v3667
        %v3700 = vmul.f32 %v3531, %v3668
        %v3701 = vmul.f32 %v3533, %v3669
        %v3702 = vmul.f32 %v3535, %v3670
        %v3703 = vmul.f32 %v3537, %v3671
        %v3704 = vmul.f32 %v3539, %v3672
        %v3705 = vmul.f32 %v3541, %v3673
        %v3706 = vmul.f32 %v3543, %v3674
        %v3707 = vmul.f32 %v3545, %v3675
        %v3708 = vmul.f32 %v3547, %v3676
        %v3709 = vmul.f32 %v3549, %v3677
        %v3710 = vpack.c.bf16 %v3679, %v3678
        %v3711 = vpack.c.bf16 %v3681, %v3680
        %v3712 = vpack.c.bf16 %v3683, %v3682
        %v3713 = vpack.c.bf16 %v3685, %v3684
        %v3714 = vpack.c.bf16 %v3687, %v3686
        %v3715 = vpack.c.bf16 %v3689, %v3688
        %v3716 = vpack.c.bf16 %v3691, %v3690
        %v3717 = vpack.c.bf16 %v3693, %v3692
        %v3718 = vpack.c.bf16 %v3695, %v3694
        %v3719 = vpack.c.bf16 %v3697, %v3696
        %v3720 = vpack.c.bf16 %v3699, %v3698
        %v3721 = vpack.c.bf16 %v3701, %v3700
        %v3722 = vpack.c.bf16 %v3703, %v3702
        %v3723 = vpack.c.bf16 %v3705, %v3704
        %v3724 = vpack.c.bf16 %v3707, %v3706
        %v3725 = vpack.c.bf16 %v3709, %v3708
        %s3726 = scalar_lea.vmem [#allocation3], 32
        %v3727 = vld [vmem:[%s3726] sm:$0xf]
        %v3728 = vld [vmem:[%s3726 + $0x4] sm:$0xf]
        %v3729 = vld [vmem:[%s3726 + $0x8] sm:$0xf]
        %v3730 = vld [vmem:[%s3726 + $0xc] sm:$0xf]
        %v3731 = vld [vmem:[%s3726 + $0x10] sm:$0xf]
        %v3732 = vld [vmem:[%s3726 + $0x14] sm:$0xf]
        %v3733 = vld [vmem:[%s3726 + $0x18] sm:$0xf]
        %v3734 = vld [vmem:[%s3726 + $0x1c] sm:$0xf]
        %v3743 = vunpack.c.l.b16 %v3727
        %v3744 = vunpack.c.l.b16 %v3728
        %v3745 = vunpack.c.l.b16 %v3729
        %v3746 = vunpack.c.l.b16 %v3730
        %v3747 = vunpack.c.l.b16 %v3731
        %v3748 = vunpack.c.l.b16 %v3732
        %v3749 = vunpack.c.l.b16 %v3733
        %v3750 = vunpack.c.l.b16 %v3734
        %v3751 = vpack.c.b16 %v3744, %v3743
        %v3752 = vpack.c.b16 %v3746, %v3745
        %v3753 = vpack.c.b16 %v3748, %v3747
        %v3754 = vpack.c.b16 %v3750, %v3749
        %v3760 = vsel %vm2483, %v3710, 0
        %v3763 = vsel %vm2483, %v3711, 0
        %v3766 = vsel %vm2483, %v3712, 0
        %v3769 = vsel %vm2483, %v3713, 0
        %v3772 = vsel %vm2483, %v3714, 0
        %v3775 = vsel %vm2483, %v3715, 0
        %v3778 = vsel %vm2483, %v3716, 0
        %v3781 = vsel %vm2483, %v3717, 0
        %v3784 = vsel %vm2483, %v3718, 0
        %v3787 = vsel %vm2483, %v3719, 0
        %v3790 = vsel %vm2483, %v3720, 0
        %v3793 = vsel %vm2483, %v3721, 0
        %v3796 = vsel %vm2483, %v3722, 0
        %v3799 = vsel %vm2483, %v3723, 0
        %v3802 = vsel %vm2483, %v3724, 0
        %v3805 = vsel %vm2483, %v3725, 0
        %3807 = vmatprep.subr.bf16.mxu0 0
        %3808 = vmatpush1.bf16.msra.mxu0 0
        %3809 = vmatprep.subr.bf16.mxu0 0
        %3810 = vmatpush1.bf16.msra.mxu0 0
        %3811 = vmatprep.subr.bf16.mxu0 0
        %3812 = vmatpush1.bf16.msra.mxu0 0
        %3813 = vmatprep.subr.bf16.mxu0 0
        %3814 = vmatpush1.bf16.msra.mxu0 0
        %3815 = vmatprep.subr.bf16.mxu0 0
        %3816 = vmatpush1.bf16.msra.mxu0 %v3754
        %3817 = vmatprep.subr.bf16.mxu0 0
        %3818 = vmatpush1.bf16.msra.mxu0 %v3753
        %3819 = vmatprep.subr.bf16.mxu0 0
        %3820 = vmatpush1.bf16.msra.mxu0 %v3752
        %3821 = vmatprep.subr.bf16.mxu0 0
        %3822 = vmatpush1.bf16.msra.mxu0 %v3751
        %3823 = vmatprep.subr.bf16.mxu0 0
        %3824 = vmatpush2.bf16.msra.mxu0 0
        %3825 = vmatprep.subr.bf16.mxu0 0
        %3826 = vmatpush2.bf16.msra.mxu0 0
        %3827 = vmatprep.subr.bf16.mxu0 0
        %3828 = vmatpush2.bf16.msra.mxu0 0
        %3829 = vmatprep.subr.bf16.mxu0 0
        %3830 = vmatpush2.bf16.msra.mxu0 0
        %3831 = vmatprep.subr.bf16.mxu0 0
        %3832 = vmatpush2.bf16.msra.mxu0 0
        %3833 = vmatprep.subr.bf16.mxu0 0
        %3834 = vmatpush2.bf16.msra.mxu0 0
        %3835 = vmatprep.subr.bf16.mxu0 0
        %3836 = vmatpush2.bf16.msra.mxu0 0
        %3837 = vmatprep.subr.bf16.mxu0 0
        %3838 = vmatpush2.bf16.msra.mxu0 0
        %3839 = vmatprep.mubr.bf16.mxu0 0
        %3840 = vmatmul.mubr.bf16.gmra.mxu0 %v3760
        %v3841 = vpop.f32.mrf.mxu0
        %v3842 = vadd.f32 0.0, %v3841
        %v3843 = vpop.f32.mrf.mxu0
        %v3844 = vpop.f32.mrf.mxu0
        %v3845 = vadd.f32 0.0, %v3844
        %v3846 = vpop.f32.mrf.mxu0
        %3847 = vmatprep.mubr.bf16.mxu0 0
        %3848 = vmatmul.mubr.bf16.gmra.mxu0 %v3763
        %v3849 = vpop.f32.mrf.mxu0
        %v3850 = vadd.f32 0.0, %v3849
        %v3851 = vpop.f32.mrf.mxu0
        %v3852 = vpop.f32.mrf.mxu0
        %v3853 = vadd.f32 0.0, %v3852
        %v3854 = vpop.f32.mrf.mxu0
        %3855 = vmatprep.mubr.bf16.mxu0 0
        %3856 = vmatmul.mubr.bf16.gmra.mxu0 %v3766
        %v3857 = vpop.f32.mrf.mxu0
        %v3858 = vadd.f32 0.0, %v3857
        %v3859 = vpop.f32.mrf.mxu0
        %v3860 = vpop.f32.mrf.mxu0
        %v3861 = vadd.f32 0.0, %v3860
        %v3862 = vpop.f32.mrf.mxu0
        %3863 = vmatprep.mubr.bf16.mxu0 0
        %3864 = vmatmul.mubr.bf16.gmra.mxu0 %v3769
        %v3865 = vpop.f32.mrf.mxu0
        %v3866 = vadd.f32 0.0, %v3865
        %v3867 = vpop.f32.mrf.mxu0
        %v3868 = vpop.f32.mrf.mxu0
        %v3869 = vadd.f32 0.0, %v3868
        %v3870 = vpop.f32.mrf.mxu0
        %3871 = vmatprep.mubr.bf16.mxu0 0
        %3872 = vmatmul.mubr.bf16.gmra.mxu0 %v3772
        %v3873 = vpop.f32.mrf.mxu0
        %v3874 = vadd.f32 0.0, %v3873
        %v3875 = vpop.f32.mrf.mxu0
        %v3876 = vpop.f32.mrf.mxu0
        %v3877 = vadd.f32 0.0, %v3876
        %v3878 = vpop.f32.mrf.mxu0
        %3879 = vmatprep.mubr.bf16.mxu0 0
        %3880 = vmatmul.mubr.bf16.gmra.mxu0 %v3775
        %v3881 = vpop.f32.mrf.mxu0
        %v3882 = vadd.f32 0.0, %v3881
        %v3883 = vpop.f32.mrf.mxu0
        %v3884 = vpop.f32.mrf.mxu0
        %v3885 = vadd.f32 0.0, %v3884
        %v3886 = vpop.f32.mrf.mxu0
        %3887 = vmatprep.mubr.bf16.mxu0 0
        %3888 = vmatmul.mubr.bf16.gmra.mxu0 %v3778
        %v3889 = vpop.f32.mrf.mxu0
        %v3890 = vadd.f32 0.0, %v3889
        %v3891 = vpop.f32.mrf.mxu0
        %v3892 = vpop.f32.mrf.mxu0
        %v3893 = vadd.f32 0.0, %v3892
        %v3894 = vpop.f32.mrf.mxu0
        %3895 = vmatprep.mubr.bf16.mxu0 0
        %3896 = vmatmul.mubr.bf16.gmra.mxu0 %v3781
        %v3897 = vpop.f32.mrf.mxu0
        %v3898 = vadd.f32 0.0, %v3897
        %v3899 = vpop.f32.mrf.mxu0
        %v3900 = vpop.f32.mrf.mxu0
        %v3901 = vadd.f32 0.0, %v3900
        %v3902 = vpop.f32.mrf.mxu0
        %3903 = vmatprep.mubr.bf16.mxu0 0
        %3904 = vmatmul.mubr.bf16.gmra.mxu0 %v3784
        %v3905 = vpop.f32.mrf.mxu0
        %v3906 = vadd.f32 0.0, %v3905
        %v3907 = vpop.f32.mrf.mxu0
        %v3908 = vpop.f32.mrf.mxu0
        %v3909 = vadd.f32 0.0, %v3908
        %v3910 = vpop.f32.mrf.mxu0
        %3911 = vmatprep.mubr.bf16.mxu0 0
        %3912 = vmatmul.mubr.bf16.gmra.mxu0 %v3787
        %v3913 = vpop.f32.mrf.mxu0
        %v3914 = vadd.f32 0.0, %v3913
        %v3915 = vpop.f32.mrf.mxu0
        %v3916 = vpop.f32.mrf.mxu0
        %v3917 = vadd.f32 0.0, %v3916
        %v3918 = vpop.f32.mrf.mxu0
        %3919 = vmatprep.mubr.bf16.mxu0 0
        %3920 = vmatmul.mubr.bf16.gmra.mxu0 %v3790
        %v3921 = vpop.f32.mrf.mxu0
        %v3922 = vadd.f32 0.0, %v3921
        %v3923 = vpop.f32.mrf.mxu0
        %v3924 = vpop.f32.mrf.mxu0
        %v3925 = vadd.f32 0.0, %v3924
        %v3926 = vpop.f32.mrf.mxu0
        %3927 = vmatprep.mubr.bf16.mxu0 0
        %3928 = vmatmul.mubr.bf16.gmra.mxu0 %v3793
        %v3929 = vpop.f32.mrf.mxu0
        %v3930 = vadd.f32 0.0, %v3929
        %v3931 = vpop.f32.mrf.mxu0
        %v3932 = vpop.f32.mrf.mxu0
        %v3933 = vadd.f32 0.0, %v3932
        %v3934 = vpop.f32.mrf.mxu0
        %3935 = vmatprep.mubr.bf16.mxu0 0
        %3936 = vmatmul.mubr.bf16.gmra.mxu0 %v3796
        %v3937 = vpop.f32.mrf.mxu0
        %v3938 = vadd.f32 0.0, %v3937
        %v3939 = vpop.f32.mrf.mxu0
        %v3940 = vpop.f32.mrf.mxu0
        %v3941 = vadd.f32 0.0, %v3940
        %v3942 = vpop.f32.mrf.mxu0
        %3943 = vmatprep.mubr.bf16.mxu0 0
        %3944 = vmatmul.mubr.bf16.gmra.mxu0 %v3799
        %v3945 = vpop.f32.mrf.mxu0
        %v3946 = vadd.f32 0.0, %v3945
        %v3947 = vpop.f32.mrf.mxu0
        %v3948 = vpop.f32.mrf.mxu0
        %v3949 = vadd.f32 0.0, %v3948
        %v3950 = vpop.f32.mrf.mxu0
        %3951 = vmatprep.mubr.bf16.mxu0 0
        %3952 = vmatmul.mubr.bf16.gmra.mxu0 %v3802
        %v3953 = vpop.f32.mrf.mxu0
        %v3954 = vadd.f32 0.0, %v3953
        %v3955 = vpop.f32.mrf.mxu0
        %v3956 = vpop.f32.mrf.mxu0
        %v3957 = vadd.f32 0.0, %v3956
        %v3958 = vpop.f32.mrf.mxu0
        %3959 = vmatprep.mubr.bf16.mxu0 0
        %3960 = vmatmul.mubr.bf16.gmra.mxu0 %v3805
        %v3961 = vpop.f32.mrf.mxu0
        %v3962 = vadd.f32 0.0, %v3961
        %v3963 = vpop.f32.mrf.mxu0
        %v3964 = vpop.f32.mrf.mxu0
        %v3965 = vadd.f32 0.0, %v3964
        %v3966 = vpop.f32.mrf.mxu0
        %3967 = vdwg.mxu0
        %v3968 = vld [vmem:[#allocation4] sm:$0xff]
        %v3969 = vld [vmem:[#allocation4 + $0x8] sm:$0xff]
        %v3970 = vld [vmem:[#allocation4 + $0x10] sm:$0xff]
        %v3971 = vld [vmem:[#allocation4 + $0x18] sm:$0xff]
        %v3972 = vld [vmem:[#allocation4 + $0x20] sm:$0xff]
        %v3973 = vld [vmem:[#allocation4 + $0x28] sm:$0xff]
        %v3974 = vld [vmem:[#allocation4 + $0x30] sm:$0xff]
        %v3975 = vld [vmem:[#allocation4 + $0x38] sm:$0xff]
        %v3976 = vld [vmem:[#allocation4 + $0x40] sm:$0xff]
        %v3977 = vld [vmem:[#allocation4 + $0x48] sm:$0xff]
        %v3978 = vld [vmem:[#allocation4 + $0x50] sm:$0xff]
        %v3979 = vld [vmem:[#allocation4 + $0x58] sm:$0xff]
        %v3980 = vld [vmem:[#allocation4 + $0x60] sm:$0xff]
        %v3981 = vld [vmem:[#allocation4 + $0x68] sm:$0xff]
        %v3982 = vld [vmem:[#allocation4 + $0x70] sm:$0xff]
        %v3983 = vld [vmem:[#allocation4 + $0x78] sm:$0xff]
        %v3984 = vld [vmem:[#allocation4 + $0x80] sm:$0xff]
        %v3985 = vld [vmem:[#allocation4 + $0x88] sm:$0xff]
        %v3986 = vld [vmem:[#allocation4 + $0x90] sm:$0xff]
        %v3987 = vld [vmem:[#allocation4 + $0x98] sm:$0xff]
        %v3988 = vld [vmem:[#allocation4 + $0xa0] sm:$0xff]
        %v3989 = vld [vmem:[#allocation4 + $0xa8] sm:$0xff]
        %v3990 = vld [vmem:[#allocation4 + $0xb0] sm:$0xff]
        %v3991 = vld [vmem:[#allocation4 + $0xb8] sm:$0xff]
        %v3992 = vld [vmem:[#allocation4 + $0xc0] sm:$0xff]
        %v3993 = vld [vmem:[#allocation4 + $0xc8] sm:$0xff]
        %v3994 = vld [vmem:[#allocation4 + $0xd0] sm:$0xff]
        %v3995 = vld [vmem:[#allocation4 + $0xd8] sm:$0xff]
        %v3996 = vld [vmem:[#allocation4 + $0xe0] sm:$0xff]
        %v3997 = vld [vmem:[#allocation4 + $0xe8] sm:$0xff]
        %v3998 = vld [vmem:[#allocation4 + $0xf0] sm:$0xff]
        %v3999 = vld [vmem:[#allocation4 + $0xf8] sm:$0xff]
        %v4000 = vadd.f32 %v3968, %v3842
        %v4001 = vadd.f32 %v3969, %v3845
        %v4002 = vadd.f32 %v3970, %v3850
        %v4003 = vadd.f32 %v3971, %v3853
        %v4004 = vadd.f32 %v3972, %v3858
        %v4005 = vadd.f32 %v3973, %v3861
        %v4006 = vadd.f32 %v3974, %v3866
        %v4007 = vadd.f32 %v3975, %v3869
        %v4008 = vadd.f32 %v3976, %v3874
        %v4009 = vadd.f32 %v3977, %v3877
        %v4010 = vadd.f32 %v3978, %v3882
        %v4011 = vadd.f32 %v3979, %v3885
        %v4012 = vadd.f32 %v3980, %v3890
        %v4013 = vadd.f32 %v3981, %v3893
        %v4014 = vadd.f32 %v3982, %v3898
        %v4015 = vadd.f32 %v3983, %v3901
        %v4016 = vadd.f32 %v3984, %v3906
        %v4017 = vadd.f32 %v3985, %v3909
        %v4018 = vadd.f32 %v3986, %v3914
        %v4019 = vadd.f32 %v3987, %v3917
        %v4020 = vadd.f32 %v3988, %v3922
        %v4021 = vadd.f32 %v3989, %v3925
        %v4022 = vadd.f32 %v3990, %v3930
        %v4023 = vadd.f32 %v3991, %v3933
        %v4024 = vadd.f32 %v3992, %v3938
        %v4025 = vadd.f32 %v3993, %v3941
        %v4026 = vadd.f32 %v3994, %v3946
        %v4027 = vadd.f32 %v3995, %v3949
        %v4028 = vadd.f32 %v3996, %v3954
        %v4029 = vadd.f32 %v3997, %v3957
        %v4030 = vadd.f32 %v3998, %v3962
        %v4031 = vadd.f32 %v3999, %v3965
        %4032 = vst [vmem:[#allocation4] sm:$0xff] %v4000
        %4033 = vst [vmem:[#allocation4 + $0x8] sm:$0xff] %v4001
        %4034 = vst [vmem:[#allocation4 + $0x10] sm:$0xff] %v4002
        %4035 = vst [vmem:[#allocation4 + $0x18] sm:$0xff] %v4003
        %4036 = vst [vmem:[#allocation4 + $0x20] sm:$0xff] %v4004
        %4037 = vst [vmem:[#allocation4 + $0x28] sm:$0xff] %v4005
        %4038 = vst [vmem:[#allocation4 + $0x30] sm:$0xff] %v4006
        %4039 = vst [vmem:[#allocation4 + $0x38] sm:$0xff] %v4007
        %4040 = vst [vmem:[#allocation4 + $0x40] sm:$0xff] %v4008
        %4041 = vst [vmem:[#allocation4 + $0x48] sm:$0xff] %v4009
        %4042 = vst [vmem:[#allocation4 + $0x50] sm:$0xff] %v4010
        %4043 = vst [vmem:[#allocation4 + $0x58] sm:$0xff] %v4011
        %4044 = vst [vmem:[#allocation4 + $0x60] sm:$0xff] %v4012
        %4045 = vst [vmem:[#allocation4 + $0x68] sm:$0xff] %v4013
        %4046 = vst [vmem:[#allocation4 + $0x70] sm:$0xff] %v4014
        %4047 = vst [vmem:[#allocation4 + $0x78] sm:$0xff] %v4015
        %4048 = vst [vmem:[#allocation4 + $0x80] sm:$0xff] %v4016
        %4049 = vst [vmem:[#allocation4 + $0x88] sm:$0xff] %v4017
        %4050 = vst [vmem:[#allocation4 + $0x90] sm:$0xff] %v4018
        %4051 = vst [vmem:[#allocation4 + $0x98] sm:$0xff] %v4019
        %4052 = vst [vmem:[#allocation4 + $0xa0] sm:$0xff] %v4020
        %4053 = vst [vmem:[#allocation4 + $0xa8] sm:$0xff] %v4021
        %4054 = vst [vmem:[#allocation4 + $0xb0] sm:$0xff] %v4022
        %4055 = vst [vmem:[#allocation4 + $0xb8] sm:$0xff] %v4023
        %4056 = vst [vmem:[#allocation4 + $0xc0] sm:$0xff] %v4024
        %4057 = vst [vmem:[#allocation4 + $0xc8] sm:$0xff] %v4025
        %4058 = vst [vmem:[#allocation4 + $0xd0] sm:$0xff] %v4026
        %4059 = vst [vmem:[#allocation4 + $0xd8] sm:$0xff] %v4027
        %4060 = vst [vmem:[#allocation4 + $0xe0] sm:$0xff] %v4028
        %4061 = vst [vmem:[#allocation4 + $0xe8] sm:$0xff] %v4029
        %4062 = vst [vmem:[#allocation4 + $0xf0] sm:$0xff] %v4030
        %4063 = vst [vmem:[#allocation4 + $0xf8] sm:$0xff] %v4031
        %s4064 = scalar_lea.vmem [#allocation2], 128
        %v4065 = vld [vmem:[%s4064] sm:$0xf]
        %v4066 = vld [vmem:[%s4064 + $0x4] sm:$0xf]
        %v4067 = vld [vmem:[%s4064 + $0x8] sm:$0xf]
        %v4068 = vld [vmem:[%s4064 + $0xc] sm:$0xf]
        %v4069 = vld [vmem:[%s4064 + $0x10] sm:$0xf]
        %v4070 = vld [vmem:[%s4064 + $0x14] sm:$0xf]
        %v4071 = vld [vmem:[%s4064 + $0x18] sm:$0xf]
        %v4072 = vld [vmem:[%s4064 + $0x1c] sm:$0xf]
        %v4073 = vld [vmem:[%s4064 + $0x20] sm:$0xf]
        %v4074 = vld [vmem:[%s4064 + $0x24] sm:$0xf]
        %v4075 = vld [vmem:[%s4064 + $0x28] sm:$0xf]
        %v4076 = vld [vmem:[%s4064 + $0x2c] sm:$0xf]
        %v4077 = vld [vmem:[%s4064 + $0x30] sm:$0xf]
        %v4078 = vld [vmem:[%s4064 + $0x34] sm:$0xf]
        %v4079 = vld [vmem:[%s4064 + $0x38] sm:$0xf]
        %v4080 = vld [vmem:[%s4064 + $0x3c] sm:$0xf]
        %v4097 = vunpack.c.l.b16 %v4065
        %v4098 = vunpack.c.l.b16 %v4066
        %v4099 = vunpack.c.l.b16 %v4067
        %v4100 = vunpack.c.l.b16 %v4068
        %v4101 = vunpack.c.l.b16 %v4069
        %v4102 = vunpack.c.l.b16 %v4070
        %v4103 = vunpack.c.l.b16 %v4071
        %v4104 = vunpack.c.l.b16 %v4072
        %v4105 = vunpack.c.l.b16 %v4073
        %v4106 = vunpack.c.l.b16 %v4074
        %v4107 = vunpack.c.l.b16 %v4075
        %v4108 = vunpack.c.l.b16 %v4076
        %v4109 = vunpack.c.l.b16 %v4077
        %v4110 = vunpack.c.l.b16 %v4078
        %v4111 = vunpack.c.l.b16 %v4079
        %v4112 = vunpack.c.l.b16 %v4080
        %v4113 = vpack.c.b16 %v4098, %v4097
        %v4114 = vpack.c.b16 %v4100, %v4099
        %v4115 = vpack.c.b16 %v4102, %v4101
        %v4116 = vpack.c.b16 %v4104, %v4103
        %v4117 = vpack.c.b16 %v4106, %v4105
        %v4118 = vpack.c.b16 %v4108, %v4107
        %v4119 = vpack.c.b16 %v4110, %v4109
        %v4120 = vpack.c.b16 %v4112, %v4111
        %4129 = vmatprep.subr.bf16.mxu0 0
        %4130 = vmatpush1.bf16.msra.mxu0 %v4120
        %4131 = vmatprep.subr.bf16.mxu0 0
        %4132 = vmatpush1.bf16.msra.mxu0 %v4119
        %4133 = vmatprep.subr.bf16.mxu0 0
        %4134 = vmatpush1.bf16.msra.mxu0 %v4118
        %4135 = vmatprep.subr.bf16.mxu0 0
        %4136 = vmatpush1.bf16.msra.mxu0 %v4117
        %4137 = vmatprep.subr.bf16.mxu0 0
        %4138 = vmatpush1.bf16.msra.mxu0 %v4116
        %4139 = vmatprep.subr.bf16.mxu0 0
        %4140 = vmatpush1.bf16.msra.mxu0 %v4115
        %4141 = vmatprep.subr.bf16.mxu0 0
        %4142 = vmatpush1.bf16.msra.mxu0 %v4114
        %4143 = vmatprep.subr.bf16.mxu0 0
        %4144 = vmatpush1.bf16.msra.mxu0 %v4113
        %4145 = vmatprep.subr.bf16.mxu0 0
        %4146 = vmatpush2.bf16.msra.mxu0 0
        %4147 = vmatprep.subr.bf16.mxu0 0
        %4148 = vmatpush2.bf16.msra.mxu0 0
        %4149 = vmatprep.subr.bf16.mxu0 0
        %4150 = vmatpush2.bf16.msra.mxu0 0
        %4151 = vmatprep.subr.bf16.mxu0 0
        %4152 = vmatpush2.bf16.msra.mxu0 0
        %4153 = vmatprep.subr.bf16.mxu0 0
        %4154 = vmatpush2.bf16.msra.mxu0 0
        %4155 = vmatprep.subr.bf16.mxu0 0
        %4156 = vmatpush2.bf16.msra.mxu0 0
        %4157 = vmatprep.subr.bf16.mxu0 0
        %4158 = vmatpush2.bf16.msra.mxu0 0
        %4159 = vmatprep.subr.bf16.mxu0 0
        %4160 = vmatpush2.bf16.msra.mxu0 0
        %4161 = vmatprep.mubr.bf16.mxu0 0
        %4162 = vmatmul.mubr.bf16.gmra.mxu0 %v2242
        %v4163 = vpop.f32.mrf.mxu0
        %v4164 = vadd.f32 0.0, %v4163
        %v4165 = vpop.f32.mrf.mxu0
        %v4166 = vpop.f32.mrf.mxu0
        %v4167 = vadd.f32 0.0, %v4166
        %v4168 = vpop.f32.mrf.mxu0
        %4169 = vmatprep.mubr.bf16.mxu0 0
        %4170 = vmatmul.mubr.bf16.gmra.mxu0 %v2243
        %v4171 = vpop.f32.mrf.mxu0
        %v4172 = vadd.f32 0.0, %v4171
        %v4173 = vpop.f32.mrf.mxu0
        %v4174 = vpop.f32.mrf.mxu0
        %v4175 = vadd.f32 0.0, %v4174
        %v4176 = vpop.f32.mrf.mxu0
        %4177 = vmatprep.mubr.bf16.mxu0 0
        %4178 = vmatmul.mubr.bf16.gmra.mxu0 %v2244
        %v4179 = vpop.f32.mrf.mxu0
        %v4180 = vadd.f32 0.0, %v4179
        %v4181 = vpop.f32.mrf.mxu0
        %v4182 = vpop.f32.mrf.mxu0
        %v4183 = vadd.f32 0.0, %v4182
        %v4184 = vpop.f32.mrf.mxu0
        %4185 = vmatprep.mubr.bf16.mxu0 0
        %4186 = vmatmul.mubr.bf16.gmra.mxu0 %v2245
        %v4187 = vpop.f32.mrf.mxu0
        %v4188 = vadd.f32 0.0, %v4187
        %v4189 = vpop.f32.mrf.mxu0
        %v4190 = vpop.f32.mrf.mxu0
        %v4191 = vadd.f32 0.0, %v4190
        %v4192 = vpop.f32.mrf.mxu0
        %4193 = vmatprep.mubr.bf16.mxu0 0
        %4194 = vmatmul.mubr.bf16.gmra.mxu0 %v2246
        %v4195 = vpop.f32.mrf.mxu0
        %v4196 = vadd.f32 0.0, %v4195
        %v4197 = vpop.f32.mrf.mxu0
        %v4198 = vpop.f32.mrf.mxu0
        %v4199 = vadd.f32 0.0, %v4198
        %v4200 = vpop.f32.mrf.mxu0
        %4201 = vmatprep.mubr.bf16.mxu0 0
        %4202 = vmatmul.mubr.bf16.gmra.mxu0 %v2247
        %v4203 = vpop.f32.mrf.mxu0
        %v4204 = vadd.f32 0.0, %v4203
        %v4205 = vpop.f32.mrf.mxu0
        %v4206 = vpop.f32.mrf.mxu0
        %v4207 = vadd.f32 0.0, %v4206
        %v4208 = vpop.f32.mrf.mxu0
        %4209 = vmatprep.mubr.bf16.mxu0 0
        %4210 = vmatmul.mubr.bf16.gmra.mxu0 %v2248
        %v4211 = vpop.f32.mrf.mxu0
        %v4212 = vadd.f32 0.0, %v4211
        %v4213 = vpop.f32.mrf.mxu0
        %v4214 = vpop.f32.mrf.mxu0
        %v4215 = vadd.f32 0.0, %v4214
        %v4216 = vpop.f32.mrf.mxu0
        %4217 = vmatprep.mubr.bf16.mxu0 0
        %4218 = vmatmul.mubr.bf16.gmra.mxu0 %v2249
        %v4219 = vpop.f32.mrf.mxu0
        %v4220 = vadd.f32 0.0, %v4219
        %v4221 = vpop.f32.mrf.mxu0
        %v4222 = vpop.f32.mrf.mxu0
        %v4223 = vadd.f32 0.0, %v4222
        %v4224 = vpop.f32.mrf.mxu0
        %4225 = vmatprep.mubr.bf16.mxu0 0
        %4226 = vmatmul.mubr.bf16.gmra.mxu0 %v2250
        %v4227 = vpop.f32.mrf.mxu0
        %v4228 = vadd.f32 0.0, %v4227
        %v4229 = vpop.f32.mrf.mxu0
        %v4230 = vpop.f32.mrf.mxu0
        %v4231 = vadd.f32 0.0, %v4230
        %v4232 = vpop.f32.mrf.mxu0
        %4233 = vmatprep.mubr.bf16.mxu0 0
        %4234 = vmatmul.mubr.bf16.gmra.mxu0 %v2251
        %v4235 = vpop.f32.mrf.mxu0
        %v4236 = vadd.f32 0.0, %v4235
        %v4237 = vpop.f32.mrf.mxu0
        %v4238 = vpop.f32.mrf.mxu0
        %v4239 = vadd.f32 0.0, %v4238
        %v4240 = vpop.f32.mrf.mxu0
        %4241 = vmatprep.mubr.bf16.mxu0 0
        %4242 = vmatmul.mubr.bf16.gmra.mxu0 %v2252
        %v4243 = vpop.f32.mrf.mxu0
        %v4244 = vadd.f32 0.0, %v4243
        %v4245 = vpop.f32.mrf.mxu0
        %v4246 = vpop.f32.mrf.mxu0
        %v4247 = vadd.f32 0.0, %v4246
        %v4248 = vpop.f32.mrf.mxu0
        %4249 = vmatprep.mubr.bf16.mxu0 0
        %4250 = vmatmul.mubr.bf16.gmra.mxu0 %v2253
        %v4251 = vpop.f32.mrf.mxu0
        %v4252 = vadd.f32 0.0, %v4251
        %v4253 = vpop.f32.mrf.mxu0
        %v4254 = vpop.f32.mrf.mxu0
        %v4255 = vadd.f32 0.0, %v4254
        %v4256 = vpop.f32.mrf.mxu0
        %4257 = vmatprep.mubr.bf16.mxu0 0
        %4258 = vmatmul.mubr.bf16.gmra.mxu0 %v2254
        %v4259 = vpop.f32.mrf.mxu0
        %v4260 = vadd.f32 0.0, %v4259
        %v4261 = vpop.f32.mrf.mxu0
        %v4262 = vpop.f32.mrf.mxu0
        %v4263 = vadd.f32 0.0, %v4262
        %v4264 = vpop.f32.mrf.mxu0
        %4265 = vmatprep.mubr.bf16.mxu0 0
        %4266 = vmatmul.mubr.bf16.gmra.mxu0 %v2255
        %v4267 = vpop.f32.mrf.mxu0
        %v4268 = vadd.f32 0.0, %v4267
        %v4269 = vpop.f32.mrf.mxu0
        %v4270 = vpop.f32.mrf.mxu0
        %v4271 = vadd.f32 0.0, %v4270
        %v4272 = vpop.f32.mrf.mxu0
        %4273 = vmatprep.mubr.bf16.mxu0 0
        %4274 = vmatmul.mubr.bf16.gmra.mxu0 %v2256
        %v4275 = vpop.f32.mrf.mxu0
        %v4276 = vadd.f32 0.0, %v4275
        %v4277 = vpop.f32.mrf.mxu0
        %v4278 = vpop.f32.mrf.mxu0
        %v4279 = vadd.f32 0.0, %v4278
        %v4280 = vpop.f32.mrf.mxu0
        %4281 = vmatprep.mubr.bf16.mxu0 0
        %4282 = vmatmul.mubr.bf16.gmra.mxu0 %v2257
        %v4283 = vpop.f32.mrf.mxu0
        %v4284 = vadd.f32 0.0, %v4283
        %v4285 = vpop.f32.mrf.mxu0
        %v4286 = vpop.f32.mrf.mxu0
        %v4287 = vadd.f32 0.0, %v4286
        %v4288 = vpop.f32.mrf.mxu0
        %4289 = vdwg.mxu0
        %v4290 = vsel %vm2483, %v4164, -inf
        %4291 = vmax.xlane.f32.xlu0 %v4290
        %v4292 = vpop.xlane.xlu0 %4291
        %v4293 = vsel %vm2483, %v4167, -inf
        %4294 = vmax.xlane.f32.xlu0 %v4293
        %v4295 = vpop.xlane.xlu0 %4294
        %v4296 = vsel %vm2483, %v4172, -inf
        %4297 = vmax.xlane.f32.xlu0 %v4296
        %v4298 = vpop.xlane.xlu0 %4297
        %v4299 = vsel %vm2483, %v4175, -inf
        %4300 = vmax.xlane.f32.xlu0 %v4299
        %v4301 = vpop.xlane.xlu0 %4300
        %v4302 = vsel %vm2483, %v4180, -inf
        %4303 = vmax.xlane.f32.xlu0 %v4302
        %v4304 = vpop.xlane.xlu0 %4303
        %v4305 = vsel %vm2483, %v4183, -inf
        %4306 = vmax.xlane.f32.xlu0 %v4305
        %v4307 = vpop.xlane.xlu0 %4306
        %v4308 = vsel %vm2483, %v4188, -inf
        %4309 = vmax.xlane.f32.xlu0 %v4308
        %v4310 = vpop.xlane.xlu0 %4309
        %v4311 = vsel %vm2483, %v4191, -inf
        %4312 = vmax.xlane.f32.xlu0 %v4311
        %v4313 = vpop.xlane.xlu0 %4312
        %v4314 = vsel %vm2483, %v4196, -inf
        %4315 = vmax.xlane.f32.xlu0 %v4314
        %v4316 = vpop.xlane.xlu0 %4315
        %v4317 = vsel %vm2483, %v4199, -inf
        %4318 = vmax.xlane.f32.xlu0 %v4317
        %v4319 = vpop.xlane.xlu0 %4318
        %v4320 = vsel %vm2483, %v4204, -inf
        %4321 = vmax.xlane.f32.xlu0 %v4320
        %v4322 = vpop.xlane.xlu0 %4321
        %v4323 = vsel %vm2483, %v4207, -inf
        %4324 = vmax.xlane.f32.xlu0 %v4323
        %v4325 = vpop.xlane.xlu0 %4324
        %v4326 = vsel %vm2483, %v4212, -inf
        %4327 = vmax.xlane.f32.xlu0 %v4326
        %v4328 = vpop.xlane.xlu0 %4327
        %v4329 = vsel %vm2483, %v4215, -inf
        %4330 = vmax.xlane.f32.xlu0 %v4329
        %v4331 = vpop.xlane.xlu0 %4330
        %v4332 = vsel %vm2483, %v4220, -inf
        %4333 = vmax.xlane.f32.xlu0 %v4332
        %v4334 = vpop.xlane.xlu0 %4333
        %v4335 = vsel %vm2483, %v4223, -inf
        %4336 = vmax.xlane.f32.xlu0 %v4335
        %v4337 = vpop.xlane.xlu0 %4336
        %v4338 = vsel %vm2483, %v4228, -inf
        %4339 = vmax.xlane.f32.xlu0 %v4338
        %v4340 = vpop.xlane.xlu0 %4339
        %v4341 = vsel %vm2483, %v4231, -inf
        %4342 = vmax.xlane.f32.xlu0 %v4341
        %v4343 = vpop.xlane.xlu0 %4342
        %v4344 = vsel %vm2483, %v4236, -inf
        %4345 = vmax.xlane.f32.xlu0 %v4344
        %v4346 = vpop.xlane.xlu0 %4345
        %v4347 = vsel %vm2483, %v4239, -inf
        %4348 = vmax.xlane.f32.xlu0 %v4347
        %v4349 = vpop.xlane.xlu0 %4348
        %v4350 = vsel %vm2483, %v4244, -inf
        %4351 = vmax.xlane.f32.xlu0 %v4350
        %v4352 = vpop.xlane.xlu0 %4351
        %v4353 = vsel %vm2483, %v4247, -inf
        %4354 = vmax.xlane.f32.xlu0 %v4353
        %v4355 = vpop.xlane.xlu0 %4354
        %v4356 = vsel %vm2483, %v4252, -inf
        %4357 = vmax.xlane.f32.xlu0 %v4356
        %v4358 = vpop.xlane.xlu0 %4357
        %v4359 = vsel %vm2483, %v4255, -inf
        %4360 = vmax.xlane.f32.xlu0 %v4359
        %v4361 = vpop.xlane.xlu0 %4360
        %v4362 = vsel %vm2483, %v4260, -inf
        %4363 = vmax.xlane.f32.xlu0 %v4362
        %v4364 = vpop.xlane.xlu0 %4363
        %v4365 = vsel %vm2483, %v4263, -inf
        %4366 = vmax.xlane.f32.xlu0 %v4365
        %v4367 = vpop.xlane.xlu0 %4366
        %v4368 = vsel %vm2483, %v4268, -inf
        %4369 = vmax.xlane.f32.xlu0 %v4368
        %v4370 = vpop.xlane.xlu0 %4369
        %v4371 = vsel %vm2483, %v4271, -inf
        %4372 = vmax.xlane.f32.xlu0 %v4371
        %v4373 = vpop.xlane.xlu0 %4372
        %v4374 = vsel %vm2483, %v4276, -inf
        %4375 = vmax.xlane.f32.xlu0 %v4374
        %v4376 = vpop.xlane.xlu0 %4375
        %v4377 = vsel %vm2483, %v4279, -inf
        %4378 = vmax.xlane.f32.xlu0 %v4377
        %v4379 = vpop.xlane.xlu0 %4378
        %v4380 = vsel %vm2483, %v4284, -inf
        %4381 = vmax.xlane.f32.xlu0 %v4380
        %v4382 = vpop.xlane.xlu0 %4381
        %v4383 = vsel %vm2483, %v4287, -inf
        %4384 = vmax.xlane.f32.xlu0 %v4383
        %v4385 = vpop.xlane.xlu0 %4384
        %v4386 = vsub.f32 %v4164, %v4292
        %v4387 = vsub.f32 %v4167, %v4295
        %v4388 = vsub.f32 %v4172, %v4298
        %v4389 = vsub.f32 %v4175, %v4301
        %v4390 = vsub.f32 %v4180, %v4304
        %v4391 = vsub.f32 %v4183, %v4307
        %v4392 = vsub.f32 %v4188, %v4310
        %v4393 = vsub.f32 %v4191, %v4313
        %v4394 = vsub.f32 %v4196, %v4316
        %v4395 = vsub.f32 %v4199, %v4319
        %v4396 = vsub.f32 %v4204, %v4322
        %v4397 = vsub.f32 %v4207, %v4325
        %v4398 = vsub.f32 %v4212, %v4328
        %v4399 = vsub.f32 %v4215, %v4331
        %v4400 = vsub.f32 %v4220, %v4334
        %v4401 = vsub.f32 %v4223, %v4337
        %v4402 = vsub.f32 %v4228, %v4340
        %v4403 = vsub.f32 %v4231, %v4343
        %v4404 = vsub.f32 %v4236, %v4346
        %v4405 = vsub.f32 %v4239, %v4349
        %v4406 = vsub.f32 %v4244, %v4352
        %v4407 = vsub.f32 %v4247, %v4355
        %v4408 = vsub.f32 %v4252, %v4358
        %v4409 = vsub.f32 %v4255, %v4361
        %v4410 = vsub.f32 %v4260, %v4364
        %v4411 = vsub.f32 %v4263, %v4367
        %v4412 = vsub.f32 %v4268, %v4370
        %v4413 = vsub.f32 %v4271, %v4373
        %v4414 = vsub.f32 %v4276, %v4376
        %v4415 = vsub.f32 %v4279, %v4379
        %v4416 = vsub.f32 %v4284, %v4382
        %v4417 = vsub.f32 %v4287, %v4385
        %v4418 = vmul.f32 %v4386, 1.442695
        %v4419 = vpow.pop %v4418
        %v4420 = vmul.f32 %v4387, 1.442695
        %v4421 = vpow.pop %v4420
        %v4422 = vmul.f32 %v4388, 1.442695
        %v4423 = vpow.pop %v4422
        %v4424 = vmul.f32 %v4389, 1.442695
        %v4425 = vpow.pop %v4424
        %v4426 = vmul.f32 %v4390, 1.442695
        %v4427 = vpow.pop %v4426
        %v4428 = vmul.f32 %v4391, 1.442695
        %v4429 = vpow.pop %v4428
        %v4430 = vmul.f32 %v4392, 1.442695
        %v4431 = vpow.pop %v4430
        %v4432 = vmul.f32 %v4393, 1.442695
        %v4433 = vpow.pop %v4432
        %v4434 = vmul.f32 %v4394, 1.442695
        %v4435 = vpow.pop %v4434
        %v4436 = vmul.f32 %v4395, 1.442695
        %v4437 = vpow.pop %v4436
        %v4438 = vmul.f32 %v4396, 1.442695
        %v4439 = vpow.pop %v4438
        %v4440 = vmul.f32 %v4397, 1.442695
        %v4441 = vpow.pop %v4440
        %v4442 = vmul.f32 %v4398, 1.442695
        %v4443 = vpow.pop %v4442
        %v4444 = vmul.f32 %v4399, 1.442695
        %v4445 = vpow.pop %v4444
        %v4446 = vmul.f32 %v4400, 1.442695
        %v4447 = vpow.pop %v4446
        %v4448 = vmul.f32 %v4401, 1.442695
        %v4449 = vpow.pop %v4448
        %v4450 = vmul.f32 %v4402, 1.442695
        %v4451 = vpow.pop %v4450
        %v4452 = vmul.f32 %v4403, 1.442695
        %v4453 = vpow.pop %v4452
        %v4454 = vmul.f32 %v4404, 1.442695
        %v4455 = vpow.pop %v4454
        %v4456 = vmul.f32 %v4405, 1.442695
        %v4457 = vpow.pop %v4456
        %v4458 = vmul.f32 %v4406, 1.442695
        %v4459 = vpow.pop %v4458
        %v4460 = vmul.f32 %v4407, 1.442695
        %v4461 = vpow.pop %v4460
        %v4462 = vmul.f32 %v4408, 1.442695
        %v4463 = vpow.pop %v4462
        %v4464 = vmul.f32 %v4409, 1.442695
        %v4465 = vpow.pop %v4464
        %v4466 = vmul.f32 %v4410, 1.442695
        %v4467 = vpow.pop %v4466
        %v4468 = vmul.f32 %v4411, 1.442695
        %v4469 = vpow.pop %v4468
        %v4470 = vmul.f32 %v4412, 1.442695
        %v4471 = vpow.pop %v4470
        %v4472 = vmul.f32 %v4413, 1.442695
        %v4473 = vpow.pop %v4472
        %v4474 = vmul.f32 %v4414, 1.442695
        %v4475 = vpow.pop %v4474
        %v4476 = vmul.f32 %v4415, 1.442695
        %v4477 = vpow.pop %v4476
        %v4478 = vmul.f32 %v4416, 1.442695
        %v4479 = vpow.pop %v4478
        %v4480 = vmul.f32 %v4417, 1.442695
        %v4481 = vpow.pop %v4480
        %v4482 = vsel %vm2483, %v4419, 0.0
        %4483 = vadd.xlane.f32.xlu0 %v4482
        %v4484 = vpop.xlane.xlu0 %4483
        %v4485 = vsel %vm2483, %v4421, 0.0
        %4486 = vadd.xlane.f32.xlu0 %v4485
        %v4487 = vpop.xlane.xlu0 %4486
        %v4488 = vsel %vm2483, %v4423, 0.0
        %4489 = vadd.xlane.f32.xlu0 %v4488
        %v4490 = vpop.xlane.xlu0 %4489
        %v4491 = vsel %vm2483, %v4425, 0.0
        %4492 = vadd.xlane.f32.xlu0 %v4491
        %v4493 = vpop.xlane.xlu0 %4492
        %v4494 = vsel %vm2483, %v4427, 0.0
        %4495 = vadd.xlane.f32.xlu0 %v4494
        %v4496 = vpop.xlane.xlu0 %4495
        %v4497 = vsel %vm2483, %v4429, 0.0
        %4498 = vadd.xlane.f32.xlu0 %v4497
        %v4499 = vpop.xlane.xlu0 %4498
        %v4500 = vsel %vm2483, %v4431, 0.0
        %4501 = vadd.xlane.f32.xlu0 %v4500
        %v4502 = vpop.xlane.xlu0 %4501
        %v4503 = vsel %vm2483, %v4433, 0.0
        %4504 = vadd.xlane.f32.xlu0 %v4503
        %v4505 = vpop.xlane.xlu0 %4504
        %v4506 = vsel %vm2483, %v4435, 0.0
        %4507 = vadd.xlane.f32.xlu0 %v4506
        %v4508 = vpop.xlane.xlu0 %4507
        %v4509 = vsel %vm2483, %v4437, 0.0
        %4510 = vadd.xlane.f32.xlu0 %v4509
        %v4511 = vpop.xlane.xlu0 %4510
        %v4512 = vsel %vm2483, %v4439, 0.0
        %4513 = vadd.xlane.f32.xlu0 %v4512
        %v4514 = vpop.xlane.xlu0 %4513
        %v4515 = vsel %vm2483, %v4441, 0.0
        %4516 = vadd.xlane.f32.xlu0 %v4515
        %v4517 = vpop.xlane.xlu0 %4516
        %v4518 = vsel %vm2483, %v4443, 0.0
        %4519 = vadd.xlane.f32.xlu0 %v4518
        %v4520 = vpop.xlane.xlu0 %4519
        %v4521 = vsel %vm2483, %v4445, 0.0
        %4522 = vadd.xlane.f32.xlu0 %v4521
        %v4523 = vpop.xlane.xlu0 %4522
        %v4524 = vsel %vm2483, %v4447, 0.0
        %4525 = vadd.xlane.f32.xlu0 %v4524
        %v4526 = vpop.xlane.xlu0 %4525
        %v4527 = vsel %vm2483, %v4449, 0.0
        %4528 = vadd.xlane.f32.xlu0 %v4527
        %v4529 = vpop.xlane.xlu0 %4528
        %v4530 = vsel %vm2483, %v4451, 0.0
        %4531 = vadd.xlane.f32.xlu0 %v4530
        %v4532 = vpop.xlane.xlu0 %4531
        %v4533 = vsel %vm2483, %v4453, 0.0
        %4534 = vadd.xlane.f32.xlu0 %v4533
        %v4535 = vpop.xlane.xlu0 %4534
        %v4536 = vsel %vm2483, %v4455, 0.0
        %4537 = vadd.xlane.f32.xlu0 %v4536
        %v4538 = vpop.xlane.xlu0 %4537
        %v4539 = vsel %vm2483, %v4457, 0.0
        %4540 = vadd.xlane.f32.xlu0 %v4539
        %v4541 = vpop.xlane.xlu0 %4540
        %v4542 = vsel %vm2483, %v4459, 0.0
        %4543 = vadd.xlane.f32.xlu0 %v4542
        %v4544 = vpop.xlane.xlu0 %4543
        %v4545 = vsel %vm2483, %v4461, 0.0
        %4546 = vadd.xlane.f32.xlu0 %v4545
        %v4547 = vpop.xlane.xlu0 %4546
        %v4548 = vsel %vm2483, %v4463, 0.0
        %4549 = vadd.xlane.f32.xlu0 %v4548
        %v4550 = vpop.xlane.xlu0 %4549
        %v4551 = vsel %vm2483, %v4465, 0.0
        %4552 = vadd.xlane.f32.xlu0 %v4551
        %v4553 = vpop.xlane.xlu0 %4552
        %v4554 = vsel %vm2483, %v4467, 0.0
        %4555 = vadd.xlane.f32.xlu0 %v4554
        %v4556 = vpop.xlane.xlu0 %4555
        %v4557 = vsel %vm2483, %v4469, 0.0
        %4558 = vadd.xlane.f32.xlu0 %v4557
        %v4559 = vpop.xlane.xlu0 %4558
        %v4560 = vsel %vm2483, %v4471, 0.0
        %4561 = vadd.xlane.f32.xlu0 %v4560
        %v4562 = vpop.xlane.xlu0 %4561
        %v4563 = vsel %vm2483, %v4473, 0.0
        %4564 = vadd.xlane.f32.xlu0 %v4563
        %v4565 = vpop.xlane.xlu0 %4564
        %v4566 = vsel %vm2483, %v4475, 0.0
        %4567 = vadd.xlane.f32.xlu0 %v4566
        %v4568 = vpop.xlane.xlu0 %4567
        %v4569 = vsel %vm2483, %v4477, 0.0
        %4570 = vadd.xlane.f32.xlu0 %v4569
        %v4571 = vpop.xlane.xlu0 %4570
        %v4572 = vsel %vm2483, %v4479, 0.0
        %4573 = vadd.xlane.f32.xlu0 %v4572
        %v4574 = vpop.xlane.xlu0 %4573
        %v4575 = vsel %vm2483, %v4481, 0.0
        %4576 = vadd.xlane.f32.xlu0 %v4575
        %v4577 = vpop.xlane.xlu0 %4576
        %v4578 = vrcp.pop %v4484
        %v4579 = vrcp.pop %v4487
        %v4580 = vrcp.pop %v4490
        %v4581 = vrcp.pop %v4493
        %v4582 = vrcp.pop %v4496
        %v4583 = vrcp.pop %v4499
        %v4584 = vrcp.pop %v4502
        %v4585 = vrcp.pop %v4505
        %v4586 = vrcp.pop %v4508
        %v4587 = vrcp.pop %v4511
        %v4588 = vrcp.pop %v4514
        %v4589 = vrcp.pop %v4517
        %v4590 = vrcp.pop %v4520
        %v4591 = vrcp.pop %v4523
        %v4592 = vrcp.pop %v4526
        %v4593 = vrcp.pop %v4529
        %v4594 = vrcp.pop %v4532
        %v4595 = vrcp.pop %v4535
        %v4596 = vrcp.pop %v4538
        %v4597 = vrcp.pop %v4541
        %v4598 = vrcp.pop %v4544
        %v4599 = vrcp.pop %v4547
        %v4600 = vrcp.pop %v4550
        %v4601 = vrcp.pop %v4553
        %v4602 = vrcp.pop %v4556
        %v4603 = vrcp.pop %v4559
        %v4604 = vrcp.pop %v4562
        %v4605 = vrcp.pop %v4565
        %v4606 = vrcp.pop %v4568
        %v4607 = vrcp.pop %v4571
        %v4608 = vrcp.pop %v4574
        %v4609 = vrcp.pop %v4577
        %v4610 = vmul.f32 %v4419, %v4578
        %v4611 = vmul.f32 %v4421, %v4579
        %v4612 = vmul.f32 %v4423, %v4580
        %v4613 = vmul.f32 %v4425, %v4581
        %v4614 = vmul.f32 %v4427, %v4582
        %v4615 = vmul.f32 %v4429, %v4583
        %v4616 = vmul.f32 %v4431, %v4584
        %v4617 = vmul.f32 %v4433, %v4585
        %v4618 = vmul.f32 %v4435, %v4586
        %v4619 = vmul.f32 %v4437, %v4587
        %v4620 = vmul.f32 %v4439, %v4588
        %v4621 = vmul.f32 %v4441, %v4589
        %v4622 = vmul.f32 %v4443, %v4590
        %v4623 = vmul.f32 %v4445, %v4591
        %v4624 = vmul.f32 %v4447, %v4592
        %v4625 = vmul.f32 %v4449, %v4593
        %v4626 = vmul.f32 %v4451, %v4594
        %v4627 = vmul.f32 %v4453, %v4595
        %v4628 = vmul.f32 %v4455, %v4596
        %v4629 = vmul.f32 %v4457, %v4597
        %v4630 = vmul.f32 %v4459, %v4598
        %v4631 = vmul.f32 %v4461, %v4599
        %v4632 = vmul.f32 %v4463, %v4600
        %v4633 = vmul.f32 %v4465, %v4601
        %v4634 = vmul.f32 %v4467, %v4602
        %v4635 = vmul.f32 %v4469, %v4603
        %v4636 = vmul.f32 %v4471, %v4604
        %v4637 = vmul.f32 %v4473, %v4605
        %v4638 = vmul.f32 %v4475, %v4606
        %v4639 = vmul.f32 %v4477, %v4607
        %v4640 = vmul.f32 %v4479, %v4608
        %v4641 = vmul.f32 %v4481, %v4609
        %v4642 = vpack.c.bf16 %v4611, %v4610
        %v4643 = vpack.c.bf16 %v4613, %v4612
        %v4644 = vpack.c.bf16 %v4615, %v4614
        %v4645 = vpack.c.bf16 %v4617, %v4616
        %v4646 = vpack.c.bf16 %v4619, %v4618
        %v4647 = vpack.c.bf16 %v4621, %v4620
        %v4648 = vpack.c.bf16 %v4623, %v4622
        %v4649 = vpack.c.bf16 %v4625, %v4624
        %v4650 = vpack.c.bf16 %v4627, %v4626
        %v4651 = vpack.c.bf16 %v4629, %v4628
        %v4652 = vpack.c.bf16 %v4631, %v4630
        %v4653 = vpack.c.bf16 %v4633, %v4632
        %v4654 = vpack.c.bf16 %v4635, %v4634
        %v4655 = vpack.c.bf16 %v4637, %v4636
        %v4656 = vpack.c.bf16 %v4639, %v4638
        %v4657 = vpack.c.bf16 %v4641, %v4640
        %s4658 = scalar_lea.vmem [#allocation3], 64
        %v4659 = vld [vmem:[%s4658] sm:$0xf]
        %v4660 = vld [vmem:[%s4658 + $0x4] sm:$0xf]
        %v4661 = vld [vmem:[%s4658 + $0x8] sm:$0xf]
        %v4662 = vld [vmem:[%s4658 + $0xc] sm:$0xf]
        %v4663 = vld [vmem:[%s4658 + $0x10] sm:$0xf]
        %v4664 = vld [vmem:[%s4658 + $0x14] sm:$0xf]
        %v4665 = vld [vmem:[%s4658 + $0x18] sm:$0xf]
        %v4666 = vld [vmem:[%s4658 + $0x1c] sm:$0xf]
        %v4675 = vunpack.c.l.b16 %v4659
        %v4676 = vunpack.c.l.b16 %v4660
        %v4677 = vunpack.c.l.b16 %v4661
        %v4678 = vunpack.c.l.b16 %v4662
        %v4679 = vunpack.c.l.b16 %v4663
        %v4680 = vunpack.c.l.b16 %v4664
        %v4681 = vunpack.c.l.b16 %v4665
        %v4682 = vunpack.c.l.b16 %v4666
        %v4683 = vpack.c.b16 %v4676, %v4675
        %v4684 = vpack.c.b16 %v4678, %v4677
        %v4685 = vpack.c.b16 %v4680, %v4679
        %v4686 = vpack.c.b16 %v4682, %v4681
        %v4692 = vsel %vm2483, %v4642, 0
        %v4695 = vsel %vm2483, %v4643, 0
        %v4698 = vsel %vm2483, %v4644, 0
        %v4701 = vsel %vm2483, %v4645, 0
        %v4704 = vsel %vm2483, %v4646, 0
        %v4707 = vsel %vm2483, %v4647, 0
        %v4710 = vsel %vm2483, %v4648, 0
        %v4713 = vsel %vm2483, %v4649, 0
        %v4716 = vsel %vm2483, %v4650, 0
        %v4719 = vsel %vm2483, %v4651, 0
        %v4722 = vsel %vm2483, %v4652, 0
        %v4725 = vsel %vm2483, %v4653, 0
        %v4728 = vsel %vm2483, %v4654, 0
        %v4731 = vsel %vm2483, %v4655, 0
        %v4734 = vsel %vm2483, %v4656, 0
        %v4737 = vsel %vm2483, %v4657, 0
        %4739 = vmatprep.subr.bf16.mxu0 0
        %4740 = vmatpush1.bf16.msra.mxu0 0
        %4741 = vmatprep.subr.bf16.mxu0 0
        %4742 = vmatpush1.bf16.msra.mxu0 0
        %4743 = vmatprep.subr.bf16.mxu0 0
        %4744 = vmatpush1.bf16.msra.mxu0 0
        %4745 = vmatprep.subr.bf16.mxu0 0
        %4746 = vmatpush1.bf16.msra.mxu0 0
        %4747 = vmatprep.subr.bf16.mxu0 0
        %4748 = vmatpush1.bf16.msra.mxu0 %v4686
        %4749 = vmatprep.subr.bf16.mxu0 0
        %4750 = vmatpush1.bf16.msra.mxu0 %v4685
        %4751 = vmatprep.subr.bf16.mxu0 0
        %4752 = vmatpush1.bf16.msra.mxu0 %v4684
        %4753 = vmatprep.subr.bf16.mxu0 0
        %4754 = vmatpush1.bf16.msra.mxu0 %v4683
        %4755 = vmatprep.subr.bf16.mxu0 0
        %4756 = vmatpush2.bf16.msra.mxu0 0
        %4757 = vmatprep.subr.bf16.mxu0 0
        %4758 = vmatpush2.bf16.msra.mxu0 0
        %4759 = vmatprep.subr.bf16.mxu0 0
        %4760 = vmatpush2.bf16.msra.mxu0 0
        %4761 = vmatprep.subr.bf16.mxu0 0
        %4762 = vmatpush2.bf16.msra.mxu0 0
        %4763 = vmatprep.subr.bf16.mxu0 0
        %4764 = vmatpush2.bf16.msra.mxu0 0
        %4765 = vmatprep.subr.bf16.mxu0 0
        %4766 = vmatpush2.bf16.msra.mxu0 0
        %4767 = vmatprep.subr.bf16.mxu0 0
        %4768 = vmatpush2.bf16.msra.mxu0 0
        %4769 = vmatprep.subr.bf16.mxu0 0
        %4770 = vmatpush2.bf16.msra.mxu0 0
        %4771 = vmatprep.mubr.bf16.mxu0 0
        %4772 = vmatmul.mubr.bf16.gmra.mxu0 %v4692
        %v4773 = vpop.f32.mrf.mxu0
        %v4774 = vadd.f32 0.0, %v4773
        %v4775 = vpop.f32.mrf.mxu0
        %v4776 = vpop.f32.mrf.mxu0
        %v4777 = vadd.f32 0.0, %v4776
        %v4778 = vpop.f32.mrf.mxu0
        %4779 = vmatprep.mubr.bf16.mxu0 0
        %4780 = vmatmul.mubr.bf16.gmra.mxu0 %v4695
        %v4781 = vpop.f32.mrf.mxu0
        %v4782 = vadd.f32 0.0, %v4781
        %v4783 = vpop.f32.mrf.mxu0
        %v4784 = vpop.f32.mrf.mxu0
        %v4785 = vadd.f32 0.0, %v4784
        %v4786 = vpop.f32.mrf.mxu0
        %4787 = vmatprep.mubr.bf16.mxu0 0
        %4788 = vmatmul.mubr.bf16.gmra.mxu0 %v4698
        %v4789 = vpop.f32.mrf.mxu0
        %v4790 = vadd.f32 0.0, %v4789
        %v4791 = vpop.f32.mrf.mxu0
        %v4792 = vpop.f32.mrf.mxu0
        %v4793 = vadd.f32 0.0, %v4792
        %v4794 = vpop.f32.mrf.mxu0
        %4795 = vmatprep.mubr.bf16.mxu0 0
        %4796 = vmatmul.mubr.bf16.gmra.mxu0 %v4701
        %v4797 = vpop.f32.mrf.mxu0
        %v4798 = vadd.f32 0.0, %v4797
        %v4799 = vpop.f32.mrf.mxu0
        %v4800 = vpop.f32.mrf.mxu0
        %v4801 = vadd.f32 0.0, %v4800
        %v4802 = vpop.f32.mrf.mxu0
        %4803 = vmatprep.mubr.bf16.mxu0 0
        %4804 = vmatmul.mubr.bf16.gmra.mxu0 %v4704
        %v4805 = vpop.f32.mrf.mxu0
        %v4806 = vadd.f32 0.0, %v4805
        %v4807 = vpop.f32.mrf.mxu0
        %v4808 = vpop.f32.mrf.mxu0
        %v4809 = vadd.f32 0.0, %v4808
        %v4810 = vpop.f32.mrf.mxu0
        %4811 = vmatprep.mubr.bf16.mxu0 0
        %4812 = vmatmul.mubr.bf16.gmra.mxu0 %v4707
        %v4813 = vpop.f32.mrf.mxu0
        %v4814 = vadd.f32 0.0, %v4813
        %v4815 = vpop.f32.mrf.mxu0
        %v4816 = vpop.f32.mrf.mxu0
        %v4817 = vadd.f32 0.0, %v4816
        %v4818 = vpop.f32.mrf.mxu0
        %4819 = vmatprep.mubr.bf16.mxu0 0
        %4820 = vmatmul.mubr.bf16.gmra.mxu0 %v4710
        %v4821 = vpop.f32.mrf.mxu0
        %v4822 = vadd.f32 0.0, %v4821
        %v4823 = vpop.f32.mrf.mxu0
        %v4824 = vpop.f32.mrf.mxu0
        %v4825 = vadd.f32 0.0, %v4824
        %v4826 = vpop.f32.mrf.mxu0
        %4827 = vmatprep.mubr.bf16.mxu0 0
        %4828 = vmatmul.mubr.bf16.gmra.mxu0 %v4713
        %v4829 = vpop.f32.mrf.mxu0
        %v4830 = vadd.f32 0.0, %v4829
        %v4831 = vpop.f32.mrf.mxu0
        %v4832 = vpop.f32.mrf.mxu0
        %v4833 = vadd.f32 0.0, %v4832
        %v4834 = vpop.f32.mrf.mxu0
        %4835 = vmatprep.mubr.bf16.mxu0 0
        %4836 = vmatmul.mubr.bf16.gmra.mxu0 %v4716
        %v4837 = vpop.f32.mrf.mxu0
        %v4838 = vadd.f32 0.0, %v4837
        %v4839 = vpop.f32.mrf.mxu0
        %v4840 = vpop.f32.mrf.mxu0
        %v4841 = vadd.f32 0.0, %v4840
        %v4842 = vpop.f32.mrf.mxu0
        %4843 = vmatprep.mubr.bf16.mxu0 0
        %4844 = vmatmul.mubr.bf16.gmra.mxu0 %v4719
        %v4845 = vpop.f32.mrf.mxu0
        %v4846 = vadd.f32 0.0, %v4845
        %v4847 = vpop.f32.mrf.mxu0
        %v4848 = vpop.f32.mrf.mxu0
        %v4849 = vadd.f32 0.0, %v4848
        %v4850 = vpop.f32.mrf.mxu0
        %4851 = vmatprep.mubr.bf16.mxu0 0
        %4852 = vmatmul.mubr.bf16.gmra.mxu0 %v4722
        %v4853 = vpop.f32.mrf.mxu0
        %v4854 = vadd.f32 0.0, %v4853
        %v4855 = vpop.f32.mrf.mxu0
        %v4856 = vpop.f32.mrf.mxu0
        %v4857 = vadd.f32 0.0, %v4856
        %v4858 = vpop.f32.mrf.mxu0
        %4859 = vmatprep.mubr.bf16.mxu0 0
        %4860 = vmatmul.mubr.bf16.gmra.mxu0 %v4725
        %v4861 = vpop.f32.mrf.mxu0
        %v4862 = vadd.f32 0.0, %v4861
        %v4863 = vpop.f32.mrf.mxu0
        %v4864 = vpop.f32.mrf.mxu0
        %v4865 = vadd.f32 0.0, %v4864
        %v4866 = vpop.f32.mrf.mxu0
        %4867 = vmatprep.mubr.bf16.mxu0 0
        %4868 = vmatmul.mubr.bf16.gmra.mxu0 %v4728
        %v4869 = vpop.f32.mrf.mxu0
        %v4870 = vadd.f32 0.0, %v4869
        %v4871 = vpop.f32.mrf.mxu0
        %v4872 = vpop.f32.mrf.mxu0
        %v4873 = vadd.f32 0.0, %v4872
        %v4874 = vpop.f32.mrf.mxu0
        %4875 = vmatprep.mubr.bf16.mxu0 0
        %4876 = vmatmul.mubr.bf16.gmra.mxu0 %v4731
        %v4877 = vpop.f32.mrf.mxu0
        %v4878 = vadd.f32 0.0, %v4877
        %v4879 = vpop.f32.mrf.mxu0
        %v4880 = vpop.f32.mrf.mxu0
        %v4881 = vadd.f32 0.0, %v4880
        %v4882 = vpop.f32.mrf.mxu0
        %4883 = vmatprep.mubr.bf16.mxu0 0
        %4884 = vmatmul.mubr.bf16.gmra.mxu0 %v4734
        %v4885 = vpop.f32.mrf.mxu0
        %v4886 = vadd.f32 0.0, %v4885
        %v4887 = vpop.f32.mrf.mxu0
        %v4888 = vpop.f32.mrf.mxu0
        %v4889 = vadd.f32 0.0, %v4888
        %v4890 = vpop.f32.mrf.mxu0
        %4891 = vmatprep.mubr.bf16.mxu0 0
        %4892 = vmatmul.mubr.bf16.gmra.mxu0 %v4737
        %v4893 = vpop.f32.mrf.mxu0
        %v4894 = vadd.f32 0.0, %v4893
        %v4895 = vpop.f32.mrf.mxu0
        %v4896 = vpop.f32.mrf.mxu0
        %v4897 = vadd.f32 0.0, %v4896
        %v4898 = vpop.f32.mrf.mxu0
        %4899 = vdwg.mxu0
        %v4900 = vld [vmem:[#allocation4] sm:$0xff]
        %v4901 = vld [vmem:[#allocation4 + $0x8] sm:$0xff]
        %v4902 = vld [vmem:[#allocation4 + $0x10] sm:$0xff]
        %v4903 = vld [vmem:[#allocation4 + $0x18] sm:$0xff]
        %v4904 = vld [vmem:[#allocation4 + $0x20] sm:$0xff]
        %v4905 = vld [vmem:[#allocation4 + $0x28] sm:$0xff]
        %v4906 = vld [vmem:[#allocation4 + $0x30] sm:$0xff]
        %v4907 = vld [vmem:[#allocation4 + $0x38] sm:$0xff]
        %v4908 = vld [vmem:[#allocation4 + $0x40] sm:$0xff]
        %v4909 = vld [vmem:[#allocation4 + $0x48] sm:$0xff]
        %v4910 = vld [vmem:[#allocation4 + $0x50] sm:$0xff]
        %v4911 = vld [vmem:[#allocation4 + $0x58] sm:$0xff]
        %v4912 = vld [vmem:[#allocation4 + $0x60] sm:$0xff]
        %v4913 = vld [vmem:[#allocation4 + $0x68] sm:$0xff]
        %v4914 = vld [vmem:[#allocation4 + $0x70] sm:$0xff]
        %v4915 = vld [vmem:[#allocation4 + $0x78] sm:$0xff]
        %v4916 = vld [vmem:[#allocation4 + $0x80] sm:$0xff]
        %v4917 = vld [vmem:[#allocation4 + $0x88] sm:$0xff]
        %v4918 = vld [vmem:[#allocation4 + $0x90] sm:$0xff]
        %v4919 = vld [vmem:[#allocation4 + $0x98] sm:$0xff]
        %v4920 = vld [vmem:[#allocation4 + $0xa0] sm:$0xff]
        %v4921 = vld [vmem:[#allocation4 + $0xa8] sm:$0xff]
        %v4922 = vld [vmem:[#allocation4 + $0xb0] sm:$0xff]
        %v4923 = vld [vmem:[#allocation4 + $0xb8] sm:$0xff]
        %v4924 = vld [vmem:[#allocation4 + $0xc0] sm:$0xff]
        %v4925 = vld [vmem:[#allocation4 + $0xc8] sm:$0xff]
        %v4926 = vld [vmem:[#allocation4 + $0xd0] sm:$0xff]
        %v4927 = vld [vmem:[#allocation4 + $0xd8] sm:$0xff]
        %v4928 = vld [vmem:[#allocation4 + $0xe0] sm:$0xff]
        %v4929 = vld [vmem:[#allocation4 + $0xe8] sm:$0xff]
        %v4930 = vld [vmem:[#allocation4 + $0xf0] sm:$0xff]
        %v4931 = vld [vmem:[#allocation4 + $0xf8] sm:$0xff]
        %v4932 = vadd.f32 %v4900, %v4774
        %v4933 = vadd.f32 %v4901, %v4777
        %v4934 = vadd.f32 %v4902, %v4782
        %v4935 = vadd.f32 %v4903, %v4785
        %v4936 = vadd.f32 %v4904, %v4790
        %v4937 = vadd.f32 %v4905, %v4793
        %v4938 = vadd.f32 %v4906, %v4798
        %v4939 = vadd.f32 %v4907, %v4801
        %v4940 = vadd.f32 %v4908, %v4806
        %v4941 = vadd.f32 %v4909, %v4809
        %v4942 = vadd.f32 %v4910, %v4814
        %v4943 = vadd.f32 %v4911, %v4817
        %v4944 = vadd.f32 %v4912, %v4822
        %v4945 = vadd.f32 %v4913, %v4825
        %v4946 = vadd.f32 %v4914, %v4830
        %v4947 = vadd.f32 %v4915, %v4833
        %v4948 = vadd.f32 %v4916, %v4838
        %v4949 = vadd.f32 %v4917, %v4841
        %v4950 = vadd.f32 %v4918, %v4846
        %v4951 = vadd.f32 %v4919, %v4849
        %v4952 = vadd.f32 %v4920, %v4854
        %v4953 = vadd.f32 %v4921, %v4857
        %v4954 = vadd.f32 %v4922, %v4862
        %v4955 = vadd.f32 %v4923, %v4865
        %v4956 = vadd.f32 %v4924, %v4870
        %v4957 = vadd.f32 %v4925, %v4873
        %v4958 = vadd.f32 %v4926, %v4878
        %v4959 = vadd.f32 %v4927, %v4881
        %v4960 = vadd.f32 %v4928, %v4886
        %v4961 = vadd.f32 %v4929, %v4889
        %v4962 = vadd.f32 %v4930, %v4894
        %v4963 = vadd.f32 %v4931, %v4897
        %4964 = vst [vmem:[#allocation4] sm:$0xff] %v4932
        %4965 = vst [vmem:[#allocation4 + $0x8] sm:$0xff] %v4933
        %4966 = vst [vmem:[#allocation4 + $0x10] sm:$0xff] %v4934
        %4967 = vst [vmem:[#allocation4 + $0x18] sm:$0xff] %v4935
        %4968 = vst [vmem:[#allocation4 + $0x20] sm:$0xff] %v4936
        %4969 = vst [vmem:[#allocation4 + $0x28] sm:$0xff] %v4937
        %4970 = vst [vmem:[#allocation4 + $0x30] sm:$0xff] %v4938
        %4971 = vst [vmem:[#allocation4 + $0x38] sm:$0xff] %v4939
        %4972 = vst [vmem:[#allocation4 + $0x40] sm:$0xff] %v4940
        %4973 = vst [vmem:[#allocation4 + $0x48] sm:$0xff] %v4941
        %4974 = vst [vmem:[#allocation4 + $0x50] sm:$0xff] %v4942
        %4975 = vst [vmem:[#allocation4 + $0x58] sm:$0xff] %v4943
        %4976 = vst [vmem:[#allocation4 + $0x60] sm:$0xff] %v4944
        %4977 = vst [vmem:[#allocation4 + $0x68] sm:$0xff] %v4945
        %4978 = vst [vmem:[#allocation4 + $0x70] sm:$0xff] %v4946
        %4979 = vst [vmem:[#allocation4 + $0x78] sm:$0xff] %v4947
        %4980 = vst [vmem:[#allocation4 + $0x80] sm:$0xff] %v4948
        %4981 = vst [vmem:[#allocation4 + $0x88] sm:$0xff] %v4949
        %4982 = vst [vmem:[#allocation4 + $0x90] sm:$0xff] %v4950
        %4983 = vst [vmem:[#allocation4 + $0x98] sm:$0xff] %v4951
        %4984 = vst [vmem:[#allocation4 + $0xa0] sm:$0xff] %v4952
        %4985 = vst [vmem:[#allocation4 + $0xa8] sm:$0xff] %v4953
        %4986 = vst [vmem:[#allocation4 + $0xb0] sm:$0xff] %v4954
        %4987 = vst [vmem:[#allocation4 + $0xb8] sm:$0xff] %v4955
        %4988 = vst [vmem:[#allocation4 + $0xc0] sm:$0xff] %v4956
        %4989 = vst [vmem:[#allocation4 + $0xc8] sm:$0xff] %v4957
        %4990 = vst [vmem:[#allocation4 + $0xd0] sm:$0xff] %v4958
        %4991 = vst [vmem:[#allocation4 + $0xd8] sm:$0xff] %v4959
        %4992 = vst [vmem:[#allocation4 + $0xe0] sm:$0xff] %v4960
        %4993 = vst [vmem:[#allocation4 + $0xe8] sm:$0xff] %v4961
        %4994 = vst [vmem:[#allocation4 + $0xf0] sm:$0xff] %v4962
        %4995 = vst [vmem:[#allocation4 + $0xf8] sm:$0xff] %v4963
        %s4996 = scalar_lea.vmem [#allocation2], 192
        %v4997 = vld [vmem:[%s4996] sm:$0xf]
        %v4998 = vld [vmem:[%s4996 + $0x4] sm:$0xf]
        %v4999 = vld [vmem:[%s4996 + $0x8] sm:$0xf]
        %v5000 = vld [vmem:[%s4996 + $0xc] sm:$0xf]
        %v5001 = vld [vmem:[%s4996 + $0x10] sm:$0xf]
        %v5002 = vld [vmem:[%s4996 + $0x14] sm:$0xf]
        %v5003 = vld [vmem:[%s4996 + $0x18] sm:$0xf]
        %v5004 = vld [vmem:[%s4996 + $0x1c] sm:$0xf]
        %v5005 = vld [vmem:[%s4996 + $0x20] sm:$0xf]
        %v5006 = vld [vmem:[%s4996 + $0x24] sm:$0xf]
        %v5007 = vld [vmem:[%s4996 + $0x28] sm:$0xf]
        %v5008 = vld [vmem:[%s4996 + $0x2c] sm:$0xf]
        %v5009 = vld [vmem:[%s4996 + $0x30] sm:$0xf]
        %v5010 = vld [vmem:[%s4996 + $0x34] sm:$0xf]
        %v5011 = vld [vmem:[%s4996 + $0x38] sm:$0xf]
        %v5012 = vld [vmem:[%s4996 + $0x3c] sm:$0xf]
        %v5029 = vunpack.c.l.b16 %v4997
        %v5030 = vunpack.c.l.b16 %v4998
        %v5031 = vunpack.c.l.b16 %v4999
        %v5032 = vunpack.c.l.b16 %v5000
        %v5033 = vunpack.c.l.b16 %v5001
        %v5034 = vunpack.c.l.b16 %v5002
        %v5035 = vunpack.c.l.b16 %v5003
        %v5036 = vunpack.c.l.b16 %v5004
        %v5037 = vunpack.c.l.b16 %v5005
        %v5038 = vunpack.c.l.b16 %v5006
        %v5039 = vunpack.c.l.b16 %v5007
        %v5040 = vunpack.c.l.b16 %v5008
        %v5041 = vunpack.c.l.b16 %v5009
        %v5042 = vunpack.c.l.b16 %v5010
        %v5043 = vunpack.c.l.b16 %v5011
        %v5044 = vunpack.c.l.b16 %v5012
        %v5045 = vpack.c.b16 %v5030, %v5029
        %v5046 = vpack.c.b16 %v5032, %v5031
        %v5047 = vpack.c.b16 %v5034, %v5033
        %v5048 = vpack.c.b16 %v5036, %v5035
        %v5049 = vpack.c.b16 %v5038, %v5037
        %v5050 = vpack.c.b16 %v5040, %v5039
        %v5051 = vpack.c.b16 %v5042, %v5041
        %v5052 = vpack.c.b16 %v5044, %v5043
        %5061 = vmatprep.subr.bf16.mxu0 0
        %5062 = vmatpush1.bf16.msra.mxu0 %v5052
        %5063 = vmatprep.subr.bf16.mxu0 0
        %5064 = vmatpush1.bf16.msra.mxu0 %v5051
        %5065 = vmatprep.subr.bf16.mxu0 0
        %5066 = vmatpush1.bf16.msra.mxu0 %v5050
        %5067 = vmatprep.subr.bf16.mxu0 0
        %5068 = vmatpush1.bf16.msra.mxu0 %v5049
        %5069 = vmatprep.subr.bf16.mxu0 0
        %5070 = vmatpush1.bf16.msra.mxu0 %v5048
        %5071 = vmatprep.subr.bf16.mxu0 0
        %5072 = vmatpush1.bf16.msra.mxu0 %v5047
        %5073 = vmatprep.subr.bf16.mxu0 0
        %5074 = vmatpush1.bf16.msra.mxu0 %v5046
        %5075 = vmatprep.subr.bf16.mxu0 0
        %5076 = vmatpush1.bf16.msra.mxu0 %v5045
        %5077 = vmatprep.subr.bf16.mxu0 0
        %5078 = vmatpush2.bf16.msra.mxu0 0
        %5079 = vmatprep.subr.bf16.mxu0 0
        %5080 = vmatpush2.bf16.msra.mxu0 0
        %5081 = vmatprep.subr.bf16.mxu0 0
        %5082 = vmatpush2.bf16.msra.mxu0 0
        %5083 = vmatprep.subr.bf16.mxu0 0
        %5084 = vmatpush2.bf16.msra.mxu0 0
        %5085 = vmatprep.subr.bf16.mxu0 0
        %5086 = vmatpush2.bf16.msra.mxu0 0
        %5087 = vmatprep.subr.bf16.mxu0 0
        %5088 = vmatpush2.bf16.msra.mxu0 0
        %5089 = vmatprep.subr.bf16.mxu0 0
        %5090 = vmatpush2.bf16.msra.mxu0 0
        %5091 = vmatprep.subr.bf16.mxu0 0
        %5092 = vmatpush2.bf16.msra.mxu0 0
        %5093 = vmatprep.mubr.bf16.mxu0 0
        %5094 = vmatmul.mubr.bf16.gmra.mxu0 %v2242
        %v5095 = vpop.f32.mrf.mxu0
        %v5096 = vadd.f32 0.0, %v5095
        %v5097 = vpop.f32.mrf.mxu0
        %v5098 = vpop.f32.mrf.mxu0
        %v5099 = vadd.f32 0.0, %v5098
        %v5100 = vpop.f32.mrf.mxu0
        %5101 = vmatprep.mubr.bf16.mxu0 0
        %5102 = vmatmul.mubr.bf16.gmra.mxu0 %v2243
        %v5103 = vpop.f32.mrf.mxu0
        %v5104 = vadd.f32 0.0, %v5103
        %v5105 = vpop.f32.mrf.mxu0
        %v5106 = vpop.f32.mrf.mxu0
        %v5107 = vadd.f32 0.0, %v5106
        %v5108 = vpop.f32.mrf.mxu0
        %5109 = vmatprep.mubr.bf16.mxu0 0
        %5110 = vmatmul.mubr.bf16.gmra.mxu0 %v2244
        %v5111 = vpop.f32.mrf.mxu0
        %v5112 = vadd.f32 0.0, %v5111
        %v5113 = vpop.f32.mrf.mxu0
        %v5114 = vpop.f32.mrf.mxu0
        %v5115 = vadd.f32 0.0, %v5114
        %v5116 = vpop.f32.mrf.mxu0
        %5117 = vmatprep.mubr.bf16.mxu0 0
        %5118 = vmatmul.mubr.bf16.gmra.mxu0 %v2245
        %v5119 = vpop.f32.mrf.mxu0
        %v5120 = vadd.f32 0.0, %v5119
        %v5121 = vpop.f32.mrf.mxu0
        %v5122 = vpop.f32.mrf.mxu0
        %v5123 = vadd.f32 0.0, %v5122
        %v5124 = vpop.f32.mrf.mxu0
        %5125 = vmatprep.mubr.bf16.mxu0 0
        %5126 = vmatmul.mubr.bf16.gmra.mxu0 %v2246
        %v5127 = vpop.f32.mrf.mxu0
        %v5128 = vadd.f32 0.0, %v5127
        %v5129 = vpop.f32.mrf.mxu0
        %v5130 = vpop.f32.mrf.mxu0
        %v5131 = vadd.f32 0.0, %v5130
        %v5132 = vpop.f32.mrf.mxu0
        %5133 = vmatprep.mubr.bf16.mxu0 0
        %5134 = vmatmul.mubr.bf16.gmra.mxu0 %v2247
        %v5135 = vpop.f32.mrf.mxu0
        %v5136 = vadd.f32 0.0, %v5135
        %v5137 = vpop.f32.mrf.mxu0
        %v5138 = vpop.f32.mrf.mxu0
        %v5139 = vadd.f32 0.0, %v5138
        %v5140 = vpop.f32.mrf.mxu0
        %5141 = vmatprep.mubr.bf16.mxu0 0
        %5142 = vmatmul.mubr.bf16.gmra.mxu0 %v2248
        %v5143 = vpop.f32.mrf.mxu0
        %v5144 = vadd.f32 0.0, %v5143
        %v5145 = vpop.f32.mrf.mxu0
        %v5146 = vpop.f32.mrf.mxu0
        %v5147 = vadd.f32 0.0, %v5146
        %v5148 = vpop.f32.mrf.mxu0
        %5149 = vmatprep.mubr.bf16.mxu0 0
        %5150 = vmatmul.mubr.bf16.gmra.mxu0 %v2249
        %v5151 = vpop.f32.mrf.mxu0
        %v5152 = vadd.f32 0.0, %v5151
        %v5153 = vpop.f32.mrf.mxu0
        %v5154 = vpop.f32.mrf.mxu0
        %v5155 = vadd.f32 0.0, %v5154
        %v5156 = vpop.f32.mrf.mxu0
        %5157 = vmatprep.mubr.bf16.mxu0 0
        %5158 = vmatmul.mubr.bf16.gmra.mxu0 %v2250
        %v5159 = vpop.f32.mrf.mxu0
        %v5160 = vadd.f32 0.0, %v5159
        %v5161 = vpop.f32.mrf.mxu0
        %v5162 = vpop.f32.mrf.mxu0
        %v5163 = vadd.f32 0.0, %v5162
        %v5164 = vpop.f32.mrf.mxu0
        %5165 = vmatprep.mubr.bf16.mxu0 0
        %5166 = vmatmul.mubr.bf16.gmra.mxu0 %v2251
        %v5167 = vpop.f32.mrf.mxu0
        %v5168 = vadd.f32 0.0, %v5167
        %v5169 = vpop.f32.mrf.mxu0
        %v5170 = vpop.f32.mrf.mxu0
        %v5171 = vadd.f32 0.0, %v5170
        %v5172 = vpop.f32.mrf.mxu0
        %5173 = vmatprep.mubr.bf16.mxu0 0
        %5174 = vmatmul.mubr.bf16.gmra.mxu0 %v2252
        %v5175 = vpop.f32.mrf.mxu0
        %v5176 = vadd.f32 0.0, %v5175
        %v5177 = vpop.f32.mrf.mxu0
        %v5178 = vpop.f32.mrf.mxu0
        %v5179 = vadd.f32 0.0, %v5178
        %v5180 = vpop.f32.mrf.mxu0
        %5181 = vmatprep.mubr.bf16.mxu0 0
        %5182 = vmatmul.mubr.bf16.gmra.mxu0 %v2253
        %v5183 = vpop.f32.mrf.mxu0
        %v5184 = vadd.f32 0.0, %v5183
        %v5185 = vpop.f32.mrf.mxu0
        %v5186 = vpop.f32.mrf.mxu0
        %v5187 = vadd.f32 0.0, %v5186
        %v5188 = vpop.f32.mrf.mxu0
        %5189 = vmatprep.mubr.bf16.mxu0 0
        %5190 = vmatmul.mubr.bf16.gmra.mxu0 %v2254
        %v5191 = vpop.f32.mrf.mxu0
        %v5192 = vadd.f32 0.0, %v5191
        %v5193 = vpop.f32.mrf.mxu0
        %v5194 = vpop.f32.mrf.mxu0
        %v5195 = vadd.f32 0.0, %v5194
        %v5196 = vpop.f32.mrf.mxu0
        %5197 = vmatprep.mubr.bf16.mxu0 0
        %5198 = vmatmul.mubr.bf16.gmra.mxu0 %v2255
        %v5199 = vpop.f32.mrf.mxu0
        %v5200 = vadd.f32 0.0, %v5199
        %v5201 = vpop.f32.mrf.mxu0
        %v5202 = vpop.f32.mrf.mxu0
        %v5203 = vadd.f32 0.0, %v5202
        %v5204 = vpop.f32.mrf.mxu0
        %5205 = vmatprep.mubr.bf16.mxu0 0
        %5206 = vmatmul.mubr.bf16.gmra.mxu0 %v2256
        %v5207 = vpop.f32.mrf.mxu0
        %v5208 = vadd.f32 0.0, %v5207
        %v5209 = vpop.f32.mrf.mxu0
        %v5210 = vpop.f32.mrf.mxu0
        %v5211 = vadd.f32 0.0, %v5210
        %v5212 = vpop.f32.mrf.mxu0
        %5213 = vmatprep.mubr.bf16.mxu0 0
        %5214 = vmatmul.mubr.bf16.gmra.mxu0 %v2257
        %v5215 = vpop.f32.mrf.mxu0
        %v5216 = vadd.f32 0.0, %v5215
        %v5217 = vpop.f32.mrf.mxu0
        %v5218 = vpop.f32.mrf.mxu0
        %v5219 = vadd.f32 0.0, %v5218
        %v5220 = vpop.f32.mrf.mxu0
        %5221 = vdwg.mxu0
        %v5222 = vsel %vm2483, %v5096, -inf
        %5223 = vmax.xlane.f32.xlu0 %v5222
        %v5224 = vpop.xlane.xlu0 %5223
        %v5225 = vsel %vm2483, %v5099, -inf
        %5226 = vmax.xlane.f32.xlu0 %v5225
        %v5227 = vpop.xlane.xlu0 %5226
        %v5228 = vsel %vm2483, %v5104, -inf
        %5229 = vmax.xlane.f32.xlu0 %v5228
        %v5230 = vpop.xlane.xlu0 %5229
        %v5231 = vsel %vm2483, %v5107, -inf
        %5232 = vmax.xlane.f32.xlu0 %v5231
        %v5233 = vpop.xlane.xlu0 %5232
        %v5234 = vsel %vm2483, %v5112, -inf
        %5235 = vmax.xlane.f32.xlu0 %v5234
        %v5236 = vpop.xlane.xlu0 %5235
        %v5237 = vsel %vm2483, %v5115, -inf
        %5238 = vmax.xlane.f32.xlu0 %v5237
        %v5239 = vpop.xlane.xlu0 %5238
        %v5240 = vsel %vm2483, %v5120, -inf
        %5241 = vmax.xlane.f32.xlu0 %v5240
        %v5242 = vpop.xlane.xlu0 %5241
        %v5243 = vsel %vm2483, %v5123, -inf
        %5244 = vmax.xlane.f32.xlu0 %v5243
        %v5245 = vpop.xlane.xlu0 %5244
        %v5246 = vsel %vm2483, %v5128, -inf
        %5247 = vmax.xlane.f32.xlu0 %v5246
        %v5248 = vpop.xlane.xlu0 %5247
        %v5249 = vsel %vm2483, %v5131, -inf
        %5250 = vmax.xlane.f32.xlu0 %v5249
        %v5251 = vpop.xlane.xlu0 %5250
        %v5252 = vsel %vm2483, %v5136, -inf
        %5253 = vmax.xlane.f32.xlu0 %v5252
        %v5254 = vpop.xlane.xlu0 %5253
        %v5255 = vsel %vm2483, %v5139, -inf
        %5256 = vmax.xlane.f32.xlu0 %v5255
        %v5257 = vpop.xlane.xlu0 %5256
        %v5258 = vsel %vm2483, %v5144, -inf
        %5259 = vmax.xlane.f32.xlu0 %v5258
        %v5260 = vpop.xlane.xlu0 %5259
        %v5261 = vsel %vm2483, %v5147, -inf
        %5262 = vmax.xlane.f32.xlu0 %v5261
        %v5263 = vpop.xlane.xlu0 %5262
        %v5264 = vsel %vm2483, %v5152, -inf
        %5265 = vmax.xlane.f32.xlu0 %v5264
        %v5266 = vpop.xlane.xlu0 %5265
        %v5267 = vsel %vm2483, %v5155, -inf
        %5268 = vmax.xlane.f32.xlu0 %v5267
        %v5269 = vpop.xlane.xlu0 %5268
        %v5270 = vsel %vm2483, %v5160, -inf
        %5271 = vmax.xlane.f32.xlu0 %v5270
        %v5272 = vpop.xlane.xlu0 %5271
        %v5273 = vsel %vm2483, %v5163, -inf
        %5274 = vmax.xlane.f32.xlu0 %v5273
        %v5275 = vpop.xlane.xlu0 %5274
        %v5276 = vsel %vm2483, %v5168, -inf
        %5277 = vmax.xlane.f32.xlu0 %v5276
        %v5278 = vpop.xlane.xlu0 %5277
        %v5279 = vsel %vm2483, %v5171, -inf
        %5280 = vmax.xlane.f32.xlu0 %v5279
        %v5281 = vpop.xlane.xlu0 %5280
        %v5282 = vsel %vm2483, %v5176, -inf
        %5283 = vmax.xlane.f32.xlu0 %v5282
        %v5284 = vpop.xlane.xlu0 %5283
        %v5285 = vsel %vm2483, %v5179, -inf
        %5286 = vmax.xlane.f32.xlu0 %v5285
        %v5287 = vpop.xlane.xlu0 %5286
        %v5288 = vsel %vm2483, %v5184, -inf
        %5289 = vmax.xlane.f32.xlu0 %v5288
        %v5290 = vpop.xlane.xlu0 %5289
        %v5291 = vsel %vm2483, %v5187, -inf
        %5292 = vmax.xlane.f32.xlu0 %v5291
        %v5293 = vpop.xlane.xlu0 %5292
        %v5294 = vsel %vm2483, %v5192, -inf
        %5295 = vmax.xlane.f32.xlu0 %v5294
        %v5296 = vpop.xlane.xlu0 %5295
        %v5297 = vsel %vm2483, %v5195, -inf
        %5298 = vmax.xlane.f32.xlu0 %v5297
        %v5299 = vpop.xlane.xlu0 %5298
        %v5300 = vsel %vm2483, %v5200, -inf
        %5301 = vmax.xlane.f32.xlu0 %v5300
        %v5302 = vpop.xlane.xlu0 %5301
        %v5303 = vsel %vm2483, %v5203, -inf
        %5304 = vmax.xlane.f32.xlu0 %v5303
        %v5305 = vpop.xlane.xlu0 %5304
        %v5306 = vsel %vm2483, %v5208, -inf
        %5307 = vmax.xlane.f32.xlu0 %v5306
        %v5308 = vpop.xlane.xlu0 %5307
        %v5309 = vsel %vm2483, %v5211, -inf
        %5310 = vmax.xlane.f32.xlu0 %v5309
        %v5311 = vpop.xlane.xlu0 %5310
        %v5312 = vsel %vm2483, %v5216, -inf
        %5313 = vmax.xlane.f32.xlu0 %v5312
        %v5314 = vpop.xlane.xlu0 %5313
        %v5315 = vsel %vm2483, %v5219, -inf
        %5316 = vmax.xlane.f32.xlu0 %v5315
        %v5317 = vpop.xlane.xlu0 %5316
        %v5318 = vsub.f32 %v5096, %v5224
        %v5319 = vsub.f32 %v5099, %v5227
        %v5320 = vsub.f32 %v5104, %v5230
        %v5321 = vsub.f32 %v5107, %v5233
        %v5322 = vsub.f32 %v5112, %v5236
        %v5323 = vsub.f32 %v5115, %v5239
        %v5324 = vsub.f32 %v5120, %v5242
        %v5325 = vsub.f32 %v5123, %v5245
        %v5326 = vsub.f32 %v5128, %v5248
        %v5327 = vsub.f32 %v5131, %v5251
        %v5328 = vsub.f32 %v5136, %v5254
        %v5329 = vsub.f32 %v5139, %v5257
        %v5330 = vsub.f32 %v5144, %v5260
        %v5331 = vsub.f32 %v5147, %v5263
        %v5332 = vsub.f32 %v5152, %v5266
        %v5333 = vsub.f32 %v5155, %v5269
        %v5334 = vsub.f32 %v5160, %v5272
        %v5335 = vsub.f32 %v5163, %v5275
        %v5336 = vsub.f32 %v5168, %v5278
        %v5337 = vsub.f32 %v5171, %v5281
        %v5338 = vsub.f32 %v5176, %v5284
        %v5339 = vsub.f32 %v5179, %v5287
        %v5340 = vsub.f32 %v5184, %v5290
        %v5341 = vsub.f32 %v5187, %v5293
        %v5342 = vsub.f32 %v5192, %v5296
        %v5343 = vsub.f32 %v5195, %v5299
        %v5344 = vsub.f32 %v5200, %v5302
        %v5345 = vsub.f32 %v5203, %v5305
        %v5346 = vsub.f32 %v5208, %v5308
        %v5347 = vsub.f32 %v5211, %v5311
        %v5348 = vsub.f32 %v5216, %v5314
        %v5349 = vsub.f32 %v5219, %v5317
        %v5350 = vmul.f32 %v5318, 1.442695
        %v5351 = vpow.pop %v5350
        %v5352 = vmul.f32 %v5319, 1.442695
        %v5353 = vpow.pop %v5352
        %v5354 = vmul.f32 %v5320, 1.442695
        %v5355 = vpow.pop %v5354
        %v5356 = vmul.f32 %v5321, 1.442695
        %v5357 = vpow.pop %v5356
        %v5358 = vmul.f32 %v5322, 1.442695
        %v5359 = vpow.pop %v5358
        %v5360 = vmul.f32 %v5323, 1.442695
        %v5361 = vpow.pop %v5360
        %v5362 = vmul.f32 %v5324, 1.442695
        %v5363 = vpow.pop %v5362
        %v5364 = vmul.f32 %v5325, 1.442695
        %v5365 = vpow.pop %v5364
        %v5366 = vmul.f32 %v5326, 1.442695
        %v5367 = vpow.pop %v5366
        %v5368 = vmul.f32 %v5327, 1.442695
        %v5369 = vpow.pop %v5368
        %v5370 = vmul.f32 %v5328, 1.442695
        %v5371 = vpow.pop %v5370
        %v5372 = vmul.f32 %v5329, 1.442695
        %v5373 = vpow.pop %v5372
        %v5374 = vmul.f32 %v5330, 1.442695
        %v5375 = vpow.pop %v5374
        %v5376 = vmul.f32 %v5331, 1.442695
        %v5377 = vpow.pop %v5376
        %v5378 = vmul.f32 %v5332, 1.442695
        %v5379 = vpow.pop %v5378
        %v5380 = vmul.f32 %v5333, 1.442695
        %v5381 = vpow.pop %v5380
        %v5382 = vmul.f32 %v5334, 1.442695
        %v5383 = vpow.pop %v5382
        %v5384 = vmul.f32 %v5335, 1.442695
        %v5385 = vpow.pop %v5384
        %v5386 = vmul.f32 %v5336, 1.442695
        %v5387 = vpow.pop %v5386
        %v5388 = vmul.f32 %v5337, 1.442695
        %v5389 = vpow.pop %v5388
        %v5390 = vmul.f32 %v5338, 1.442695
        %v5391 = vpow.pop %v5390
        %v5392 = vmul.f32 %v5339, 1.442695
        %v5393 = vpow.pop %v5392
        %v5394 = vmul.f32 %v5340, 1.442695
        %v5395 = vpow.pop %v5394
        %v5396 = vmul.f32 %v5341, 1.442695
        %v5397 = vpow.pop %v5396
        %v5398 = vmul.f32 %v5342, 1.442695
        %v5399 = vpow.pop %v5398
        %v5400 = vmul.f32 %v5343, 1.442695
        %v5401 = vpow.pop %v5400
        %v5402 = vmul.f32 %v5344, 1.442695
        %v5403 = vpow.pop %v5402
        %v5404 = vmul.f32 %v5345, 1.442695
        %v5405 = vpow.pop %v5404
        %v5406 = vmul.f32 %v5346, 1.442695
        %v5407 = vpow.pop %v5406
        %v5408 = vmul.f32 %v5347, 1.442695
        %v5409 = vpow.pop %v5408
        %v5410 = vmul.f32 %v5348, 1.442695
        %v5411 = vpow.pop %v5410
        %v5412 = vmul.f32 %v5349, 1.442695
        %v5413 = vpow.pop %v5412
        %v5414 = vsel %vm2483, %v5351, 0.0
        %5415 = vadd.xlane.f32.xlu0 %v5414
        %v5416 = vpop.xlane.xlu0 %5415
        %v5417 = vsel %vm2483, %v5353, 0.0
        %5418 = vadd.xlane.f32.xlu0 %v5417
        %v5419 = vpop.xlane.xlu0 %5418
        %v5420 = vsel %vm2483, %v5355, 0.0
        %5421 = vadd.xlane.f32.xlu0 %v5420
        %v5422 = vpop.xlane.xlu0 %5421
        %v5423 = vsel %vm2483, %v5357, 0.0
        %5424 = vadd.xlane.f32.xlu0 %v5423
        %v5425 = vpop.xlane.xlu0 %5424
        %v5426 = vsel %vm2483, %v5359, 0.0
        %5427 = vadd.xlane.f32.xlu0 %v5426
        %v5428 = vpop.xlane.xlu0 %5427
        %v5429 = vsel %vm2483, %v5361, 0.0
        %5430 = vadd.xlane.f32.xlu0 %v5429
        %v5431 = vpop.xlane.xlu0 %5430
        %v5432 = vsel %vm2483, %v5363, 0.0
        %5433 = vadd.xlane.f32.xlu0 %v5432
        %v5434 = vpop.xlane.xlu0 %5433
        %v5435 = vsel %vm2483, %v5365, 0.0
        %5436 = vadd.xlane.f32.xlu0 %v5435
        %v5437 = vpop.xlane.xlu0 %5436
        %v5438 = vsel %vm2483, %v5367, 0.0
        %5439 = vadd.xlane.f32.xlu0 %v5438
        %v5440 = vpop.xlane.xlu0 %5439
        %v5441 = vsel %vm2483, %v5369, 0.0
        %5442 = vadd.xlane.f32.xlu0 %v5441
        %v5443 = vpop.xlane.xlu0 %5442
        %v5444 = vsel %vm2483, %v5371, 0.0
        %5445 = vadd.xlane.f32.xlu0 %v5444
        %v5446 = vpop.xlane.xlu0 %5445
        %v5447 = vsel %vm2483, %v5373, 0.0
        %5448 = vadd.xlane.f32.xlu0 %v5447
        %v5449 = vpop.xlane.xlu0 %5448
        %v5450 = vsel %vm2483, %v5375, 0.0
        %5451 = vadd.xlane.f32.xlu0 %v5450
        %v5452 = vpop.xlane.xlu0 %5451
        %v5453 = vsel %vm2483, %v5377, 0.0
        %5454 = vadd.xlane.f32.xlu0 %v5453
        %v5455 = vpop.xlane.xlu0 %5454
        %v5456 = vsel %vm2483, %v5379, 0.0
        %5457 = vadd.xlane.f32.xlu0 %v5456
        %v5458 = vpop.xlane.xlu0 %5457
        %v5459 = vsel %vm2483, %v5381, 0.0
        %5460 = vadd.xlane.f32.xlu0 %v5459
        %v5461 = vpop.xlane.xlu0 %5460
        %v5462 = vsel %vm2483, %v5383, 0.0
        %5463 = vadd.xlane.f32.xlu0 %v5462
        %v5464 = vpop.xlane.xlu0 %5463
        %v5465 = vsel %vm2483, %v5385, 0.0
        %5466 = vadd.xlane.f32.xlu0 %v5465
        %v5467 = vpop.xlane.xlu0 %5466
        %v5468 = vsel %vm2483, %v5387, 0.0
        %5469 = vadd.xlane.f32.xlu0 %v5468
        %v5470 = vpop.xlane.xlu0 %5469
        %v5471 = vsel %vm2483, %v5389, 0.0
        %5472 = vadd.xlane.f32.xlu0 %v5471
        %v5473 = vpop.xlane.xlu0 %5472
        %v5474 = vsel %vm2483, %v5391, 0.0
        %5475 = vadd.xlane.f32.xlu0 %v5474
        %v5476 = vpop.xlane.xlu0 %5475
        %v5477 = vsel %vm2483, %v5393, 0.0
        %5478 = vadd.xlane.f32.xlu0 %v5477
        %v5479 = vpop.xlane.xlu0 %5478
        %v5480 = vsel %vm2483, %v5395, 0.0
        %5481 = vadd.xlane.f32.xlu0 %v5480
        %v5482 = vpop.xlane.xlu0 %5481
        %v5483 = vsel %vm2483, %v5397, 0.0
        %5484 = vadd.xlane.f32.xlu0 %v5483
        %v5485 = vpop.xlane.xlu0 %5484
        %v5486 = vsel %vm2483, %v5399, 0.0
        %5487 = vadd.xlane.f32.xlu0 %v5486
        %v5488 = vpop.xlane.xlu0 %5487
        %v5489 = vsel %vm2483, %v5401, 0.0
        %5490 = vadd.xlane.f32.xlu0 %v5489
        %v5491 = vpop.xlane.xlu0 %5490
        %v5492 = vsel %vm2483, %v5403, 0.0
        %5493 = vadd.xlane.f32.xlu0 %v5492
        %v5494 = vpop.xlane.xlu0 %5493
        %v5495 = vsel %vm2483, %v5405, 0.0
        %5496 = vadd.xlane.f32.xlu0 %v5495
        %v5497 = vpop.xlane.xlu0 %5496
        %v5498 = vsel %vm2483, %v5407, 0.0
        %5499 = vadd.xlane.f32.xlu0 %v5498
        %v5500 = vpop.xlane.xlu0 %5499
        %v5501 = vsel %vm2483, %v5409, 0.0
        %5502 = vadd.xlane.f32.xlu0 %v5501
        %v5503 = vpop.xlane.xlu0 %5502
        %v5504 = vsel %vm2483, %v5411, 0.0
        %5505 = vadd.xlane.f32.xlu0 %v5504
        %v5506 = vpop.xlane.xlu0 %5505
        %v5507 = vsel %vm2483, %v5413, 0.0
        %5508 = vadd.xlane.f32.xlu0 %v5507
        %v5509 = vpop.xlane.xlu0 %5508
        %v5510 = vrcp.pop %v5416
        %v5511 = vrcp.pop %v5419
        %v5512 = vrcp.pop %v5422
        %v5513 = vrcp.pop %v5425
        %v5514 = vrcp.pop %v5428
        %v5515 = vrcp.pop %v5431
        %v5516 = vrcp.pop %v5434
        %v5517 = vrcp.pop %v5437
        %v5518 = vrcp.pop %v5440
        %v5519 = vrcp.pop %v5443
        %v5520 = vrcp.pop %v5446
        %v5521 = vrcp.pop %v5449
        %v5522 = vrcp.pop %v5452
        %v5523 = vrcp.pop %v5455
        %v5524 = vrcp.pop %v5458
        %v5525 = vrcp.pop %v5461
        %v5526 = vrcp.pop %v5464
        %v5527 = vrcp.pop %v5467
        %v5528 = vrcp.pop %v5470
        %v5529 = vrcp.pop %v5473
        %v5530 = vrcp.pop %v5476
        %v5531 = vrcp.pop %v5479
        %v5532 = vrcp.pop %v5482
        %v5533 = vrcp.pop %v5485
        %v5534 = vrcp.pop %v5488
        %v5535 = vrcp.pop %v5491
        %v5536 = vrcp.pop %v5494
        %v5537 = vrcp.pop %v5497
        %v5538 = vrcp.pop %v5500
        %v5539 = vrcp.pop %v5503
        %v5540 = vrcp.pop %v5506
        %v5541 = vrcp.pop %v5509
        %v5542 = vmul.f32 %v5351, %v5510
        %v5543 = vmul.f32 %v5353, %v5511
        %v5544 = vmul.f32 %v5355, %v5512
        %v5545 = vmul.f32 %v5357, %v5513
        %v5546 = vmul.f32 %v5359, %v5514
        %v5547 = vmul.f32 %v5361, %v5515
        %v5548 = vmul.f32 %v5363, %v5516
        %v5549 = vmul.f32 %v5365, %v5517
        %v5550 = vmul.f32 %v5367, %v5518
        %v5551 = vmul.f32 %v5369, %v5519
        %v5552 = vmul.f32 %v5371, %v5520
        %v5553 = vmul.f32 %v5373, %v5521
        %v5554 = vmul.f32 %v5375, %v5522
        %v5555 = vmul.f32 %v5377, %v5523
        %v5556 = vmul.f32 %v5379, %v5524
        %v5557 = vmul.f32 %v5381, %v5525
        %v5558 = vmul.f32 %v5383, %v5526
        %v5559 = vmul.f32 %v5385, %v5527
        %v5560 = vmul.f32 %v5387, %v5528
        %v5561 = vmul.f32 %v5389, %v5529
        %v5562 = vmul.f32 %v5391, %v5530
        %v5563 = vmul.f32 %v5393, %v5531
        %v5564 = vmul.f32 %v5395, %v5532
        %v5565 = vmul.f32 %v5397, %v5533
        %v5566 = vmul.f32 %v5399, %v5534
        %v5567 = vmul.f32 %v5401, %v5535
        %v5568 = vmul.f32 %v5403, %v5536
        %v5569 = vmul.f32 %v5405, %v5537
        %v5570 = vmul.f32 %v5407, %v5538
        %v5571 = vmul.f32 %v5409, %v5539
        %v5572 = vmul.f32 %v5411, %v5540
        %v5573 = vmul.f32 %v5413, %v5541
        %v5574 = vpack.c.bf16 %v5543, %v5542
        %v5575 = vpack.c.bf16 %v5545, %v5544
        %v5576 = vpack.c.bf16 %v5547, %v5546
        %v5577 = vpack.c.bf16 %v5549, %v5548
        %v5578 = vpack.c.bf16 %v5551, %v5550
        %v5579 = vpack.c.bf16 %v5553, %v5552
        %v5580 = vpack.c.bf16 %v5555, %v5554
        %v5581 = vpack.c.bf16 %v5557, %v5556
        %v5582 = vpack.c.bf16 %v5559, %v5558
        %v5583 = vpack.c.bf16 %v5561, %v5560
        %v5584 = vpack.c.bf16 %v5563, %v5562
        %v5585 = vpack.c.bf16 %v5565, %v5564
        %v5586 = vpack.c.bf16 %v5567, %v5566
        %v5587 = vpack.c.bf16 %v5569, %v5568
        %v5588 = vpack.c.bf16 %v5571, %v5570
        %v5589 = vpack.c.bf16 %v5573, %v5572
        %s5590 = scalar_lea.vmem [#allocation3], 96
        %v5591 = vld [vmem:[%s5590] sm:$0xf]
        %v5592 = vld [vmem:[%s5590 + $0x4] sm:$0xf]
        %v5593 = vld [vmem:[%s5590 + $0x8] sm:$0xf]
        %v5594 = vld [vmem:[%s5590 + $0xc] sm:$0xf]
        %v5595 = vld [vmem:[%s5590 + $0x10] sm:$0xf]
        %v5596 = vld [vmem:[%s5590 + $0x14] sm:$0xf]
        %v5597 = vld [vmem:[%s5590 + $0x18] sm:$0xf]
        %v5598 = vld [vmem:[%s5590 + $0x1c] sm:$0xf]
        %v5607 = vunpack.c.l.b16 %v5591
        %v5608 = vunpack.c.l.b16 %v5592
        %v5609 = vunpack.c.l.b16 %v5593
        %v5610 = vunpack.c.l.b16 %v5594
        %v5611 = vunpack.c.l.b16 %v5595
        %v5612 = vunpack.c.l.b16 %v5596
        %v5613 = vunpack.c.l.b16 %v5597
        %v5614 = vunpack.c.l.b16 %v5598
        %v5615 = vpack.c.b16 %v5608, %v5607
        %v5616 = vpack.c.b16 %v5610, %v5609
        %v5617 = vpack.c.b16 %v5612, %v5611
        %v5618 = vpack.c.b16 %v5614, %v5613
        %v5624 = vsel %vm2483, %v5574, 0
        %v5627 = vsel %vm2483, %v5575, 0
        %v5630 = vsel %vm2483, %v5576, 0
        %v5633 = vsel %vm2483, %v5577, 0
        %v5636 = vsel %vm2483, %v5578, 0
        %v5639 = vsel %vm2483, %v5579, 0
        %v5642 = vsel %vm2483, %v5580, 0
        %v5645 = vsel %vm2483, %v5581, 0
        %v5648 = vsel %vm2483, %v5582, 0
        %v5651 = vsel %vm2483, %v5583, 0
        %v5654 = vsel %vm2483, %v5584, 0
        %v5657 = vsel %vm2483, %v5585, 0
        %v5660 = vsel %vm2483, %v5586, 0
        %v5663 = vsel %vm2483, %v5587, 0
        %v5666 = vsel %vm2483, %v5588, 0
        %v5669 = vsel %vm2483, %v5589, 0
        %5671 = vmatprep.subr.bf16.mxu0 0
        %5672 = vmatpush1.bf16.msra.mxu0 0
        %5673 = vmatprep.subr.bf16.mxu0 0
        %5674 = vmatpush1.bf16.msra.mxu0 0
        %5675 = vmatprep.subr.bf16.mxu0 0
        %5676 = vmatpush1.bf16.msra.mxu0 0
        %5677 = vmatprep.subr.bf16.mxu0 0
        %5678 = vmatpush1.bf16.msra.mxu0 0
        %5679 = vmatprep.subr.bf16.mxu0 0
        %5680 = vmatpush1.bf16.msra.mxu0 %v5618
        %5681 = vmatprep.subr.bf16.mxu0 0
        %5682 = vmatpush1.bf16.msra.mxu0 %v5617
        %5683 = vmatprep.subr.bf16.mxu0 0
        %5684 = vmatpush1.bf16.msra.mxu0 %v5616
        %5685 = vmatprep.subr.bf16.mxu0 0
        %5686 = vmatpush1.bf16.msra.mxu0 %v5615
        %5687 = vmatprep.subr.bf16.mxu0 0
        %5688 = vmatpush2.bf16.msra.mxu0 0
        %5689 = vmatprep.subr.bf16.mxu0 0
        %5690 = vmatpush2.bf16.msra.mxu0 0
        %5691 = vmatprep.subr.bf16.mxu0 0
        %5692 = vmatpush2.bf16.msra.mxu0 0
        %5693 = vmatprep.subr.bf16.mxu0 0
        %5694 = vmatpush2.bf16.msra.mxu0 0
        %5695 = vmatprep.subr.bf16.mxu0 0
        %5696 = vmatpush2.bf16.msra.mxu0 0
        %5697 = vmatprep.subr.bf16.mxu0 0
        %5698 = vmatpush2.bf16.msra.mxu0 0
        %5699 = vmatprep.subr.bf16.mxu0 0
        %5700 = vmatpush2.bf16.msra.mxu0 0
        %5701 = vmatprep.subr.bf16.mxu0 0
        %5702 = vmatpush2.bf16.msra.mxu0 0
        %5703 = vmatprep.mubr.bf16.mxu0 0
        %5704 = vmatmul.mubr.bf16.gmra.mxu0 %v5624
        %v5705 = vpop.f32.mrf.mxu0
        %v5706 = vadd.f32 0.0, %v5705
        %v5707 = vpop.f32.mrf.mxu0
        %v5708 = vpop.f32.mrf.mxu0
        %v5709 = vadd.f32 0.0, %v5708
        %v5710 = vpop.f32.mrf.mxu0
        %5711 = vmatprep.mubr.bf16.mxu0 0
        %5712 = vmatmul.mubr.bf16.gmra.mxu0 %v5627
        %v5713 = vpop.f32.mrf.mxu0
        %v5714 = vadd.f32 0.0, %v5713
        %v5715 = vpop.f32.mrf.mxu0
        %v5716 = vpop.f32.mrf.mxu0
        %v5717 = vadd.f32 0.0, %v5716
        %v5718 = vpop.f32.mrf.mxu0
        %5719 = vmatprep.mubr.bf16.mxu0 0
        %5720 = vmatmul.mubr.bf16.gmra.mxu0 %v5630
        %v5721 = vpop.f32.mrf.mxu0
        %v5722 = vadd.f32 0.0, %v5721
        %v5723 = vpop.f32.mrf.mxu0
        %v5724 = vpop.f32.mrf.mxu0
        %v5725 = vadd.f32 0.0, %v5724
        %v5726 = vpop.f32.mrf.mxu0
        %5727 = vmatprep.mubr.bf16.mxu0 0
        %5728 = vmatmul.mubr.bf16.gmra.mxu0 %v5633
        %v5729 = vpop.f32.mrf.mxu0
        %v5730 = vadd.f32 0.0, %v5729
        %v5731 = vpop.f32.mrf.mxu0
        %v5732 = vpop.f32.mrf.mxu0
        %v5733 = vadd.f32 0.0, %v5732
        %v5734 = vpop.f32.mrf.mxu0
        %5735 = vmatprep.mubr.bf16.mxu0 0
        %5736 = vmatmul.mubr.bf16.gmra.mxu0 %v5636
        %v5737 = vpop.f32.mrf.mxu0
        %v5738 = vadd.f32 0.0, %v5737
        %v5739 = vpop.f32.mrf.mxu0
        %v5740 = vpop.f32.mrf.mxu0
        %v5741 = vadd.f32 0.0, %v5740
        %v5742 = vpop.f32.mrf.mxu0
        %5743 = vmatprep.mubr.bf16.mxu0 0
        %5744 = vmatmul.mubr.bf16.gmra.mxu0 %v5639
        %v5745 = vpop.f32.mrf.mxu0
        %v5746 = vadd.f32 0.0, %v5745
        %v5747 = vpop.f32.mrf.mxu0
        %v5748 = vpop.f32.mrf.mxu0
        %v5749 = vadd.f32 0.0, %v5748
        %v5750 = vpop.f32.mrf.mxu0
        %5751 = vmatprep.mubr.bf16.mxu0 0
        %5752 = vmatmul.mubr.bf16.gmra.mxu0 %v5642
        %v5753 = vpop.f32.mrf.mxu0
        %v5754 = vadd.f32 0.0, %v5753
        %v5755 = vpop.f32.mrf.mxu0
        %v5756 = vpop.f32.mrf.mxu0
        %v5757 = vadd.f32 0.0, %v5756
        %v5758 = vpop.f32.mrf.mxu0
        %5759 = vmatprep.mubr.bf16.mxu0 0
        %5760 = vmatmul.mubr.bf16.gmra.mxu0 %v5645
        %v5761 = vpop.f32.mrf.mxu0
        %v5762 = vadd.f32 0.0, %v5761
        %v5763 = vpop.f32.mrf.mxu0
        %v5764 = vpop.f32.mrf.mxu0
        %v5765 = vadd.f32 0.0, %v5764
        %v5766 = vpop.f32.mrf.mxu0
        %5767 = vmatprep.mubr.bf16.mxu0 0
        %5768 = vmatmul.mubr.bf16.gmra.mxu0 %v5648
        %v5769 = vpop.f32.mrf.mxu0
        %v5770 = vadd.f32 0.0, %v5769
        %v5771 = vpop.f32.mrf.mxu0
        %v5772 = vpop.f32.mrf.mxu0
        %v5773 = vadd.f32 0.0, %v5772
        %v5774 = vpop.f32.mrf.mxu0
        %5775 = vmatprep.mubr.bf16.mxu0 0
        %5776 = vmatmul.mubr.bf16.gmra.mxu0 %v5651
        %v5777 = vpop.f32.mrf.mxu0
        %v5778 = vadd.f32 0.0, %v5777
        %v5779 = vpop.f32.mrf.mxu0
        %v5780 = vpop.f32.mrf.mxu0
        %v5781 = vadd.f32 0.0, %v5780
        %v5782 = vpop.f32.mrf.mxu0
        %5783 = vmatprep.mubr.bf16.mxu0 0
        %5784 = vmatmul.mubr.bf16.gmra.mxu0 %v5654
        %v5785 = vpop.f32.mrf.mxu0
        %v5786 = vadd.f32 0.0, %v5785
        %v5787 = vpop.f32.mrf.mxu0
        %v5788 = vpop.f32.mrf.mxu0
        %v5789 = vadd.f32 0.0, %v5788
        %v5790 = vpop.f32.mrf.mxu0
        %5791 = vmatprep.mubr.bf16.mxu0 0
        %5792 = vmatmul.mubr.bf16.gmra.mxu0 %v5657
        %v5793 = vpop.f32.mrf.mxu0
        %v5794 = vadd.f32 0.0, %v5793
        %v5795 = vpop.f32.mrf.mxu0
        %v5796 = vpop.f32.mrf.mxu0
        %v5797 = vadd.f32 0.0, %v5796
        %v5798 = vpop.f32.mrf.mxu0
        %5799 = vmatprep.mubr.bf16.mxu0 0
        %5800 = vmatmul.mubr.bf16.gmra.mxu0 %v5660
        %v5801 = vpop.f32.mrf.mxu0
        %v5802 = vadd.f32 0.0, %v5801
        %v5803 = vpop.f32.mrf.mxu0
        %v5804 = vpop.f32.mrf.mxu0
        %v5805 = vadd.f32 0.0, %v5804
        %v5806 = vpop.f32.mrf.mxu0
        %5807 = vmatprep.mubr.bf16.mxu0 0
        %5808 = vmatmul.mubr.bf16.gmra.mxu0 %v5663
        %v5809 = vpop.f32.mrf.mxu0
        %v5810 = vadd.f32 0.0, %v5809
        %v5811 = vpop.f32.mrf.mxu0
        %v5812 = vpop.f32.mrf.mxu0
        %v5813 = vadd.f32 0.0, %v5812
        %v5814 = vpop.f32.mrf.mxu0
        %5815 = vmatprep.mubr.bf16.mxu0 0
        %5816 = vmatmul.mubr.bf16.gmra.mxu0 %v5666
        %v5817 = vpop.f32.mrf.mxu0
        %v5818 = vadd.f32 0.0, %v5817
        %v5819 = vpop.f32.mrf.mxu0
        %v5820 = vpop.f32.mrf.mxu0
        %v5821 = vadd.f32 0.0, %v5820
        %v5822 = vpop.f32.mrf.mxu0
        %5823 = vmatprep.mubr.bf16.mxu0 0
        %5824 = vmatmul.mubr.bf16.gmra.mxu0 %v5669
        %v5825 = vpop.f32.mrf.mxu0
        %v5826 = vadd.f32 0.0, %v5825
        %v5827 = vpop.f32.mrf.mxu0
        %v5828 = vpop.f32.mrf.mxu0
        %v5829 = vadd.f32 0.0, %v5828
        %v5830 = vpop.f32.mrf.mxu0
        %5831 = vdwg.mxu0
        %v5832 = vld [vmem:[#allocation4] sm:$0xff]
        %v5833 = vld [vmem:[#allocation4 + $0x8] sm:$0xff]
        %v5834 = vld [vmem:[#allocation4 + $0x10] sm:$0xff]
        %v5835 = vld [vmem:[#allocation4 + $0x18] sm:$0xff]
        %v5836 = vld [vmem:[#allocation4 + $0x20] sm:$0xff]
        %v5837 = vld [vmem:[#allocation4 + $0x28] sm:$0xff]
        %v5838 = vld [vmem:[#allocation4 + $0x30] sm:$0xff]
        %v5839 = vld [vmem:[#allocation4 + $0x38] sm:$0xff]
        %v5840 = vld [vmem:[#allocation4 + $0x40] sm:$0xff]
        %v5841 = vld [vmem:[#allocation4 + $0x48] sm:$0xff]
        %v5842 = vld [vmem:[#allocation4 + $0x50] sm:$0xff]
        %v5843 = vld [vmem:[#allocation4 + $0x58] sm:$0xff]
        %v5844 = vld [vmem:[#allocation4 + $0x60] sm:$0xff]
        %v5845 = vld [vmem:[#allocation4 + $0x68] sm:$0xff]
        %v5846 = vld [vmem:[#allocation4 + $0x70] sm:$0xff]
        %v5847 = vld [vmem:[#allocation4 + $0x78] sm:$0xff]
        %v5848 = vld [vmem:[#allocation4 + $0x80] sm:$0xff]
        %v5849 = vld [vmem:[#allocation4 + $0x88] sm:$0xff]
        %v5850 = vld [vmem:[#allocation4 + $0x90] sm:$0xff]
        %v5851 = vld [vmem:[#allocation4 + $0x98] sm:$0xff]
        %v5852 = vld [vmem:[#allocation4 + $0xa0] sm:$0xff]
        %v5853 = vld [vmem:[#allocation4 + $0xa8] sm:$0xff]
        %v5854 = vld [vmem:[#allocation4 + $0xb0] sm:$0xff]
        %v5855 = vld [vmem:[#allocation4 + $0xb8] sm:$0xff]
        %v5856 = vld [vmem:[#allocation4 + $0xc0] sm:$0xff]
        %v5857 = vld [vmem:[#allocation4 + $0xc8] sm:$0xff]
        %v5858 = vld [vmem:[#allocation4 + $0xd0] sm:$0xff]
        %v5859 = vld [vmem:[#allocation4 + $0xd8] sm:$0xff]
        %v5860 = vld [vmem:[#allocation4 + $0xe0] sm:$0xff]
        %v5861 = vld [vmem:[#allocation4 + $0xe8] sm:$0xff]
        %v5862 = vld [vmem:[#allocation4 + $0xf0] sm:$0xff]
        %v5863 = vld [vmem:[#allocation4 + $0xf8] sm:$0xff]
        %v5864 = vadd.f32 %v5832, %v5706
        %v5865 = vadd.f32 %v5833, %v5709
        %v5866 = vadd.f32 %v5834, %v5714
        %v5867 = vadd.f32 %v5835, %v5717
        %v5868 = vadd.f32 %v5836, %v5722
        %v5869 = vadd.f32 %v5837, %v5725
        %v5870 = vadd.f32 %v5838, %v5730
        %v5871 = vadd.f32 %v5839, %v5733
        %v5872 = vadd.f32 %v5840, %v5738
        %v5873 = vadd.f32 %v5841, %v5741
        %v5874 = vadd.f32 %v5842, %v5746
        %v5875 = vadd.f32 %v5843, %v5749
        %v5876 = vadd.f32 %v5844, %v5754
        %v5877 = vadd.f32 %v5845, %v5757
        %v5878 = vadd.f32 %v5846, %v5762
        %v5879 = vadd.f32 %v5847, %v5765
        %v5880 = vadd.f32 %v5848, %v5770
        %v5881 = vadd.f32 %v5849, %v5773
        %v5882 = vadd.f32 %v5850, %v5778
        %v5883 = vadd.f32 %v5851, %v5781
        %v5884 = vadd.f32 %v5852, %v5786
        %v5885 = vadd.f32 %v5853, %v5789
        %v5886 = vadd.f32 %v5854, %v5794
        %v5887 = vadd.f32 %v5855, %v5797
        %v5888 = vadd.f32 %v5856, %v5802
        %v5889 = vadd.f32 %v5857, %v5805
        %v5890 = vadd.f32 %v5858, %v5810
        %v5891 = vadd.f32 %v5859, %v5813
        %v5892 = vadd.f32 %v5860, %v5818
        %v5893 = vadd.f32 %v5861, %v5821
        %v5894 = vadd.f32 %v5862, %v5826
        %v5895 = vadd.f32 %v5863, %v5829
        %5896 = vst [vmem:[#allocation4] sm:$0xff] %v5864
        %5897 = vst [vmem:[#allocation4 + $0x8] sm:$0xff] %v5865
        %5898 = vst [vmem:[#allocation4 + $0x10] sm:$0xff] %v5866
        %5899 = vst [vmem:[#allocation4 + $0x18] sm:$0xff] %v5867
        %5900 = vst [vmem:[#allocation4 + $0x20] sm:$0xff] %v5868
        %5901 = vst [vmem:[#allocation4 + $0x28] sm:$0xff] %v5869
        %5902 = vst [vmem:[#allocation4 + $0x30] sm:$0xff] %v5870
        %5903 = vst [vmem:[#allocation4 + $0x38] sm:$0xff] %v5871
        %5904 = vst [vmem:[#allocation4 + $0x40] sm:$0xff] %v5872
        %5905 = vst [vmem:[#allocation4 + $0x48] sm:$0xff] %v5873
        %5906 = vst [vmem:[#allocation4 + $0x50] sm:$0xff] %v5874
        %5907 = vst [vmem:[#allocation4 + $0x58] sm:$0xff] %v5875
        %5908 = vst [vmem:[#allocation4 + $0x60] sm:$0xff] %v5876
        %5909 = vst [vmem:[#allocation4 + $0x68] sm:$0xff] %v5877
        %5910 = vst [vmem:[#allocation4 + $0x70] sm:$0xff] %v5878
        %5911 = vst [vmem:[#allocation4 + $0x78] sm:$0xff] %v5879
        %5912 = vst [vmem:[#allocation4 + $0x80] sm:$0xff] %v5880
        %5913 = vst [vmem:[#allocation4 + $0x88] sm:$0xff] %v5881
        %5914 = vst [vmem:[#allocation4 + $0x90] sm:$0xff] %v5882
        %5915 = vst [vmem:[#allocation4 + $0x98] sm:$0xff] %v5883
        %5916 = vst [vmem:[#allocation4 + $0xa0] sm:$0xff] %v5884
        %5917 = vst [vmem:[#allocation4 + $0xa8] sm:$0xff] %v5885
        %5918 = vst [vmem:[#allocation4 + $0xb0] sm:$0xff] %v5886
        %5919 = vst [vmem:[#allocation4 + $0xb8] sm:$0xff] %v5887
        %5920 = vst [vmem:[#allocation4 + $0xc0] sm:$0xff] %v5888
        %5921 = vst [vmem:[#allocation4 + $0xc8] sm:$0xff] %v5889
        %5922 = vst [vmem:[#allocation4 + $0xd0] sm:$0xff] %v5890
        %5923 = vst [vmem:[#allocation4 + $0xd8] sm:$0xff] %v5891
        %5924 = vst [vmem:[#allocation4 + $0xe0] sm:$0xff] %v5892
        %5925 = vst [vmem:[#allocation4 + $0xe8] sm:$0xff] %v5893
        %5926 = vst [vmem:[#allocation4 + $0xf0] sm:$0xff] %v5894
        %5927 = vst [vmem:[#allocation4 + $0xf8] sm:$0xff] %v5895
        %v5928 = vld [vmem:[#allocation4] sm:$0xff]
        %v5929 = vld [vmem:[#allocation4 + $0x8] sm:$0xff]
        %v5930 = vld [vmem:[#allocation4 + $0x10] sm:$0xff]
        %v5931 = vld [vmem:[#allocation4 + $0x18] sm:$0xff]
        %v5932 = vld [vmem:[#allocation4 + $0x20] sm:$0xff]
        %v5933 = vld [vmem:[#allocation4 + $0x28] sm:$0xff]
        %v5934 = vld [vmem:[#allocation4 + $0x30] sm:$0xff]
        %v5935 = vld [vmem:[#allocation4 + $0x38] sm:$0xff]
        %v5936 = vld [vmem:[#allocation4 + $0x40] sm:$0xff]
        %v5937 = vld [vmem:[#allocation4 + $0x48] sm:$0xff]
        %v5938 = vld [vmem:[#allocation4 + $0x50] sm:$0xff]
        %v5939 = vld [vmem:[#allocation4 + $0x58] sm:$0xff]
        %v5940 = vld [vmem:[#allocation4 + $0x60] sm:$0xff]
        %v5941 = vld [vmem:[#allocation4 + $0x68] sm:$0xff]
        %v5942 = vld [vmem:[#allocation4 + $0x70] sm:$0xff]
        %v5943 = vld [vmem:[#allocation4 + $0x78] sm:$0xff]
        %v5944 = vld [vmem:[#allocation4 + $0x80] sm:$0xff]
        %v5945 = vld [vmem:[#allocation4 + $0x88] sm:$0xff]
        %v5946 = vld [vmem:[#allocation4 + $0x90] sm:$0xff]
        %v5947 = vld [vmem:[#allocation4 + $0x98] sm:$0xff]
        %v5948 = vld [vmem:[#allocation4 + $0xa0] sm:$0xff]
        %v5949 = vld [vmem:[#allocation4 + $0xa8] sm:$0xff]
        %v5950 = vld [vmem:[#allocation4 + $0xb0] sm:$0xff]
        %v5951 = vld [vmem:[#allocation4 + $0xb8] sm:$0xff]
        %v5952 = vld [vmem:[#allocation4 + $0xc0] sm:$0xff]
        %v5953 = vld [vmem:[#allocation4 + $0xc8] sm:$0xff]
        %v5954 = vld [vmem:[#allocation4 + $0xd0] sm:$0xff]
        %v5955 = vld [vmem:[#allocation4 + $0xd8] sm:$0xff]
        %v5956 = vld [vmem:[#allocation4 + $0xe0] sm:$0xff]
        %v5957 = vld [vmem:[#allocation4 + $0xe8] sm:$0xff]
        %v5958 = vld [vmem:[#allocation4 + $0xf0] sm:$0xff]
        %v5959 = vld [vmem:[#allocation4 + $0xf8] sm:$0xff]
        %v5960 = vpack.c.bf16 %v5929, %v5928
        %v5961 = vpack.c.bf16 %v5931, %v5930
        %v5962 = vpack.c.bf16 %v5933, %v5932
        %v5963 = vpack.c.bf16 %v5935, %v5934
        %v5964 = vpack.c.bf16 %v5937, %v5936
        %v5965 = vpack.c.bf16 %v5939, %v5938
        %v5966 = vpack.c.bf16 %v5941, %v5940
        %v5967 = vpack.c.bf16 %v5943, %v5942
        %v5968 = vpack.c.bf16 %v5945, %v5944
        %v5969 = vpack.c.bf16 %v5947, %v5946
        %v5970 = vpack.c.bf16 %v5949, %v5948
        %v5971 = vpack.c.bf16 %v5951, %v5950
        %v5972 = vpack.c.bf16 %v5953, %v5952
        %v5973 = vpack.c.bf16 %v5955, %v5954
        %v5974 = vpack.c.bf16 %v5957, %v5956
        %v5975 = vpack.c.bf16 %v5959, %v5958
        %v5992 = vunpack.c.l.b16 %v5960
        %v5993 = vunpack.c.h.b16 %v5960
        %v5994 = vunpack.c.l.b16 %v5961
        %v5995 = vunpack.c.h.b16 %v5961
        %v5996 = vunpack.c.l.b16 %v5962
        %v5997 = vunpack.c.h.b16 %v5962
        %v5998 = vunpack.c.l.b16 %v5963
        %v5999 = vunpack.c.h.b16 %v5963
        %v6000 = vunpack.c.l.b16 %v5964
        %v6001 = vunpack.c.h.b16 %v5964
        %v6002 = vunpack.c.l.b16 %v5965
        %v6003 = vunpack.c.h.b16 %v5965
        %v6004 = vunpack.c.l.b16 %v5966
        %v6005 = vunpack.c.h.b16 %v5966
        %v6006 = vunpack.c.l.b16 %v5967
        %v6007 = vunpack.c.h.b16 %v5967
        %v6008 = vunpack.c.l.b16 %v5968
        %v6009 = vunpack.c.h.b16 %v5968
        %v6010 = vunpack.c.l.b16 %v5969
        %v6011 = vunpack.c.h.b16 %v5969
        %v6012 = vunpack.c.l.b16 %v5970
        %v6013 = vunpack.c.h.b16 %v5970
        %v6014 = vunpack.c.l.b16 %v5971
        %v6015 = vunpack.c.h.b16 %v5971
        %v6016 = vunpack.c.l.b16 %v5972
        %v6017 = vunpack.c.h.b16 %v5972
        %v6018 = vunpack.c.l.b16 %v5973
        %v6019 = vunpack.c.h.b16 %v5973
        %v6020 = vunpack.c.l.b16 %v5974
        %v6021 = vunpack.c.h.b16 %v5974
        %v6022 = vunpack.c.l.b16 %v5975
        %v6023 = vunpack.c.h.b16 %v5975
        %v6024 = vpack.c.b16 %v5992, %v5992
        %v6025 = vpack.c.b16 %v5993, %v5993
        %v6026 = vpack.c.b16 %v5994, %v5994
        %v6027 = vpack.c.b16 %v5995, %v5995
        %v6028 = vpack.c.b16 %v5996, %v5996
        %v6029 = vpack.c.b16 %v5997, %v5997
        %v6030 = vpack.c.b16 %v5998, %v5998
        %v6031 = vpack.c.b16 %v5999, %v5999
        %v6032 = vpack.c.b16 %v6000, %v6000
        %v6033 = vpack.c.b16 %v6001, %v6001
        %v6034 = vpack.c.b16 %v6002, %v6002
        %v6035 = vpack.c.b16 %v6003, %v6003
        %v6036 = vpack.c.b16 %v6004, %v6004
        %v6037 = vpack.c.b16 %v6005, %v6005
        %v6038 = vpack.c.b16 %v6006, %v6006
        %v6039 = vpack.c.b16 %v6007, %v6007
        %v6040 = vpack.c.b16 %v6008, %v6008
        %v6041 = vpack.c.b16 %v6009, %v6009
        %v6042 = vpack.c.b16 %v6010, %v6010
        %v6043 = vpack.c.b16 %v6011, %v6011
        %v6044 = vpack.c.b16 %v6012, %v6012
        %v6045 = vpack.c.b16 %v6013, %v6013
        %v6046 = vpack.c.b16 %v6014, %v6014
        %v6047 = vpack.c.b16 %v6015, %v6015
        %v6048 = vpack.c.b16 %v6016, %v6016
        %v6049 = vpack.c.b16 %v6017, %v6017
        %v6050 = vpack.c.b16 %v6018, %v6018
        %v6051 = vpack.c.b16 %v6019, %v6019
        %v6052 = vpack.c.b16 %v6020, %v6020
        %v6053 = vpack.c.b16 %v6021, %v6021
        %v6054 = vpack.c.b16 %v6022, %v6022
        %v6055 = vpack.c.b16 %v6023, %v6023
        %6088 = vst [vmem:[%s313] sm:$0xf] %v6024
        %6089 = vst [vmem:[%s313 + $0x4] sm:$0xf] %v6025
        %6090 = vst [vmem:[%s313 + $0x8] sm:$0xf] %v6026
        %6091 = vst [vmem:[%s313 + $0xc] sm:$0xf] %v6027
        %6092 = vst [vmem:[%s313 + $0x10] sm:$0xf] %v6028
        %6093 = vst [vmem:[%s313 + $0x14] sm:$0xf] %v6029
        %6094 = vst [vmem:[%s313 + $0x18] sm:$0xf] %v6030
        %6095 = vst [vmem:[%s313 + $0x1c] sm:$0xf] %v6031
        %6096 = vst [vmem:[%s313 + $0x20] sm:$0xf] %v6032
        %6097 = vst [vmem:[%s313 + $0x24] sm:$0xf] %v6033
        %6098 = vst [vmem:[%s313 + $0x28] sm:$0xf] %v6034
        %6099 = vst [vmem:[%s313 + $0x2c] sm:$0xf] %v6035
        %6100 = vst [vmem:[%s313 + $0x30] sm:$0xf] %v6036
        %6101 = vst [vmem:[%s313 + $0x34] sm:$0xf] %v6037
        %6102 = vst [vmem:[%s313 + $0x38] sm:$0xf] %v6038
        %6103 = vst [vmem:[%s313 + $0x3c] sm:$0xf] %v6039
        %6104 = vst [vmem:[%s313 + $0x40] sm:$0xf] %v6040
        %6105 = vst [vmem:[%s313 + $0x44] sm:$0xf] %v6041
        %6106 = vst [vmem:[%s313 + $0x48] sm:$0xf] %v6042
        %6107 = vst [vmem:[%s313 + $0x4c] sm:$0xf] %v6043
        %6108 = vst [vmem:[%s313 + $0x50] sm:$0xf] %v6044
        %6109 = vst [vmem:[%s313 + $0x54] sm:$0xf] %v6045
        %6110 = vst [vmem:[%s313 + $0x58] sm:$0xf] %v6046
        %6111 = vst [vmem:[%s313 + $0x5c] sm:$0xf] %v6047
        %6112 = vst [vmem:[%s313 + $0x60] sm:$0xf] %v6048
        %6113 = vst [vmem:[%s313 + $0x64] sm:$0xf] %v6049
        %6114 = vst [vmem:[%s313 + $0x68] sm:$0xf] %v6050
        %6115 = vst [vmem:[%s313 + $0x6c] sm:$0xf] %v6051
        %6116 = vst [vmem:[%s313 + $0x70] sm:$0xf] %v6052
        %6117 = vst [vmem:[%s313 + $0x74] sm:$0xf] %v6053
        %6118 = vst [vmem:[%s313 + $0x78] sm:$0xf] %v6054
        %6119 = vst [vmem:[%s313 + $0x7c] sm:$0xf] %v6055
        %s6120 = sand.u32 %s196, 1
        %s6121 = scalar_lea.sflag [#allocation6], %s6120
        %s6122 = sand.u32 %s196, 1
        %s6123 = smul.addr %s6122, 128
        %s6124 = scalar_lea.vmem [#allocation5], %s6123
        // Predicated region
        $region49: #{pvt_attention.3} parent=43 // pred_check
          %p6125 = pneg %p206
        $region50: #{pvt_attention.3} parent=43 // pred_check_branch
          %6127 = sbr.rel (%p6125) target = $region52
        $region51: #{pvt_attention.3} parent=43 // pred_region
          %s6128 = sadd.s32 %s26, %s27
          %s6129 = smul.u32 32, %s6128
          %s6131 = ssub.s32 2048, 2048
          %6132 = vsyncadd %s6121, %s6131
          %s6133 = smul.addr %s25, 32
          %s6134 = sadd.s32 %s6129, %s6133
          %s6135 = smul.addr %s6134, 64
          %s6136 = scalar_lea.hbm %s6, %s6135
          %s6137 = sshll.u32 %s6124, 4
          %s6138 = int_to_ptr.vmem [resolvable:$true] %s6137
          %6143 = dma.vmem_to_hbm [thread:$0]  %s6138, 2048, %s6136, %s6121, 64, 64, 4
        $region52: #{pvt_attention.3} parent=43 // pred_fallthru
          _
      $region44: #{pvt_attention.3} parent=5 // pred_fallthru
        _
      %p6144 = scmp.le.s32.totalorder 2, %s15
      // Predicated region
      $region53: #{pvt_attention.3} parent=5 // pred_check
        %p6145 = pneg %p6144
      $region54: #{pvt_attention.3} parent=5 // pred_check_branch
        %6147 = sbr.rel (%p6145) target = $region56
      $region55: #{pvt_attention.3} parent=5 // pred_region
        %s6148 = ssub.s32 %s15, 2
        // Predicated region
        $region57: #{pvt_attention.3} parent=55 // pred_check
          %p6149 = pneg %p212
        $region58: #{pvt_attention.3} parent=55 // pred_check_branch
          %6151 = sbr.rel (%p6149) target = $region60
        $region59: #{pvt_attention.3} parent=55 // pred_region
          %s6152 = sand.u32 %s197, 1
          %s6153 = scalar_lea.sflag [#allocation6], %s6152
          %s6154 = sand.u32 %s197, 1
          %s6155 = smul.addr %s6154, 128
          %s6156 = scalar_lea.vmem [#allocation5], %s6155
          %6157 = dma.done %s6153, 2048
        $region60: #{pvt_attention.3} parent=55 // pred_fallthru
          _
      $region56: #{pvt_attention.3} parent=5 // pred_fallthru
        _
    $region6: #{pvt_attention.3} parent=1 // loop_footer
      %s19 = sadd.s32 1, %s15
    $region7: #{pvt_attention.3} parent=1 // loop_footer_branch
      %14 = sbr.rel target = $region3
    $region8: #{pvt_attention.3} parent=1 // loop_exit
      _
    %6158 = vsyncpa [#allocation6], 1
    %s6159 = scalar_lea.sflag [#allocation6], 1
    %6160 = vsyncpa %s6159, 1

</llo_original>
